<compile_context>
chip_gen: v7x
topology: tpu7x:2x2x1
jax: 0.10.0
libtpu: 0.0.40
codegen_flags: <defaults>
</compile_context>

<pallas_src>
import functools
import math

import jax
import jax.numpy as jnp
from jax import lax
from jax.experimental import pallas as pl
from jax.experimental.pallas import tpu as pltpu

NEG_INF = -10000.0
LN_EPS = 1e-5


# ------------------------------ fused kernel ------------------------------- #

def _perceiver_kernel(enc_ref, encmask_ref, init_h_ref,
                      wqkv_ref, bqkv_ref, wo_ref, bo_ref,
                      lng_ref, lnb_ref,
                      w1_ref, b1_ref, w2_ref, b2_ref,
                      out_ref, *,
                      num_heads, head_dim, num_layers, hidden_blocks):
    """Full Perceiver forward for one batch element; all weights resident."""
    K, H = init_h_ref.shape

    enc = enc_ref[0].astype(jnp.float32)                        # (L_enc, H)

    # ---- additive attention masks built in-kernel (no HBM mask tensors) ----
    keep = encmask_ref[0].astype(jnp.float32)                   # (1, L_enc)
    cross_add = jnp.where(keep > 0.0, 0.0, NEG_INF)             # broadcast over queries
    row = lax.broadcasted_iota(jnp.int32, (K, K), 0)
    col = lax.broadcasted_iota(jnp.int32, (K, K), 1)
    causal_add = jnp.where(col <= row, 0.0, NEG_INF)            # hidden_mask is all ones

    # --------------------------- building blocks ---------------------------
    def project_qkv(x, ai):
        # One fused (Lq,H)@(H,3H) matmul; q/k scale already folded into weights.
        qkv = jnp.dot(x, wqkv_ref[ai], preferred_element_type=jnp.float32) + bqkv_ref[ai]
        return qkv[:, :H], qkv[:, H:2 * H], qkv[:, 2 * H:]

    def mha(q, k, v, mask_add, ai):
        ctx_parts = []
        for h in range(num_heads):                              # small, stays unrolled
            sl = slice(h * head_dim, (h + 1) * head_dim)
            # NT matmul: contract last dims of both -> no explicit transpose.
            s = lax.dot_general(q[:, sl], k[:, sl], (((1,), (1,)), ((), ())),
                                preferred_element_type=jnp.float32)
            if mask_add is not None:
                s = s + mask_add
            m = jnp.max(s, axis=-1, keepdims=True)
            e = jnp.exp(s - m)
            p = e * pl.reciprocal(jnp.sum(e, axis=-1, keepdims=True), approx=True)
            ctx_parts.append(jnp.dot(p, v[:, sl], preferred_element_type=jnp.float32))
        ctx = jnp.concatenate(ctx_parts, axis=-1)               # (Lq, H)
        # Single wide output projection for all heads.
        return jnp.dot(ctx, wo_ref[ai], preferred_element_type=jnp.float32) + bo_ref[ai]

    def add_ln(x, res, li):
        y = x + res
        # One pass: E[y] and E[y^2] (biased variance, eps=1e-5, post-LN).
        mean = jnp.mean(y, axis=-1, keepdims=True)
        msq = jnp.mean(y * y, axis=-1, keepdims=True)
        var = msq - mean * mean
        yn = (y - mean) * lax.rsqrt(var + LN_EPS)
        return yn * lng_ref[li] + lnb_ref[li]

    def ffn(x, fi):
        h = jnp.dot(x, w1_ref[fi], preferred_element_type=jnp.float32) + b1_ref[fi]
        h = jnp.maximum(h, 0.0)                                 # hidden_act = 'relu'
        return jnp.dot(h, w2_ref[fi], preferred_element_type=jnp.float32) + b2_ref[fi]

    def cross_q(x, ai):                                         # ai is static
        w = wqkv_ref[ai]
        b = bqkv_ref[ai]
        return jnp.dot(x, w[:, :H], preferred_element_type=jnp.float32) + b[:, :H]

    def cross_kv(ai):                                           # ai is static
        w = wqkv_ref[ai]
        b = bqkv_ref[ai]
        kv = jnp.dot(enc, w[:, H:], preferred_element_type=jnp.float32) + b[:, H:]
        return kv[:, :H], kv[:, H:]

    # post-LN (pre_ln=False); no final LayerNorm since pre_ln=False
    def decoder_layer(x, a_self, a_cross, l_base, f_idx, kc, vc):
        q, k, v = project_qkv(x, a_self)
        x = add_ln(mha(q, k, v, causal_add, a_self), x, l_base)         # causal self-attn
        x = add_ln(mha(cross_q(x, a_cross), kc, vc, cross_add, a_cross),
                   x, l_base + 1)                                        # cross-attn (hoisted K/V)
        return add_ln(ffn(x, f_idx), x, l_base + 2)

    def encoder_layer(x, ai, l_base, f_idx):
        q, k, v = project_qkv(x, ai)
        x = add_ln(mha(q, k, v, None, ai), x, l_base)                    # hidden_mask all ones
        return add_ln(ffn(x, f_idx), x, l_base + 1)

    def self_att_stack(x):
        # Rolled loop over layers; weights are stacked so dynamic indexing works.
        return lax.fori_loop(
            0, num_layers,
            lambda l, xc: encoder_layer(xc, 4 + l, 6 + 2 * l, 2 + l), x)

    # Module index layout (must match pack_perceiver_params):
    #   attn: 0/1 init_cross (self, cross); 2/3 cross (self, cross); 4+l enc layer l
    #   ln:   0..2 init_cross; 3..5 cross; 6+2l,7+2l enc layer l
    #   ffn:  0 init_cross; 1 cross; 2+l enc layer l

    # Hoisted encoder-side K/V for both cross-attention modules (enc & weights fixed).
    kc_init, vc_init = cross_kv(1)
    kc_shared, vc_shared = cross_kv(3)

    hidden = init_h_ref[...].astype(jnp.float32)                # (K, H)
    hidden = decoder_layer(hidden, 0, 1, 0, 0, kc_init, vc_init)  # init_cross_att

    def block_body(_, xc):
        xc = self_att_stack(xc)
        return decoder_layer(xc, 2, 3, 3, 1, kc_shared, vc_shared)       # shared cross_att

    hidden = lax.fori_loop(0, hidden_blocks, block_body, hidden)
    hidden = self_att_stack(hidden)

    # NOTE: at H=32 this is a masked (partial-lane) store; a lane-dense (1, K*H)
    # output would need an in-kernel (K,H)->(K*H,) reshape, skipped here for
    # lowering robustness at toy sizes.
    out_ref[0] = hidden.astype(out_ref.dtype)


# ------------------------------- parameters -------------------------------- #

def _linear(key, fan_in, fan_out):
    kw, kb = jax.random.split(key)
    bound = 1.0 / math.sqrt(fan_in)
    w = jax.random.uniform(kw, (fan_in, fan_out), jnp.float32, -bound, bound)
    b = jax.random.uniform(kb, (1, fan_out), jnp.float32, -bound, bound)
    return w, b


def _attn_params(key, H):
    ks = jax.random.split(key, 4)
    wq, bq = _linear(ks[0], H, H)
    wk, bk = _linear(ks[1], H, H)
    wv, bv = _linear(ks[2], H, H)
    wo, bo = _linear(ks[3], H, H)
    return dict(wq=wq, bq=bq, wk=wk, bk=bk, wv=wv, bv=bv, wo=wo, bo=bo)


def _ffn_params(key, H, inner):
    k1, k2 = jax.random.split(key)
    w1, b1 = _linear(k1, H, inner)
    w2, b2 = _linear(k2, inner, H)
    return dict(w1=w1, b1=b1, w2=w2, b2=b2)


def _ln_params(H):
    return dict(g=jnp.ones((1, H), jnp.float32), b=jnp.zeros((1, H), jnp.float32))


def _decoder_layer_params(key, H, inner):
    k1, k2, k3 = jax.random.split(key, 3)
    return dict(self_attn=_attn_params(k1, H), ln1=_ln_params(H),
                cross_attn=_attn_params(k2, H), ln2=_ln_params(H),
                ffn=_ffn_params(k3, H, inner), ln3=_ln_params(H))


def _encoder_layer_params(key, H, inner):
    k1, k2 = jax.random.split(key, 2)
    return dict(attn=_attn_params(k1, H), ln1=_ln_params(H),
                ffn=_ffn_params(k2, H, inner), ln2=_ln_params(H))


def init_perceiver_params(key, *, num_layers, hidden_size, inner_size, hidden_steps):
    k0, k1, k2, k3 = jax.random.split(key, 4)
    # torch.nn.init.xavier_normal_ on (hidden_steps, hidden_size)
    std = math.sqrt(2.0 / (hidden_steps + hidden_size))
    init_hidden = std * jax.random.normal(k0, (hidden_steps, hidden_size), jnp.float32)
    self_att = [_encoder_layer_params(k, hidden_size, inner_size)
                for k in jax.random.split(k3, num_layers)]
    return dict(init_hidden=init_hidden,
                init_cross_att=_decoder_layer_params(k1, hidden_size, inner_size),
                cross_att=_decoder_layer_params(k2, hidden_size, inner_size),
                self_att=self_att)


def pack_perceiver_params(params, *, num_heads):
    """Stack per-module weights into a few resident tensors.

    wq|wk|wv are fused into one (H, 3H) matrix per attention module (same for
    biases), and the NeMo q/k scale 1/sqrt(sqrt(head_dim)) is folded into the
    Q and K parts (one-time transform, zero in-kernel cost).
    """
    H = params["init_hidden"].shape[1]
    head_dim = H // num_heads
    scale = 1.0 / math.sqrt(math.sqrt(head_dim))

    attn_mods = [params["init_cross_att"]["self_attn"], params["init_cross_att"]["cross_attn"],
                 params["cross_att"]["self_attn"], params["cross_att"]["cross_attn"]]
    attn_mods += [lp["attn"] for lp in params["self_att"]]

    ln_mods = [params["init_cross_att"]["ln1"], params["init_cross_att"]["ln2"],
               params["init_cross_att"]["ln3"],
               params["cross_att"]["ln1"], params["cross_att"]["ln2"],
               params["cross_att"]["ln3"]]
    for lp in params["self_att"]:
        ln_mods += [lp["ln1"], lp["ln2"]]

    ffn_mods = [params["init_cross_att"]["ffn"], params["cross_att"]["ffn"]]
    ffn_mods += [lp["ffn"] for lp in params["self_att"]]

    def fused_w(a):
        return jnp.concatenate([a["wq"] * scale, a["wk"] * scale, a["wv"]], axis=-1)

    def fused_b(a):
        return jnp.concatenate([a["bq"] * scale, a["bk"] * scale, a["bv"]], axis=-1)

    # TODO(synk): optionally store matmul weights in bfloat16 (bf16-native MXU on
    # v6e/v7x) while keeping LN/softmax/residual math in f32; kept f32 here.
    return dict(
        init_hidden=params["init_hidden"],
        wqkv=jnp.stack([fused_w(a) for a in attn_mods]),     # (A, H, 3H)
        bqkv=jnp.stack([fused_b(a) for a in attn_mods]),     # (A, 1, 3H)
        wo=jnp.stack([a["wo"] for a in attn_mods]),          # (A, H, H)
        bo=jnp.stack([a["bo"] for a in attn_mods]),          # (A, 1, H)
        ln_g=jnp.stack([l["g"] for l in ln_mods]),           # (NL, 1, H)
        ln_b=jnp.stack([l["b"] for l in ln_mods]),
        w1=jnp.stack([f["w1"] for f in ffn_mods]),           # (NF, H, inner)
        b1=jnp.stack([f["b1"] for f in ffn_mods]),
        w2=jnp.stack([f["w2"] for f in ffn_mods]),           # (NF, inner, H)
        b2=jnp.stack([f["b2"] for f in ffn_mods]),
    )


# ------------------------------ Perceiver fwd ------------------------------ #

_WEIGHT_ORDER = ("init_hidden", "wqkv", "bqkv", "wo", "bo",
                 "ln_g", "ln_b", "w1", "b1", "w2", "b2")


def perceiver_forward(encoder_states, encoder_mask, packed, *,
                      num_heads, num_layers, hidden_blocks):
    B, L_enc, H = encoder_states.shape
    K = packed["init_hidden"].shape[0]
    head_dim = H // num_heads

    kernel = functools.partial(
        _perceiver_kernel, num_heads=num_heads, head_dim=head_dim,
        num_layers=num_layers, hidden_blocks=hidden_blocks)

    def per_batch(shape):
        n = len(shape)
        return pl.BlockSpec(shape, lambda b: (b,) + (0,) * (n - 1))

    def resident(arr):
        n = arr.ndim
        # Constant block index across the whole grid -> one buffer is enough
        # (halves resident-weight VMEM vs. default double-buffering).
        return pl.BlockSpec(arr.shape, lambda b: (0,) * n,
                            pipeline_mode=pl.Buffered(1))

    weights = [packed[k] for k in _WEIGHT_ORDER]

    # All layer weights stay resident in VMEM for the whole forward. Fine for
    # small/medium configs; production sizes (H>=512, inner>=2048, many layers)
    # outgrow VMEM (64 MiB on v7x, 128 MiB on v5e/v6e).
    # TODO(synk): when this guard trips, stream per-layer weights via a layer
    # grid axis / pltpu.emit_pipeline over the stacked leading weight axis.
    resident_bytes = sum(int(w.size) * w.dtype.itemsize for w in weights)
    if resident_bytes > 24 * 1024 * 1024:
        raise NotImplementedError(
            "Resident-weight VMEM budget exceeded; switch to streamed layer weights.")

    enc_mask3 = encoder_mask.reshape(B, 1, L_enc)   # layout-only reshape

    hidden_states = pl.pallas_call(
        kernel,
        out_shape=jax.ShapeDtypeStruct((B, K, H), encoder_states.dtype),
        grid=(B,),
        in_specs=[per_batch((1, L_enc, H)), per_batch((1, 1, L_enc))]
                 + [resident(w) for w in weights],
        out_specs=per_batch((1, K, H)),
        compiler_params=pltpu.CompilerParams(
            dimension_semantics=("parallel",),          # batch axis -> 2 TCs on v7x
            vmem_limit_bytes=32 * 1024 * 1024),
    )(encoder_states, enc_mask3, *weights)

    hidden_mask = jnp.ones((B, K), dtype=encoder_mask.dtype)
    return hidden_states, hidden_mask


# ---------------------------------- main ------------------------------------ #

if __name__ == "__main__":
    # Module config (small, consistent with PerceiverEncoder.__init__)
    num_layers = 2
    hidden_size = 32
    inner_size = 64
    num_attention_heads = 4
    hidden_steps = 8
    hidden_blocks = 2

    B, L_enc = 2, 16

    key = jax.random.PRNGKey(0)
    k_params, k_x = jax.random.split(key)

    params = init_perceiver_params(
        k_params, num_layers=num_layers, hidden_size=hidden_size,
        inner_size=inner_size, hidden_steps=hidden_steps)
    packed = pack_perceiver_params(params, num_heads=num_attention_heads)

    encoder_states = jax.random.normal(k_x, (B, L_enc, hidden_size), jnp.float32)
    lengths = jnp.array([L_enc, L_enc - 4], dtype=jnp.int32)
    encoder_mask = (jnp.arange(L_enc)[None, :] < lengths[:, None]).astype(jnp.int32)

    fwd = jax.jit(functools.partial(
        perceiver_forward, packed=packed, num_heads=num_attention_heads,
        num_layers=num_layers, hidden_blocks=hidden_blocks))

    hidden_states, hidden_mask = fwd(encoder_states, encoder_mask)
    jax.block_until_ready(hidden_states)
    jax.block_until_ready(hidden_mask)

    assert hidden_states.shape == (B, hidden_steps, hidden_size)
    assert hidden_mask.shape == (B, hidden_steps)
    assert hidden_mask.dtype == encoder_mask.dtype
    assert bool(jnp.all(jnp.isfinite(hidden_states)))
    assert bool(jnp.any(jnp.abs(hidden_states) > 0))

    # TODO(synk): dropout layers (attn_score/attn_layer/ffn) are identity at p=0.0 (eval); not implemented.
    print("KERNEL_OK")
</pallas_src>

<mosaic_0001>
module attributes {stable_mosaic.version = 11 : i64} {
  func.func @_perceiver_kernel(%arg0: i32, %arg1: memref<1x16x32xf32, #tpu.memory_space<vmem>>, %arg2: memref<1x1x16xi32, #tpu.memory_space<vmem>>, %arg3: memref<8x32xf32, #tpu.memory_space<vmem>>, %arg4: memref<6x32x96xf32, #tpu.memory_space<vmem>>, %arg5: memref<6x1x96xf32, #tpu.memory_space<vmem>>, %arg6: memref<6x32x32xf32, #tpu.memory_space<vmem>>, %arg7: memref<6x1x32xf32, #tpu.memory_space<vmem>>, %arg8: memref<10x1x32xf32, #tpu.memory_space<vmem>>, %arg9: memref<10x1x32xf32, #tpu.memory_space<vmem>>, %arg10: memref<4x32x64xf32, #tpu.memory_space<vmem>>, %arg11: memref<4x1x64xf32, #tpu.memory_space<vmem>>, %arg12: memref<4x64x32xf32, #tpu.memory_space<vmem>>, %arg13: memref<4x1x32xf32, #tpu.memory_space<vmem>>, %arg14: memref<1x8x32xf32, #tpu.memory_space<vmem>>) attributes {dimension_semantics = [#tpu.dimension_semantics<parallel>], iteration_bounds = array<i64: 2>, scalar_prefetch = 0 : i64, scratch_operands = 0 : i64, tpu.core_type = #tpu.core_type<tc>, window_params = [{transform_indices = @transform_0, window_bounds = array<i64: 1, 16, 32>}, {transform_indices = @transform_1, window_bounds = array<i64: 1, 1, 16>}, {pipeline_mode = #tpu.pipeline_mode<synchronous>, transform_indices = @transform_2, window_bounds = array<i64: 8, 32>}, {pipeline_mode = #tpu.pipeline_mode<synchronous>, transform_indices = @transform_3, window_bounds = array<i64: 6, 32, 96>}, {pipeline_mode = #tpu.pipeline_mode<synchronous>, transform_indices = @transform_4, window_bounds = array<i64: 6, 1, 96>}, {pipeline_mode = #tpu.pipeline_mode<synchronous>, transform_indices = @transform_5, window_bounds = array<i64: 6, 32, 32>}, {pipeline_mode = #tpu.pipeline_mode<synchronous>, transform_indices = @transform_6, window_bounds = array<i64: 6, 1, 32>}, {pipeline_mode = #tpu.pipeline_mode<synchronous>, transform_indices = @transform_7, window_bounds = array<i64: 10, 1, 32>}, {pipeline_mode = #tpu.pipeline_mode<synchronous>, transform_indices = @transform_8, window_bounds = array<i64: 10, 1, 32>}, {pipeline_mode = #tpu.pipeline_mode<synchronous>, transform_indices = @transform_9, window_bounds = array<i64: 4, 32, 64>}, {pipeline_mode = #tpu.pipeline_mode<synchronous>, transform_indices = @transform_10, window_bounds = array<i64: 4, 1, 64>}, {pipeline_mode = #tpu.pipeline_mode<synchronous>, transform_indices = @transform_11, window_bounds = array<i64: 4, 64, 32>}, {pipeline_mode = #tpu.pipeline_mode<synchronous>, transform_indices = @transform_12, window_bounds = array<i64: 4, 1, 32>}, {transform_indices = @transform_13, window_bounds = array<i64: 1, 8, 32>}]} {
    %c0 = arith.constant 0 : index
    %c0_0 = arith.constant 0 : index
    %c0_1 = arith.constant 0 : index
    %0 = vector.load %arg1[%c0, %c0_0, %c0_1] : memref<1x16x32xf32, #tpu.memory_space<vmem>>, vector<1x16x32xf32>
    %1 = vector.shape_cast %0 : vector<1x16x32xf32> to vector<16x32xf32>
    %c0_2 = arith.constant 0 : index
    %c0_3 = arith.constant 0 : index
    %c0_4 = arith.constant 0 : index
    %2 = vector.load %arg2[%c0_2, %c0_3, %c0_4] : memref<1x1x16xi32, #tpu.memory_space<vmem>>, vector<1x1x16xi32>
    %3 = vector.shape_cast %2 : vector<1x1x16xi32> to vector<1x16xi32>
    %4 = arith.sitofp %3 : vector<1x16xi32> to vector<1x16xf32>
    %cst = arith.constant 0.000000e+00 : f32
    %5 = vector.broadcast %cst : f32 to vector<1x16xf32>
    %6 = arith.cmpf ogt, %4, %5 : vector<1x16xf32>
    %cst_5 = arith.constant 0.000000e+00 : f32
    %cst_6 = arith.constant -1.000000e+04 : f32
    %7 = vector.broadcast %cst_5 : f32 to vector<1x16xf32>
    %8 = vector.broadcast %cst_6 : f32 to vector<1x16xf32>
    %9 = arith.select %6, %7, %8 : vector<1x16xi1>, vector<1x16xf32>
    %10 = tpu.iota {dimensions = array<i32: 0>} : vector<8x8xi32>
    %11 = tpu.iota {dimensions = array<i32: 1>} : vector<8x8xi32>
    %12 = arith.cmpi sle, %11, %10 : vector<8x8xi32>
    %cst_7 = arith.constant 0.000000e+00 : f32
    %cst_8 = arith.constant -1.000000e+04 : f32
    %13 = vector.broadcast %cst_7 : f32 to vector<8x8xf32>
    %14 = vector.broadcast %cst_8 : f32 to vector<8x8xf32>
    %15 = arith.select %12, %13, %14 : vector<8x8xi1>, vector<8x8xf32>
    %c1 = arith.constant 1 : index
    %c0_9 = arith.constant 0 : index
    %c0_10 = arith.constant 0 : index
    %16 = vector.load %arg4[%c1, %c0_9, %c0_10] : memref<6x32x96xf32, #tpu.memory_space<vmem>>, vector<1x32x96xf32>
    %17 = vector.shape_cast %16 : vector<1x32x96xf32> to vector<32x96xf32>
    %c1_11 = arith.constant 1 : index
    %c0_12 = arith.constant 0 : index
    %c0_13 = arith.constant 0 : index
    %18 = vector.load %arg5[%c1_11, %c0_12, %c0_13] : memref<6x1x96xf32, #tpu.memory_space<vmem>>, vector<1x1x96xf32>
    %19 = vector.shape_cast %18 : vector<1x1x96xf32> to vector<1x96xf32>
    %20 = vector.extract_strided_slice %17 {offsets = [0, 32], sizes = [32, 64], strides = [1, 1]} : vector<32x96xf32> to vector<32x64xf32>
    %cst_14 = arith.constant dense<0.000000e+00> : vector<16x64xf32>
    %21 = tpu.matmul %1, %20, %cst_14 {dimension_numbers = #tpu.dot_dimension_numbers<[1], [0], [0], [1], [0, 0, 1, 1], [], []>} : vector<16x32xf32>, vector<32x64xf32>, vector<16x64xf32> -> vector<16x64xf32>
    %22 = vector.extract_strided_slice %19 {offsets = [0, 32], sizes = [1, 64], strides = [1, 1]} : vector<1x96xf32> to vector<1x64xf32>
    %23 = vector.broadcast %22 : vector<1x64xf32> to vector<16x64xf32>
    %24 = arith.addf %21, %23 : vector<16x64xf32>
    %25 = vector.extract_strided_slice %24 {offsets = [0, 0], sizes = [16, 32], strides = [1, 1]} : vector<16x64xf32> to vector<16x32xf32>
    %26 = vector.extract_strided_slice %24 {offsets = [0, 32], sizes = [16, 32], strides = [1, 1]} : vector<16x64xf32> to vector<16x32xf32>
    %c3 = arith.constant 3 : index
    %c0_15 = arith.constant 0 : index
    %c0_16 = arith.constant 0 : index
    %27 = vector.load %arg4[%c3, %c0_15, %c0_16] : memref<6x32x96xf32, #tpu.memory_space<vmem>>, vector<1x32x96xf32>
    %28 = vector.shape_cast %27 : vector<1x32x96xf32> to vector<32x96xf32>
    %c3_17 = arith.constant 3 : index
    %c0_18 = arith.constant 0 : index
    %c0_19 = arith.constant 0 : index
    %29 = vector.load %arg5[%c3_17, %c0_18, %c0_19] : memref<6x1x96xf32, #tpu.memory_space<vmem>>, vector<1x1x96xf32>
    %30 = vector.shape_cast %29 : vector<1x1x96xf32> to vector<1x96xf32>
    %31 = vector.extract_strided_slice %28 {offsets = [0, 32], sizes = [32, 64], strides = [1, 1]} : vector<32x96xf32> to vector<32x64xf32>
    %cst_20 = arith.constant dense<0.000000e+00> : vector<16x64xf32>
    %32 = tpu.matmul %1, %31, %cst_20 {dimension_numbers = #tpu.dot_dimension_numbers<[1], [0], [0], [1], [0, 0, 1, 1], [], []>} : vector<16x32xf32>, vector<32x64xf32>, vector<16x64xf32> -> vector<16x64xf32>
    %33 = vector.extract_strided_slice %30 {offsets = [0, 32], sizes = [1, 64], strides = [1, 1]} : vector<1x96xf32> to vector<1x64xf32>
    %34 = vector.broadcast %33 : vector<1x64xf32> to vector<16x64xf32>
    %35 = arith.addf %32, %34 : vector<16x64xf32>
    %36 = vector.extract_strided_slice %35 {offsets = [0, 0], sizes = [16, 32], strides = [1, 1]} : vector<16x64xf32> to vector<16x32xf32>
    %37 = vector.extract_strided_slice %35 {offsets = [0, 32], sizes = [16, 32], strides = [1, 1]} : vector<16x64xf32> to vector<16x32xf32>
    %c0_21 = arith.constant 0 : index
    %c0_22 = arith.constant 0 : index
    %38 = vector.load %arg3[%c0_21, %c0_22] : memref<8x32xf32, #tpu.memory_space<vmem>>, vector<8x32xf32>
    %c0_23 = arith.constant 0 : index
    %c0_24 = arith.constant 0 : index
    %c0_25 = arith.constant 0 : index
    %39 = vector.load %arg4[%c0_23, %c0_24, %c0_25] : memref<6x32x96xf32, #tpu.memory_space<vmem>>, vector<1x32x96xf32>
    %40 = vector.shape_cast %39 : vector<1x32x96xf32> to vector<32x96xf32>
    %cst_26 = arith.constant dense<0.000000e+00> : vector<8x96xf32>
    %41 = tpu.matmul %38, %40, %cst_26 {dimension_numbers = #tpu.dot_dimension_numbers<[1], [0], [0], [1], [0, 0, 1, 1], [], []>} : vector<8x32xf32>, vector<32x96xf32>, vector<8x96xf32> -> vector<8x96xf32>
    %c0_27 = arith.constant 0 : index
    %c0_28 = arith.constant 0 : index
    %c0_29 = arith.constant 0 : index
    %42 = vector.load %arg5[%c0_27, %c0_28, %c0_29] : memref<6x1x96xf32, #tpu.memory_space<vmem>>, vector<1x1x96xf32>
    %43 = vector.shape_cast %42 : vector<1x1x96xf32> to vector<1x96xf32>
    %44 = vector.broadcast %43 : vector<1x96xf32> to vector<8x96xf32>
    %45 = arith.addf %41, %44 : vector<8x96xf32>
    %46 = vector.extract_strided_slice %45 {offsets = [0, 0], sizes = [8, 32], strides = [1, 1]} : vector<8x96xf32> to vector<8x32xf32>
    %47 = vector.extract_strided_slice %45 {offsets = [0, 32], sizes = [8, 32], strides = [1, 1]} : vector<8x96xf32> to vector<8x32xf32>
    %48 = vector.extract_strided_slice %45 {offsets = [0, 64], sizes = [8, 32], strides = [1, 1]} : vector<8x96xf32> to vector<8x32xf32>
    %49 = vector.extract_strided_slice %46 {offsets = [0, 0], sizes = [8, 8], strides = [1, 1]} : vector<8x32xf32> to vector<8x8xf32>
    %50 = vector.extract_strided_slice %47 {offsets = [0, 0], sizes = [8, 8], strides = [1, 1]} : vector<8x32xf32> to vector<8x8xf32>
    %cst_30 = arith.constant dense<0.000000e+00> : vector<8x8xf32>
    %51 = tpu.matmul %49, %50, %cst_30 {dimension_numbers = #tpu.dot_dimension_numbers<[1], [1], [0], [0], [0, 0, 1, 0], [], []>} : vector<8x8xf32>, vector<8x8xf32>, vector<8x8xf32> -> vector<8x8xf32>
    %52 = arith.addf %51, %15 : vector<8x8xf32>
    %cst_31 = arith.constant dense<0xFF800000> : vector<8xf32>
    %53 = vector.multi_reduction <maximumf>, %52, %cst_31 [1] : vector<8x8xf32> to vector<8xf32>
    %54 = vector.shape_cast %53 : vector<8xf32> to vector<8x1xf32>
    %55 = vector.broadcast %54 : vector<8x1xf32> to vector<8x8xf32>
    %56 = arith.subf %52, %55 : vector<8x8xf32>
    %57 = math.exp %56 : vector<8x8xf32>
    %cst_32 = arith.constant dense<0.000000e+00> : vector<8xf32>
    %58 = vector.multi_reduction <add>, %57, %cst_32 [1] : vector<8x8xf32> to vector<8xf32>
    %59 = vector.shape_cast %58 : vector<8xf32> to vector<8x1xf32>
    %60 = tpu.reciprocal %59 {approx = true} : vector<8x1xf32> -> vector<8x1xf32>
    %61 = vector.broadcast %60 : vector<8x1xf32> to vector<8x8xf32>
    %62 = arith.mulf %57, %61 : vector<8x8xf32>
    %63 = vector.extract_strided_slice %48 {offsets = [0, 0], sizes = [8, 8], strides = [1, 1]} : vector<8x32xf32> to vector<8x8xf32>
    %cst_33 = arith.constant dense<0.000000e+00> : vector<8x8xf32>
    %64 = tpu.matmul %62, %63, %cst_33 {dimension_numbers = #tpu.dot_dimension_numbers<[1], [0], [0], [1], [0, 0, 1, 1], [], []>} : vector<8x8xf32>, vector<8x8xf32>, vector<8x8xf32> -> vector<8x8xf32>
    %65 = vector.extract_strided_slice %46 {offsets = [0, 8], sizes = [8, 8], strides = [1, 1]} : vector<8x32xf32> to vector<8x8xf32>
    %66 = vector.extract_strided_slice %47 {offsets = [0, 8], sizes = [8, 8], strides = [1, 1]} : vector<8x32xf32> to vector<8x8xf32>
    %cst_34 = arith.constant dense<0.000000e+00> : vector<8x8xf32>
    %67 = tpu.matmul %65, %66, %cst_34 {dimension_numbers = #tpu.dot_dimension_numbers<[1], [1], [0], [0], [0, 0, 1, 0], [], []>} : vector<8x8xf32>, vector<8x8xf32>, vector<8x8xf32> -> vector<8x8xf32>
    %68 = arith.addf %67, %15 : vector<8x8xf32>
    %cst_35 = arith.constant dense<0xFF800000> : vector<8xf32>
    %69 = vector.multi_reduction <maximumf>, %68, %cst_35 [1] : vector<8x8xf32> to vector<8xf32>
    %70 = vector.shape_cast %69 : vector<8xf32> to vector<8x1xf32>
    %71 = vector.broadcast %70 : vector<8x1xf32> to vector<8x8xf32>
    %72 = arith.subf %68, %71 : vector<8x8xf32>
    %73 = math.exp %72 : vector<8x8xf32>
    %cst_36 = arith.constant dense<0.000000e+00> : vector<8xf32>
    %74 = vector.multi_reduction <add>, %73, %cst_36 [1] : vector<8x8xf32> to vector<8xf32>
    %75 = vector.shape_cast %74 : vector<8xf32> to vector<8x1xf32>
    %76 = tpu.reciprocal %75 {approx = true} : vector<8x1xf32> -> vector<8x1xf32>
    %77 = vector.broadcast %76 : vector<8x1xf32> to vector<8x8xf32>
    %78 = arith.mulf %73, %77 : vector<8x8xf32>
    %79 = vector.extract_strided_slice %48 {offsets = [0, 8], sizes = [8, 8], strides = [1, 1]} : vector<8x32xf32> to vector<8x8xf32>
    %cst_37 = arith.constant dense<0.000000e+00> : vector<8x8xf32>
    %80 = tpu.matmul %78, %79, %cst_37 {dimension_numbers = #tpu.dot_dimension_numbers<[1], [0], [0], [1], [0, 0, 1, 1], [], []>} : vector<8x8xf32>, vector<8x8xf32>, vector<8x8xf32> -> vector<8x8xf32>
    %81 = vector.extract_strided_slice %46 {offsets = [0, 16], sizes = [8, 8], strides = [1, 1]} : vector<8x32xf32> to vector<8x8xf32>
    %82 = vector.extract_strided_slice %47 {offsets = [0, 16], sizes = [8, 8], strides = [1, 1]} : vector<8x32xf32> to vector<8x8xf32>
    %cst_38 = arith.constant dense<0.000000e+00> : vector<8x8xf32>
    %83 = tpu.matmul %81, %82, %cst_38 {dimension_numbers = #tpu.dot_dimension_numbers<[1], [1], [0], [0], [0, 0, 1, 0], [], []>} : vector<8x8xf32>, vector<8x8xf32>, vector<8x8xf32> -> vector<8x8xf32>
    %84 = arith.addf %83, %15 : vector<8x8xf32>
    %cst_39 = arith.constant dense<0xFF800000> : vector<8xf32>
    %85 = vector.multi_reduction <maximumf>, %84, %cst_39 [1] : vector<8x8xf32> to vector<8xf32>
    %86 = vector.shape_cast %85 : vector<8xf32> to vector<8x1xf32>
    %87 = vector.broadcast %86 : vector<8x1xf32> to vector<8x8xf32>
    %88 = arith.subf %84, %87 : vector<8x8xf32>
    %89 = math.exp %88 : vector<8x8xf32>
    %cst_40 = arith.constant dense<0.000000e+00> : vector<8xf32>
    %90 = vector.multi_reduction <add>, %89, %cst_40 [1] : vector<8x8xf32> to vector<8xf32>
    %91 = vector.shape_cast %90 : vector<8xf32> to vector<8x1xf32>
    %92 = tpu.reciprocal %91 {approx = true} : vector<8x1xf32> -> vector<8x1xf32>
    %93 = vector.broadcast %92 : vector<8x1xf32> to vector<8x8xf32>
    %94 = arith.mulf %89, %93 : vector<8x8xf32>
    %95 = vector.extract_strided_slice %48 {offsets = [0, 16], sizes = [8, 8], strides = [1, 1]} : vector<8x32xf32> to vector<8x8xf32>
    %cst_41 = arith.constant dense<0.000000e+00> : vector<8x8xf32>
    %96 = tpu.matmul %94, %95, %cst_41 {dimension_numbers = #tpu.dot_dimension_numbers<[1], [0], [0], [1], [0, 0, 1, 1], [], []>} : vector<8x8xf32>, vector<8x8xf32>, vector<8x8xf32> -> vector<8x8xf32>
    %97 = vector.extract_strided_slice %46 {offsets = [0, 24], sizes = [8, 8], strides = [1, 1]} : vector<8x32xf32> to vector<8x8xf32>
    %98 = vector.extract_strided_slice %47 {offsets = [0, 24], sizes = [8, 8], strides = [1, 1]} : vector<8x32xf32> to vector<8x8xf32>
    %cst_42 = arith.constant dense<0.000000e+00> : vector<8x8xf32>
    %99 = tpu.matmul %97, %98, %cst_42 {dimension_numbers = #tpu.dot_dimension_numbers<[1], [1], [0], [0], [0, 0, 1, 0], [], []>} : vector<8x8xf32>, vector<8x8xf32>, vector<8x8xf32> -> vector<8x8xf32>
    %100 = arith.addf %99, %15 : vector<8x8xf32>
    %cst_43 = arith.constant dense<0xFF800000> : vector<8xf32>
    %101 = vector.multi_reduction <maximumf>, %100, %cst_43 [1] : vector<8x8xf32> to vector<8xf32>
    %102 = vector.shape_cast %101 : vector<8xf32> to vector<8x1xf32>
    %103 = vector.broadcast %102 : vector<8x1xf32> to vector<8x8xf32>
    %104 = arith.subf %100, %103 : vector<8x8xf32>
    %105 = math.exp %104 : vector<8x8xf32>
    %cst_44 = arith.constant dense<0.000000e+00> : vector<8xf32>
    %106 = vector.multi_reduction <add>, %105, %cst_44 [1] : vector<8x8xf32> to vector<8xf32>
    %107 = vector.shape_cast %106 : vector<8xf32> to vector<8x1xf32>
    %108 = tpu.reciprocal %107 {approx = true} : vector<8x1xf32> -> vector<8x1xf32>
    %109 = vector.broadcast %108 : vector<8x1xf32> to vector<8x8xf32>
    %110 = arith.mulf %105, %109 : vector<8x8xf32>
    %111 = vector.extract_strided_slice %48 {offsets = [0, 24], sizes = [8, 8], strides = [1, 1]} : vector<8x32xf32> to vector<8x8xf32>
    %cst_45 = arith.constant dense<0.000000e+00> : vector<8x8xf32>
    %112 = tpu.matmul %110, %111, %cst_45 {dimension_numbers = #tpu.dot_dimension_numbers<[1], [0], [0], [1], [0, 0, 1, 1], [], []>} : vector<8x8xf32>, vector<8x8xf32>, vector<8x8xf32> -> vector<8x8xf32>
    %113 = tpu.concatenate %64, %80, %96, %112 in 1 : vector<8x8xf32>, vector<8x8xf32>, vector<8x8xf32>, vector<8x8xf32> -> vector<8x32xf32>
    %c0_46 = arith.constant 0 : index
    %c0_47 = arith.constant 0 : index
    %c0_48 = arith.constant 0 : index
    %114 = vector.load %arg6[%c0_46, %c0_47, %c0_48] : memref<6x32x32xf32, #tpu.memory_space<vmem>>, vector<1x32x32xf32>
    %115 = vector.shape_cast %114 : vector<1x32x32xf32> to vector<32x32xf32>
    %cst_49 = arith.constant dense<0.000000e+00> : vector<8x32xf32>
    %116 = tpu.matmul %113, %115, %cst_49 {dimension_numbers = #tpu.dot_dimension_numbers<[1], [0], [0], [1], [0, 0, 1, 1], [], []>} : vector<8x32xf32>, vector<32x32xf32>, vector<8x32xf32> -> vector<8x32xf32>
    %c0_50 = arith.constant 0 : index
    %c0_51 = arith.constant 0 : index
    %c0_52 = arith.constant 0 : index
    %117 = vector.load %arg7[%c0_50, %c0_51, %c0_52] : memref<6x1x32xf32, #tpu.memory_space<vmem>>, vector<1x1x32xf32>
    %118 = vector.shape_cast %117 : vector<1x1x32xf32> to vector<1x32xf32>
    %119 = vector.broadcast %118 : vector<1x32xf32> to vector<8x32xf32>
    %120 = arith.addf %116, %119 : vector<8x32xf32>
    %121 = arith.addf %120, %38 : vector<8x32xf32>
    %cst_53 = arith.constant dense<0.000000e+00> : vector<8xf32>
    %122 = vector.multi_reduction <add>, %121, %cst_53 [1] : vector<8x32xf32> to vector<8xf32>
    %123 = vector.shape_cast %122 : vector<8xf32> to vector<8x1xf32>
    %cst_54 = arith.constant 3.200000e+01 : f32
    %124 = vector.broadcast %cst_54 : f32 to vector<8x1xf32>
    %125 = arith.divf %123, %124 : vector<8x1xf32>
    %126 = arith.mulf %121, %121 : vector<8x32xf32>
    %cst_55 = arith.constant dense<0.000000e+00> : vector<8xf32>
    %127 = vector.multi_reduction <add>, %126, %cst_55 [1] : vector<8x32xf32> to vector<8xf32>
    %128 = vector.shape_cast %127 : vector<8xf32> to vector<8x1xf32>
    %cst_56 = arith.constant 3.200000e+01 : f32
    %129 = vector.broadcast %cst_56 : f32 to vector<8x1xf32>
    %130 = arith.divf %128, %129 : vector<8x1xf32>
    %131 = arith.mulf %125, %125 : vector<8x1xf32>
    %132 = arith.subf %130, %131 : vector<8x1xf32>
    %133 = vector.broadcast %125 : vector<8x1xf32> to vector<8x32xf32>
    %134 = arith.subf %121, %133 : vector<8x32xf32>
    %cst_57 = arith.constant 9.99999974E-6 : f32
    %135 = vector.broadcast %cst_57 : f32 to vector<8x1xf32>
    %136 = arith.addf %132, %135 : vector<8x1xf32>
    %137 = math.rsqrt %136 : vector<8x1xf32>
    %138 = vector.broadcast %137 : vector<8x1xf32> to vector<8x32xf32>
    %139 = arith.mulf %134, %138 : vector<8x32xf32>
    %c0_58 = arith.constant 0 : index
    %c0_59 = arith.constant 0 : index
    %c0_60 = arith.constant 0 : index
    %140 = vector.load %arg8[%c0_58, %c0_59, %c0_60] : memref<10x1x32xf32, #tpu.memory_space<vmem>>, vector<1x1x32xf32>
    %141 = vector.shape_cast %140 : vector<1x1x32xf32> to vector<1x32xf32>
    %142 = vector.broadcast %141 : vector<1x32xf32> to vector<8x32xf32>
    %143 = arith.mulf %139, %142 : vector<8x32xf32>
    %c0_61 = arith.constant 0 : index
    %c0_62 = arith.constant 0 : index
    %c0_63 = arith.constant 0 : index
    %144 = vector.load %arg9[%c0_61, %c0_62, %c0_63] : memref<10x1x32xf32, #tpu.memory_space<vmem>>, vector<1x1x32xf32>
    %145 = vector.shape_cast %144 : vector<1x1x32xf32> to vector<1x32xf32>
    %146 = vector.broadcast %145 : vector<1x32xf32> to vector<8x32xf32>
    %147 = arith.addf %143, %146 : vector<8x32xf32>
    %c1_64 = arith.constant 1 : index
    %c0_65 = arith.constant 0 : index
    %c0_66 = arith.constant 0 : index
    %148 = vector.load %arg4[%c1_64, %c0_65, %c0_66] : memref<6x32x96xf32, #tpu.memory_space<vmem>>, vector<1x32x96xf32>
    %149 = vector.shape_cast %148 : vector<1x32x96xf32> to vector<32x96xf32>
    %c1_67 = arith.constant 1 : index
    %c0_68 = arith.constant 0 : index
    %c0_69 = arith.constant 0 : index
    %150 = vector.load %arg5[%c1_67, %c0_68, %c0_69] : memref<6x1x96xf32, #tpu.memory_space<vmem>>, vector<1x1x96xf32>
    %151 = vector.shape_cast %150 : vector<1x1x96xf32> to vector<1x96xf32>
    %152 = vector.extract_strided_slice %149 {offsets = [0, 0], sizes = [32, 32], strides = [1, 1]} : vector<32x96xf32> to vector<32x32xf32>
    %cst_70 = arith.constant dense<0.000000e+00> : vector<8x32xf32>
    %153 = tpu.matmul %147, %152, %cst_70 {dimension_numbers = #tpu.dot_dimension_numbers<[1], [0], [0], [1], [0, 0, 1, 1], [], []>} : vector<8x32xf32>, vector<32x32xf32>, vector<8x32xf32> -> vector<8x32xf32>
    %154 = vector.extract_strided_slice %151 {offsets = [0, 0], sizes = [1, 32], strides = [1, 1]} : vector<1x96xf32> to vector<1x32xf32>
    %155 = vector.broadcast %154 : vector<1x32xf32> to vector<8x32xf32>
    %156 = arith.addf %153, %155 : vector<8x32xf32>
    %157 = vector.extract_strided_slice %156 {offsets = [0, 0], sizes = [8, 8], strides = [1, 1]} : vector<8x32xf32> to vector<8x8xf32>
    %158 = vector.extract_strided_slice %25 {offsets = [0, 0], sizes = [16, 8], strides = [1, 1]} : vector<16x32xf32> to vector<16x8xf32>
    %cst_71 = arith.constant dense<0.000000e+00> : vector<8x16xf32>
    %159 = tpu.matmul %157, %158, %cst_71 {dimension_numbers = #tpu.dot_dimension_numbers<[1], [1], [0], [0], [0, 0, 1, 0], [], []>} : vector<8x8xf32>, vector<16x8xf32>, vector<8x16xf32> -> vector<8x16xf32>
    %160 = vector.broadcast %9 : vector<1x16xf32> to vector<8x16xf32>
    %161 = arith.addf %159, %160 : vector<8x16xf32>
    %cst_72 = arith.constant dense<0xFF800000> : vector<8xf32>
    %162 = vector.multi_reduction <maximumf>, %161, %cst_72 [1] : vector<8x16xf32> to vector<8xf32>
    %163 = vector.shape_cast %162 : vector<8xf32> to vector<8x1xf32>
    %164 = vector.broadcast %163 : vector<8x1xf32> to vector<8x16xf32>
    %165 = arith.subf %161, %164 : vector<8x16xf32>
    %166 = math.exp %165 : vector<8x16xf32>
    %cst_73 = arith.constant dense<0.000000e+00> : vector<8xf32>
    %167 = vector.multi_reduction <add>, %166, %cst_73 [1] : vector<8x16xf32> to vector<8xf32>
    %168 = vector.shape_cast %167 : vector<8xf32> to vector<8x1xf32>
    %169 = tpu.reciprocal %168 {approx = true} : vector<8x1xf32> -> vector<8x1xf32>
    %170 = vector.broadcast %169 : vector<8x1xf32> to vector<8x16xf32>
    %171 = arith.mulf %166, %170 : vector<8x16xf32>
    %172 = vector.extract_strided_slice %26 {offsets = [0, 0], sizes = [16, 8], strides = [1, 1]} : vector<16x32xf32> to vector<16x8xf32>
    %cst_74 = arith.constant dense<0.000000e+00> : vector<8x8xf32>
    %173 = tpu.matmul %171, %172, %cst_74 {dimension_numbers = #tpu.dot_dimension_numbers<[1], [0], [0], [1], [0, 0, 1, 1], [], []>} : vector<8x16xf32>, vector<16x8xf32>, vector<8x8xf32> -> vector<8x8xf32>
    %174 = vector.extract_strided_slice %156 {offsets = [0, 8], sizes = [8, 8], strides = [1, 1]} : vector<8x32xf32> to vector<8x8xf32>
    %175 = vector.extract_strided_slice %25 {offsets = [0, 8], sizes = [16, 8], strides = [1, 1]} : vector<16x32xf32> to vector<16x8xf32>
    %cst_75 = arith.constant dense<0.000000e+00> : vector<8x16xf32>
    %176 = tpu.matmul %174, %175, %cst_75 {dimension_numbers = #tpu.dot_dimension_numbers<[1], [1], [0], [0], [0, 0, 1, 0], [], []>} : vector<8x8xf32>, vector<16x8xf32>, vector<8x16xf32> -> vector<8x16xf32>
    %177 = vector.broadcast %9 : vector<1x16xf32> to vector<8x16xf32>
    %178 = arith.addf %176, %177 : vector<8x16xf32>
    %cst_76 = arith.constant dense<0xFF800000> : vector<8xf32>
    %179 = vector.multi_reduction <maximumf>, %178, %cst_76 [1] : vector<8x16xf32> to vector<8xf32>
    %180 = vector.shape_cast %179 : vector<8xf32> to vector<8x1xf32>
    %181 = vector.broadcast %180 : vector<8x1xf32> to vector<8x16xf32>
    %182 = arith.subf %178, %181 : vector<8x16xf32>
    %183 = math.exp %182 : vector<8x16xf32>
    %cst_77 = arith.constant dense<0.000000e+00> : vector<8xf32>
    %184 = vector.multi_reduction <add>, %183, %cst_77 [1] : vector<8x16xf32> to vector<8xf32>
    %185 = vector.shape_cast %184 : vector<8xf32> to vector<8x1xf32>
    %186 = tpu.reciprocal %185 {approx = true} : vector<8x1xf32> -> vector<8x1xf32>
    %187 = vector.broadcast %186 : vector<8x1xf32> to vector<8x16xf32>
    %188 = arith.mulf %183, %187 : vector<8x16xf32>
    %189 = vector.extract_strided_slice %26 {offsets = [0, 8], sizes = [16, 8], strides = [1, 1]} : vector<16x32xf32> to vector<16x8xf32>
    %cst_78 = arith.constant dense<0.000000e+00> : vector<8x8xf32>
    %190 = tpu.matmul %188, %189, %cst_78 {dimension_numbers = #tpu.dot_dimension_numbers<[1], [0], [0], [1], [0, 0, 1, 1], [], []>} : vector<8x16xf32>, vector<16x8xf32>, vector<8x8xf32> -> vector<8x8xf32>
    %191 = vector.extract_strided_slice %156 {offsets = [0, 16], sizes = [8, 8], strides = [1, 1]} : vector<8x32xf32> to vector<8x8xf32>
    %192 = vector.extract_strided_slice %25 {offsets = [0, 16], sizes = [16, 8], strides = [1, 1]} : vector<16x32xf32> to vector<16x8xf32>
    %cst_79 = arith.constant dense<0.000000e+00> : vector<8x16xf32>
    %193 = tpu.matmul %191, %192, %cst_79 {dimension_numbers = #tpu.dot_dimension_numbers<[1], [1], [0], [0], [0, 0, 1, 0], [], []>} : vector<8x8xf32>, vector<16x8xf32>, vector<8x16xf32> -> vector<8x16xf32>
    %194 = vector.broadcast %9 : vector<1x16xf32> to vector<8x16xf32>
    %195 = arith.addf %193, %194 : vector<8x16xf32>
    %cst_80 = arith.constant dense<0xFF800000> : vector<8xf32>
    %196 = vector.multi_reduction <maximumf>, %195, %cst_80 [1] : vector<8x16xf32> to vector<8xf32>
    %197 = vector.shape_cast %196 : vector<8xf32> to vector<8x1xf32>
    %198 = vector.broadcast %197 : vector<8x1xf32> to vector<8x16xf32>
    %199 = arith.subf %195, %198 : vector<8x16xf32>
    %200 = math.exp %199 : vector<8x16xf32>
    %cst_81 = arith.constant dense<0.000000e+00> : vector<8xf32>
    %201 = vector.multi_reduction <add>, %200, %cst_81 [1] : vector<8x16xf32> to vector<8xf32>
    %202 = vector.shape_cast %201 : vector<8xf32> to vector<8x1xf32>
    %203 = tpu.reciprocal %202 {approx = true} : vector<8x1xf32> -> vector<8x1xf32>
    %204 = vector.broadcast %203 : vector<8x1xf32> to vector<8x16xf32>
    %205 = arith.mulf %200, %204 : vector<8x16xf32>
    %206 = vector.extract_strided_slice %26 {offsets = [0, 16], sizes = [16, 8], strides = [1, 1]} : vector<16x32xf32> to vector<16x8xf32>
    %cst_82 = arith.constant dense<0.000000e+00> : vector<8x8xf32>
    %207 = tpu.matmul %205, %206, %cst_82 {dimension_numbers = #tpu.dot_dimension_numbers<[1], [0], [0], [1], [0, 0, 1, 1], [], []>} : vector<8x16xf32>, vector<16x8xf32>, vector<8x8xf32> -> vector<8x8xf32>
    %208 = vector.extract_strided_slice %156 {offsets = [0, 24], sizes = [8, 8], strides = [1, 1]} : vector<8x32xf32> to vector<8x8xf32>
    %209 = vector.extract_strided_slice %25 {offsets = [0, 24], sizes = [16, 8], strides = [1, 1]} : vector<16x32xf32> to vector<16x8xf32>
    %cst_83 = arith.constant dense<0.000000e+00> : vector<8x16xf32>
    %210 = tpu.matmul %208, %209, %cst_83 {dimension_numbers = #tpu.dot_dimension_numbers<[1], [1], [0], [0], [0, 0, 1, 0], [], []>} : vector<8x8xf32>, vector<16x8xf32>, vector<8x16xf32> -> vector<8x16xf32>
    %211 = vector.broadcast %9 : vector<1x16xf32> to vector<8x16xf32>
    %212 = arith.addf %210, %211 : vector<8x16xf32>
    %cst_84 = arith.constant dense<0xFF800000> : vector<8xf32>
    %213 = vector.multi_reduction <maximumf>, %212, %cst_84 [1] : vector<8x16xf32> to vector<8xf32>
    %214 = vector.shape_cast %213 : vector<8xf32> to vector<8x1xf32>
    %215 = vector.broadcast %214 : vector<8x1xf32> to vector<8x16xf32>
    %216 = arith.subf %212, %215 : vector<8x16xf32>
    %217 = math.exp %216 : vector<8x16xf32>
    %cst_85 = arith.constant dense<0.000000e+00> : vector<8xf32>
    %218 = vector.multi_reduction <add>, %217, %cst_85 [1] : vector<8x16xf32> to vector<8xf32>
    %219 = vector.shape_cast %218 : vector<8xf32> to vector<8x1xf32>
    %220 = tpu.reciprocal %219 {approx = true} : vector<8x1xf32> -> vector<8x1xf32>
    %221 = vector.broadcast %220 : vector<8x1xf32> to vector<8x16xf32>
    %222 = arith.mulf %217, %221 : vector<8x16xf32>
    %223 = vector.extract_strided_slice %26 {offsets = [0, 24], sizes = [16, 8], strides = [1, 1]} : vector<16x32xf32> to vector<16x8xf32>
    %cst_86 = arith.constant dense<0.000000e+00> : vector<8x8xf32>
    %224 = tpu.matmul %222, %223, %cst_86 {dimension_numbers = #tpu.dot_dimension_numbers<[1], [0], [0], [1], [0, 0, 1, 1], [], []>} : vector<8x16xf32>, vector<16x8xf32>, vector<8x8xf32> -> vector<8x8xf32>
    %225 = tpu.concatenate %173, %190, %207, %224 in 1 : vector<8x8xf32>, vector<8x8xf32>, vector<8x8xf32>, vector<8x8xf32> -> vector<8x32xf32>
    %c1_87 = arith.constant 1 : index
    %c0_88 = arith.constant 0 : index
    %c0_89 = arith.constant 0 : index
    %226 = vector.load %arg6[%c1_87, %c0_88, %c0_89] : memref<6x32x32xf32, #tpu.memory_space<vmem>>, vector<1x32x32xf32>
    %227 = vector.shape_cast %226 : vector<1x32x32xf32> to vector<32x32xf32>
    %cst_90 = arith.constant dense<0.000000e+00> : vector<8x32xf32>
    %228 = tpu.matmul %225, %227, %cst_90 {dimension_numbers = #tpu.dot_dimension_numbers<[1], [0], [0], [1], [0, 0, 1, 1], [], []>} : vector<8x32xf32>, vector<32x32xf32>, vector<8x32xf32> -> vector<8x32xf32>
    %c1_91 = arith.constant 1 : index
    %c0_92 = arith.constant 0 : index
    %c0_93 = arith.constant 0 : index
    %229 = vector.load %arg7[%c1_91, %c0_92, %c0_93] : memref<6x1x32xf32, #tpu.memory_space<vmem>>, vector<1x1x32xf32>
    %230 = vector.shape_cast %229 : vector<1x1x32xf32> to vector<1x32xf32>
    %231 = vector.broadcast %230 : vector<1x32xf32> to vector<8x32xf32>
    %232 = arith.addf %228, %231 : vector<8x32xf32>
    %233 = arith.addf %232, %147 : vector<8x32xf32>
    %cst_94 = arith.constant dense<0.000000e+00> : vector<8xf32>
    %234 = vector.multi_reduction <add>, %233, %cst_94 [1] : vector<8x32xf32> to vector<8xf32>
    %235 = vector.shape_cast %234 : vector<8xf32> to vector<8x1xf32>
    %cst_95 = arith.constant 3.200000e+01 : f32
    %236 = vector.broadcast %cst_95 : f32 to vector<8x1xf32>
    %237 = arith.divf %235, %236 : vector<8x1xf32>
    %238 = arith.mulf %233, %233 : vector<8x32xf32>
    %cst_96 = arith.constant dense<0.000000e+00> : vector<8xf32>
    %239 = vector.multi_reduction <add>, %238, %cst_96 [1] : vector<8x32xf32> to vector<8xf32>
    %240 = vector.shape_cast %239 : vector<8xf32> to vector<8x1xf32>
    %cst_97 = arith.constant 3.200000e+01 : f32
    %241 = vector.broadcast %cst_97 : f32 to vector<8x1xf32>
    %242 = arith.divf %240, %241 : vector<8x1xf32>
    %243 = arith.mulf %237, %237 : vector<8x1xf32>
    %244 = arith.subf %242, %243 : vector<8x1xf32>
    %245 = vector.broadcast %237 : vector<8x1xf32> to vector<8x32xf32>
    %246 = arith.subf %233, %245 : vector<8x32xf32>
    %cst_98 = arith.constant 9.99999974E-6 : f32
    %247 = vector.broadcast %cst_98 : f32 to vector<8x1xf32>
    %248 = arith.addf %244, %247 : vector<8x1xf32>
    %249 = math.rsqrt %248 : vector<8x1xf32>
    %250 = vector.broadcast %249 : vector<8x1xf32> to vector<8x32xf32>
    %251 = arith.mulf %246, %250 : vector<8x32xf32>
    %c1_99 = arith.constant 1 : index
    %c0_100 = arith.constant 0 : index
    %c0_101 = arith.constant 0 : index
    %252 = vector.load %arg8[%c1_99, %c0_100, %c0_101] : memref<10x1x32xf32, #tpu.memory_space<vmem>>, vector<1x1x32xf32>
    %253 = vector.shape_cast %252 : vector<1x1x32xf32> to vector<1x32xf32>
    %254 = vector.broadcast %253 : vector<1x32xf32> to vector<8x32xf32>
    %255 = arith.mulf %251, %254 : vector<8x32xf32>
    %c1_102 = arith.constant 1 : index
    %c0_103 = arith.constant 0 : index
    %c0_104 = arith.constant 0 : index
    %256 = vector.load %arg9[%c1_102, %c0_103, %c0_104] : memref<10x1x32xf32, #tpu.memory_space<vmem>>, vector<1x1x32xf32>
    %257 = vector.shape_cast %256 : vector<1x1x32xf32> to vector<1x32xf32>
    %258 = vector.broadcast %257 : vector<1x32xf32> to vector<8x32xf32>
    %259 = arith.addf %255, %258 : vector<8x32xf32>
    %c0_105 = arith.constant 0 : index
    %c0_106 = arith.constant 0 : index
    %c0_107 = arith.constant 0 : index
    %260 = vector.load %arg10[%c0_105, %c0_106, %c0_107] : memref<4x32x64xf32, #tpu.memory_space<vmem>>, vector<1x32x64xf32>
    %261 = vector.shape_cast %260 : vector<1x32x64xf32> to vector<32x64xf32>
    %cst_108 = arith.constant dense<0.000000e+00> : vector<8x64xf32>
    %262 = tpu.matmul %259, %261, %cst_108 {dimension_numbers = #tpu.dot_dimension_numbers<[1], [0], [0], [1], [0, 0, 1, 1], [], []>} : vector<8x32xf32>, vector<32x64xf32>, vector<8x64xf32> -> vector<8x64xf32>
    %c0_109 = arith.constant 0 : index
    %c0_110 = arith.constant 0 : index
    %c0_111 = arith.constant 0 : index
    %263 = vector.load %arg11[%c0_109, %c0_110, %c0_111] : memref<4x1x64xf32, #tpu.memory_space<vmem>>, vector<1x1x64xf32>
    %264 = vector.shape_cast %263 : vector<1x1x64xf32> to vector<1x64xf32>
    %265 = vector.broadcast %264 : vector<1x64xf32> to vector<8x64xf32>
    %266 = arith.addf %262, %265 : vector<8x64xf32>
    %cst_112 = arith.constant 0.000000e+00 : f32
    %267 = vector.broadcast %cst_112 : f32 to vector<8x64xf32>
    %268 = arith.maximumf %266, %267 : vector<8x64xf32>
    %c0_113 = arith.constant 0 : index
    %c0_114 = arith.constant 0 : index
    %c0_115 = arith.constant 0 : index
    %269 = vector.load %arg12[%c0_113, %c0_114, %c0_115] : memref<4x64x32xf32, #tpu.memory_space<vmem>>, vector<1x64x32xf32>
    %270 = vector.shape_cast %269 : vector<1x64x32xf32> to vector<64x32xf32>
    %cst_116 = arith.constant dense<0.000000e+00> : vector<8x32xf32>
    %271 = tpu.matmul %268, %270, %cst_116 {dimension_numbers = #tpu.dot_dimension_numbers<[1], [0], [0], [1], [0, 0, 1, 1], [], []>} : vector<8x64xf32>, vector<64x32xf32>, vector<8x32xf32> -> vector<8x32xf32>
    %c0_117 = arith.constant 0 : index
    %c0_118 = arith.constant 0 : index
    %c0_119 = arith.constant 0 : index
    %272 = vector.load %arg13[%c0_117, %c0_118, %c0_119] : memref<4x1x32xf32, #tpu.memory_space<vmem>>, vector<1x1x32xf32>
    %273 = vector.shape_cast %272 : vector<1x1x32xf32> to vector<1x32xf32>
    %274 = vector.broadcast %273 : vector<1x32xf32> to vector<8x32xf32>
    %275 = arith.addf %271, %274 : vector<8x32xf32>
    %276 = arith.addf %275, %259 : vector<8x32xf32>
    %cst_120 = arith.constant dense<0.000000e+00> : vector<8xf32>
    %277 = vector.multi_reduction <add>, %276, %cst_120 [1] : vector<8x32xf32> to vector<8xf32>
    %278 = vector.shape_cast %277 : vector<8xf32> to vector<8x1xf32>
    %cst_121 = arith.constant 3.200000e+01 : f32
    %279 = vector.broadcast %cst_121 : f32 to vector<8x1xf32>
    %280 = arith.divf %278, %279 : vector<8x1xf32>
    %281 = arith.mulf %276, %276 : vector<8x32xf32>
    %cst_122 = arith.constant dense<0.000000e+00> : vector<8xf32>
    %282 = vector.multi_reduction <add>, %281, %cst_122 [1] : vector<8x32xf32> to vector<8xf32>
    %283 = vector.shape_cast %282 : vector<8xf32> to vector<8x1xf32>
    %cst_123 = arith.constant 3.200000e+01 : f32
    %284 = vector.broadcast %cst_123 : f32 to vector<8x1xf32>
    %285 = arith.divf %283, %284 : vector<8x1xf32>
    %286 = arith.mulf %280, %280 : vector<8x1xf32>
    %287 = arith.subf %285, %286 : vector<8x1xf32>
    %288 = vector.broadcast %280 : vector<8x1xf32> to vector<8x32xf32>
    %289 = arith.subf %276, %288 : vector<8x32xf32>
    %cst_124 = arith.constant 9.99999974E-6 : f32
    %290 = vector.broadcast %cst_124 : f32 to vector<8x1xf32>
    %291 = arith.addf %287, %290 : vector<8x1xf32>
    %292 = math.rsqrt %291 : vector<8x1xf32>
    %293 = vector.broadcast %292 : vector<8x1xf32> to vector<8x32xf32>
    %294 = arith.mulf %289, %293 : vector<8x32xf32>
    %c2 = arith.constant 2 : index
    %c0_125 = arith.constant 0 : index
    %c0_126 = arith.constant 0 : index
    %295 = vector.load %arg8[%c2, %c0_125, %c0_126] : memref<10x1x32xf32, #tpu.memory_space<vmem>>, vector<1x1x32xf32>
    %296 = vector.shape_cast %295 : vector<1x1x32xf32> to vector<1x32xf32>
    %297 = vector.broadcast %296 : vector<1x32xf32> to vector<8x32xf32>
    %298 = arith.mulf %294, %297 : vector<8x32xf32>
    %c2_127 = arith.constant 2 : index
    %c0_128 = arith.constant 0 : index
    %c0_129 = arith.constant 0 : index
    %299 = vector.load %arg9[%c2_127, %c0_128, %c0_129] : memref<10x1x32xf32, #tpu.memory_space<vmem>>, vector<1x1x32xf32>
    %300 = vector.shape_cast %299 : vector<1x1x32xf32> to vector<1x32xf32>
    %301 = vector.broadcast %300 : vector<1x32xf32> to vector<8x32xf32>
    %302 = arith.addf %298, %301 : vector<8x32xf32>
    %c0_i32 = arith.constant 0 : i32
    %c2_i32 = arith.constant 2 : i32
    %303 = arith.addi %c0_i32, %c2_i32 : i32
    %c1_i32 = arith.constant 1 : i32
    %304 = scf.for %arg15 = %c0_i32 to %303 step %c1_i32 iter_args(%arg16 = %302) -> (vector<8x32xf32>)  : i32 {
      %c0_i32_137 = arith.constant 0 : i32
      %c2_i32_138 = arith.constant 2 : i32
      %310 = arith.addi %c0_i32_137, %c2_i32_138 : i32
      %c1_i32_139 = arith.constant 1 : i32
      %311 = scf.for %arg17 = %c0_i32_137 to %310 step %c1_i32_139 iter_args(%arg18 = %arg16) -> (vector<8x32xf32>)  : i32 {
        %c4_i32 = arith.constant 4 : i32
        %576 = arith.addi %c4_i32, %arg17 : i32
        %c2_i32_247 = arith.constant 2 : i32
        %577 = arith.muli %c2_i32_247, %arg17 : i32
        %c6_i32 = arith.constant 6 : i32
        %578 = arith.addi %c6_i32, %577 : i32
        %c2_i32_248 = arith.constant 2 : i32
        %579 = arith.addi %c2_i32_248, %arg17 : i32
        %580 = arith.index_cast %576 : i32 to index
        %c0_249 = arith.constant 0 : index
        %c0_250 = arith.constant 0 : index
        %581 = vector.load %arg4[%580, %c0_249, %c0_250] : memref<6x32x96xf32, #tpu.memory_space<vmem>>, vector<1x32x96xf32>
        %582 = vector.shape_cast %581 : vector<1x32x96xf32> to vector<32x96xf32>
        %cst_251 = arith.constant dense<0.000000e+00> : vector<8x96xf32>
        %583 = tpu.matmul %arg18, %582, %cst_251 {dimension_numbers = #tpu.dot_dimension_numbers<[1], [0], [0], [1], [0, 0, 1, 1], [], []>} : vector<8x32xf32>, vector<32x96xf32>, vector<8x96xf32> -> vector<8x96xf32>
        %584 = arith.index_cast %576 : i32 to index
        %c0_252 = arith.constant 0 : index
        %c0_253 = arith.constant 0 : index
        %585 = vector.load %arg5[%584, %c0_252, %c0_253] : memref<6x1x96xf32, #tpu.memory_space<vmem>>, vector<1x1x96xf32>
        %586 = vector.shape_cast %585 : vector<1x1x96xf32> to vector<1x96xf32>
        %587 = vector.broadcast %586 : vector<1x96xf32> to vector<8x96xf32>
        %588 = arith.addf %583, %587 : vector<8x96xf32>
        %589 = vector.extract_strided_slice %588 {offsets = [0, 0], sizes = [8, 32], strides = [1, 1]} : vector<8x96xf32> to vector<8x32xf32>
        %590 = vector.extract_strided_slice %588 {offsets = [0, 32], sizes = [8, 32], strides = [1, 1]} : vector<8x96xf32> to vector<8x32xf32>
        %591 = vector.extract_strided_slice %588 {offsets = [0, 64], sizes = [8, 32], strides = [1, 1]} : vector<8x96xf32> to vector<8x32xf32>
        %592 = vector.extract_strided_slice %589 {offsets = [0, 0], sizes = [8, 8], strides = [1, 1]} : vector<8x32xf32> to vector<8x8xf32>
        %593 = vector.extract_strided_slice %590 {offsets = [0, 0], sizes = [8, 8], strides = [1, 1]} : vector<8x32xf32> to vector<8x8xf32>
        %cst_254 = arith.constant dense<0.000000e+00> : vector<8x8xf32>
        %594 = tpu.matmul %592, %593, %cst_254 {dimension_numbers = #tpu.dot_dimension_numbers<[1], [1], [0], [0], [0, 0, 1, 0], [], []>} : vector<8x8xf32>, vector<8x8xf32>, vector<8x8xf32> -> vector<8x8xf32>
        %cst_255 = arith.constant dense<0xFF800000> : vector<8xf32>
        %595 = vector.multi_reduction <maximumf>, %594, %cst_255 [1] : vector<8x8xf32> to vector<8xf32>
        %596 = vector.shape_cast %595 : vector<8xf32> to vector<8x1xf32>
        %597 = vector.broadcast %596 : vector<8x1xf32> to vector<8x8xf32>
        %598 = arith.subf %594, %597 : vector<8x8xf32>
        %599 = math.exp %598 : vector<8x8xf32>
        %cst_256 = arith.constant dense<0.000000e+00> : vector<8xf32>
        %600 = vector.multi_reduction <add>, %599, %cst_256 [1] : vector<8x8xf32> to vector<8xf32>
        %601 = vector.shape_cast %600 : vector<8xf32> to vector<8x1xf32>
        %602 = tpu.reciprocal %601 {approx = true} : vector<8x1xf32> -> vector<8x1xf32>
        %603 = vector.broadcast %602 : vector<8x1xf32> to vector<8x8xf32>
        %604 = arith.mulf %599, %603 : vector<8x8xf32>
        %605 = vector.extract_strided_slice %591 {offsets = [0, 0], sizes = [8, 8], strides = [1, 1]} : vector<8x32xf32> to vector<8x8xf32>
        %cst_257 = arith.constant dense<0.000000e+00> : vector<8x8xf32>
        %606 = tpu.matmul %604, %605, %cst_257 {dimension_numbers = #tpu.dot_dimension_numbers<[1], [0], [0], [1], [0, 0, 1, 1], [], []>} : vector<8x8xf32>, vector<8x8xf32>, vector<8x8xf32> -> vector<8x8xf32>
        %607 = vector.extract_strided_slice %589 {offsets = [0, 8], sizes = [8, 8], strides = [1, 1]} : vector<8x32xf32> to vector<8x8xf32>
        %608 = vector.extract_strided_slice %590 {offsets = [0, 8], sizes = [8, 8], strides = [1, 1]} : vector<8x32xf32> to vector<8x8xf32>
        %cst_258 = arith.constant dense<0.000000e+00> : vector<8x8xf32>
        %609 = tpu.matmul %607, %608, %cst_258 {dimension_numbers = #tpu.dot_dimension_numbers<[1], [1], [0], [0], [0, 0, 1, 0], [], []>} : vector<8x8xf32>, vector<8x8xf32>, vector<8x8xf32> -> vector<8x8xf32>
        %cst_259 = arith.constant dense<0xFF800000> : vector<8xf32>
        %610 = vector.multi_reduction <maximumf>, %609, %cst_259 [1] : vector<8x8xf32> to vector<8xf32>
        %611 = vector.shape_cast %610 : vector<8xf32> to vector<8x1xf32>
        %612 = vector.broadcast %611 : vector<8x1xf32> to vector<8x8xf32>
        %613 = arith.subf %609, %612 : vector<8x8xf32>
        %614 = math.exp %613 : vector<8x8xf32>
        %cst_260 = arith.constant dense<0.000000e+00> : vector<8xf32>
        %615 = vector.multi_reduction <add>, %614, %cst_260 [1] : vector<8x8xf32> to vector<8xf32>
        %616 = vector.shape_cast %615 : vector<8xf32> to vector<8x1xf32>
        %617 = tpu.reciprocal %616 {approx = true} : vector<8x1xf32> -> vector<8x1xf32>
        %618 = vector.broadcast %617 : vector<8x1xf32> to vector<8x8xf32>
        %619 = arith.mulf %614, %618 : vector<8x8xf32>
        %620 = vector.extract_strided_slice %591 {offsets = [0, 8], sizes = [8, 8], strides = [1, 1]} : vector<8x32xf32> to vector<8x8xf32>
        %cst_261 = arith.constant dense<0.000000e+00> : vector<8x8xf32>
        %621 = tpu.matmul %619, %620, %cst_261 {dimension_numbers = #tpu.dot_dimension_numbers<[1], [0], [0], [1], [0, 0, 1, 1], [], []>} : vector<8x8xf32>, vector<8x8xf32>, vector<8x8xf32> -> vector<8x8xf32>
        %622 = vector.extract_strided_slice %589 {offsets = [0, 16], sizes = [8, 8], strides = [1, 1]} : vector<8x32xf32> to vector<8x8xf32>
        %623 = vector.extract_strided_slice %590 {offsets = [0, 16], sizes = [8, 8], strides = [1, 1]} : vector<8x32xf32> to vector<8x8xf32>
        %cst_262 = arith.constant dense<0.000000e+00> : vector<8x8xf32>
        %624 = tpu.matmul %622, %623, %cst_262 {dimension_numbers = #tpu.dot_dimension_numbers<[1], [1], [0], [0], [0, 0, 1, 0], [], []>} : vector<8x8xf32>, vector<8x8xf32>, vector<8x8xf32> -> vector<8x8xf32>
        %cst_263 = arith.constant dense<0xFF800000> : vector<8xf32>
        %625 = vector.multi_reduction <maximumf>, %624, %cst_263 [1] : vector<8x8xf32> to vector<8xf32>
        %626 = vector.shape_cast %625 : vector<8xf32> to vector<8x1xf32>
        %627 = vector.broadcast %626 : vector<8x1xf32> to vector<8x8xf32>
        %628 = arith.subf %624, %627 : vector<8x8xf32>
        %629 = math.exp %628 : vector<8x8xf32>
        %cst_264 = arith.constant dense<0.000000e+00> : vector<8xf32>
        %630 = vector.multi_reduction <add>, %629, %cst_264 [1] : vector<8x8xf32> to vector<8xf32>
        %631 = vector.shape_cast %630 : vector<8xf32> to vector<8x1xf32>
        %632 = tpu.reciprocal %631 {approx = true} : vector<8x1xf32> -> vector<8x1xf32>
        %633 = vector.broadcast %632 : vector<8x1xf32> to vector<8x8xf32>
        %634 = arith.mulf %629, %633 : vector<8x8xf32>
        %635 = vector.extract_strided_slice %591 {offsets = [0, 16], sizes = [8, 8], strides = [1, 1]} : vector<8x32xf32> to vector<8x8xf32>
        %cst_265 = arith.constant dense<0.000000e+00> : vector<8x8xf32>
        %636 = tpu.matmul %634, %635, %cst_265 {dimension_numbers = #tpu.dot_dimension_numbers<[1], [0], [0], [1], [0, 0, 1, 1], [], []>} : vector<8x8xf32>, vector<8x8xf32>, vector<8x8xf32> -> vector<8x8xf32>
        %637 = vector.extract_strided_slice %589 {offsets = [0, 24], sizes = [8, 8], strides = [1, 1]} : vector<8x32xf32> to vector<8x8xf32>
        %638 = vector.extract_strided_slice %590 {offsets = [0, 24], sizes = [8, 8], strides = [1, 1]} : vector<8x32xf32> to vector<8x8xf32>
        %cst_266 = arith.constant dense<0.000000e+00> : vector<8x8xf32>
        %639 = tpu.matmul %637, %638, %cst_266 {dimension_numbers = #tpu.dot_dimension_numbers<[1], [1], [0], [0], [0, 0, 1, 0], [], []>} : vector<8x8xf32>, vector<8x8xf32>, vector<8x8xf32> -> vector<8x8xf32>
        %cst_267 = arith.constant dense<0xFF800000> : vector<8xf32>
        %640 = vector.multi_reduction <maximumf>, %639, %cst_267 [1] : vector<8x8xf32> to vector<8xf32>
        %641 = vector.shape_cast %640 : vector<8xf32> to vector<8x1xf32>
        %642 = vector.broadcast %641 : vector<8x1xf32> to vector<8x8xf32>
        %643 = arith.subf %639, %642 : vector<8x8xf32>
        %644 = math.exp %643 : vector<8x8xf32>
        %cst_268 = arith.constant dense<0.000000e+00> : vector<8xf32>
        %645 = vector.multi_reduction <add>, %644, %cst_268 [1] : vector<8x8xf32> to vector<8xf32>
        %646 = vector.shape_cast %645 : vector<8xf32> to vector<8x1xf32>
        %647 = tpu.reciprocal %646 {approx = true} : vector<8x1xf32> -> vector<8x1xf32>
        %648 = vector.broadcast %647 : vector<8x1xf32> to vector<8x8xf32>
        %649 = arith.mulf %644, %648 : vector<8x8xf32>
        %650 = vector.extract_strided_slice %591 {offsets = [0, 24], sizes = [8, 8], strides = [1, 1]} : vector<8x32xf32> to vector<8x8xf32>
        %cst_269 = arith.constant dense<0.000000e+00> : vector<8x8xf32>
        %651 = tpu.matmul %649, %650, %cst_269 {dimension_numbers = #tpu.dot_dimension_numbers<[1], [0], [0], [1], [0, 0, 1, 1], [], []>} : vector<8x8xf32>, vector<8x8xf32>, vector<8x8xf32> -> vector<8x8xf32>
        %652 = tpu.concatenate %606, %621, %636, %651 in 1 : vector<8x8xf32>, vector<8x8xf32>, vector<8x8xf32>, vector<8x8xf32> -> vector<8x32xf32>
        %653 = arith.index_cast %576 : i32 to index
        %c0_270 = arith.constant 0 : index
        %c0_271 = arith.constant 0 : index
        %654 = vector.load %arg6[%653, %c0_270, %c0_271] : memref<6x32x32xf32, #tpu.memory_space<vmem>>, vector<1x32x32xf32>
        %655 = vector.shape_cast %654 : vector<1x32x32xf32> to vector<32x32xf32>
        %cst_272 = arith.constant dense<0.000000e+00> : vector<8x32xf32>
        %656 = tpu.matmul %652, %655, %cst_272 {dimension_numbers = #tpu.dot_dimension_numbers<[1], [0], [0], [1], [0, 0, 1, 1], [], []>} : vector<8x32xf32>, vector<32x32xf32>, vector<8x32xf32> -> vector<8x32xf32>
        %657 = arith.index_cast %576 : i32 to index
        %c0_273 = arith.constant 0 : index
        %c0_274 = arith.constant 0 : index
        %658 = vector.load %arg7[%657, %c0_273, %c0_274] : memref<6x1x32xf32, #tpu.memory_space<vmem>>, vector<1x1x32xf32>
        %659 = vector.shape_cast %658 : vector<1x1x32xf32> to vector<1x32xf32>
        %660 = vector.broadcast %659 : vector<1x32xf32> to vector<8x32xf32>
        %661 = arith.addf %656, %660 : vector<8x32xf32>
        %662 = arith.addf %661, %arg18 : vector<8x32xf32>
        %cst_275 = arith.constant dense<0.000000e+00> : vector<8xf32>
        %663 = vector.multi_reduction <add>, %662, %cst_275 [1] : vector<8x32xf32> to vector<8xf32>
        %664 = vector.shape_cast %663 : vector<8xf32> to vector<8x1xf32>
        %cst_276 = arith.constant 3.200000e+01 : f32
        %665 = vector.broadcast %cst_276 : f32 to vector<8x1xf32>
        %666 = arith.divf %664, %665 : vector<8x1xf32>
        %667 = arith.mulf %662, %662 : vector<8x32xf32>
        %cst_277 = arith.constant dense<0.000000e+00> : vector<8xf32>
        %668 = vector.multi_reduction <add>, %667, %cst_277 [1] : vector<8x32xf32> to vector<8xf32>
        %669 = vector.shape_cast %668 : vector<8xf32> to vector<8x1xf32>
        %cst_278 = arith.constant 3.200000e+01 : f32
        %670 = vector.broadcast %cst_278 : f32 to vector<8x1xf32>
        %671 = arith.divf %669, %670 : vector<8x1xf32>
        %672 = arith.mulf %666, %666 : vector<8x1xf32>
        %673 = arith.subf %671, %672 : vector<8x1xf32>
        %674 = vector.broadcast %666 : vector<8x1xf32> to vector<8x32xf32>
        %675 = arith.subf %662, %674 : vector<8x32xf32>
        %cst_279 = arith.constant 9.99999974E-6 : f32
        %676 = vector.broadcast %cst_279 : f32 to vector<8x1xf32>
        %677 = arith.addf %673, %676 : vector<8x1xf32>
        %678 = math.rsqrt %677 : vector<8x1xf32>
        %679 = vector.broadcast %678 : vector<8x1xf32> to vector<8x32xf32>
        %680 = arith.mulf %675, %679 : vector<8x32xf32>
        %681 = arith.index_cast %578 : i32 to index
        %c0_280 = arith.constant 0 : index
        %c0_281 = arith.constant 0 : index
        %682 = vector.load %arg8[%681, %c0_280, %c0_281] : memref<10x1x32xf32, #tpu.memory_space<vmem>>, vector<1x1x32xf32>
        %683 = vector.shape_cast %682 : vector<1x1x32xf32> to vector<1x32xf32>
        %684 = vector.broadcast %683 : vector<1x32xf32> to vector<8x32xf32>
        %685 = arith.mulf %680, %684 : vector<8x32xf32>
        %686 = arith.index_cast %578 : i32 to index
        %c0_282 = arith.constant 0 : index
        %c0_283 = arith.constant 0 : index
        %687 = vector.load %arg9[%686, %c0_282, %c0_283] : memref<10x1x32xf32, #tpu.memory_space<vmem>>, vector<1x1x32xf32>
        %688 = vector.shape_cast %687 : vector<1x1x32xf32> to vector<1x32xf32>
        %689 = vector.broadcast %688 : vector<1x32xf32> to vector<8x32xf32>
        %690 = arith.addf %685, %689 : vector<8x32xf32>
        %691 = arith.index_cast %579 : i32 to index
        %c0_284 = arith.constant 0 : index
        %c0_285 = arith.constant 0 : index
        %692 = vector.load %arg10[%691, %c0_284, %c0_285] : memref<4x32x64xf32, #tpu.memory_space<vmem>>, vector<1x32x64xf32>
        %693 = vector.shape_cast %692 : vector<1x32x64xf32> to vector<32x64xf32>
        %cst_286 = arith.constant dense<0.000000e+00> : vector<8x64xf32>
        %694 = tpu.matmul %690, %693, %cst_286 {dimension_numbers = #tpu.dot_dimension_numbers<[1], [0], [0], [1], [0, 0, 1, 1], [], []>} : vector<8x32xf32>, vector<32x64xf32>, vector<8x64xf32> -> vector<8x64xf32>
        %695 = arith.index_cast %579 : i32 to index
        %c0_287 = arith.constant 0 : index
        %c0_288 = arith.constant 0 : index
        %696 = vector.load %arg11[%695, %c0_287, %c0_288] : memref<4x1x64xf32, #tpu.memory_space<vmem>>, vector<1x1x64xf32>
        %697 = vector.shape_cast %696 : vector<1x1x64xf32> to vector<1x64xf32>
        %698 = vector.broadcast %697 : vector<1x64xf32> to vector<8x64xf32>
        %699 = arith.addf %694, %698 : vector<8x64xf32>
        %cst_289 = arith.constant 0.000000e+00 : f32
        %700 = vector.broadcast %cst_289 : f32 to vector<8x64xf32>
        %701 = arith.maximumf %699, %700 : vector<8x64xf32>
        %702 = arith.index_cast %579 : i32 to index
        %c0_290 = arith.constant 0 : index
        %c0_291 = arith.constant 0 : index
        %703 = vector.load %arg12[%702, %c0_290, %c0_291] : memref<4x64x32xf32, #tpu.memory_space<vmem>>, vector<1x64x32xf32>
        %704 = vector.shape_cast %703 : vector<1x64x32xf32> to vector<64x32xf32>
        %cst_292 = arith.constant dense<0.000000e+00> : vector<8x32xf32>
        %705 = tpu.matmul %701, %704, %cst_292 {dimension_numbers = #tpu.dot_dimension_numbers<[1], [0], [0], [1], [0, 0, 1, 1], [], []>} : vector<8x64xf32>, vector<64x32xf32>, vector<8x32xf32> -> vector<8x32xf32>
        %706 = arith.index_cast %579 : i32 to index
        %c0_293 = arith.constant 0 : index
        %c0_294 = arith.constant 0 : index
        %707 = vector.load %arg13[%706, %c0_293, %c0_294] : memref<4x1x32xf32, #tpu.memory_space<vmem>>, vector<1x1x32xf32>
        %708 = vector.shape_cast %707 : vector<1x1x32xf32> to vector<1x32xf32>
        %709 = vector.broadcast %708 : vector<1x32xf32> to vector<8x32xf32>
        %710 = arith.addf %705, %709 : vector<8x32xf32>
        %c1_i32_295 = arith.constant 1 : i32
        %711 = arith.addi %578, %c1_i32_295 : i32
        %712 = arith.addf %710, %690 : vector<8x32xf32>
        %cst_296 = arith.constant dense<0.000000e+00> : vector<8xf32>
        %713 = vector.multi_reduction <add>, %712, %cst_296 [1] : vector<8x32xf32> to vector<8xf32>
        %714 = vector.shape_cast %713 : vector<8xf32> to vector<8x1xf32>
        %cst_297 = arith.constant 3.200000e+01 : f32
        %715 = vector.broadcast %cst_297 : f32 to vector<8x1xf32>
        %716 = arith.divf %714, %715 : vector<8x1xf32>
        %717 = arith.mulf %712, %712 : vector<8x32xf32>
        %cst_298 = arith.constant dense<0.000000e+00> : vector<8xf32>
        %718 = vector.multi_reduction <add>, %717, %cst_298 [1] : vector<8x32xf32> to vector<8xf32>
        %719 = vector.shape_cast %718 : vector<8xf32> to vector<8x1xf32>
        %cst_299 = arith.constant 3.200000e+01 : f32
        %720 = vector.broadcast %cst_299 : f32 to vector<8x1xf32>
        %721 = arith.divf %719, %720 : vector<8x1xf32>
        %722 = arith.mulf %716, %716 : vector<8x1xf32>
        %723 = arith.subf %721, %722 : vector<8x1xf32>
        %724 = vector.broadcast %716 : vector<8x1xf32> to vector<8x32xf32>
        %725 = arith.subf %712, %724 : vector<8x32xf32>
        %cst_300 = arith.constant 9.99999974E-6 : f32
        %726 = vector.broadcast %cst_300 : f32 to vector<8x1xf32>
        %727 = arith.addf %723, %726 : vector<8x1xf32>
        %728 = math.rsqrt %727 : vector<8x1xf32>
        %729 = vector.broadcast %728 : vector<8x1xf32> to vector<8x32xf32>
        %730 = arith.mulf %725, %729 : vector<8x32xf32>
        %731 = arith.index_cast %711 : i32 to index
        %c0_301 = arith.constant 0 : index
        %c0_302 = arith.constant 0 : index
        %732 = vector.load %arg8[%731, %c0_301, %c0_302] : memref<10x1x32xf32, #tpu.memory_space<vmem>>, vector<1x1x32xf32>
        %733 = vector.shape_cast %732 : vector<1x1x32xf32> to vector<1x32xf32>
        %734 = vector.broadcast %733 : vector<1x32xf32> to vector<8x32xf32>
        %735 = arith.mulf %730, %734 : vector<8x32xf32>
        %736 = arith.index_cast %711 : i32 to index
        %c0_303 = arith.constant 0 : index
        %c0_304 = arith.constant 0 : index
        %737 = vector.load %arg9[%736, %c0_303, %c0_304] : memref<10x1x32xf32, #tpu.memory_space<vmem>>, vector<1x1x32xf32>
        %738 = vector.shape_cast %737 : vector<1x1x32xf32> to vector<1x32xf32>
        %739 = vector.broadcast %738 : vector<1x32xf32> to vector<8x32xf32>
        %740 = arith.addf %735, %739 : vector<8x32xf32>
        scf.yield %740 : vector<8x32xf32>
      }
      %c2_i32_140 = arith.constant 2 : i32
      %c2_141 = arith.constant 2 : index
      %c0_142 = arith.constant 0 : index
      %c0_143 = arith.constant 0 : index
      %312 = vector.load %arg4[%c2_141, %c0_142, %c0_143] : memref<6x32x96xf32, #tpu.memory_space<vmem>>, vector<1x32x96xf32>
      %313 = vector.shape_cast %312 : vector<1x32x96xf32> to vector<32x96xf32>
      %cst_144 = arith.constant dense<0.000000e+00> : vector<8x96xf32>
      %314 = tpu.matmul %311, %313, %cst_144 {dimension_numbers = #tpu.dot_dimension_numbers<[1], [0], [0], [1], [0, 0, 1, 1], [], []>} : vector<8x32xf32>, vector<32x96xf32>, vector<8x96xf32> -> vector<8x96xf32>
      %c2_145 = arith.constant 2 : index
      %c0_146 = arith.constant 0 : index
      %c0_147 = arith.constant 0 : index
      %315 = vector.load %arg5[%c2_145, %c0_146, %c0_147] : memref<6x1x96xf32, #tpu.memory_space<vmem>>, vector<1x1x96xf32>
      %316 = vector.shape_cast %315 : vector<1x1x96xf32> to vector<1x96xf32>
      %317 = vector.broadcast %316 : vector<1x96xf32> to vector<8x96xf32>
      %318 = arith.addf %314, %317 : vector<8x96xf32>
      %319 = vector.extract_strided_slice %318 {offsets = [0, 0], sizes = [8, 32], strides = [1, 1]} : vector<8x96xf32> to vector<8x32xf32>
      %320 = vector.extract_strided_slice %318 {offsets = [0, 32], sizes = [8, 32], strides = [1, 1]} : vector<8x96xf32> to vector<8x32xf32>
      %321 = vector.extract_strided_slice %318 {offsets = [0, 64], sizes = [8, 32], strides = [1, 1]} : vector<8x96xf32> to vector<8x32xf32>
      %322 = vector.extract_strided_slice %319 {offsets = [0, 0], sizes = [8, 8], strides = [1, 1]} : vector<8x32xf32> to vector<8x8xf32>
      %323 = vector.extract_strided_slice %320 {offsets = [0, 0], sizes = [8, 8], strides = [1, 1]} : vector<8x32xf32> to vector<8x8xf32>
      %cst_148 = arith.constant dense<0.000000e+00> : vector<8x8xf32>
      %324 = tpu.matmul %322, %323, %cst_148 {dimension_numbers = #tpu.dot_dimension_numbers<[1], [1], [0], [0], [0, 0, 1, 0], [], []>} : vector<8x8xf32>, vector<8x8xf32>, vector<8x8xf32> -> vector<8x8xf32>
      %325 = arith.addf %324, %15 : vector<8x8xf32>
      %cst_149 = arith.constant dense<0xFF800000> : vector<8xf32>
      %326 = vector.multi_reduction <maximumf>, %325, %cst_149 [1] : vector<8x8xf32> to vector<8xf32>
      %327 = vector.shape_cast %326 : vector<8xf32> to vector<8x1xf32>
      %328 = vector.broadcast %327 : vector<8x1xf32> to vector<8x8xf32>
      %329 = arith.subf %325, %328 : vector<8x8xf32>
      %330 = math.exp %329 : vector<8x8xf32>
      %cst_150 = arith.constant dense<0.000000e+00> : vector<8xf32>
      %331 = vector.multi_reduction <add>, %330, %cst_150 [1] : vector<8x8xf32> to vector<8xf32>
      %332 = vector.shape_cast %331 : vector<8xf32> to vector<8x1xf32>
      %333 = tpu.reciprocal %332 {approx = true} : vector<8x1xf32> -> vector<8x1xf32>
      %334 = vector.broadcast %333 : vector<8x1xf32> to vector<8x8xf32>
      %335 = arith.mulf %330, %334 : vector<8x8xf32>
      %336 = vector.extract_strided_slice %321 {offsets = [0, 0], sizes = [8, 8], strides = [1, 1]} : vector<8x32xf32> to vector<8x8xf32>
      %cst_151 = arith.constant dense<0.000000e+00> : vector<8x8xf32>
      %337 = tpu.matmul %335, %336, %cst_151 {dimension_numbers = #tpu.dot_dimension_numbers<[1], [0], [0], [1], [0, 0, 1, 1], [], []>} : vector<8x8xf32>, vector<8x8xf32>, vector<8x8xf32> -> vector<8x8xf32>
      %338 = vector.extract_strided_slice %319 {offsets = [0, 8], sizes = [8, 8], strides = [1, 1]} : vector<8x32xf32> to vector<8x8xf32>
      %339 = vector.extract_strided_slice %320 {offsets = [0, 8], sizes = [8, 8], strides = [1, 1]} : vector<8x32xf32> to vector<8x8xf32>
      %cst_152 = arith.constant dense<0.000000e+00> : vector<8x8xf32>
      %340 = tpu.matmul %338, %339, %cst_152 {dimension_numbers = #tpu.dot_dimension_numbers<[1], [1], [0], [0], [0, 0, 1, 0], [], []>} : vector<8x8xf32>, vector<8x8xf32>, vector<8x8xf32> -> vector<8x8xf32>
      %341 = arith.addf %340, %15 : vector<8x8xf32>
      %cst_153 = arith.constant dense<0xFF800000> : vector<8xf32>
      %342 = vector.multi_reduction <maximumf>, %341, %cst_153 [1] : vector<8x8xf32> to vector<8xf32>
      %343 = vector.shape_cast %342 : vector<8xf32> to vector<8x1xf32>
      %344 = vector.broadcast %343 : vector<8x1xf32> to vector<8x8xf32>
      %345 = arith.subf %341, %344 : vector<8x8xf32>
      %346 = math.exp %345 : vector<8x8xf32>
      %cst_154 = arith.constant dense<0.000000e+00> : vector<8xf32>
      %347 = vector.multi_reduction <add>, %346, %cst_154 [1] : vector<8x8xf32> to vector<8xf32>
      %348 = vector.shape_cast %347 : vector<8xf32> to vector<8x1xf32>
      %349 = tpu.reciprocal %348 {approx = true} : vector<8x1xf32> -> vector<8x1xf32>
      %350 = vector.broadcast %349 : vector<8x1xf32> to vector<8x8xf32>
      %351 = arith.mulf %346, %350 : vector<8x8xf32>
      %352 = vector.extract_strided_slice %321 {offsets = [0, 8], sizes = [8, 8], strides = [1, 1]} : vector<8x32xf32> to vector<8x8xf32>
      %cst_155 = arith.constant dense<0.000000e+00> : vector<8x8xf32>
      %353 = tpu.matmul %351, %352, %cst_155 {dimension_numbers = #tpu.dot_dimension_numbers<[1], [0], [0], [1], [0, 0, 1, 1], [], []>} : vector<8x8xf32>, vector<8x8xf32>, vector<8x8xf32> -> vector<8x8xf32>
      %354 = vector.extract_strided_slice %319 {offsets = [0, 16], sizes = [8, 8], strides = [1, 1]} : vector<8x32xf32> to vector<8x8xf32>
      %355 = vector.extract_strided_slice %320 {offsets = [0, 16], sizes = [8, 8], strides = [1, 1]} : vector<8x32xf32> to vector<8x8xf32>
      %cst_156 = arith.constant dense<0.000000e+00> : vector<8x8xf32>
      %356 = tpu.matmul %354, %355, %cst_156 {dimension_numbers = #tpu.dot_dimension_numbers<[1], [1], [0], [0], [0, 0, 1, 0], [], []>} : vector<8x8xf32>, vector<8x8xf32>, vector<8x8xf32> -> vector<8x8xf32>
      %357 = arith.addf %356, %15 : vector<8x8xf32>
      %cst_157 = arith.constant dense<0xFF800000> : vector<8xf32>
      %358 = vector.multi_reduction <maximumf>, %357, %cst_157 [1] : vector<8x8xf32> to vector<8xf32>
      %359 = vector.shape_cast %358 : vector<8xf32> to vector<8x1xf32>
      %360 = vector.broadcast %359 : vector<8x1xf32> to vector<8x8xf32>
      %361 = arith.subf %357, %360 : vector<8x8xf32>
      %362 = math.exp %361 : vector<8x8xf32>
      %cst_158 = arith.constant dense<0.000000e+00> : vector<8xf32>
      %363 = vector.multi_reduction <add>, %362, %cst_158 [1] : vector<8x8xf32> to vector<8xf32>
      %364 = vector.shape_cast %363 : vector<8xf32> to vector<8x1xf32>
      %365 = tpu.reciprocal %364 {approx = true} : vector<8x1xf32> -> vector<8x1xf32>
      %366 = vector.broadcast %365 : vector<8x1xf32> to vector<8x8xf32>
      %367 = arith.mulf %362, %366 : vector<8x8xf32>
      %368 = vector.extract_strided_slice %321 {offsets = [0, 16], sizes = [8, 8], strides = [1, 1]} : vector<8x32xf32> to vector<8x8xf32>
      %cst_159 = arith.constant dense<0.000000e+00> : vector<8x8xf32>
      %369 = tpu.matmul %367, %368, %cst_159 {dimension_numbers = #tpu.dot_dimension_numbers<[1], [0], [0], [1], [0, 0, 1, 1], [], []>} : vector<8x8xf32>, vector<8x8xf32>, vector<8x8xf32> -> vector<8x8xf32>
      %370 = vector.extract_strided_slice %319 {offsets = [0, 24], sizes = [8, 8], strides = [1, 1]} : vector<8x32xf32> to vector<8x8xf32>
      %371 = vector.extract_strided_slice %320 {offsets = [0, 24], sizes = [8, 8], strides = [1, 1]} : vector<8x32xf32> to vector<8x8xf32>
      %cst_160 = arith.constant dense<0.000000e+00> : vector<8x8xf32>
      %372 = tpu.matmul %370, %371, %cst_160 {dimension_numbers = #tpu.dot_dimension_numbers<[1], [1], [0], [0], [0, 0, 1, 0], [], []>} : vector<8x8xf32>, vector<8x8xf32>, vector<8x8xf32> -> vector<8x8xf32>
      %373 = arith.addf %372, %15 : vector<8x8xf32>
      %cst_161 = arith.constant dense<0xFF800000> : vector<8xf32>
      %374 = vector.multi_reduction <maximumf>, %373, %cst_161 [1] : vector<8x8xf32> to vector<8xf32>
      %375 = vector.shape_cast %374 : vector<8xf32> to vector<8x1xf32>
      %376 = vector.broadcast %375 : vector<8x1xf32> to vector<8x8xf32>
      %377 = arith.subf %373, %376 : vector<8x8xf32>
      %378 = math.exp %377 : vector<8x8xf32>
      %cst_162 = arith.constant dense<0.000000e+00> : vector<8xf32>
      %379 = vector.multi_reduction <add>, %378, %cst_162 [1] : vector<8x8xf32> to vector<8xf32>
      %380 = vector.shape_cast %379 : vector<8xf32> to vector<8x1xf32>
      %381 = tpu.reciprocal %380 {approx = true} : vector<8x1xf32> -> vector<8x1xf32>
      %382 = vector.broadcast %381 : vector<8x1xf32> to vector<8x8xf32>
      %383 = arith.mulf %378, %382 : vector<8x8xf32>
      %384 = vector.extract_strided_slice %321 {offsets = [0, 24], sizes = [8, 8], strides = [1, 1]} : vector<8x32xf32> to vector<8x8xf32>
      %cst_163 = arith.constant dense<0.000000e+00> : vector<8x8xf32>
      %385 = tpu.matmul %383, %384, %cst_163 {dimension_numbers = #tpu.dot_dimension_numbers<[1], [0], [0], [1], [0, 0, 1, 1], [], []>} : vector<8x8xf32>, vector<8x8xf32>, vector<8x8xf32> -> vector<8x8xf32>
      %386 = tpu.concatenate %337, %353, %369, %385 in 1 : vector<8x8xf32>, vector<8x8xf32>, vector<8x8xf32>, vector<8x8xf32> -> vector<8x32xf32>
      %c2_164 = arith.constant 2 : index
      %c0_165 = arith.constant 0 : index
      %c0_166 = arith.constant 0 : index
      %387 = vector.load %arg6[%c2_164, %c0_165, %c0_166] : memref<6x32x32xf32, #tpu.memory_space<vmem>>, vector<1x32x32xf32>
      %388 = vector.shape_cast %387 : vector<1x32x32xf32> to vector<32x32xf32>
      %cst_167 = arith.constant dense<0.000000e+00> : vector<8x32xf32>
      %389 = tpu.matmul %386, %388, %cst_167 {dimension_numbers = #tpu.dot_dimension_numbers<[1], [0], [0], [1], [0, 0, 1, 1], [], []>} : vector<8x32xf32>, vector<32x32xf32>, vector<8x32xf32> -> vector<8x32xf32>
      %c2_168 = arith.constant 2 : index
      %c0_169 = arith.constant 0 : index
      %c0_170 = arith.constant 0 : index
      %390 = vector.load %arg7[%c2_168, %c0_169, %c0_170] : memref<6x1x32xf32, #tpu.memory_space<vmem>>, vector<1x1x32xf32>
      %391 = vector.shape_cast %390 : vector<1x1x32xf32> to vector<1x32xf32>
      %392 = vector.broadcast %391 : vector<1x32xf32> to vector<8x32xf32>
      %393 = arith.addf %389, %392 : vector<8x32xf32>
      %394 = arith.addf %393, %311 : vector<8x32xf32>
      %cst_171 = arith.constant dense<0.000000e+00> : vector<8xf32>
      %395 = vector.multi_reduction <add>, %394, %cst_171 [1] : vector<8x32xf32> to vector<8xf32>
      %396 = vector.shape_cast %395 : vector<8xf32> to vector<8x1xf32>
      %cst_172 = arith.constant 3.200000e+01 : f32
      %397 = vector.broadcast %cst_172 : f32 to vector<8x1xf32>
      %398 = arith.divf %396, %397 : vector<8x1xf32>
      %399 = arith.mulf %394, %394 : vector<8x32xf32>
      %cst_173 = arith.constant dense<0.000000e+00> : vector<8xf32>
      %400 = vector.multi_reduction <add>, %399, %cst_173 [1] : vector<8x32xf32> to vector<8xf32>
      %401 = vector.shape_cast %400 : vector<8xf32> to vector<8x1xf32>
      %cst_174 = arith.constant 3.200000e+01 : f32
      %402 = vector.broadcast %cst_174 : f32 to vector<8x1xf32>
      %403 = arith.divf %401, %402 : vector<8x1xf32>
      %404 = arith.mulf %398, %398 : vector<8x1xf32>
      %405 = arith.subf %403, %404 : vector<8x1xf32>
      %406 = vector.broadcast %398 : vector<8x1xf32> to vector<8x32xf32>
      %407 = arith.subf %394, %406 : vector<8x32xf32>
      %cst_175 = arith.constant 9.99999974E-6 : f32
      %408 = vector.broadcast %cst_175 : f32 to vector<8x1xf32>
      %409 = arith.addf %405, %408 : vector<8x1xf32>
      %410 = math.rsqrt %409 : vector<8x1xf32>
      %411 = vector.broadcast %410 : vector<8x1xf32> to vector<8x32xf32>
      %412 = arith.mulf %407, %411 : vector<8x32xf32>
      %c3_176 = arith.constant 3 : index
      %c0_177 = arith.constant 0 : index
      %c0_178 = arith.constant 0 : index
      %413 = vector.load %arg8[%c3_176, %c0_177, %c0_178] : memref<10x1x32xf32, #tpu.memory_space<vmem>>, vector<1x1x32xf32>
      %414 = vector.shape_cast %413 : vector<1x1x32xf32> to vector<1x32xf32>
      %415 = vector.broadcast %414 : vector<1x32xf32> to vector<8x32xf32>
      %416 = arith.mulf %412, %415 : vector<8x32xf32>
      %c3_179 = arith.constant 3 : index
      %c0_180 = arith.constant 0 : index
      %c0_181 = arith.constant 0 : index
      %417 = vector.load %arg9[%c3_179, %c0_180, %c0_181] : memref<10x1x32xf32, #tpu.memory_space<vmem>>, vector<1x1x32xf32>
      %418 = vector.shape_cast %417 : vector<1x1x32xf32> to vector<1x32xf32>
      %419 = vector.broadcast %418 : vector<1x32xf32> to vector<8x32xf32>
      %420 = arith.addf %416, %419 : vector<8x32xf32>
      %c3_182 = arith.constant 3 : index
      %c0_183 = arith.constant 0 : index
      %c0_184 = arith.constant 0 : index
      %421 = vector.load %arg4[%c3_182, %c0_183, %c0_184] : memref<6x32x96xf32, #tpu.memory_space<vmem>>, vector<1x32x96xf32>
      %422 = vector.shape_cast %421 : vector<1x32x96xf32> to vector<32x96xf32>
      %c3_185 = arith.constant 3 : index
      %c0_186 = arith.constant 0 : index
      %c0_187 = arith.constant 0 : index
      %423 = vector.load %arg5[%c3_185, %c0_186, %c0_187] : memref<6x1x96xf32, #tpu.memory_space<vmem>>, vector<1x1x96xf32>
      %424 = vector.shape_cast %423 : vector<1x1x96xf32> to vector<1x96xf32>
      %425 = vector.extract_strided_slice %422 {offsets = [0, 0], sizes = [32, 32], strides = [1, 1]} : vector<32x96xf32> to vector<32x32xf32>
      %cst_188 = arith.constant dense<0.000000e+00> : vector<8x32xf32>
      %426 = tpu.matmul %420, %425, %cst_188 {dimension_numbers = #tpu.dot_dimension_numbers<[1], [0], [0], [1], [0, 0, 1, 1], [], []>} : vector<8x32xf32>, vector<32x32xf32>, vector<8x32xf32> -> vector<8x32xf32>
      %427 = vector.extract_strided_slice %424 {offsets = [0, 0], sizes = [1, 32], strides = [1, 1]} : vector<1x96xf32> to vector<1x32xf32>
      %428 = vector.broadcast %427 : vector<1x32xf32> to vector<8x32xf32>
      %429 = arith.addf %426, %428 : vector<8x32xf32>
      %430 = vector.extract_strided_slice %429 {offsets = [0, 0], sizes = [8, 8], strides = [1, 1]} : vector<8x32xf32> to vector<8x8xf32>
      %431 = vector.extract_strided_slice %36 {offsets = [0, 0], sizes = [16, 8], strides = [1, 1]} : vector<16x32xf32> to vector<16x8xf32>
      %cst_189 = arith.constant dense<0.000000e+00> : vector<8x16xf32>
      %432 = tpu.matmul %430, %431, %cst_189 {dimension_numbers = #tpu.dot_dimension_numbers<[1], [1], [0], [0], [0, 0, 1, 0], [], []>} : vector<8x8xf32>, vector<16x8xf32>, vector<8x16xf32> -> vector<8x16xf32>
      %433 = vector.broadcast %9 : vector<1x16xf32> to vector<8x16xf32>
      %434 = arith.addf %432, %433 : vector<8x16xf32>
      %cst_190 = arith.constant dense<0xFF800000> : vector<8xf32>
      %435 = vector.multi_reduction <maximumf>, %434, %cst_190 [1] : vector<8x16xf32> to vector<8xf32>
      %436 = vector.shape_cast %435 : vector<8xf32> to vector<8x1xf32>
      %437 = vector.broadcast %436 : vector<8x1xf32> to vector<8x16xf32>
      %438 = arith.subf %434, %437 : vector<8x16xf32>
      %439 = math.exp %438 : vector<8x16xf32>
      %cst_191 = arith.constant dense<0.000000e+00> : vector<8xf32>
      %440 = vector.multi_reduction <add>, %439, %cst_191 [1] : vector<8x16xf32> to vector<8xf32>
      %441 = vector.shape_cast %440 : vector<8xf32> to vector<8x1xf32>
      %442 = tpu.reciprocal %441 {approx = true} : vector<8x1xf32> -> vector<8x1xf32>
      %443 = vector.broadcast %442 : vector<8x1xf32> to vector<8x16xf32>
      %444 = arith.mulf %439, %443 : vector<8x16xf32>
      %445 = vector.extract_strided_slice %37 {offsets = [0, 0], sizes = [16, 8], strides = [1, 1]} : vector<16x32xf32> to vector<16x8xf32>
      %cst_192 = arith.constant dense<0.000000e+00> : vector<8x8xf32>
      %446 = tpu.matmul %444, %445, %cst_192 {dimension_numbers = #tpu.dot_dimension_numbers<[1], [0], [0], [1], [0, 0, 1, 1], [], []>} : vector<8x16xf32>, vector<16x8xf32>, vector<8x8xf32> -> vector<8x8xf32>
      %447 = vector.extract_strided_slice %429 {offsets = [0, 8], sizes = [8, 8], strides = [1, 1]} : vector<8x32xf32> to vector<8x8xf32>
      %448 = vector.extract_strided_slice %36 {offsets = [0, 8], sizes = [16, 8], strides = [1, 1]} : vector<16x32xf32> to vector<16x8xf32>
      %cst_193 = arith.constant dense<0.000000e+00> : vector<8x16xf32>
      %449 = tpu.matmul %447, %448, %cst_193 {dimension_numbers = #tpu.dot_dimension_numbers<[1], [1], [0], [0], [0, 0, 1, 0], [], []>} : vector<8x8xf32>, vector<16x8xf32>, vector<8x16xf32> -> vector<8x16xf32>
      %450 = vector.broadcast %9 : vector<1x16xf32> to vector<8x16xf32>
      %451 = arith.addf %449, %450 : vector<8x16xf32>
      %cst_194 = arith.constant dense<0xFF800000> : vector<8xf32>
      %452 = vector.multi_reduction <maximumf>, %451, %cst_194 [1] : vector<8x16xf32> to vector<8xf32>
      %453 = vector.shape_cast %452 : vector<8xf32> to vector<8x1xf32>
      %454 = vector.broadcast %453 : vector<8x1xf32> to vector<8x16xf32>
      %455 = arith.subf %451, %454 : vector<8x16xf32>
      %456 = math.exp %455 : vector<8x16xf32>
      %cst_195 = arith.constant dense<0.000000e+00> : vector<8xf32>
      %457 = vector.multi_reduction <add>, %456, %cst_195 [1] : vector<8x16xf32> to vector<8xf32>
      %458 = vector.shape_cast %457 : vector<8xf32> to vector<8x1xf32>
      %459 = tpu.reciprocal %458 {approx = true} : vector<8x1xf32> -> vector<8x1xf32>
      %460 = vector.broadcast %459 : vector<8x1xf32> to vector<8x16xf32>
      %461 = arith.mulf %456, %460 : vector<8x16xf32>
      %462 = vector.extract_strided_slice %37 {offsets = [0, 8], sizes = [16, 8], strides = [1, 1]} : vector<16x32xf32> to vector<16x8xf32>
      %cst_196 = arith.constant dense<0.000000e+00> : vector<8x8xf32>
      %463 = tpu.matmul %461, %462, %cst_196 {dimension_numbers = #tpu.dot_dimension_numbers<[1], [0], [0], [1], [0, 0, 1, 1], [], []>} : vector<8x16xf32>, vector<16x8xf32>, vector<8x8xf32> -> vector<8x8xf32>
      %464 = vector.extract_strided_slice %429 {offsets = [0, 16], sizes = [8, 8], strides = [1, 1]} : vector<8x32xf32> to vector<8x8xf32>
      %465 = vector.extract_strided_slice %36 {offsets = [0, 16], sizes = [16, 8], strides = [1, 1]} : vector<16x32xf32> to vector<16x8xf32>
      %cst_197 = arith.constant dense<0.000000e+00> : vector<8x16xf32>
      %466 = tpu.matmul %464, %465, %cst_197 {dimension_numbers = #tpu.dot_dimension_numbers<[1], [1], [0], [0], [0, 0, 1, 0], [], []>} : vector<8x8xf32>, vector<16x8xf32>, vector<8x16xf32> -> vector<8x16xf32>
      %467 = vector.broadcast %9 : vector<1x16xf32> to vector<8x16xf32>
      %468 = arith.addf %466, %467 : vector<8x16xf32>
      %cst_198 = arith.constant dense<0xFF800000> : vector<8xf32>
      %469 = vector.multi_reduction <maximumf>, %468, %cst_198 [1] : vector<8x16xf32> to vector<8xf32>
      %470 = vector.shape_cast %469 : vector<8xf32> to vector<8x1xf32>
      %471 = vector.broadcast %470 : vector<8x1xf32> to vector<8x16xf32>
      %472 = arith.subf %468, %471 : vector<8x16xf32>
      %473 = math.exp %472 : vector<8x16xf32>
      %cst_199 = arith.constant dense<0.000000e+00> : vector<8xf32>
      %474 = vector.multi_reduction <add>, %473, %cst_199 [1] : vector<8x16xf32> to vector<8xf32>
      %475 = vector.shape_cast %474 : vector<8xf32> to vector<8x1xf32>
      %476 = tpu.reciprocal %475 {approx = true} : vector<8x1xf32> -> vector<8x1xf32>
      %477 = vector.broadcast %476 : vector<8x1xf32> to vector<8x16xf32>
      %478 = arith.mulf %473, %477 : vector<8x16xf32>
      %479 = vector.extract_strided_slice %37 {offsets = [0, 16], sizes = [16, 8], strides = [1, 1]} : vector<16x32xf32> to vector<16x8xf32>
      %cst_200 = arith.constant dense<0.000000e+00> : vector<8x8xf32>
      %480 = tpu.matmul %478, %479, %cst_200 {dimension_numbers = #tpu.dot_dimension_numbers<[1], [0], [0], [1], [0, 0, 1, 1], [], []>} : vector<8x16xf32>, vector<16x8xf32>, vector<8x8xf32> -> vector<8x8xf32>
      %481 = vector.extract_strided_slice %429 {offsets = [0, 24], sizes = [8, 8], strides = [1, 1]} : vector<8x32xf32> to vector<8x8xf32>
      %482 = vector.extract_strided_slice %36 {offsets = [0, 24], sizes = [16, 8], strides = [1, 1]} : vector<16x32xf32> to vector<16x8xf32>
      %cst_201 = arith.constant dense<0.000000e+00> : vector<8x16xf32>
      %483 = tpu.matmul %481, %482, %cst_201 {dimension_numbers = #tpu.dot_dimension_numbers<[1], [1], [0], [0], [0, 0, 1, 0], [], []>} : vector<8x8xf32>, vector<16x8xf32>, vector<8x16xf32> -> vector<8x16xf32>
      %484 = vector.broadcast %9 : vector<1x16xf32> to vector<8x16xf32>
      %485 = arith.addf %483, %484 : vector<8x16xf32>
      %cst_202 = arith.constant dense<0xFF800000> : vector<8xf32>
      %486 = vector.multi_reduction <maximumf>, %485, %cst_202 [1] : vector<8x16xf32> to vector<8xf32>
      %487 = vector.shape_cast %486 : vector<8xf32> to vector<8x1xf32>
      %488 = vector.broadcast %487 : vector<8x1xf32> to vector<8x16xf32>
      %489 = arith.subf %485, %488 : vector<8x16xf32>
      %490 = math.exp %489 : vector<8x16xf32>
      %cst_203 = arith.constant dense<0.000000e+00> : vector<8xf32>
      %491 = vector.multi_reduction <add>, %490, %cst_203 [1] : vector<8x16xf32> to vector<8xf32>
      %492 = vector.shape_cast %491 : vector<8xf32> to vector<8x1xf32>
      %493 = tpu.reciprocal %492 {approx = true} : vector<8x1xf32> -> vector<8x1xf32>
      %494 = vector.broadcast %493 : vector<8x1xf32> to vector<8x16xf32>
      %495 = arith.mulf %490, %494 : vector<8x16xf32>
      %496 = vector.extract_strided_slice %37 {offsets = [0, 24], sizes = [16, 8], strides = [1, 1]} : vector<16x32xf32> to vector<16x8xf32>
      %cst_204 = arith.constant dense<0.000000e+00> : vector<8x8xf32>
      %497 = tpu.matmul %495, %496, %cst_204 {dimension_numbers = #tpu.dot_dimension_numbers<[1], [0], [0], [1], [0, 0, 1, 1], [], []>} : vector<8x16xf32>, vector<16x8xf32>, vector<8x8xf32> -> vector<8x8xf32>
      %498 = tpu.concatenate %446, %463, %480, %497 in 1 : vector<8x8xf32>, vector<8x8xf32>, vector<8x8xf32>, vector<8x8xf32> -> vector<8x32xf32>
      %c3_205 = arith.constant 3 : index
      %c0_206 = arith.constant 0 : index
      %c0_207 = arith.constant 0 : index
      %499 = vector.load %arg6[%c3_205, %c0_206, %c0_207] : memref<6x32x32xf32, #tpu.memory_space<vmem>>, vector<1x32x32xf32>
      %500 = vector.shape_cast %499 : vector<1x32x32xf32> to vector<32x32xf32>
      %cst_208 = arith.constant dense<0.000000e+00> : vector<8x32xf32>
      %501 = tpu.matmul %498, %500, %cst_208 {dimension_numbers = #tpu.dot_dimension_numbers<[1], [0], [0], [1], [0, 0, 1, 1], [], []>} : vector<8x32xf32>, vector<32x32xf32>, vector<8x32xf32> -> vector<8x32xf32>
      %c3_209 = arith.constant 3 : index
      %c0_210 = arith.constant 0 : index
      %c0_211 = arith.constant 0 : index
      %502 = vector.load %arg7[%c3_209, %c0_210, %c0_211] : memref<6x1x32xf32, #tpu.memory_space<vmem>>, vector<1x1x32xf32>
      %503 = vector.shape_cast %502 : vector<1x1x32xf32> to vector<1x32xf32>
      %504 = vector.broadcast %503 : vector<1x32xf32> to vector<8x32xf32>
      %505 = arith.addf %501, %504 : vector<8x32xf32>
      %506 = arith.addf %505, %420 : vector<8x32xf32>
      %cst_212 = arith.constant dense<0.000000e+00> : vector<8xf32>
      %507 = vector.multi_reduction <add>, %506, %cst_212 [1] : vector<8x32xf32> to vector<8xf32>
      %508 = vector.shape_cast %507 : vector<8xf32> to vector<8x1xf32>
      %cst_213 = arith.constant 3.200000e+01 : f32
      %509 = vector.broadcast %cst_213 : f32 to vector<8x1xf32>
      %510 = arith.divf %508, %509 : vector<8x1xf32>
      %511 = arith.mulf %506, %506 : vector<8x32xf32>
      %cst_214 = arith.constant dense<0.000000e+00> : vector<8xf32>
      %512 = vector.multi_reduction <add>, %511, %cst_214 [1] : vector<8x32xf32> to vector<8xf32>
      %513 = vector.shape_cast %512 : vector<8xf32> to vector<8x1xf32>
      %cst_215 = arith.constant 3.200000e+01 : f32
      %514 = vector.broadcast %cst_215 : f32 to vector<8x1xf32>
      %515 = arith.divf %513, %514 : vector<8x1xf32>
      %516 = arith.mulf %510, %510 : vector<8x1xf32>
      %517 = arith.subf %515, %516 : vector<8x1xf32>
      %518 = vector.broadcast %510 : vector<8x1xf32> to vector<8x32xf32>
      %519 = arith.subf %506, %518 : vector<8x32xf32>
      %cst_216 = arith.constant 9.99999974E-6 : f32
      %520 = vector.broadcast %cst_216 : f32 to vector<8x1xf32>
      %521 = arith.addf %517, %520 : vector<8x1xf32>
      %522 = math.rsqrt %521 : vector<8x1xf32>
      %523 = vector.broadcast %522 : vector<8x1xf32> to vector<8x32xf32>
      %524 = arith.mulf %519, %523 : vector<8x32xf32>
      %c4 = arith.constant 4 : index
      %c0_217 = arith.constant 0 : index
      %c0_218 = arith.constant 0 : index
      %525 = vector.load %arg8[%c4, %c0_217, %c0_218] : memref<10x1x32xf32, #tpu.memory_space<vmem>>, vector<1x1x32xf32>
      %526 = vector.shape_cast %525 : vector<1x1x32xf32> to vector<1x32xf32>
      %527 = vector.broadcast %526 : vector<1x32xf32> to vector<8x32xf32>
      %528 = arith.mulf %524, %527 : vector<8x32xf32>
      %c4_219 = arith.constant 4 : index
      %c0_220 = arith.constant 0 : index
      %c0_221 = arith.constant 0 : index
      %529 = vector.load %arg9[%c4_219, %c0_220, %c0_221] : memref<10x1x32xf32, #tpu.memory_space<vmem>>, vector<1x1x32xf32>
      %530 = vector.shape_cast %529 : vector<1x1x32xf32> to vector<1x32xf32>
      %531 = vector.broadcast %530 : vector<1x32xf32> to vector<8x32xf32>
      %532 = arith.addf %528, %531 : vector<8x32xf32>
      %c1_222 = arith.constant 1 : index
      %c0_223 = arith.constant 0 : index
      %c0_224 = arith.constant 0 : index
      %533 = vector.load %arg10[%c1_222, %c0_223, %c0_224] : memref<4x32x64xf32, #tpu.memory_space<vmem>>, vector<1x32x64xf32>
      %534 = vector.shape_cast %533 : vector<1x32x64xf32> to vector<32x64xf32>
      %cst_225 = arith.constant dense<0.000000e+00> : vector<8x64xf32>
      %535 = tpu.matmul %532, %534, %cst_225 {dimension_numbers = #tpu.dot_dimension_numbers<[1], [0], [0], [1], [0, 0, 1, 1], [], []>} : vector<8x32xf32>, vector<32x64xf32>, vector<8x64xf32> -> vector<8x64xf32>
      %c1_226 = arith.constant 1 : index
      %c0_227 = arith.constant 0 : index
      %c0_228 = arith.constant 0 : index
      %536 = vector.load %arg11[%c1_226, %c0_227, %c0_228] : memref<4x1x64xf32, #tpu.memory_space<vmem>>, vector<1x1x64xf32>
      %537 = vector.shape_cast %536 : vector<1x1x64xf32> to vector<1x64xf32>
      %538 = vector.broadcast %537 : vector<1x64xf32> to vector<8x64xf32>
      %539 = arith.addf %535, %538 : vector<8x64xf32>
      %cst_229 = arith.constant 0.000000e+00 : f32
      %540 = vector.broadcast %cst_229 : f32 to vector<8x64xf32>
      %541 = arith.maximumf %539, %540 : vector<8x64xf32>
      %c1_230 = arith.constant 1 : index
      %c0_231 = arith.constant 0 : index
      %c0_232 = arith.constant 0 : index
      %542 = vector.load %arg12[%c1_230, %c0_231, %c0_232] : memref<4x64x32xf32, #tpu.memory_space<vmem>>, vector<1x64x32xf32>
      %543 = vector.shape_cast %542 : vector<1x64x32xf32> to vector<64x32xf32>
      %cst_233 = arith.constant dense<0.000000e+00> : vector<8x32xf32>
      %544 = tpu.matmul %541, %543, %cst_233 {dimension_numbers = #tpu.dot_dimension_numbers<[1], [0], [0], [1], [0, 0, 1, 1], [], []>} : vector<8x64xf32>, vector<64x32xf32>, vector<8x32xf32> -> vector<8x32xf32>
      %c1_234 = arith.constant 1 : index
      %c0_235 = arith.constant 0 : index
      %c0_236 = arith.constant 0 : index
      %545 = vector.load %arg13[%c1_234, %c0_235, %c0_236] : memref<4x1x32xf32, #tpu.memory_space<vmem>>, vector<1x1x32xf32>
      %546 = vector.shape_cast %545 : vector<1x1x32xf32> to vector<1x32xf32>
      %547 = vector.broadcast %546 : vector<1x32xf32> to vector<8x32xf32>
      %548 = arith.addf %544, %547 : vector<8x32xf32>
      %549 = arith.addf %548, %532 : vector<8x32xf32>
      %cst_237 = arith.constant dense<0.000000e+00> : vector<8xf32>
      %550 = vector.multi_reduction <add>, %549, %cst_237 [1] : vector<8x32xf32> to vector<8xf32>
      %551 = vector.shape_cast %550 : vector<8xf32> to vector<8x1xf32>
      %cst_238 = arith.constant 3.200000e+01 : f32
      %552 = vector.broadcast %cst_238 : f32 to vector<8x1xf32>
      %553 = arith.divf %551, %552 : vector<8x1xf32>
      %554 = arith.mulf %549, %549 : vector<8x32xf32>
      %cst_239 = arith.constant dense<0.000000e+00> : vector<8xf32>
      %555 = vector.multi_reduction <add>, %554, %cst_239 [1] : vector<8x32xf32> to vector<8xf32>
      %556 = vector.shape_cast %555 : vector<8xf32> to vector<8x1xf32>
      %cst_240 = arith.constant 3.200000e+01 : f32
      %557 = vector.broadcast %cst_240 : f32 to vector<8x1xf32>
      %558 = arith.divf %556, %557 : vector<8x1xf32>
      %559 = arith.mulf %553, %553 : vector<8x1xf32>
      %560 = arith.subf %558, %559 : vector<8x1xf32>
      %561 = vector.broadcast %553 : vector<8x1xf32> to vector<8x32xf32>
      %562 = arith.subf %549, %561 : vector<8x32xf32>
      %cst_241 = arith.constant 9.99999974E-6 : f32
      %563 = vector.broadcast %cst_241 : f32 to vector<8x1xf32>
      %564 = arith.addf %560, %563 : vector<8x1xf32>
      %565 = math.rsqrt %564 : vector<8x1xf32>
      %566 = vector.broadcast %565 : vector<8x1xf32> to vector<8x32xf32>
      %567 = arith.mulf %562, %566 : vector<8x32xf32>
      %c5 = arith.constant 5 : index
      %c0_242 = arith.constant 0 : index
      %c0_243 = arith.constant 0 : index
      %568 = vector.load %arg8[%c5, %c0_242, %c0_243] : memref<10x1x32xf32, #tpu.memory_space<vmem>>, vector<1x1x32xf32>
      %569 = vector.shape_cast %568 : vector<1x1x32xf32> to vector<1x32xf32>
      %570 = vector.broadcast %569 : vector<1x32xf32> to vector<8x32xf32>
      %571 = arith.mulf %567, %570 : vector<8x32xf32>
      %c5_244 = arith.constant 5 : index
      %c0_245 = arith.constant 0 : index
      %c0_246 = arith.constant 0 : index
      %572 = vector.load %arg9[%c5_244, %c0_245, %c0_246] : memref<10x1x32xf32, #tpu.memory_space<vmem>>, vector<1x1x32xf32>
      %573 = vector.shape_cast %572 : vector<1x1x32xf32> to vector<1x32xf32>
      %574 = vector.broadcast %573 : vector<1x32xf32> to vector<8x32xf32>
      %575 = arith.addf %571, %574 : vector<8x32xf32>
      scf.yield %575 : vector<8x32xf32>
    }
    %c0_i32_130 = arith.constant 0 : i32
    %c2_i32_131 = arith.constant 2 : i32
    %305 = arith.addi %c0_i32_130, %c2_i32_131 : i32
    %c1_i32_132 = arith.constant 1 : i32
    %306 = scf.for %arg15 = %c0_i32_130 to %305 step %c1_i32_132 iter_args(%arg16 = %304) -> (vector<8x32xf32>)  : i32 {
      %c4_i32 = arith.constant 4 : i32
      %310 = arith.addi %c4_i32, %arg15 : i32
      %c2_i32_137 = arith.constant 2 : i32
      %311 = arith.muli %c2_i32_137, %arg15 : i32
      %c6_i32 = arith.constant 6 : i32
      %312 = arith.addi %c6_i32, %311 : i32
      %c2_i32_138 = arith.constant 2 : i32
      %313 = arith.addi %c2_i32_138, %arg15 : i32
      %314 = arith.index_cast %310 : i32 to index
      %c0_139 = arith.constant 0 : index
      %c0_140 = arith.constant 0 : index
      %315 = vector.load %arg4[%314, %c0_139, %c0_140] : memref<6x32x96xf32, #tpu.memory_space<vmem>>, vector<1x32x96xf32>
      %316 = vector.shape_cast %315 : vector<1x32x96xf32> to vector<32x96xf32>
      %cst_141 = arith.constant dense<0.000000e+00> : vector<8x96xf32>
      %317 = tpu.matmul %arg16, %316, %cst_141 {dimension_numbers = #tpu.dot_dimension_numbers<[1], [0], [0], [1], [0, 0, 1, 1], [], []>} : vector<8x32xf32>, vector<32x96xf32>, vector<8x96xf32> -> vector<8x96xf32>
      %318 = arith.index_cast %310 : i32 to index
      %c0_142 = arith.constant 0 : index
      %c0_143 = arith.constant 0 : index
      %319 = vector.load %arg5[%318, %c0_142, %c0_143] : memref<6x1x96xf32, #tpu.memory_space<vmem>>, vector<1x1x96xf32>
      %320 = vector.shape_cast %319 : vector<1x1x96xf32> to vector<1x96xf32>
      %321 = vector.broadcast %320 : vector<1x96xf32> to vector<8x96xf32>
      %322 = arith.addf %317, %321 : vector<8x96xf32>
      %323 = vector.extract_strided_slice %322 {offsets = [0, 0], sizes = [8, 32], strides = [1, 1]} : vector<8x96xf32> to vector<8x32xf32>
      %324 = vector.extract_strided_slice %322 {offsets = [0, 32], sizes = [8, 32], strides = [1, 1]} : vector<8x96xf32> to vector<8x32xf32>
      %325 = vector.extract_strided_slice %322 {offsets = [0, 64], sizes = [8, 32], strides = [1, 1]} : vector<8x96xf32> to vector<8x32xf32>
      %326 = vector.extract_strided_slice %323 {offsets = [0, 0], sizes = [8, 8], strides = [1, 1]} : vector<8x32xf32> to vector<8x8xf32>
      %327 = vector.extract_strided_slice %324 {offsets = [0, 0], sizes = [8, 8], strides = [1, 1]} : vector<8x32xf32> to vector<8x8xf32>
      %cst_144 = arith.constant dense<0.000000e+00> : vector<8x8xf32>
      %328 = tpu.matmul %326, %327, %cst_144 {dimension_numbers = #tpu.dot_dimension_numbers<[1], [1], [0], [0], [0, 0, 1, 0], [], []>} : vector<8x8xf32>, vector<8x8xf32>, vector<8x8xf32> -> vector<8x8xf32>
      %cst_145 = arith.constant dense<0xFF800000> : vector<8xf32>
      %329 = vector.multi_reduction <maximumf>, %328, %cst_145 [1] : vector<8x8xf32> to vector<8xf32>
      %330 = vector.shape_cast %329 : vector<8xf32> to vector<8x1xf32>
      %331 = vector.broadcast %330 : vector<8x1xf32> to vector<8x8xf32>
      %332 = arith.subf %328, %331 : vector<8x8xf32>
      %333 = math.exp %332 : vector<8x8xf32>
      %cst_146 = arith.constant dense<0.000000e+00> : vector<8xf32>
      %334 = vector.multi_reduction <add>, %333, %cst_146 [1] : vector<8x8xf32> to vector<8xf32>
      %335 = vector.shape_cast %334 : vector<8xf32> to vector<8x1xf32>
      %336 = tpu.reciprocal %335 {approx = true} : vector<8x1xf32> -> vector<8x1xf32>
      %337 = vector.broadcast %336 : vector<8x1xf32> to vector<8x8xf32>
      %338 = arith.mulf %333, %337 : vector<8x8xf32>
      %339 = vector.extract_strided_slice %325 {offsets = [0, 0], sizes = [8, 8], strides = [1, 1]} : vector<8x32xf32> to vector<8x8xf32>
      %cst_147 = arith.constant dense<0.000000e+00> : vector<8x8xf32>
      %340 = tpu.matmul %338, %339, %cst_147 {dimension_numbers = #tpu.dot_dimension_numbers<[1], [0], [0], [1], [0, 0, 1, 1], [], []>} : vector<8x8xf32>, vector<8x8xf32>, vector<8x8xf32> -> vector<8x8xf32>
      %341 = vector.extract_strided_slice %323 {offsets = [0, 8], sizes = [8, 8], strides = [1, 1]} : vector<8x32xf32> to vector<8x8xf32>
      %342 = vector.extract_strided_slice %324 {offsets = [0, 8], sizes = [8, 8], strides = [1, 1]} : vector<8x32xf32> to vector<8x8xf32>
      %cst_148 = arith.constant dense<0.000000e+00> : vector<8x8xf32>
      %343 = tpu.matmul %341, %342, %cst_148 {dimension_numbers = #tpu.dot_dimension_numbers<[1], [1], [0], [0], [0, 0, 1, 0], [], []>} : vector<8x8xf32>, vector<8x8xf32>, vector<8x8xf32> -> vector<8x8xf32>
      %cst_149 = arith.constant dense<0xFF800000> : vector<8xf32>
      %344 = vector.multi_reduction <maximumf>, %343, %cst_149 [1] : vector<8x8xf32> to vector<8xf32>
      %345 = vector.shape_cast %344 : vector<8xf32> to vector<8x1xf32>
      %346 = vector.broadcast %345 : vector<8x1xf32> to vector<8x8xf32>
      %347 = arith.subf %343, %346 : vector<8x8xf32>
      %348 = math.exp %347 : vector<8x8xf32>
      %cst_150 = arith.constant dense<0.000000e+00> : vector<8xf32>
      %349 = vector.multi_reduction <add>, %348, %cst_150 [1] : vector<8x8xf32> to vector<8xf32>
      %350 = vector.shape_cast %349 : vector<8xf32> to vector<8x1xf32>
      %351 = tpu.reciprocal %350 {approx = true} : vector<8x1xf32> -> vector<8x1xf32>
      %352 = vector.broadcast %351 : vector<8x1xf32> to vector<8x8xf32>
      %353 = arith.mulf %348, %352 : vector<8x8xf32>
      %354 = vector.extract_strided_slice %325 {offsets = [0, 8], sizes = [8, 8], strides = [1, 1]} : vector<8x32xf32> to vector<8x8xf32>
      %cst_151 = arith.constant dense<0.000000e+00> : vector<8x8xf32>
      %355 = tpu.matmul %353, %354, %cst_151 {dimension_numbers = #tpu.dot_dimension_numbers<[1], [0], [0], [1], [0, 0, 1, 1], [], []>} : vector<8x8xf32>, vector<8x8xf32>, vector<8x8xf32> -> vector<8x8xf32>
      %356 = vector.extract_strided_slice %323 {offsets = [0, 16], sizes = [8, 8], strides = [1, 1]} : vector<8x32xf32> to vector<8x8xf32>
      %357 = vector.extract_strided_slice %324 {offsets = [0, 16], sizes = [8, 8], strides = [1, 1]} : vector<8x32xf32> to vector<8x8xf32>
      %cst_152 = arith.constant dense<0.000000e+00> : vector<8x8xf32>
      %358 = tpu.matmul %356, %357, %cst_152 {dimension_numbers = #tpu.dot_dimension_numbers<[1], [1], [0], [0], [0, 0, 1, 0], [], []>} : vector<8x8xf32>, vector<8x8xf32>, vector<8x8xf32> -> vector<8x8xf32>
      %cst_153 = arith.constant dense<0xFF800000> : vector<8xf32>
      %359 = vector.multi_reduction <maximumf>, %358, %cst_153 [1] : vector<8x8xf32> to vector<8xf32>
      %360 = vector.shape_cast %359 : vector<8xf32> to vector<8x1xf32>
      %361 = vector.broadcast %360 : vector<8x1xf32> to vector<8x8xf32>
      %362 = arith.subf %358, %361 : vector<8x8xf32>
      %363 = math.exp %362 : vector<8x8xf32>
      %cst_154 = arith.constant dense<0.000000e+00> : vector<8xf32>
      %364 = vector.multi_reduction <add>, %363, %cst_154 [1] : vector<8x8xf32> to vector<8xf32>
      %365 = vector.shape_cast %364 : vector<8xf32> to vector<8x1xf32>
      %366 = tpu.reciprocal %365 {approx = true} : vector<8x1xf32> -> vector<8x1xf32>
      %367 = vector.broadcast %366 : vector<8x1xf32> to vector<8x8xf32>
      %368 = arith.mulf %363, %367 : vector<8x8xf32>
      %369 = vector.extract_strided_slice %325 {offsets = [0, 16], sizes = [8, 8], strides = [1, 1]} : vector<8x32xf32> to vector<8x8xf32>
      %cst_155 = arith.constant dense<0.000000e+00> : vector<8x8xf32>
      %370 = tpu.matmul %368, %369, %cst_155 {dimension_numbers = #tpu.dot_dimension_numbers<[1], [0], [0], [1], [0, 0, 1, 1], [], []>} : vector<8x8xf32>, vector<8x8xf32>, vector<8x8xf32> -> vector<8x8xf32>
      %371 = vector.extract_strided_slice %323 {offsets = [0, 24], sizes = [8, 8], strides = [1, 1]} : vector<8x32xf32> to vector<8x8xf32>
      %372 = vector.extract_strided_slice %324 {offsets = [0, 24], sizes = [8, 8], strides = [1, 1]} : vector<8x32xf32> to vector<8x8xf32>
      %cst_156 = arith.constant dense<0.000000e+00> : vector<8x8xf32>
      %373 = tpu.matmul %371, %372, %cst_156 {dimension_numbers = #tpu.dot_dimension_numbers<[1], [1], [0], [0], [0, 0, 1, 0], [], []>} : vector<8x8xf32>, vector<8x8xf32>, vector<8x8xf32> -> vector<8x8xf32>
      %cst_157 = arith.constant dense<0xFF800000> : vector<8xf32>
      %374 = vector.multi_reduction <maximumf>, %373, %cst_157 [1] : vector<8x8xf32> to vector<8xf32>
      %375 = vector.shape_cast %374 : vector<8xf32> to vector<8x1xf32>
      %376 = vector.broadcast %375 : vector<8x1xf32> to vector<8x8xf32>
      %377 = arith.subf %373, %376 : vector<8x8xf32>
      %378 = math.exp %377 : vector<8x8xf32>
      %cst_158 = arith.constant dense<0.000000e+00> : vector<8xf32>
      %379 = vector.multi_reduction <add>, %378, %cst_158 [1] : vector<8x8xf32> to vector<8xf32>
      %380 = vector.shape_cast %379 : vector<8xf32> to vector<8x1xf32>
      %381 = tpu.reciprocal %380 {approx = true} : vector<8x1xf32> -> vector<8x1xf32>
      %382 = vector.broadcast %381 : vector<8x1xf32> to vector<8x8xf32>
      %383 = arith.mulf %378, %382 : vector<8x8xf32>
      %384 = vector.extract_strided_slice %325 {offsets = [0, 24], sizes = [8, 8], strides = [1, 1]} : vector<8x32xf32> to vector<8x8xf32>
      %cst_159 = arith.constant dense<0.000000e+00> : vector<8x8xf32>
      %385 = tpu.matmul %383, %384, %cst_159 {dimension_numbers = #tpu.dot_dimension_numbers<[1], [0], [0], [1], [0, 0, 1, 1], [], []>} : vector<8x8xf32>, vector<8x8xf32>, vector<8x8xf32> -> vector<8x8xf32>
      %386 = tpu.concatenate %340, %355, %370, %385 in 1 : vector<8x8xf32>, vector<8x8xf32>, vector<8x8xf32>, vector<8x8xf32> -> vector<8x32xf32>
      %387 = arith.index_cast %310 : i32 to index
      %c0_160 = arith.constant 0 : index
      %c0_161 = arith.constant 0 : index
      %388 = vector.load %arg6[%387, %c0_160, %c0_161] : memref<6x32x32xf32, #tpu.memory_space<vmem>>, vector<1x32x32xf32>
      %389 = vector.shape_cast %388 : vector<1x32x32xf32> to vector<32x32xf32>
      %cst_162 = arith.constant dense<0.000000e+00> : vector<8x32xf32>
      %390 = tpu.matmul %386, %389, %cst_162 {dimension_numbers = #tpu.dot_dimension_numbers<[1], [0], [0], [1], [0, 0, 1, 1], [], []>} : vector<8x32xf32>, vector<32x32xf32>, vector<8x32xf32> -> vector<8x32xf32>
      %391 = arith.index_cast %310 : i32 to index
      %c0_163 = arith.constant 0 : index
      %c0_164 = arith.constant 0 : index
      %392 = vector.load %arg7[%391, %c0_163, %c0_164] : memref<6x1x32xf32, #tpu.memory_space<vmem>>, vector<1x1x32xf32>
      %393 = vector.shape_cast %392 : vector<1x1x32xf32> to vector<1x32xf32>
      %394 = vector.broadcast %393 : vector<1x32xf32> to vector<8x32xf32>
      %395 = arith.addf %390, %394 : vector<8x32xf32>
      %396 = arith.addf %395, %arg16 : vector<8x32xf32>
      %cst_165 = arith.constant dense<0.000000e+00> : vector<8xf32>
      %397 = vector.multi_reduction <add>, %396, %cst_165 [1] : vector<8x32xf32> to vector<8xf32>
      %398 = vector.shape_cast %397 : vector<8xf32> to vector<8x1xf32>
      %cst_166 = arith.constant 3.200000e+01 : f32
      %399 = vector.broadcast %cst_166 : f32 to vector<8x1xf32>
      %400 = arith.divf %398, %399 : vector<8x1xf32>
      %401 = arith.mulf %396, %396 : vector<8x32xf32>
      %cst_167 = arith.constant dense<0.000000e+00> : vector<8xf32>
      %402 = vector.multi_reduction <add>, %401, %cst_167 [1] : vector<8x32xf32> to vector<8xf32>
      %403 = vector.shape_cast %402 : vector<8xf32> to vector<8x1xf32>
      %cst_168 = arith.constant 3.200000e+01 : f32
      %404 = vector.broadcast %cst_168 : f32 to vector<8x1xf32>
      %405 = arith.divf %403, %404 : vector<8x1xf32>
      %406 = arith.mulf %400, %400 : vector<8x1xf32>
      %407 = arith.subf %405, %406 : vector<8x1xf32>
      %408 = vector.broadcast %400 : vector<8x1xf32> to vector<8x32xf32>
      %409 = arith.subf %396, %408 : vector<8x32xf32>
      %cst_169 = arith.constant 9.99999974E-6 : f32
      %410 = vector.broadcast %cst_169 : f32 to vector<8x1xf32>
      %411 = arith.addf %407, %410 : vector<8x1xf32>
      %412 = math.rsqrt %411 : vector<8x1xf32>
      %413 = vector.broadcast %412 : vector<8x1xf32> to vector<8x32xf32>
      %414 = arith.mulf %409, %413 : vector<8x32xf32>
      %415 = arith.index_cast %312 : i32 to index
      %c0_170 = arith.constant 0 : index
      %c0_171 = arith.constant 0 : index
      %416 = vector.load %arg8[%415, %c0_170, %c0_171] : memref<10x1x32xf32, #tpu.memory_space<vmem>>, vector<1x1x32xf32>
      %417 = vector.shape_cast %416 : vector<1x1x32xf32> to vector<1x32xf32>
      %418 = vector.broadcast %417 : vector<1x32xf32> to vector<8x32xf32>
      %419 = arith.mulf %414, %418 : vector<8x32xf32>
      %420 = arith.index_cast %312 : i32 to index
      %c0_172 = arith.constant 0 : index
      %c0_173 = arith.constant 0 : index
      %421 = vector.load %arg9[%420, %c0_172, %c0_173] : memref<10x1x32xf32, #tpu.memory_space<vmem>>, vector<1x1x32xf32>
      %422 = vector.shape_cast %421 : vector<1x1x32xf32> to vector<1x32xf32>
      %423 = vector.broadcast %422 : vector<1x32xf32> to vector<8x32xf32>
      %424 = arith.addf %419, %423 : vector<8x32xf32>
      %425 = arith.index_cast %313 : i32 to index
      %c0_174 = arith.constant 0 : index
      %c0_175 = arith.constant 0 : index
      %426 = vector.load %arg10[%425, %c0_174, %c0_175] : memref<4x32x64xf32, #tpu.memory_space<vmem>>, vector<1x32x64xf32>
      %427 = vector.shape_cast %426 : vector<1x32x64xf32> to vector<32x64xf32>
      %cst_176 = arith.constant dense<0.000000e+00> : vector<8x64xf32>
      %428 = tpu.matmul %424, %427, %cst_176 {dimension_numbers = #tpu.dot_dimension_numbers<[1], [0], [0], [1], [0, 0, 1, 1], [], []>} : vector<8x32xf32>, vector<32x64xf32>, vector<8x64xf32> -> vector<8x64xf32>
      %429 = arith.index_cast %313 : i32 to index
      %c0_177 = arith.constant 0 : index
      %c0_178 = arith.constant 0 : index
      %430 = vector.load %arg11[%429, %c0_177, %c0_178] : memref<4x1x64xf32, #tpu.memory_space<vmem>>, vector<1x1x64xf32>
      %431 = vector.shape_cast %430 : vector<1x1x64xf32> to vector<1x64xf32>
      %432 = vector.broadcast %431 : vector<1x64xf32> to vector<8x64xf32>
      %433 = arith.addf %428, %432 : vector<8x64xf32>
      %cst_179 = arith.constant 0.000000e+00 : f32
      %434 = vector.broadcast %cst_179 : f32 to vector<8x64xf32>
      %435 = arith.maximumf %433, %434 : vector<8x64xf32>
      %436 = arith.index_cast %313 : i32 to index
      %c0_180 = arith.constant 0 : index
      %c0_181 = arith.constant 0 : index
      %437 = vector.load %arg12[%436, %c0_180, %c0_181] : memref<4x64x32xf32, #tpu.memory_space<vmem>>, vector<1x64x32xf32>
      %438 = vector.shape_cast %437 : vector<1x64x32xf32> to vector<64x32xf32>
      %cst_182 = arith.constant dense<0.000000e+00> : vector<8x32xf32>
      %439 = tpu.matmul %435, %438, %cst_182 {dimension_numbers = #tpu.dot_dimension_numbers<[1], [0], [0], [1], [0, 0, 1, 1], [], []>} : vector<8x64xf32>, vector<64x32xf32>, vector<8x32xf32> -> vector<8x32xf32>
      %440 = arith.index_cast %313 : i32 to index
      %c0_183 = arith.constant 0 : index
      %c0_184 = arith.constant 0 : index
      %441 = vector.load %arg13[%440, %c0_183, %c0_184] : memref<4x1x32xf32, #tpu.memory_space<vmem>>, vector<1x1x32xf32>
      %442 = vector.shape_cast %441 : vector<1x1x32xf32> to vector<1x32xf32>
      %443 = vector.broadcast %442 : vector<1x32xf32> to vector<8x32xf32>
      %444 = arith.addf %439, %443 : vector<8x32xf32>
      %c1_i32_185 = arith.constant 1 : i32
      %445 = arith.addi %312, %c1_i32_185 : i32
      %446 = arith.addf %444, %424 : vector<8x32xf32>
      %cst_186 = arith.constant dense<0.000000e+00> : vector<8xf32>
      %447 = vector.multi_reduction <add>, %446, %cst_186 [1] : vector<8x32xf32> to vector<8xf32>
      %448 = vector.shape_cast %447 : vector<8xf32> to vector<8x1xf32>
      %cst_187 = arith.constant 3.200000e+01 : f32
      %449 = vector.broadcast %cst_187 : f32 to vector<8x1xf32>
      %450 = arith.divf %448, %449 : vector<8x1xf32>
      %451 = arith.mulf %446, %446 : vector<8x32xf32>
      %cst_188 = arith.constant dense<0.000000e+00> : vector<8xf32>
      %452 = vector.multi_reduction <add>, %451, %cst_188 [1] : vector<8x32xf32> to vector<8xf32>
      %453 = vector.shape_cast %452 : vector<8xf32> to vector<8x1xf32>
      %cst_189 = arith.constant 3.200000e+01 : f32
      %454 = vector.broadcast %cst_189 : f32 to vector<8x1xf32>
      %455 = arith.divf %453, %454 : vector<8x1xf32>
      %456 = arith.mulf %450, %450 : vector<8x1xf32>
      %457 = arith.subf %455, %456 : vector<8x1xf32>
      %458 = vector.broadcast %450 : vector<8x1xf32> to vector<8x32xf32>
      %459 = arith.subf %446, %458 : vector<8x32xf32>
      %cst_190 = arith.constant 9.99999974E-6 : f32
      %460 = vector.broadcast %cst_190 : f32 to vector<8x1xf32>
      %461 = arith.addf %457, %460 : vector<8x1xf32>
      %462 = math.rsqrt %461 : vector<8x1xf32>
      %463 = vector.broadcast %462 : vector<8x1xf32> to vector<8x32xf32>
      %464 = arith.mulf %459, %463 : vector<8x32xf32>
      %465 = arith.index_cast %445 : i32 to index
      %c0_191 = arith.constant 0 : index
      %c0_192 = arith.constant 0 : index
      %466 = vector.load %arg8[%465, %c0_191, %c0_192] : memref<10x1x32xf32, #tpu.memory_space<vmem>>, vector<1x1x32xf32>
      %467 = vector.shape_cast %466 : vector<1x1x32xf32> to vector<1x32xf32>
      %468 = vector.broadcast %467 : vector<1x32xf32> to vector<8x32xf32>
      %469 = arith.mulf %464, %468 : vector<8x32xf32>
      %470 = arith.index_cast %445 : i32 to index
      %c0_193 = arith.constant 0 : index
      %c0_194 = arith.constant 0 : index
      %471 = vector.load %arg9[%470, %c0_193, %c0_194] : memref<10x1x32xf32, #tpu.memory_space<vmem>>, vector<1x1x32xf32>
      %472 = vector.shape_cast %471 : vector<1x1x32xf32> to vector<1x32xf32>
      %473 = vector.broadcast %472 : vector<1x32xf32> to vector<8x32xf32>
      %474 = arith.addf %469, %473 : vector<8x32xf32>
      scf.yield %474 : vector<8x32xf32>
    }
    %c2_i32_133 = arith.constant 2 : i32
    %c0_134 = arith.constant 0 : index
    %c0_135 = arith.constant 0 : index
    %c0_136 = arith.constant 0 : index
    %307 = vector.load %arg14[%c0_134, %c0_135, %c0_136] : memref<1x8x32xf32, #tpu.memory_space<vmem>>, vector<1x8x32xf32>
    %308 = vector.shape_cast %307 : vector<1x8x32xf32> to vector<8x32xf32>
    %309 = vector.shape_cast %306 : vector<8x32xf32> to vector<1x8x32xf32>
    tpu.vector_store %arg14[%c0_134, %c0_135, %c0_136], %309 {strides = array<i32>} : memref<1x8x32xf32, #tpu.memory_space<vmem>>, vector<1x8x32xf32>,
    return
  }
  func.func @transform_0(%arg0: i32) -> (i32, i32, i32) {
    %c0_i32 = arith.constant 0 : i32
    %c0_i32_0 = arith.constant 0 : i32
    %c0_i32_1 = arith.constant 0 : i32
    return %arg0, %c0_i32, %c0_i32_0 : i32, i32, i32
  }
  func.func @transform_1(%arg0: i32) -> (i32, i32, i32) {
    %c0_i32 = arith.constant 0 : i32
    %c0_i32_0 = arith.constant 0 : i32
    %c0_i32_1 = arith.constant 0 : i32
    return %arg0, %c0_i32, %c0_i32_0 : i32, i32, i32
  }
  func.func @transform_2(%arg0: i32) -> (i32, i32) {
    %c0_i32 = arith.constant 0 : i32
    %c0_i32_0 = arith.constant 0 : i32
    %c0_i32_1 = arith.constant 0 : i32
    return %c0_i32, %c0_i32_0 : i32, i32
  }
  func.func @transform_3(%arg0: i32) -> (i32, i32, i32) {
    %c0_i32 = arith.constant 0 : i32
    %c0_i32_0 = arith.constant 0 : i32
    %c0_i32_1 = arith.constant 0 : i32
    %c0_i32_2 = arith.constant 0 : i32
    return %c0_i32, %c0_i32_0, %c0_i32_1 : i32, i32, i32
  }
  func.func @transform_4(%arg0: i32) -> (i32, i32, i32) {
    %c0_i32 = arith.constant 0 : i32
    %c0_i32_0 = arith.constant 0 : i32
    %c0_i32_1 = arith.constant 0 : i32
    %c0_i32_2 = arith.constant 0 : i32
    return %c0_i32, %c0_i32_0, %c0_i32_1 : i32, i32, i32
  }
  func.func @transform_5(%arg0: i32) -> (i32, i32, i32) {
    %c0_i32 = arith.constant 0 : i32
    %c0_i32_0 = arith.constant 0 : i32
    %c0_i32_1 = arith.constant 0 : i32
    %c0_i32_2 = arith.constant 0 : i32
    return %c0_i32, %c0_i32_0, %c0_i32_1 : i32, i32, i32
  }
  func.func @transform_6(%arg0: i32) -> (i32, i32, i32) {
    %c0_i32 = arith.constant 0 : i32
    %c0_i32_0 = arith.constant 0 : i32
    %c0_i32_1 = arith.constant 0 : i32
    %c0_i32_2 = arith.constant 0 : i32
    return %c0_i32, %c0_i32_0, %c0_i32_1 : i32, i32, i32
  }
  func.func @transform_7(%arg0: i32) -> (i32, i32, i32) {
    %c0_i32 = arith.constant 0 : i32
    %c0_i32_0 = arith.constant 0 : i32
    %c0_i32_1 = arith.constant 0 : i32
    %c0_i32_2 = arith.constant 0 : i32
    return %c0_i32, %c0_i32_0, %c0_i32_1 : i32, i32, i32
  }
  func.func @transform_8(%arg0: i32) -> (i32, i32, i32) {
    %c0_i32 = arith.constant 0 : i32
    %c0_i32_0 = arith.constant 0 : i32
    %c0_i32_1 = arith.constant 0 : i32
    %c0_i32_2 = arith.constant 0 : i32
    return %c0_i32, %c0_i32_0, %c0_i32_1 : i32, i32, i32
  }
  func.func @transform_9(%arg0: i32) -> (i32, i32, i32) {
    %c0_i32 = arith.constant 0 : i32
    %c0_i32_0 = arith.constant 0 : i32
    %c0_i32_1 = arith.constant 0 : i32
    %c0_i32_2 = arith.constant 0 : i32
    return %c0_i32, %c0_i32_0, %c0_i32_1 : i32, i32, i32
  }
  func.func @transform_10(%arg0: i32) -> (i32, i32, i32) {
    %c0_i32 = arith.constant 0 : i32
    %c0_i32_0 = arith.constant 0 : i32
    %c0_i32_1 = arith.constant 0 : i32
    %c0_i32_2 = arith.constant 0 : i32
    return %c0_i32, %c0_i32_0, %c0_i32_1 : i32, i32, i32
  }
  func.func @transform_11(%arg0: i32) -> (i32, i32, i32) {
    %c0_i32 = arith.constant 0 : i32
    %c0_i32_0 = arith.constant 0 : i32
    %c0_i32_1 = arith.constant 0 : i32
    %c0_i32_2 = arith.constant 0 : i32
    return %c0_i32, %c0_i32_0, %c0_i32_1 : i32, i32, i32
  }
  func.func @transform_12(%arg0: i32) -> (i32, i32, i32) {
    %c0_i32 = arith.constant 0 : i32
    %c0_i32_0 = arith.constant 0 : i32
    %c0_i32_1 = arith.constant 0 : i32
    %c0_i32_2 = arith.constant 0 : i32
    return %c0_i32, %c0_i32_0, %c0_i32_1 : i32, i32, i32
  }
  func.func @transform_13(%arg0: i32) -> (i32, i32, i32) {
    %c0_i32 = arith.constant 0 : i32
    %c0_i32_0 = arith.constant 0 : i32
    %c0_i32_1 = arith.constant 0 : i32
    return %arg0, %c0_i32, %c0_i32_0 : i32, i32, i32
  }
}

</mosaic_0001>

<llo_original>
// kernel: perceiver_forward.1
$region0: #{perceiver_forward.1}
  #allocation0 [shape = 'u32[]', space=smem, size = 0x4, offset = 0x4, fixed_abs, tag = 'smem constant byte address 0x4 - core index']
  #allocation1 [shape = 'u32[144,128]{1,0:T(1,128)}', space=vmem, size = 0x12000, scoped, tag = 'internal scratch']
  %s0 = inlined_call_operand.hbm [shape: f32[2,16,32], index: 0, kind: input, shape index: {}]
  %s1 = inlined_call_operand.hbm [shape: s32[2,1,16], index: 1, kind: input, shape index: {}]
  %s2 = inlined_call_operand.vmem [shape: f32[8,32], index: 2, kind: input, shape index: {}]
  %s3 = inlined_call_operand.hbm [shape: f32[6,32,96], index: 3, kind: input, shape index: {}]
  %s4 = inlined_call_operand.vmem [shape: f32[6,1,96], index: 4, kind: input, shape index: {}]
  %s5 = inlined_call_operand.hbm [shape: f32[6,32,32], index: 5, kind: input, shape index: {}]
  %s6 = inlined_call_operand.vmem [shape: f32[6,1,32], index: 6, kind: input, shape index: {}]
  %s7 = inlined_call_operand.vmem [shape: f32[10,1,32], index: 7, kind: input, shape index: {}]
  %s8 = inlined_call_operand.vmem [shape: f32[10,1,32], index: 8, kind: input, shape index: {}]
  %s9 = inlined_call_operand.hbm [shape: f32[4,32,64], index: 9, kind: input, shape index: {}]
  %s10 = inlined_call_operand.vmem [shape: f32[4,1,64], index: 10, kind: input, shape index: {}]
  %s11 = inlined_call_operand.hbm [shape: f32[4,64,32], index: 11, kind: input, shape index: {}]
  %s12 = inlined_call_operand.vmem [shape: f32[4,1,32], index: 12, kind: input, shape index: {}]
  %s13 = inlined_call_operand.hbm [shape: f32[2,8,32], index: 13, kind: output, shape index: {}]
  %s14 = sld [smem:[#allocation0]]
  $region130: #{perceiver_forward.1} parent=0
    _
  %s16 = ssub.s32 1, %s14
  %s17 = scalar_select 0, %s16, %s14
  $region1: #{perceiver_forward.1} parent=0
    #allocation2 [shape = 'u8[16384]{0}', space=vmem, size = 0x4000, scoped, tag = 'input window, operand 0']
    #allocation3 [shape = 's32[2]{0}', space=sflag, size = 0x8, scoped, tag = 'scoped memory for perceiver_forward.1']
    #allocation4 [shape = 's32[2]{0}', space=sflag, size = 0x8, scoped, tag = 'scoped memory for perceiver_forward.1']
    #allocation5 [shape = 'u8[1024]{0}', space=vmem, size = 0x400, scoped, tag = 'input window, operand 1']
    #allocation6 [shape = 's32[2]{0}', space=sflag, size = 0x8, scoped, tag = 'scoped memory for perceiver_forward.1']
    #allocation7 [shape = 'u8[98304]{0}', space=vmem, size = 0x18000, scoped, tag = 'input window, operand 3, single buffered']
    #allocation8 [shape = 'u8[98304]{0}', space=vmem, size = 0x18000, scoped, tag = 'input window, operand 5, single buffered']
    #allocation9 [shape = 's32[1]{0}', space=sflag, size = 0x4, scoped, tag = 'scoped memory for perceiver_forward.1']
    #allocation10 [shape = 'u8[65536]{0}', space=vmem, size = 0x10000, scoped, tag = 'input window, operand 9, single buffered']
    #allocation11 [shape = 'u8[131072]{0}', space=vmem, size = 0x20000, scoped, tag = 'input window, operand 11, single buffered']
    #allocation12 [shape = 's32[1]{0}', space=sflag, size = 0x4, scoped, tag = 'scoped memory for perceiver_forward.1']
    #allocation13 [shape = 'u8[8192]{0}', space=vmem, size = 0x2000, scoped, tag = 'output window, operand 0']
    %18 = vsyncpa [#allocation3], 0
    %s19 = scalar_lea.sflag [#allocation3], 1
    %20 = vsyncpa %s19, 0
    %21 = vsyncpa [#allocation6], 0
    %s22 = scalar_lea.sflag [#allocation6], 1
    %23 = vsyncpa %s22, 0
    %24 = vsyncpa [#allocation9], 0
    %25 = vsyncpa [#allocation12], 0
    %26 = vsyncpa [#allocation4], 0
    %s27 = scalar_lea.sflag [#allocation4], 1
    %28 = vsyncpa %s27, 0
    loop: start=0, step=1, limit=4
    $region2: #{perceiver_forward.1} parent=1 // loop_pre_header
      _
    $region3: #{perceiver_forward.1} parent=1 // loop_header
      %s30 = sphi 0, %s34
      %p31 = scmp.ge.s32.totalorder %s30, 4
      %s40 = sphi 0, %s42
      %s43 = sphi 0, %s40
      %s44 = sphi 0, %s43
      %s60 = sphi 0, %s44
      %s66 = sphi 0, %s68
      %s69 = sphi 0, %s66
      %s70 = sphi 0, %s69
      %s86 = sphi 0, %s70
      %s90 = sphi 0, %s90
      %s92 = sphi 0, %s90
      %s93 = sphi 0, %s92
      %s107 = sphi 0, %s93
      %s111 = sphi 0, %s111
      %s113 = sphi 0, %s111
      %s114 = sphi 0, %s113
      %s128 = sphi 0, %s114
      %s132 = sphi 0, %s132
      %s134 = sphi 0, %s132
      %s135 = sphi 0, %s134
      %s149 = sphi 0, %s135
      %s153 = sphi 0, %s153
      %s155 = sphi 0, %s153
      %s156 = sphi 0, %s155
      %s170 = sphi 0, %s156
      %s174 = sphi 0, %s174
      %s176 = sphi 0, %s174
      %s177 = sphi 0, %s176
      %s191 = sphi 0, %s177
      %s195 = sphi 0, %s195
      %s197 = sphi 0, %s195
      %s198 = sphi 0, %s197
      %s212 = sphi 0, %s198
      %s216 = sphi 0, %s216
      %s218 = sphi 0, %s216
      %s219 = sphi 0, %s218
      %s233 = sphi 0, %s219
      %s237 = sphi 0, %s237
      %s239 = sphi 0, %s237
      %s240 = sphi 0, %s239
      %s254 = sphi 0, %s240
      %s258 = sphi 0, %s258
      %s260 = sphi 0, %s258
      %s261 = sphi 0, %s260
      %s275 = sphi 0, %s261
      %s279 = sphi 0, %s279
      %s281 = sphi 0, %s279
      %s282 = sphi 0, %s281
      %s296 = sphi 0, %s282
      %s300 = sphi 0, %s300
      %s302 = sphi 0, %s300
      %s303 = sphi 0, %s302
      %s317 = sphi 0, %s303
      %s323 = sphi 0, %s325
      %s326 = sphi 0, %s323
      %s327 = sphi 0, %s326
      %s343 = sphi 0, %s327
    $region4: #{perceiver_forward.1} parent=1 // loop_header_branch
      %33 = sbr.rel (%p31) target = $region8
    $region5: #{perceiver_forward.1} parent=1 // loop_body
      %s35 = ssub.s32 %s30, 1
      %s36 = ssub.s32 %s30, 2
      %s37 = sadd.s32 %s30, 1
      %s38 = ssub.s32 %s30, %s37
      %p39 = scmp.eq.s32.totalorder %s38, 0
      %s41 = sadd.s32 %s40, 1
      %s42 = scalar_select %p39, %s40, %s41
      %p45 = pneg %p39
      %p46 = scmp.eq.s32.totalorder %s30, 1
      %p47 = por %p45, %p46
      %p48 = scmp.ne.s32.totalorder %s40, %s43
      %p49 = scmp.eq.s32.totalorder %s30, 0
      %p50 = por %p48, %p49
      %p51 = scmp.ne.s32.totalorder %s40, %s43
      %p52 = scmp.eq.s32.totalorder %s35, 1
      %p53 = por %p51, %p52
      %p54 = scmp.ne.s32.totalorder %s43, %s44
      %p55 = scmp.eq.s32.totalorder %s35, 0
      %p56 = por %p54, %p55
      %p57 = scmp.ne.s32.totalorder %s43, %s44
      %p58 = scmp.eq.s32.totalorder %s36, 1
      %p59 = por %p57, %p58
      %p61 = scmp.ne.s32.totalorder %s44, %s60
      %p62 = scmp.eq.s32.totalorder %s36, 0
      %p63 = por %p61, %p62
      %s64 = ssub.s32 %s30, %s37
      %p65 = scmp.eq.s32.totalorder %s64, 0
      %s67 = sadd.s32 %s66, 1
      %s68 = scalar_select %p65, %s66, %s67
      %p71 = pneg %p65
      %p72 = scmp.eq.s32.totalorder %s30, 1
      %p73 = por %p71, %p72
      %p74 = scmp.ne.s32.totalorder %s66, %s69
      %p75 = scmp.eq.s32.totalorder %s30, 0
      %p76 = por %p74, %p75
      %p77 = scmp.ne.s32.totalorder %s66, %s69
      %p78 = scmp.eq.s32.totalorder %s35, 1
      %p79 = por %p77, %p78
      %p80 = scmp.ne.s32.totalorder %s69, %s70
      %p81 = scmp.eq.s32.totalorder %s35, 0
      %p82 = por %p80, %p81
      %p83 = scmp.ne.s32.totalorder %s69, %s70
      %p84 = scmp.eq.s32.totalorder %s36, 1
      %p85 = por %p83, %p84
      %p87 = scmp.ne.s32.totalorder %s70, %s86
      %p88 = scmp.eq.s32.totalorder %s36, 0
      %p89 = por %p87, %p88
      %s91 = sadd.s32 %s90, 1
      %p94 = scmp.eq.s32.totalorder %s30, 1
      %p95 = scmp.ne.s32.totalorder %s90, %s92
      %p96 = scmp.eq.s32.totalorder %s30, 0
      %p97 = por %p95, %p96
      %p98 = scmp.ne.s32.totalorder %s90, %s92
      %p99 = scmp.eq.s32.totalorder %s35, 1
      %p100 = por %p98, %p99
      %p101 = scmp.ne.s32.totalorder %s92, %s93
      %p102 = scmp.eq.s32.totalorder %s35, 0
      %p103 = por %p101, %p102
      %p104 = scmp.ne.s32.totalorder %s92, %s93
      %p105 = scmp.eq.s32.totalorder %s36, 1
      %p106 = por %p104, %p105
      %p108 = scmp.ne.s32.totalorder %s93, %s107
      %p109 = scmp.eq.s32.totalorder %s36, 0
      %p110 = por %p108, %p109
      %s112 = sadd.s32 %s111, 1
      %p115 = scmp.eq.s32.totalorder %s30, 1
      %p116 = scmp.ne.s32.totalorder %s111, %s113
      %p117 = scmp.eq.s32.totalorder %s30, 0
      %p118 = por %p116, %p117
      %p119 = scmp.ne.s32.totalorder %s111, %s113
      %p120 = scmp.eq.s32.totalorder %s35, 1
      %p121 = por %p119, %p120
      %p122 = scmp.ne.s32.totalorder %s113, %s114
      %p123 = scmp.eq.s32.totalorder %s35, 0
      %p124 = por %p122, %p123
      %p125 = scmp.ne.s32.totalorder %s113, %s114
      %p126 = scmp.eq.s32.totalorder %s36, 1
      %p127 = por %p125, %p126
      %p129 = scmp.ne.s32.totalorder %s114, %s128
      %p130 = scmp.eq.s32.totalorder %s36, 0
      %p131 = por %p129, %p130
      %s133 = sadd.s32 %s132, 1
      %p136 = scmp.eq.s32.totalorder %s30, 1
      %p137 = scmp.ne.s32.totalorder %s132, %s134
      %p138 = scmp.eq.s32.totalorder %s30, 0
      %p139 = por %p137, %p138
      %p140 = scmp.ne.s32.totalorder %s132, %s134
      %p141 = scmp.eq.s32.totalorder %s35, 1
      %p142 = por %p140, %p141
      %p143 = scmp.ne.s32.totalorder %s134, %s135
      %p144 = scmp.eq.s32.totalorder %s35, 0
      %p145 = por %p143, %p144
      %p146 = scmp.ne.s32.totalorder %s134, %s135
      %p147 = scmp.eq.s32.totalorder %s36, 1
      %p148 = por %p146, %p147
      %p150 = scmp.ne.s32.totalorder %s135, %s149
      %p151 = scmp.eq.s32.totalorder %s36, 0
      %p152 = por %p150, %p151
      %s154 = sadd.s32 %s153, 1
      %p157 = scmp.eq.s32.totalorder %s30, 1
      %p158 = scmp.ne.s32.totalorder %s153, %s155
      %p159 = scmp.eq.s32.totalorder %s30, 0
      %p160 = por %p158, %p159
      %p161 = scmp.ne.s32.totalorder %s153, %s155
      %p162 = scmp.eq.s32.totalorder %s35, 1
      %p163 = por %p161, %p162
      %p164 = scmp.ne.s32.totalorder %s155, %s156
      %p165 = scmp.eq.s32.totalorder %s35, 0
      %p166 = por %p164, %p165
      %p167 = scmp.ne.s32.totalorder %s155, %s156
      %p168 = scmp.eq.s32.totalorder %s36, 1
      %p169 = por %p167, %p168
      %p171 = scmp.ne.s32.totalorder %s156, %s170
      %p172 = scmp.eq.s32.totalorder %s36, 0
      %p173 = por %p171, %p172
      %s175 = sadd.s32 %s174, 1
      %p178 = scmp.eq.s32.totalorder %s30, 1
      %p179 = scmp.ne.s32.totalorder %s174, %s176
      %p180 = scmp.eq.s32.totalorder %s30, 0
      %p181 = por %p179, %p180
      %p182 = scmp.ne.s32.totalorder %s174, %s176
      %p183 = scmp.eq.s32.totalorder %s35, 1
      %p184 = por %p182, %p183
      %p185 = scmp.ne.s32.totalorder %s176, %s177
      %p186 = scmp.eq.s32.totalorder %s35, 0
      %p187 = por %p185, %p186
      %p188 = scmp.ne.s32.totalorder %s176, %s177
      %p189 = scmp.eq.s32.totalorder %s36, 1
      %p190 = por %p188, %p189
      %p192 = scmp.ne.s32.totalorder %s177, %s191
      %p193 = scmp.eq.s32.totalorder %s36, 0
      %p194 = por %p192, %p193
      %s196 = sadd.s32 %s195, 1
      %p199 = scmp.eq.s32.totalorder %s30, 1
      %p200 = scmp.ne.s32.totalorder %s195, %s197
      %p201 = scmp.eq.s32.totalorder %s30, 0
      %p202 = por %p200, %p201
      %p203 = scmp.ne.s32.totalorder %s195, %s197
      %p204 = scmp.eq.s32.totalorder %s35, 1
      %p205 = por %p203, %p204
      %p206 = scmp.ne.s32.totalorder %s197, %s198
      %p207 = scmp.eq.s32.totalorder %s35, 0
      %p208 = por %p206, %p207
      %p209 = scmp.ne.s32.totalorder %s197, %s198
      %p210 = scmp.eq.s32.totalorder %s36, 1
      %p211 = por %p209, %p210
      %p213 = scmp.ne.s32.totalorder %s198, %s212
      %p214 = scmp.eq.s32.totalorder %s36, 0
      %p215 = por %p213, %p214
      %s217 = sadd.s32 %s216, 1
      %p220 = scmp.eq.s32.totalorder %s30, 1
      %p221 = scmp.ne.s32.totalorder %s216, %s218
      %p222 = scmp.eq.s32.totalorder %s30, 0
      %p223 = por %p221, %p222
      %p224 = scmp.ne.s32.totalorder %s216, %s218
      %p225 = scmp.eq.s32.totalorder %s35, 1
      %p226 = por %p224, %p225
      %p227 = scmp.ne.s32.totalorder %s218, %s219
      %p228 = scmp.eq.s32.totalorder %s35, 0
      %p229 = por %p227, %p228
      %p230 = scmp.ne.s32.totalorder %s218, %s219
      %p231 = scmp.eq.s32.totalorder %s36, 1
      %p232 = por %p230, %p231
      %p234 = scmp.ne.s32.totalorder %s219, %s233
      %p235 = scmp.eq.s32.totalorder %s36, 0
      %p236 = por %p234, %p235
      %s238 = sadd.s32 %s237, 1
      %p241 = scmp.eq.s32.totalorder %s30, 1
      %p242 = scmp.ne.s32.totalorder %s237, %s239
      %p243 = scmp.eq.s32.totalorder %s30, 0
      %p244 = por %p242, %p243
      %p245 = scmp.ne.s32.totalorder %s237, %s239
      %p246 = scmp.eq.s32.totalorder %s35, 1
      %p247 = por %p245, %p246
      %p248 = scmp.ne.s32.totalorder %s239, %s240
      %p249 = scmp.eq.s32.totalorder %s35, 0
      %p250 = por %p248, %p249
      %p251 = scmp.ne.s32.totalorder %s239, %s240
      %p252 = scmp.eq.s32.totalorder %s36, 1
      %p253 = por %p251, %p252
      %p255 = scmp.ne.s32.totalorder %s240, %s254
      %p256 = scmp.eq.s32.totalorder %s36, 0
      %p257 = por %p255, %p256
      %s259 = sadd.s32 %s258, 1
      %p262 = scmp.eq.s32.totalorder %s30, 1
      %p263 = scmp.ne.s32.totalorder %s258, %s260
      %p264 = scmp.eq.s32.totalorder %s30, 0
      %p265 = por %p263, %p264
      %p266 = scmp.ne.s32.totalorder %s258, %s260
      %p267 = scmp.eq.s32.totalorder %s35, 1
      %p268 = por %p266, %p267
      %p269 = scmp.ne.s32.totalorder %s260, %s261
      %p270 = scmp.eq.s32.totalorder %s35, 0
      %p271 = por %p269, %p270
      %p272 = scmp.ne.s32.totalorder %s260, %s261
      %p273 = scmp.eq.s32.totalorder %s36, 1
      %p274 = por %p272, %p273
      %p276 = scmp.ne.s32.totalorder %s261, %s275
      %p277 = scmp.eq.s32.totalorder %s36, 0
      %p278 = por %p276, %p277
      %s280 = sadd.s32 %s279, 1
      %p283 = scmp.eq.s32.totalorder %s30, 1
      %p284 = scmp.ne.s32.totalorder %s279, %s281
      %p285 = scmp.eq.s32.totalorder %s30, 0
      %p286 = por %p284, %p285
      %p287 = scmp.ne.s32.totalorder %s279, %s281
      %p288 = scmp.eq.s32.totalorder %s35, 1
      %p289 = por %p287, %p288
      %p290 = scmp.ne.s32.totalorder %s281, %s282
      %p291 = scmp.eq.s32.totalorder %s35, 0
      %p292 = por %p290, %p291
      %p293 = scmp.ne.s32.totalorder %s281, %s282
      %p294 = scmp.eq.s32.totalorder %s36, 1
      %p295 = por %p293, %p294
      %p297 = scmp.ne.s32.totalorder %s282, %s296
      %p298 = scmp.eq.s32.totalorder %s36, 0
      %p299 = por %p297, %p298
      %s301 = sadd.s32 %s300, 1
      %p304 = scmp.eq.s32.totalorder %s30, 1
      %p305 = scmp.ne.s32.totalorder %s300, %s302
      %p306 = scmp.eq.s32.totalorder %s30, 0
      %p307 = por %p305, %p306
      %p308 = scmp.ne.s32.totalorder %s300, %s302
      %p309 = scmp.eq.s32.totalorder %s35, 1
      %p310 = por %p308, %p309
      %p311 = scmp.ne.s32.totalorder %s302, %s303
      %p312 = scmp.eq.s32.totalorder %s35, 0
      %p313 = por %p311, %p312
      %p314 = scmp.ne.s32.totalorder %s302, %s303
      %p315 = scmp.eq.s32.totalorder %s36, 1
      %p316 = por %p314, %p315
      %p318 = scmp.ne.s32.totalorder %s303, %s317
      %p319 = scmp.eq.s32.totalorder %s36, 0
      %p320 = por %p318, %p319
      %s321 = ssub.s32 %s30, %s37
      %p322 = scmp.eq.s32.totalorder %s321, 0
      %s324 = sadd.s32 %s323, 1
      %s325 = scalar_select %p322, %s323, %s324
      %p328 = pneg %p322
      %p329 = scmp.eq.s32.totalorder %s30, 1
      %p330 = por %p328, %p329
      %p331 = scmp.ne.s32.totalorder %s323, %s326
      %p332 = scmp.eq.s32.totalorder %s30, 0
      %p333 = por %p331, %p332
      %p334 = scmp.ne.s32.totalorder %s323, %s326
      %p335 = scmp.eq.s32.totalorder %s35, 1
      %p336 = por %p334, %p335
      %p337 = scmp.ne.s32.totalorder %s326, %s327
      %p338 = scmp.eq.s32.totalorder %s35, 0
      %p339 = por %p337, %p338
      %p340 = scmp.ne.s32.totalorder %s326, %s327
      %p341 = scmp.eq.s32.totalorder %s36, 1
      %p342 = por %p340, %p341
      %p344 = scmp.ne.s32.totalorder %s327, %s343
      %p345 = scmp.eq.s32.totalorder %s36, 0
      %p346 = por %p344, %p345
      %p347 = scmp.le.s32.totalorder 1, %s30
      %p348 = scmp.lt.s32.totalorder %s30, 3
      %p349 = pnand %p347, %p348
      %p350 = pneg %p349
      // Predicated region
      $region9: #{perceiver_forward.1} parent=5 // pred_check
        _
      $region10: #{perceiver_forward.1} parent=5 // pred_check_branch
        %352 = sbr.rel (%p349) target = $region12
      $region11: #{perceiver_forward.1} parent=5 // pred_region
        %s353 = ssub.s32 %s30, 1
        // Predicated region
        $region13: #{perceiver_forward.1} parent=11 // pred_check
          %p354 = pneg %p103
        $region14: #{perceiver_forward.1} parent=11 // pred_check_branch
          %356 = sbr.rel (%p354) target = $region16
        $region15: #{perceiver_forward.1} parent=11 // pred_region
          _
        $region16: #{perceiver_forward.1} parent=11 // pred_fallthru
          _
        // Predicated region
        $region17: #{perceiver_forward.1} parent=11 // pred_check
          %p357 = pneg %p124
        $region18: #{perceiver_forward.1} parent=11 // pred_check_branch
          %359 = sbr.rel (%p357) target = $region20
        $region19: #{perceiver_forward.1} parent=11 // pred_region
          %s361 = ssub.s32 3072, 3072
          %362 = vsyncadd [#allocation6], %s361
          %s363 = sshll.u32 [#allocation7], 4
          %s364 = int_to_ptr.vmem [resolvable:$true] %s363
          %369 = dma.hbm_to_vmem [thread:$0]  %s3, 3072, %s364, [#allocation6], 128, 128, 8
        $region20: #{perceiver_forward.1} parent=11 // pred_fallthru
          _
        // Predicated region
        $region21: #{perceiver_forward.1} parent=11 // pred_check
          %p370 = pneg %p145
        $region22: #{perceiver_forward.1} parent=11 // pred_check_branch
          %372 = sbr.rel (%p370) target = $region24
        $region23: #{perceiver_forward.1} parent=11 // pred_region
          _
        $region24: #{perceiver_forward.1} parent=11 // pred_fallthru
          _
        // Predicated region
        $region25: #{perceiver_forward.1} parent=11 // pred_check
          %p373 = pneg %p166
        $region26: #{perceiver_forward.1} parent=11 // pred_check_branch
          %375 = sbr.rel (%p373) target = $region28
        $region27: #{perceiver_forward.1} parent=11 // pred_region
          %s377 = ssub.s32 3072, 3072
          %378 = vsyncadd [#allocation9], %s377
          %s379 = sshll.u32 [#allocation8], 4
          %s380 = int_to_ptr.vmem [resolvable:$true] %s379
          %385 = dma.hbm_to_vmem [thread:$0]  %s5, 3072, %s380, [#allocation9], 128, 128, 8
        $region28: #{perceiver_forward.1} parent=11 // pred_fallthru
          _
        // Predicated region
        $region29: #{perceiver_forward.1} parent=11 // pred_check
          %p386 = pneg %p187
        $region30: #{perceiver_forward.1} parent=11 // pred_check_branch
          %388 = sbr.rel (%p386) target = $region32
        $region31: #{perceiver_forward.1} parent=11 // pred_region
          _
        $region32: #{perceiver_forward.1} parent=11 // pred_fallthru
          _
        // Predicated region
        $region33: #{perceiver_forward.1} parent=11 // pred_check
          %p389 = pneg %p208
        $region34: #{perceiver_forward.1} parent=11 // pred_check_branch
          %391 = sbr.rel (%p389) target = $region36
        $region35: #{perceiver_forward.1} parent=11 // pred_region
          _
        $region36: #{perceiver_forward.1} parent=11 // pred_fallthru
          _
        // Predicated region
        $region37: #{perceiver_forward.1} parent=11 // pred_check
          %p392 = pneg %p229
        $region38: #{perceiver_forward.1} parent=11 // pred_check_branch
          %394 = sbr.rel (%p392) target = $region40
        $region39: #{perceiver_forward.1} parent=11 // pred_region
          _
        $region40: #{perceiver_forward.1} parent=11 // pred_fallthru
          _
        // Predicated region
        $region41: #{perceiver_forward.1} parent=11 // pred_check
          %p395 = pneg %p250
        $region42: #{perceiver_forward.1} parent=11 // pred_check_branch
          %397 = sbr.rel (%p395) target = $region44
        $region43: #{perceiver_forward.1} parent=11 // pred_region
          %s399 = ssub.s32 2048, 2048
          %400 = vsyncadd [#allocation9], %s399
          %s401 = sshll.u32 [#allocation10], 4
          %s402 = int_to_ptr.vmem [resolvable:$true] %s401
          %407 = dma.hbm_to_vmem [thread:$0]  %s9, 2048, %s402, [#allocation9], 128, 128, 8
        $region44: #{perceiver_forward.1} parent=11 // pred_fallthru
          _
        // Predicated region
        $region45: #{perceiver_forward.1} parent=11 // pred_check
          %p408 = pneg %p271
        $region46: #{perceiver_forward.1} parent=11 // pred_check_branch
          %410 = sbr.rel (%p408) target = $region48
        $region47: #{perceiver_forward.1} parent=11 // pred_region
          _
        $region48: #{perceiver_forward.1} parent=11 // pred_fallthru
          _
        // Predicated region
        $region49: #{perceiver_forward.1} parent=11 // pred_check
          %p411 = pneg %p292
        $region50: #{perceiver_forward.1} parent=11 // pred_check_branch
          %413 = sbr.rel (%p411) target = $region52
        $region51: #{perceiver_forward.1} parent=11 // pred_region
          %s415 = ssub.s32 4096, 4096
          %416 = vsyncadd [#allocation12], %s415
          %s417 = sshll.u32 [#allocation11], 4
          %s418 = int_to_ptr.vmem [resolvable:$true] %s417
          %423 = dma.hbm_to_vmem [thread:$0]  %s11, 4096, %s418, [#allocation12], 128, 128, 8
        $region52: #{perceiver_forward.1} parent=11 // pred_fallthru
          _
        // Predicated region
        $region53: #{perceiver_forward.1} parent=11 // pred_check
          %p424 = pneg %p313
        $region54: #{perceiver_forward.1} parent=11 // pred_check_branch
          %426 = sbr.rel (%p424) target = $region56
        $region55: #{perceiver_forward.1} parent=11 // pred_region
          _
        $region56: #{perceiver_forward.1} parent=11 // pred_fallthru
          _
      $region12: #{perceiver_forward.1} parent=5 // pred_fallthru
        _
      %p427 = scmp.lt.s32.totalorder %s30, 2
      // Predicated region
      $region57: #{perceiver_forward.1} parent=5 // pred_check
        %p428 = pneg %p427
      $region58: #{perceiver_forward.1} parent=5 // pred_check_branch
        %430 = sbr.rel (%p428) target = $region60
      $region59: #{perceiver_forward.1} parent=5 // pred_region
        // Predicated region
        $region61: #{perceiver_forward.1} parent=59 // pred_check
          %p431 = pneg %p50
        $region62: #{perceiver_forward.1} parent=59 // pred_check_branch
          %433 = sbr.rel (%p431) target = $region64
        $region63: #{perceiver_forward.1} parent=59 // pred_region
          %s434 = sand.u32 %s40, 1
          %s435 = scalar_lea.sflag [#allocation3], %s434
          %s436 = sand.u32 %s40, 1
          %s437 = smul.addr %s436, 16
          %s438 = scalar_lea.vmem [#allocation2], %s437
          %s440 = ssub.s32 256, 256
          %441 = vsyncadd %s435, %s440
          %s442 = smul.addr %s30, 2
          %s443 = smul.addr %s442, 128
          %s444 = scalar_lea.hbm %s0, %s443
          %s445 = sshll.u32 %s438, 4
          %s446 = int_to_ptr.vmem [resolvable:$true] %s445
          %451 = dma.hbm_to_vmem [thread:$0]  %s444, 256, %s446, %s435, 128, 128, 8
        $region64: #{perceiver_forward.1} parent=59 // pred_fallthru
          _
        // Predicated region
        $region65: #{perceiver_forward.1} parent=59 // pred_check
          %p452 = pneg %p76
        $region66: #{perceiver_forward.1} parent=59 // pred_check_branch
          %454 = sbr.rel (%p452) target = $region68
        $region67: #{perceiver_forward.1} parent=59 // pred_region
          %s455 = sand.u32 %s30, 1
          %s456 = scalar_lea.sflag [#allocation6], %s455
          %s457 = sand.u32 %s66, 1
          %s458 = scalar_lea.vmem [#allocation5], %s457
          %s460 = ssub.s32 16, 16
          %461 = vsyncadd %s456, %s460
          %s462 = smul.addr %s30, 16
          %s463 = scalar_lea.hbm %s1, %s462
          %s465 = sshll.u32 %s458, 4
          %s466 = int_to_ptr.vmem [resolvable:$true] %s465
          %468 = dma.hbm_to_vmem [thread:$0]  %s463, 16, %s466, %s456
        $region68: #{perceiver_forward.1} parent=59 // pred_fallthru
          _
      $region60: #{perceiver_forward.1} parent=5 // pred_fallthru
        _
      %p469 = scmp.le.s32.totalorder 1, %s30
      %p470 = scmp.lt.s32.totalorder %s30, 3
      %p471 = pnand %p469, %p470
      %p472 = pneg %p471
      // Predicated region
      $region69: #{perceiver_forward.1} parent=5 // pred_check
        _
      $region70: #{perceiver_forward.1} parent=5 // pred_check_branch
        %474 = sbr.rel (%p471) target = $region72
      $region71: #{perceiver_forward.1} parent=5 // pred_region
        %s475 = ssub.s32 %s30, 1
        %s476 = sand.u32 %s43, 1
        %s477 = scalar_lea.sflag [#allocation3], %s476
        %s478 = sand.u32 %s43, 1
        %s479 = smul.addr %s478, 16
        %s480 = scalar_lea.vmem [#allocation2], %s479
        // Predicated region
        $region73: #{perceiver_forward.1} parent=71 // pred_check
          %p481 = pneg %p56
        $region74: #{perceiver_forward.1} parent=71 // pred_check_branch
          %483 = sbr.rel (%p481) target = $region76
        $region75: #{perceiver_forward.1} parent=71 // pred_region
          %484 = dma.done %s477, 256
        $region76: #{perceiver_forward.1} parent=71 // pred_fallthru
          _
        %s485 = sand.u32 %s35, 1
        %s486 = scalar_lea.sflag [#allocation6], %s485
        %s487 = sand.u32 %s69, 1
        %s488 = scalar_lea.vmem [#allocation5], %s487
        // Predicated region
        $region77: #{perceiver_forward.1} parent=71 // pred_check
          %p489 = pneg %p82
        $region78: #{perceiver_forward.1} parent=71 // pred_check_branch
          %491 = sbr.rel (%p489) target = $region80
        $region79: #{perceiver_forward.1} parent=71 // pred_region
          %492 = dma.done %s486, 16
        $region80: #{perceiver_forward.1} parent=71 // pred_fallthru
          _
        // Predicated region
        $region81: #{perceiver_forward.1} parent=71 // pred_check
          %p493 = pneg %p124
        $region82: #{perceiver_forward.1} parent=71 // pred_check_branch
          %495 = sbr.rel (%p493) target = $region84
        $region83: #{perceiver_forward.1} parent=71 // pred_region
          %496 = dma.done [#allocation6], 3072
        $region84: #{perceiver_forward.1} parent=71 // pred_fallthru
          _
        // Predicated region
        $region85: #{perceiver_forward.1} parent=71 // pred_check
          %p497 = pneg %p166
        $region86: #{perceiver_forward.1} parent=71 // pred_check_branch
          %499 = sbr.rel (%p497) target = $region88
        $region87: #{perceiver_forward.1} parent=71 // pred_region
          %500 = dma.done [#allocation9], 3072
        $region88: #{perceiver_forward.1} parent=71 // pred_fallthru
          _
        // Predicated region
        $region89: #{perceiver_forward.1} parent=71 // pred_check
          %p501 = pneg %p250
        $region90: #{perceiver_forward.1} parent=71 // pred_check_branch
          %503 = sbr.rel (%p501) target = $region92
        $region91: #{perceiver_forward.1} parent=71 // pred_region
          %504 = dma.done [#allocation9], 2048
        $region92: #{perceiver_forward.1} parent=71 // pred_fallthru
          _
        // Predicated region
        $region93: #{perceiver_forward.1} parent=71 // pred_check
          %p505 = pneg %p292
        $region94: #{perceiver_forward.1} parent=71 // pred_check_branch
          %507 = sbr.rel (%p505) target = $region96
        $region95: #{perceiver_forward.1} parent=71 // pred_region
          %508 = dma.done [#allocation12], 4096
        $region96: #{perceiver_forward.1} parent=71 // pred_fallthru
          _
        %s509 = sand.u32 %s43, 1
        %s510 = scalar_lea.sflag [#allocation3], %s509
        %s511 = sand.u32 %s43, 1
        %s512 = smul.addr %s511, 16
        %s513 = scalar_lea.vmem [#allocation2], %s512
        %p514 = pneg %p56
        %p515 = pneg %p53
        %s516 = sand.u32 %s35, 1
        %s517 = scalar_lea.sflag [#allocation6], %s516
        %s518 = sand.u32 %s69, 1
        %s519 = scalar_lea.vmem [#allocation5], %s518
        %p520 = pneg %p82
        %p521 = pneg %p79
        %p522 = pneg %p103
        %p523 = pneg %p100
        %p524 = pneg %p124
        %p525 = pneg %p121
        %p526 = pneg %p145
        %p527 = pneg %p142
        %p528 = pneg %p166
        %p529 = pneg %p163
        %p530 = pneg %p187
        %p531 = pneg %p184
        %p532 = pneg %p208
        %p533 = pneg %p205
        %p534 = pneg %p229
        %p535 = pneg %p226
        %p536 = pneg %p250
        %p537 = pneg %p247
        %p538 = pneg %p271
        %p539 = pneg %p268
        %p540 = pneg %p292
        %p541 = pneg %p289
        %p542 = pneg %p313
        %p543 = pneg %p310
        %p544 = pneg %p339
        %p545 = pneg %p336
        %s546 = sand.u32 %s326, 1
        %s547 = scalar_lea.sflag [#allocation4], %s546
        %s548 = sand.u32 %s326, 1
        %s549 = smul.addr %s548, 8
        %s550 = scalar_lea.vmem [#allocation13], %s549
        %v551 = vld [vmem:[%s480] sm:$0xff]
        %v552 = vld [vmem:[%s480 + $0x8] sm:$0xff]
        %v553 = vld [vmem:[%s488] sm:$0x1]
        %v554 = vcvt.s32.f32 %v553
        %vm555 = vcmp.gt.f32.partialorder %v554, 0.0
        %v556 = vsel %vm555, 0.0, -10000.0
        %v557 = vlaneseq
        %v558 = vshrl.u32 %v557, 7
        %v559 = vlaneseq
        %v560 = vand.u32 %v559, 127
        %vm561 = vcmp.le.s32.totalorder %v560, %v558
        %v562 = vsel %vm561, 0.0, -10000.0
        %s563 = scalar_lea.vmem [#allocation7], 32
        %v564 = vld [vmem:[%s563] sm:$0xff]
        %v565 = vld [vmem:[%s563 + $0x8] sm:$0xff]
        %v566 = vld [vmem:[%s563 + $0x10] sm:$0xff]
        %v567 = vld [vmem:[%s563 + $0x18] sm:$0xff]
        %s568 = scalar_lea.vmem %s4, 1
        %v569 = vld [vmem:[%s568] sm:$0x1]
        %v571 = vlaneseq
        %v572 = vshrl.u32 %v571, 7
        %v573 = vsub.s32 0, %v572
        %v574 = vrot.slane %v569, %v573
        %579 = vrot.lane.b32.xlu0 %v564, 96
        %v580 = vpop.permute.xlu0 %579
        %581 = vrot.lane.b32.xlu0 %v565, 96
        %v582 = vpop.permute.xlu0 %581
        %583 = vrot.lane.b32.xlu0 %v566, 96
        %v584 = vpop.permute.xlu0 %583
        %585 = vrot.lane.b32.xlu0 %v567, 96
        %v586 = vpop.permute.xlu0 %585
        %591 = vrot.lane.b32.xlu0 %v574, 96
        %v592 = vpop.permute.xlu0 %591
        %vm594 = vcmask 261120
        %v596 = vsel %vm594, %v551, 0
        %v599 = vsel %vm594, %v552, 0
        %601 = vmatprep.subr.mxu0 0.0
        %602 = vmatpush1.msra.mxu0 %v580
        %603 = vmatprep.subr.mxu0 0.0
        %604 = vmatpush1.msra.mxu0 %v582
        %605 = vmatprep.subr.mxu0 0.0
        %606 = vmatpush1.msra.mxu0 %v584
        %607 = vmatprep.subr.mxu0 0.0
        %608 = vmatpush1.msra.mxu0 %v586
        %609 = vmatprep.subr.mxu0 0.0
        %610 = vmatpush1.msra.mxu0 0.0
        %611 = vmatprep.subr.mxu0 0.0
        %612 = vmatpush1.msra.mxu0 0.0
        %613 = vmatprep.subr.mxu0 0.0
        %614 = vmatpush1.msra.mxu0 0.0
        %615 = vmatprep.subr.mxu0 0.0
        %616 = vmatpush1.msra.mxu0 0.0
        %617 = vmatprep.subr.mxu0 0.0
        %618 = vmatpush1.msra.mxu0 0.0
        %619 = vmatprep.subr.mxu0 0.0
        %620 = vmatpush1.msra.mxu0 0.0
        %621 = vmatprep.subr.mxu0 0.0
        %622 = vmatpush1.msra.mxu0 0.0
        %623 = vmatprep.subr.mxu0 0.0
        %624 = vmatpush1.msra.mxu0 0.0
        %625 = vmatprep.subr.mxu0 0.0
        %626 = vmatpush1.msra.mxu0 0.0
        %627 = vmatprep.subr.mxu0 0.0
        %628 = vmatpush1.msra.mxu0 0.0
        %629 = vmatprep.subr.mxu0 0.0
        %630 = vmatpush1.msra.mxu0 0.0
        %631 = vmatprep.subr.mxu0 0.0
        %632 = vmatpush1.msra.mxu0 0.0
        %633 = vmatprep.subr.mxu0 0.0
        %634 = vmatpush1.msra.mxu0 0.0
        %635 = vmatprep.subr.mxu0 0.0
        %636 = vmatpush1.msra.mxu0 0.0
        %637 = vmatprep.subr.mxu0 0.0
        %638 = vmatpush1.msra.mxu0 0.0
        %639 = vmatprep.subr.mxu0 0.0
        %640 = vmatpush1.msra.mxu0 0.0
        %641 = vmatprep.subr.mxu0 0.0
        %642 = vmatpush1.msra.mxu0 0.0
        %643 = vmatprep.subr.mxu0 0.0
        %644 = vmatpush1.msra.mxu0 0.0
        %645 = vmatprep.subr.mxu0 0.0
        %646 = vmatpush1.msra.mxu0 0.0
        %647 = vmatprep.subr.mxu0 0.0
        %648 = vmatpush1.msra.mxu0 0.0
        %649 = vmatprep.subr.mxu0 0.0
        %650 = vmatpush1.msra.mxu0 0.0
        %651 = vmatprep.subr.mxu0 0.0
        %652 = vmatpush1.msra.mxu0 0.0
        %653 = vmatprep.subr.mxu0 0.0
        %654 = vmatpush1.msra.mxu0 0.0
        %655 = vmatprep.subr.mxu0 0.0
        %656 = vmatpush1.msra.mxu0 0.0
        %657 = vmatprep.subr.mxu0 0.0
        %658 = vmatpush1.msra.mxu0 0.0
        %659 = vmatprep.subr.mxu0 0.0
        %660 = vmatpush1.msra.mxu0 0.0
        %661 = vmatprep.subr.mxu0 0.0
        %662 = vmatpush1.msra.mxu0 0.0
        %663 = vmatprep.subr.mxu0 0.0
        %664 = vmatpush1.msra.mxu0 0.0
        %665 = vmatprep.mubr.f32.mxu0 0.0
        %666 = vmatmul.mubr.f32.gmra.mrb[0].mxu0 %v596
        %v667 = vpop.f32.mrb[0].mxu0
        %v668 = vadd.f32 %v592, %v667
        %v669 = vpop.f32.mrb[0].mxu0
        %670 = vmatprep.mubr.f32.mxu0 0.0
        %671 = vmatmul.mubr.f32.gmra.mrb[0].mxu0 %v599
        %v672 = vpop.f32.mrb[0].mxu0
        %v673 = vadd.f32 %v592, %v672
        %v674 = vpop.f32.mrb[0].mxu0
        %675 = vdwg.mxu0
        %s676 = scalar_lea.vmem [#allocation7], 96
        %v677 = vld [vmem:[%s676] sm:$0xff]
        %v678 = vld [vmem:[%s676 + $0x8] sm:$0xff]
        %v679 = vld [vmem:[%s676 + $0x10] sm:$0xff]
        %v680 = vld [vmem:[%s676 + $0x18] sm:$0xff]
        %s681 = scalar_lea.vmem %s4, 3
        %v682 = vld [vmem:[%s681] sm:$0x1]
        %v684 = vlaneseq
        %v685 = vshrl.u32 %v684, 7
        %v686 = vsub.s32 0, %v685
        %v687 = vrot.slane %v682, %v686
        %692 = vrot.lane.b32.xlu0 %v677, 96
        %v693 = vpop.permute.xlu0 %692
        %694 = vrot.lane.b32.xlu0 %v678, 96
        %v695 = vpop.permute.xlu0 %694
        %696 = vrot.lane.b32.xlu0 %v679, 96
        %v697 = vpop.permute.xlu0 %696
        %698 = vrot.lane.b32.xlu0 %v680, 96
        %v699 = vpop.permute.xlu0 %698
        %704 = vrot.lane.b32.xlu0 %v687, 96
        %v705 = vpop.permute.xlu0 %704
        %707 = vmatprep.subr.mxu0 0.0
        %708 = vmatpush1.msra.mxu0 %v693
        %709 = vmatprep.subr.mxu0 0.0
        %710 = vmatpush1.msra.mxu0 %v695
        %711 = vmatprep.subr.mxu0 0.0
        %712 = vmatpush1.msra.mxu0 %v697
        %713 = vmatprep.subr.mxu0 0.0
        %714 = vmatpush1.msra.mxu0 %v699
        %715 = vmatprep.subr.mxu0 0.0
        %716 = vmatpush1.msra.mxu0 0.0
        %717 = vmatprep.subr.mxu0 0.0
        %718 = vmatpush1.msra.mxu0 0.0
        %719 = vmatprep.subr.mxu0 0.0
        %720 = vmatpush1.msra.mxu0 0.0
        %721 = vmatprep.subr.mxu0 0.0
        %722 = vmatpush1.msra.mxu0 0.0
        %723 = vmatprep.subr.mxu0 0.0
        %724 = vmatpush1.msra.mxu0 0.0
        %725 = vmatprep.subr.mxu0 0.0
        %726 = vmatpush1.msra.mxu0 0.0
        %727 = vmatprep.subr.mxu0 0.0
        %728 = vmatpush1.msra.mxu0 0.0
        %729 = vmatprep.subr.mxu0 0.0
        %730 = vmatpush1.msra.mxu0 0.0
        %731 = vmatprep.subr.mxu0 0.0
        %732 = vmatpush1.msra.mxu0 0.0
        %733 = vmatprep.subr.mxu0 0.0
        %734 = vmatpush1.msra.mxu0 0.0
        %735 = vmatprep.subr.mxu0 0.0
        %736 = vmatpush1.msra.mxu0 0.0
        %737 = vmatprep.subr.mxu0 0.0
        %738 = vmatpush1.msra.mxu0 0.0
        %739 = vmatprep.subr.mxu0 0.0
        %740 = vmatpush1.msra.mxu0 0.0
        %741 = vmatprep.subr.mxu0 0.0
        %742 = vmatpush1.msra.mxu0 0.0
        %743 = vmatprep.subr.mxu0 0.0
        %744 = vmatpush1.msra.mxu0 0.0
        %745 = vmatprep.subr.mxu0 0.0
        %746 = vmatpush1.msra.mxu0 0.0
        %747 = vmatprep.subr.mxu0 0.0
        %748 = vmatpush1.msra.mxu0 0.0
        %749 = vmatprep.subr.mxu0 0.0
        %750 = vmatpush1.msra.mxu0 0.0
        %751 = vmatprep.subr.mxu0 0.0
        %752 = vmatpush1.msra.mxu0 0.0
        %753 = vmatprep.subr.mxu0 0.0
        %754 = vmatpush1.msra.mxu0 0.0
        %755 = vmatprep.subr.mxu0 0.0
        %756 = vmatpush1.msra.mxu0 0.0
        %757 = vmatprep.subr.mxu0 0.0
        %758 = vmatpush1.msra.mxu0 0.0
        %759 = vmatprep.subr.mxu0 0.0
        %760 = vmatpush1.msra.mxu0 0.0
        %761 = vmatprep.subr.mxu0 0.0
        %762 = vmatpush1.msra.mxu0 0.0
        %763 = vmatprep.subr.mxu0 0.0
        %764 = vmatpush1.msra.mxu0 0.0
        %765 = vmatprep.subr.mxu0 0.0
        %766 = vmatpush1.msra.mxu0 0.0
        %767 = vmatprep.subr.mxu0 0.0
        %768 = vmatpush1.msra.mxu0 0.0
        %769 = vmatprep.subr.mxu0 0.0
        %770 = vmatpush1.msra.mxu0 0.0
        %771 = vmatprep.mubr.f32.mxu0 0.0
        %772 = vmatmul.mubr.f32.gmra.mrb[0].mxu0 %v596
        %v773 = vpop.f32.mrb[0].mxu0
        %v774 = vadd.f32 %v705, %v773
        %v775 = vpop.f32.mrb[0].mxu0
        %776 = vmatprep.mubr.f32.mxu0 0.0
        %777 = vmatmul.mubr.f32.gmra.mrb[0].mxu0 %v599
        %v778 = vpop.f32.mrb[0].mxu0
        %v779 = vadd.f32 %v705, %v778
        %v780 = vpop.f32.mrb[0].mxu0
        %781 = vdwg.mxu0
        %v782 = vld [vmem:[%s2] sm:$0xff]
        %v783 = vld [vmem:[#allocation7] sm:$0xff]
        %v784 = vld [vmem:[#allocation7 + $0x8] sm:$0xff]
        %v785 = vld [vmem:[#allocation7 + $0x10] sm:$0xff]
        %v786 = vld [vmem:[#allocation7 + $0x18] sm:$0xff]
        %v787 = vld [vmem:[%s4] sm:$0x1]
        %v789 = vlaneseq
        %v790 = vshrl.u32 %v789, 7
        %v791 = vsub.s32 0, %v790
        %v792 = vrot.slane %v787, %v791
        %v795 = vsel %vm594, %v782, 0
        %797 = vmatprep.subr.mxu0 0.0
        %798 = vmatpush1.msra.mxu0 %v783
        %799 = vmatprep.subr.mxu0 0.0
        %800 = vmatpush1.msra.mxu0 %v784
        %801 = vmatprep.subr.mxu0 0.0
        %802 = vmatpush1.msra.mxu0 %v785
        %803 = vmatprep.subr.mxu0 0.0
        %804 = vmatpush1.msra.mxu0 %v786
        %805 = vmatprep.subr.mxu0 0.0
        %806 = vmatpush1.msra.mxu0 0.0
        %807 = vmatprep.subr.mxu0 0.0
        %808 = vmatpush1.msra.mxu0 0.0
        %809 = vmatprep.subr.mxu0 0.0
        %810 = vmatpush1.msra.mxu0 0.0
        %811 = vmatprep.subr.mxu0 0.0
        %812 = vmatpush1.msra.mxu0 0.0
        %813 = vmatprep.subr.mxu0 0.0
        %814 = vmatpush1.msra.mxu0 0.0
        %815 = vmatprep.subr.mxu0 0.0
        %816 = vmatpush1.msra.mxu0 0.0
        %817 = vmatprep.subr.mxu0 0.0
        %818 = vmatpush1.msra.mxu0 0.0
        %819 = vmatprep.subr.mxu0 0.0
        %820 = vmatpush1.msra.mxu0 0.0
        %821 = vmatprep.subr.mxu0 0.0
        %822 = vmatpush1.msra.mxu0 0.0
        %823 = vmatprep.subr.mxu0 0.0
        %824 = vmatpush1.msra.mxu0 0.0
        %825 = vmatprep.subr.mxu0 0.0
        %826 = vmatpush1.msra.mxu0 0.0
        %827 = vmatprep.subr.mxu0 0.0
        %828 = vmatpush1.msra.mxu0 0.0
        %829 = vmatprep.subr.mxu0 0.0
        %830 = vmatpush1.msra.mxu0 0.0
        %831 = vmatprep.subr.mxu0 0.0
        %832 = vmatpush1.msra.mxu0 0.0
        %833 = vmatprep.subr.mxu0 0.0
        %834 = vmatpush1.msra.mxu0 0.0
        %835 = vmatprep.subr.mxu0 0.0
        %836 = vmatpush1.msra.mxu0 0.0
        %837 = vmatprep.subr.mxu0 0.0
        %838 = vmatpush1.msra.mxu0 0.0
        %839 = vmatprep.subr.mxu0 0.0
        %840 = vmatpush1.msra.mxu0 0.0
        %841 = vmatprep.subr.mxu0 0.0
        %842 = vmatpush1.msra.mxu0 0.0
        %843 = vmatprep.subr.mxu0 0.0
        %844 = vmatpush1.msra.mxu0 0.0
        %845 = vmatprep.subr.mxu0 0.0
        %846 = vmatpush1.msra.mxu0 0.0
        %847 = vmatprep.subr.mxu0 0.0
        %848 = vmatpush1.msra.mxu0 0.0
        %849 = vmatprep.subr.mxu0 0.0
        %850 = vmatpush1.msra.mxu0 0.0
        %851 = vmatprep.subr.mxu0 0.0
        %852 = vmatpush1.msra.mxu0 0.0
        %853 = vmatprep.subr.mxu0 0.0
        %854 = vmatpush1.msra.mxu0 0.0
        %855 = vmatprep.subr.mxu0 0.0
        %856 = vmatpush1.msra.mxu0 0.0
        %857 = vmatprep.subr.mxu0 0.0
        %858 = vmatpush1.msra.mxu0 0.0
        %859 = vmatprep.subr.mxu0 0.0
        %860 = vmatpush1.msra.mxu0 0.0
        %861 = vmatprep.mubr.f32.mxu0 0.0
        %862 = vmatmul.mubr.f32.gmra.mrb[0].mxu0 %v795
        %v863 = vpop.f32.mrb[0].mxu0
        %v864 = vadd.f32 %v792, %v863
        %v865 = vpop.f32.mrb[0].mxu0
        %866 = vdwg.mxu0
        %868 = vrot.lane.b32.xlu0 %v864, 96
        %v869 = vpop.permute.xlu0 %868
        %vm870 = vcmask 64512
        %v871 = vsel %vm870, %v864, 0
        %v873 = vsel %vm870, %v869, 0
        %875 = vmatprep.subr.mxu0 0.0
        %876 = vmatpush1.xpose.msra.mxu0 %v873
        %877 = vmatprep.subr.mxu0 0.0
        %878 = vmatpush1.xpose.msra.mxu0 0.0
        %879 = vmatprep.subr.mxu0 0.0
        %880 = vmatpush1.xpose.msra.mxu0 0.0
        %881 = vmatprep.subr.mxu0 0.0
        %882 = vmatpush1.xpose.msra.mxu0 0.0
        %883 = vmatprep.subr.mxu0 0.0
        %884 = vmatpush1.xpose.msra.mxu0 0.0
        %885 = vmatprep.subr.mxu0 0.0
        %886 = vmatpush1.xpose.msra.mxu0 0.0
        %887 = vmatprep.subr.mxu0 0.0
        %888 = vmatpush1.xpose.msra.mxu0 0.0
        %889 = vmatprep.subr.mxu0 0.0
        %890 = vmatpush1.xpose.msra.mxu0 0.0
        %891 = vmatprep.subr.mxu0 0.0
        %892 = vmatpush1.xpose.msra.mxu0 0.0
        %893 = vmatprep.subr.mxu0 0.0
        %894 = vmatpush1.xpose.msra.mxu0 0.0
        %895 = vmatprep.subr.mxu0 0.0
        %896 = vmatpush1.xpose.msra.mxu0 0.0
        %897 = vmatprep.subr.mxu0 0.0
        %898 = vmatpush1.xpose.msra.mxu0 0.0
        %899 = vmatprep.subr.mxu0 0.0
        %900 = vmatpush1.xpose.msra.mxu0 0.0
        %901 = vmatprep.subr.mxu0 0.0
        %902 = vmatpush1.xpose.msra.mxu0 0.0
        %903 = vmatprep.subr.mxu0 0.0
        %904 = vmatpush1.xpose.msra.mxu0 0.0
        %905 = vmatprep.subr.mxu0 0.0
        %906 = vmatpush1.xpose.msra.mxu0 0.0
        %907 = vmatprep.subr.mxu0 0.0
        %908 = vmatpush1.xpose.msra.mxu0 0.0
        %909 = vmatprep.subr.mxu0 0.0
        %910 = vmatpush1.xpose.msra.mxu0 0.0
        %911 = vmatprep.subr.mxu0 0.0
        %912 = vmatpush1.xpose.msra.mxu0 0.0
        %913 = vmatprep.subr.mxu0 0.0
        %914 = vmatpush1.xpose.msra.mxu0 0.0
        %915 = vmatprep.subr.mxu0 0.0
        %916 = vmatpush1.xpose.msra.mxu0 0.0
        %917 = vmatprep.subr.mxu0 0.0
        %918 = vmatpush1.xpose.msra.mxu0 0.0
        %919 = vmatprep.subr.mxu0 0.0
        %920 = vmatpush1.xpose.msra.mxu0 0.0
        %921 = vmatprep.subr.mxu0 0.0
        %922 = vmatpush1.xpose.msra.mxu0 0.0
        %923 = vmatprep.subr.mxu0 0.0
        %924 = vmatpush1.xpose.msra.mxu0 0.0
        %925 = vmatprep.subr.mxu0 0.0
        %926 = vmatpush1.xpose.msra.mxu0 0.0
        %927 = vmatprep.subr.mxu0 0.0
        %928 = vmatpush1.xpose.msra.mxu0 0.0
        %929 = vmatprep.subr.mxu0 0.0
        %930 = vmatpush1.xpose.msra.mxu0 0.0
        %931 = vmatprep.subr.mxu0 0.0
        %932 = vmatpush1.xpose.msra.mxu0 0.0
        %933 = vmatprep.subr.mxu0 0.0
        %934 = vmatpush1.xpose.msra.mxu0 0.0
        %935 = vmatprep.subr.mxu0 0.0
        %936 = vmatpush1.xpose.msra.mxu0 0.0
        %937 = vmatprep.subr.mxu0 0.0
        %938 = vmatpush1.xpose.msra.mxu0 0.0
        %939 = vmatprep.mubr.f32.mxu0 0.0
        %940 = vmatmul.mubr.f32.gmra.mrb[0].mxu0 %v871
        %v941 = vpop.f32.mrb[0].mxu0
        %v942 = vadd.f32 %v562, %v941
        %v943 = vpop.f32.mrb[0].mxu0
        %944 = vdwg.mxu0
        %v945 = vsel %vm870, %v942, -inf
        %946 = vmax.xlane.f32.xlu0 %v945
        %v947 = vpop.xlane.xlu0 %946
        %v948 = vsub.f32 %v942, %v947
        %v949 = vmul.f32 %v948, 1.442695
        %v950 = vpow.pop %v949
        %v951 = vsel %vm870, %v950, 0.0
        %952 = vadd.xlane.f32.xlu0 %v951
        %v953 = vpop.xlane.xlu0 %952
        %v954 = vrcp.pop %v953
        %v955 = vmul.f32 %v950, %v954
        %956 = vrot.lane.b32.xlu0 %v864, 64
        %v957 = vpop.permute.xlu0 %956
        %v960 = vsel %vm870, %v955, 0
        %962 = vmatprep.subr.mxu0 0.0
        %963 = vmatpush1.msra.mxu0 %v957
        %964 = vmatprep.subr.mxu0 0.0
        %965 = vmatpush1.msra.mxu0 0.0
        %966 = vmatprep.subr.mxu0 0.0
        %967 = vmatpush1.msra.mxu0 0.0
        %968 = vmatprep.subr.mxu0 0.0
        %969 = vmatpush1.msra.mxu0 0.0
        %970 = vmatprep.subr.mxu0 0.0
        %971 = vmatpush1.msra.mxu0 0.0
        %972 = vmatprep.subr.mxu0 0.0
        %973 = vmatpush1.msra.mxu0 0.0
        %974 = vmatprep.subr.mxu0 0.0
        %975 = vmatpush1.msra.mxu0 0.0
        %976 = vmatprep.subr.mxu0 0.0
        %977 = vmatpush1.msra.mxu0 0.0
        %978 = vmatprep.subr.mxu0 0.0
        %979 = vmatpush1.msra.mxu0 0.0
        %980 = vmatprep.subr.mxu0 0.0
        %981 = vmatpush1.msra.mxu0 0.0
        %982 = vmatprep.subr.mxu0 0.0
        %983 = vmatpush1.msra.mxu0 0.0
        %984 = vmatprep.subr.mxu0 0.0
        %985 = vmatpush1.msra.mxu0 0.0
        %986 = vmatprep.subr.mxu0 0.0
        %987 = vmatpush1.msra.mxu0 0.0
        %988 = vmatprep.subr.mxu0 0.0
        %989 = vmatpush1.msra.mxu0 0.0
        %990 = vmatprep.subr.mxu0 0.0
        %991 = vmatpush1.msra.mxu0 0.0
        %992 = vmatprep.subr.mxu0 0.0
        %993 = vmatpush1.msra.mxu0 0.0
        %994 = vmatprep.subr.mxu0 0.0
        %995 = vmatpush1.msra.mxu0 0.0
        %996 = vmatprep.subr.mxu0 0.0
        %997 = vmatpush1.msra.mxu0 0.0
        %998 = vmatprep.subr.mxu0 0.0
        %999 = vmatpush1.msra.mxu0 0.0
        %1000 = vmatprep.subr.mxu0 0.0
        %1001 = vmatpush1.msra.mxu0 0.0
        %1002 = vmatprep.subr.mxu0 0.0
        %1003 = vmatpush1.msra.mxu0 0.0
        %1004 = vmatprep.subr.mxu0 0.0
        %1005 = vmatpush1.msra.mxu0 0.0
        %1006 = vmatprep.subr.mxu0 0.0
        %1007 = vmatpush1.msra.mxu0 0.0
        %1008 = vmatprep.subr.mxu0 0.0
        %1009 = vmatpush1.msra.mxu0 0.0
        %1010 = vmatprep.subr.mxu0 0.0
        %1011 = vmatpush1.msra.mxu0 0.0
        %1012 = vmatprep.subr.mxu0 0.0
        %1013 = vmatpush1.msra.mxu0 0.0
        %1014 = vmatprep.subr.mxu0 0.0
        %1015 = vmatpush1.msra.mxu0 0.0
        %1016 = vmatprep.subr.mxu0 0.0
        %1017 = vmatpush1.msra.mxu0 0.0
        %1018 = vmatprep.subr.mxu0 0.0
        %1019 = vmatpush1.msra.mxu0 0.0
        %1020 = vmatprep.subr.mxu0 0.0
        %1021 = vmatpush1.msra.mxu0 0.0
        %1022 = vmatprep.subr.mxu0 0.0
        %1023 = vmatpush1.msra.mxu0 0.0
        %1024 = vmatprep.subr.mxu0 0.0
        %1025 = vmatpush1.msra.mxu0 0.0
        %1026 = vmatprep.mubr.f32.mxu0 0.0
        %1027 = vmatmul.mubr.f32.gmra.mrb[0].mxu0 %v960
        %v1028 = vpop.f32.mrb[0].mxu0
        %v1029 = vadd.f32 0.0, %v1028
        %v1030 = vpop.f32.mrb[0].mxu0
        %1031 = vdwg.mxu0
        %1032 = vrot.lane.b32.xlu0 %v864, 120
        %v1033 = vpop.permute.xlu0 %1032
        %1034 = vrot.lane.b32.xlu0 %v864, 88
        %v1035 = vpop.permute.xlu0 %1034
        %v1036 = vsel %vm870, %v1033, 0
        %v1038 = vsel %vm870, %v1035, 0
        %1040 = vmatprep.subr.mxu0 0.0
        %1041 = vmatpush1.xpose.msra.mxu0 %v1038
        %1042 = vmatprep.subr.mxu0 0.0
        %1043 = vmatpush1.xpose.msra.mxu0 0.0
        %1044 = vmatprep.subr.mxu0 0.0
        %1045 = vmatpush1.xpose.msra.mxu0 0.0
        %1046 = vmatprep.subr.mxu0 0.0
        %1047 = vmatpush1.xpose.msra.mxu0 0.0
        %1048 = vmatprep.subr.mxu0 0.0
        %1049 = vmatpush1.xpose.msra.mxu0 0.0
        %1050 = vmatprep.subr.mxu0 0.0
        %1051 = vmatpush1.xpose.msra.mxu0 0.0
        %1052 = vmatprep.subr.mxu0 0.0
        %1053 = vmatpush1.xpose.msra.mxu0 0.0
        %1054 = vmatprep.subr.mxu0 0.0
        %1055 = vmatpush1.xpose.msra.mxu0 0.0
        %1056 = vmatprep.subr.mxu0 0.0
        %1057 = vmatpush1.xpose.msra.mxu0 0.0
        %1058 = vmatprep.subr.mxu0 0.0
        %1059 = vmatpush1.xpose.msra.mxu0 0.0
        %1060 = vmatprep.subr.mxu0 0.0
        %1061 = vmatpush1.xpose.msra.mxu0 0.0
        %1062 = vmatprep.subr.mxu0 0.0
        %1063 = vmatpush1.xpose.msra.mxu0 0.0
        %1064 = vmatprep.subr.mxu0 0.0
        %1065 = vmatpush1.xpose.msra.mxu0 0.0
        %1066 = vmatprep.subr.mxu0 0.0
        %1067 = vmatpush1.xpose.msra.mxu0 0.0
        %1068 = vmatprep.subr.mxu0 0.0
        %1069 = vmatpush1.xpose.msra.mxu0 0.0
        %1070 = vmatprep.subr.mxu0 0.0
        %1071 = vmatpush1.xpose.msra.mxu0 0.0
        %1072 = vmatprep.subr.mxu0 0.0
        %1073 = vmatpush1.xpose.msra.mxu0 0.0
        %1074 = vmatprep.subr.mxu0 0.0
        %1075 = vmatpush1.xpose.msra.mxu0 0.0
        %1076 = vmatprep.subr.mxu0 0.0
        %1077 = vmatpush1.xpose.msra.mxu0 0.0
        %1078 = vmatprep.subr.mxu0 0.0
        %1079 = vmatpush1.xpose.msra.mxu0 0.0
        %1080 = vmatprep.subr.mxu0 0.0
        %1081 = vmatpush1.xpose.msra.mxu0 0.0
        %1082 = vmatprep.subr.mxu0 0.0
        %1083 = vmatpush1.xpose.msra.mxu0 0.0
        %1084 = vmatprep.subr.mxu0 0.0
        %1085 = vmatpush1.xpose.msra.mxu0 0.0
        %1086 = vmatprep.subr.mxu0 0.0
        %1087 = vmatpush1.xpose.msra.mxu0 0.0
        %1088 = vmatprep.subr.mxu0 0.0
        %1089 = vmatpush1.xpose.msra.mxu0 0.0
        %1090 = vmatprep.subr.mxu0 0.0
        %1091 = vmatpush1.xpose.msra.mxu0 0.0
        %1092 = vmatprep.subr.mxu0 0.0
        %1093 = vmatpush1.xpose.msra.mxu0 0.0
        %1094 = vmatprep.subr.mxu0 0.0
        %1095 = vmatpush1.xpose.msra.mxu0 0.0
        %1096 = vmatprep.subr.mxu0 0.0
        %1097 = vmatpush1.xpose.msra.mxu0 0.0
        %1098 = vmatprep.subr.mxu0 0.0
        %1099 = vmatpush1.xpose.msra.mxu0 0.0
        %1100 = vmatprep.subr.mxu0 0.0
        %1101 = vmatpush1.xpose.msra.mxu0 0.0
        %1102 = vmatprep.subr.mxu0 0.0
        %1103 = vmatpush1.xpose.msra.mxu0 0.0
        %1104 = vmatprep.mubr.f32.mxu0 0.0
        %1105 = vmatmul.mubr.f32.gmra.mrb[0].mxu0 %v1036
        %v1106 = vpop.f32.mrb[0].mxu0
        %v1107 = vadd.f32 %v562, %v1106
        %v1108 = vpop.f32.mrb[0].mxu0
        %1109 = vdwg.mxu0
        %v1110 = vsel %vm870, %v1107, -inf
        %1111 = vmax.xlane.f32.xlu0 %v1110
        %v1112 = vpop.xlane.xlu0 %1111
        %v1113 = vsub.f32 %v1107, %v1112
        %v1114 = vmul.f32 %v1113, 1.442695
        %v1115 = vpow.pop %v1114
        %v1116 = vsel %vm870, %v1115, 0.0
        %1117 = vadd.xlane.f32.xlu0 %v1116
        %v1118 = vpop.xlane.xlu0 %1117
        %v1119 = vrcp.pop %v1118
        %v1120 = vmul.f32 %v1115, %v1119
        %1121 = vrot.lane.b32.xlu0 %v864, 56
        %v1122 = vpop.permute.xlu0 %1121
        %v1125 = vsel %vm870, %v1120, 0
        %1127 = vmatprep.subr.mxu0 0.0
        %1128 = vmatpush1.msra.mxu0 %v1122
        %1129 = vmatprep.subr.mxu0 0.0
        %1130 = vmatpush1.msra.mxu0 0.0
        %1131 = vmatprep.subr.mxu0 0.0
        %1132 = vmatpush1.msra.mxu0 0.0
        %1133 = vmatprep.subr.mxu0 0.0
        %1134 = vmatpush1.msra.mxu0 0.0
        %1135 = vmatprep.subr.mxu0 0.0
        %1136 = vmatpush1.msra.mxu0 0.0
        %1137 = vmatprep.subr.mxu0 0.0
        %1138 = vmatpush1.msra.mxu0 0.0
        %1139 = vmatprep.subr.mxu0 0.0
        %1140 = vmatpush1.msra.mxu0 0.0
        %1141 = vmatprep.subr.mxu0 0.0
        %1142 = vmatpush1.msra.mxu0 0.0
        %1143 = vmatprep.subr.mxu0 0.0
        %1144 = vmatpush1.msra.mxu0 0.0
        %1145 = vmatprep.subr.mxu0 0.0
        %1146 = vmatpush1.msra.mxu0 0.0
        %1147 = vmatprep.subr.mxu0 0.0
        %1148 = vmatpush1.msra.mxu0 0.0
        %1149 = vmatprep.subr.mxu0 0.0
        %1150 = vmatpush1.msra.mxu0 0.0
        %1151 = vmatprep.subr.mxu0 0.0
        %1152 = vmatpush1.msra.mxu0 0.0
        %1153 = vmatprep.subr.mxu0 0.0
        %1154 = vmatpush1.msra.mxu0 0.0
        %1155 = vmatprep.subr.mxu0 0.0
        %1156 = vmatpush1.msra.mxu0 0.0
        %1157 = vmatprep.subr.mxu0 0.0
        %1158 = vmatpush1.msra.mxu0 0.0
        %1159 = vmatprep.subr.mxu0 0.0
        %1160 = vmatpush1.msra.mxu0 0.0
        %1161 = vmatprep.subr.mxu0 0.0
        %1162 = vmatpush1.msra.mxu0 0.0
        %1163 = vmatprep.subr.mxu0 0.0
        %1164 = vmatpush1.msra.mxu0 0.0
        %1165 = vmatprep.subr.mxu0 0.0
        %1166 = vmatpush1.msra.mxu0 0.0
        %1167 = vmatprep.subr.mxu0 0.0
        %1168 = vmatpush1.msra.mxu0 0.0
        %1169 = vmatprep.subr.mxu0 0.0
        %1170 = vmatpush1.msra.mxu0 0.0
        %1171 = vmatprep.subr.mxu0 0.0
        %1172 = vmatpush1.msra.mxu0 0.0
        %1173 = vmatprep.subr.mxu0 0.0
        %1174 = vmatpush1.msra.mxu0 0.0
        %1175 = vmatprep.subr.mxu0 0.0
        %1176 = vmatpush1.msra.mxu0 0.0
        %1177 = vmatprep.subr.mxu0 0.0
        %1178 = vmatpush1.msra.mxu0 0.0
        %1179 = vmatprep.subr.mxu0 0.0
        %1180 = vmatpush1.msra.mxu0 0.0
        %1181 = vmatprep.subr.mxu0 0.0
        %1182 = vmatpush1.msra.mxu0 0.0
        %1183 = vmatprep.subr.mxu0 0.0
        %1184 = vmatpush1.msra.mxu0 0.0
        %1185 = vmatprep.subr.mxu0 0.0
        %1186 = vmatpush1.msra.mxu0 0.0
        %1187 = vmatprep.subr.mxu0 0.0
        %1188 = vmatpush1.msra.mxu0 0.0
        %1189 = vmatprep.subr.mxu0 0.0
        %1190 = vmatpush1.msra.mxu0 0.0
        %1191 = vmatprep.mubr.f32.mxu0 0.0
        %1192 = vmatmul.mubr.f32.gmra.mrb[0].mxu0 %v1125
        %v1193 = vpop.f32.mrb[0].mxu0
        %v1194 = vadd.f32 0.0, %v1193
        %v1195 = vpop.f32.mrb[0].mxu0
        %1196 = vdwg.mxu0
        %1197 = vrot.lane.b32.xlu0 %v864, 112
        %v1198 = vpop.permute.xlu0 %1197
        %1199 = vrot.lane.b32.xlu0 %v864, 80
        %v1200 = vpop.permute.xlu0 %1199
        %v1201 = vsel %vm870, %v1198, 0
        %v1203 = vsel %vm870, %v1200, 0
        %1205 = vmatprep.subr.mxu0 0.0
        %1206 = vmatpush1.xpose.msra.mxu0 %v1203
        %1207 = vmatprep.subr.mxu0 0.0
        %1208 = vmatpush1.xpose.msra.mxu0 0.0
        %1209 = vmatprep.subr.mxu0 0.0
        %1210 = vmatpush1.xpose.msra.mxu0 0.0
        %1211 = vmatprep.subr.mxu0 0.0
        %1212 = vmatpush1.xpose.msra.mxu0 0.0
        %1213 = vmatprep.subr.mxu0 0.0
        %1214 = vmatpush1.xpose.msra.mxu0 0.0
        %1215 = vmatprep.subr.mxu0 0.0
        %1216 = vmatpush1.xpose.msra.mxu0 0.0
        %1217 = vmatprep.subr.mxu0 0.0
        %1218 = vmatpush1.xpose.msra.mxu0 0.0
        %1219 = vmatprep.subr.mxu0 0.0
        %1220 = vmatpush1.xpose.msra.mxu0 0.0
        %1221 = vmatprep.subr.mxu0 0.0
        %1222 = vmatpush1.xpose.msra.mxu0 0.0
        %1223 = vmatprep.subr.mxu0 0.0
        %1224 = vmatpush1.xpose.msra.mxu0 0.0
        %1225 = vmatprep.subr.mxu0 0.0
        %1226 = vmatpush1.xpose.msra.mxu0 0.0
        %1227 = vmatprep.subr.mxu0 0.0
        %1228 = vmatpush1.xpose.msra.mxu0 0.0
        %1229 = vmatprep.subr.mxu0 0.0
        %1230 = vmatpush1.xpose.msra.mxu0 0.0
        %1231 = vmatprep.subr.mxu0 0.0
        %1232 = vmatpush1.xpose.msra.mxu0 0.0
        %1233 = vmatprep.subr.mxu0 0.0
        %1234 = vmatpush1.xpose.msra.mxu0 0.0
        %1235 = vmatprep.subr.mxu0 0.0
        %1236 = vmatpush1.xpose.msra.mxu0 0.0
        %1237 = vmatprep.subr.mxu0 0.0
        %1238 = vmatpush1.xpose.msra.mxu0 0.0
        %1239 = vmatprep.subr.mxu0 0.0
        %1240 = vmatpush1.xpose.msra.mxu0 0.0
        %1241 = vmatprep.subr.mxu0 0.0
        %1242 = vmatpush1.xpose.msra.mxu0 0.0
        %1243 = vmatprep.subr.mxu0 0.0
        %1244 = vmatpush1.xpose.msra.mxu0 0.0
        %1245 = vmatprep.subr.mxu0 0.0
        %1246 = vmatpush1.xpose.msra.mxu0 0.0
        %1247 = vmatprep.subr.mxu0 0.0
        %1248 = vmatpush1.xpose.msra.mxu0 0.0
        %1249 = vmatprep.subr.mxu0 0.0
        %1250 = vmatpush1.xpose.msra.mxu0 0.0
        %1251 = vmatprep.subr.mxu0 0.0
        %1252 = vmatpush1.xpose.msra.mxu0 0.0
        %1253 = vmatprep.subr.mxu0 0.0
        %1254 = vmatpush1.xpose.msra.mxu0 0.0
        %1255 = vmatprep.subr.mxu0 0.0
        %1256 = vmatpush1.xpose.msra.mxu0 0.0
        %1257 = vmatprep.subr.mxu0 0.0
        %1258 = vmatpush1.xpose.msra.mxu0 0.0
        %1259 = vmatprep.subr.mxu0 0.0
        %1260 = vmatpush1.xpose.msra.mxu0 0.0
        %1261 = vmatprep.subr.mxu0 0.0
        %1262 = vmatpush1.xpose.msra.mxu0 0.0
        %1263 = vmatprep.subr.mxu0 0.0
        %1264 = vmatpush1.xpose.msra.mxu0 0.0
        %1265 = vmatprep.subr.mxu0 0.0
        %1266 = vmatpush1.xpose.msra.mxu0 0.0
        %1267 = vmatprep.subr.mxu0 0.0
        %1268 = vmatpush1.xpose.msra.mxu0 0.0
        %1269 = vmatprep.mubr.f32.mxu0 0.0
        %1270 = vmatmul.mubr.f32.gmra.mrb[0].mxu0 %v1201
        %v1271 = vpop.f32.mrb[0].mxu0
        %v1272 = vadd.f32 %v562, %v1271
        %v1273 = vpop.f32.mrb[0].mxu0
        %1274 = vdwg.mxu0
        %v1275 = vsel %vm870, %v1272, -inf
        %1276 = vmax.xlane.f32.xlu0 %v1275
        %v1277 = vpop.xlane.xlu0 %1276
        %v1278 = vsub.f32 %v1272, %v1277
        %v1279 = vmul.f32 %v1278, 1.442695
        %v1280 = vpow.pop %v1279
        %v1281 = vsel %vm870, %v1280, 0.0
        %1282 = vadd.xlane.f32.xlu0 %v1281
        %v1283 = vpop.xlane.xlu0 %1282
        %v1284 = vrcp.pop %v1283
        %v1285 = vmul.f32 %v1280, %v1284
        %1286 = vrot.lane.b32.xlu0 %v864, 48
        %v1287 = vpop.permute.xlu0 %1286
        %v1290 = vsel %vm870, %v1285, 0
        %1292 = vmatprep.subr.mxu0 0.0
        %1293 = vmatpush1.msra.mxu0 %v1287
        %1294 = vmatprep.subr.mxu0 0.0
        %1295 = vmatpush1.msra.mxu0 0.0
        %1296 = vmatprep.subr.mxu0 0.0
        %1297 = vmatpush1.msra.mxu0 0.0
        %1298 = vmatprep.subr.mxu0 0.0
        %1299 = vmatpush1.msra.mxu0 0.0
        %1300 = vmatprep.subr.mxu0 0.0
        %1301 = vmatpush1.msra.mxu0 0.0
        %1302 = vmatprep.subr.mxu0 0.0
        %1303 = vmatpush1.msra.mxu0 0.0
        %1304 = vmatprep.subr.mxu0 0.0
        %1305 = vmatpush1.msra.mxu0 0.0
        %1306 = vmatprep.subr.mxu0 0.0
        %1307 = vmatpush1.msra.mxu0 0.0
        %1308 = vmatprep.subr.mxu0 0.0
        %1309 = vmatpush1.msra.mxu0 0.0
        %1310 = vmatprep.subr.mxu0 0.0
        %1311 = vmatpush1.msra.mxu0 0.0
        %1312 = vmatprep.subr.mxu0 0.0
        %1313 = vmatpush1.msra.mxu0 0.0
        %1314 = vmatprep.subr.mxu0 0.0
        %1315 = vmatpush1.msra.mxu0 0.0
        %1316 = vmatprep.subr.mxu0 0.0
        %1317 = vmatpush1.msra.mxu0 0.0
        %1318 = vmatprep.subr.mxu0 0.0
        %1319 = vmatpush1.msra.mxu0 0.0
        %1320 = vmatprep.subr.mxu0 0.0
        %1321 = vmatpush1.msra.mxu0 0.0
        %1322 = vmatprep.subr.mxu0 0.0
        %1323 = vmatpush1.msra.mxu0 0.0
        %1324 = vmatprep.subr.mxu0 0.0
        %1325 = vmatpush1.msra.mxu0 0.0
        %1326 = vmatprep.subr.mxu0 0.0
        %1327 = vmatpush1.msra.mxu0 0.0
        %1328 = vmatprep.subr.mxu0 0.0
        %1329 = vmatpush1.msra.mxu0 0.0
        %1330 = vmatprep.subr.mxu0 0.0
        %1331 = vmatpush1.msra.mxu0 0.0
        %1332 = vmatprep.subr.mxu0 0.0
        %1333 = vmatpush1.msra.mxu0 0.0
        %1334 = vmatprep.subr.mxu0 0.0
        %1335 = vmatpush1.msra.mxu0 0.0
        %1336 = vmatprep.subr.mxu0 0.0
        %1337 = vmatpush1.msra.mxu0 0.0
        %1338 = vmatprep.subr.mxu0 0.0
        %1339 = vmatpush1.msra.mxu0 0.0
        %1340 = vmatprep.subr.mxu0 0.0
        %1341 = vmatpush1.msra.mxu0 0.0
        %1342 = vmatprep.subr.mxu0 0.0
        %1343 = vmatpush1.msra.mxu0 0.0
        %1344 = vmatprep.subr.mxu0 0.0
        %1345 = vmatpush1.msra.mxu0 0.0
        %1346 = vmatprep.subr.mxu0 0.0
        %1347 = vmatpush1.msra.mxu0 0.0
        %1348 = vmatprep.subr.mxu0 0.0
        %1349 = vmatpush1.msra.mxu0 0.0
        %1350 = vmatprep.subr.mxu0 0.0
        %1351 = vmatpush1.msra.mxu0 0.0
        %1352 = vmatprep.subr.mxu0 0.0
        %1353 = vmatpush1.msra.mxu0 0.0
        %1354 = vmatprep.subr.mxu0 0.0
        %1355 = vmatpush1.msra.mxu0 0.0
        %1356 = vmatprep.mubr.f32.mxu0 0.0
        %1357 = vmatmul.mubr.f32.gmra.mrb[0].mxu0 %v1290
        %v1358 = vpop.f32.mrb[0].mxu0
        %v1359 = vadd.f32 0.0, %v1358
        %v1360 = vpop.f32.mrb[0].mxu0
        %1361 = vdwg.mxu0
        %1362 = vrot.lane.b32.xlu0 %v864, 104
        %v1363 = vpop.permute.xlu0 %1362
        %1364 = vrot.lane.b32.xlu0 %v864, 72
        %v1365 = vpop.permute.xlu0 %1364
        %v1366 = vsel %vm870, %v1363, 0
        %v1368 = vsel %vm870, %v1365, 0
        %1370 = vmatprep.subr.mxu0 0.0
        %1371 = vmatpush1.xpose.msra.mxu0 %v1368
        %1372 = vmatprep.subr.mxu0 0.0
        %1373 = vmatpush1.xpose.msra.mxu0 0.0
        %1374 = vmatprep.subr.mxu0 0.0
        %1375 = vmatpush1.xpose.msra.mxu0 0.0
        %1376 = vmatprep.subr.mxu0 0.0
        %1377 = vmatpush1.xpose.msra.mxu0 0.0
        %1378 = vmatprep.subr.mxu0 0.0
        %1379 = vmatpush1.xpose.msra.mxu0 0.0
        %1380 = vmatprep.subr.mxu0 0.0
        %1381 = vmatpush1.xpose.msra.mxu0 0.0
        %1382 = vmatprep.subr.mxu0 0.0
        %1383 = vmatpush1.xpose.msra.mxu0 0.0
        %1384 = vmatprep.subr.mxu0 0.0
        %1385 = vmatpush1.xpose.msra.mxu0 0.0
        %1386 = vmatprep.subr.mxu0 0.0
        %1387 = vmatpush1.xpose.msra.mxu0 0.0
        %1388 = vmatprep.subr.mxu0 0.0
        %1389 = vmatpush1.xpose.msra.mxu0 0.0
        %1390 = vmatprep.subr.mxu0 0.0
        %1391 = vmatpush1.xpose.msra.mxu0 0.0
        %1392 = vmatprep.subr.mxu0 0.0
        %1393 = vmatpush1.xpose.msra.mxu0 0.0
        %1394 = vmatprep.subr.mxu0 0.0
        %1395 = vmatpush1.xpose.msra.mxu0 0.0
        %1396 = vmatprep.subr.mxu0 0.0
        %1397 = vmatpush1.xpose.msra.mxu0 0.0
        %1398 = vmatprep.subr.mxu0 0.0
        %1399 = vmatpush1.xpose.msra.mxu0 0.0
        %1400 = vmatprep.subr.mxu0 0.0
        %1401 = vmatpush1.xpose.msra.mxu0 0.0
        %1402 = vmatprep.subr.mxu0 0.0
        %1403 = vmatpush1.xpose.msra.mxu0 0.0
        %1404 = vmatprep.subr.mxu0 0.0
        %1405 = vmatpush1.xpose.msra.mxu0 0.0
        %1406 = vmatprep.subr.mxu0 0.0
        %1407 = vmatpush1.xpose.msra.mxu0 0.0
        %1408 = vmatprep.subr.mxu0 0.0
        %1409 = vmatpush1.xpose.msra.mxu0 0.0
        %1410 = vmatprep.subr.mxu0 0.0
        %1411 = vmatpush1.xpose.msra.mxu0 0.0
        %1412 = vmatprep.subr.mxu0 0.0
        %1413 = vmatpush1.xpose.msra.mxu0 0.0
        %1414 = vmatprep.subr.mxu0 0.0
        %1415 = vmatpush1.xpose.msra.mxu0 0.0
        %1416 = vmatprep.subr.mxu0 0.0
        %1417 = vmatpush1.xpose.msra.mxu0 0.0
        %1418 = vmatprep.subr.mxu0 0.0
        %1419 = vmatpush1.xpose.msra.mxu0 0.0
        %1420 = vmatprep.subr.mxu0 0.0
        %1421 = vmatpush1.xpose.msra.mxu0 0.0
        %1422 = vmatprep.subr.mxu0 0.0
        %1423 = vmatpush1.xpose.msra.mxu0 0.0
        %1424 = vmatprep.subr.mxu0 0.0
        %1425 = vmatpush1.xpose.msra.mxu0 0.0
        %1426 = vmatprep.subr.mxu0 0.0
        %1427 = vmatpush1.xpose.msra.mxu0 0.0
        %1428 = vmatprep.subr.mxu0 0.0
        %1429 = vmatpush1.xpose.msra.mxu0 0.0
        %1430 = vmatprep.subr.mxu0 0.0
        %1431 = vmatpush1.xpose.msra.mxu0 0.0
        %1432 = vmatprep.subr.mxu0 0.0
        %1433 = vmatpush1.xpose.msra.mxu0 0.0
        %1434 = vmatprep.mubr.f32.mxu0 0.0
        %1435 = vmatmul.mubr.f32.gmra.mrb[0].mxu0 %v1366
        %v1436 = vpop.f32.mrb[0].mxu0
        %v1437 = vadd.f32 %v562, %v1436
        %v1438 = vpop.f32.mrb[0].mxu0
        %1439 = vdwg.mxu0
        %v1440 = vsel %vm870, %v1437, -inf
        %1441 = vmax.xlane.f32.xlu0 %v1440
        %v1442 = vpop.xlane.xlu0 %1441
        %v1443 = vsub.f32 %v1437, %v1442
        %v1444 = vmul.f32 %v1443, 1.442695
        %v1445 = vpow.pop %v1444
        %v1446 = vsel %vm870, %v1445, 0.0
        %1447 = vadd.xlane.f32.xlu0 %v1446
        %v1448 = vpop.xlane.xlu0 %1447
        %v1449 = vrcp.pop %v1448
        %v1450 = vmul.f32 %v1445, %v1449
        %1451 = vrot.lane.b32.xlu0 %v864, 40
        %v1452 = vpop.permute.xlu0 %1451
        %v1455 = vsel %vm870, %v1450, 0
        %1457 = vmatprep.subr.mxu0 0.0
        %1458 = vmatpush1.msra.mxu0 %v1452
        %1459 = vmatprep.subr.mxu0 0.0
        %1460 = vmatpush1.msra.mxu0 0.0
        %1461 = vmatprep.subr.mxu0 0.0
        %1462 = vmatpush1.msra.mxu0 0.0
        %1463 = vmatprep.subr.mxu0 0.0
        %1464 = vmatpush1.msra.mxu0 0.0
        %1465 = vmatprep.subr.mxu0 0.0
        %1466 = vmatpush1.msra.mxu0 0.0
        %1467 = vmatprep.subr.mxu0 0.0
        %1468 = vmatpush1.msra.mxu0 0.0
        %1469 = vmatprep.subr.mxu0 0.0
        %1470 = vmatpush1.msra.mxu0 0.0
        %1471 = vmatprep.subr.mxu0 0.0
        %1472 = vmatpush1.msra.mxu0 0.0
        %1473 = vmatprep.subr.mxu0 0.0
        %1474 = vmatpush1.msra.mxu0 0.0
        %1475 = vmatprep.subr.mxu0 0.0
        %1476 = vmatpush1.msra.mxu0 0.0
        %1477 = vmatprep.subr.mxu0 0.0
        %1478 = vmatpush1.msra.mxu0 0.0
        %1479 = vmatprep.subr.mxu0 0.0
        %1480 = vmatpush1.msra.mxu0 0.0
        %1481 = vmatprep.subr.mxu0 0.0
        %1482 = vmatpush1.msra.mxu0 0.0
        %1483 = vmatprep.subr.mxu0 0.0
        %1484 = vmatpush1.msra.mxu0 0.0
        %1485 = vmatprep.subr.mxu0 0.0
        %1486 = vmatpush1.msra.mxu0 0.0
        %1487 = vmatprep.subr.mxu0 0.0
        %1488 = vmatpush1.msra.mxu0 0.0
        %1489 = vmatprep.subr.mxu0 0.0
        %1490 = vmatpush1.msra.mxu0 0.0
        %1491 = vmatprep.subr.mxu0 0.0
        %1492 = vmatpush1.msra.mxu0 0.0
        %1493 = vmatprep.subr.mxu0 0.0
        %1494 = vmatpush1.msra.mxu0 0.0
        %1495 = vmatprep.subr.mxu0 0.0
        %1496 = vmatpush1.msra.mxu0 0.0
        %1497 = vmatprep.subr.mxu0 0.0
        %1498 = vmatpush1.msra.mxu0 0.0
        %1499 = vmatprep.subr.mxu0 0.0
        %1500 = vmatpush1.msra.mxu0 0.0
        %1501 = vmatprep.subr.mxu0 0.0
        %1502 = vmatpush1.msra.mxu0 0.0
        %1503 = vmatprep.subr.mxu0 0.0
        %1504 = vmatpush1.msra.mxu0 0.0
        %1505 = vmatprep.subr.mxu0 0.0
        %1506 = vmatpush1.msra.mxu0 0.0
        %1507 = vmatprep.subr.mxu0 0.0
        %1508 = vmatpush1.msra.mxu0 0.0
        %1509 = vmatprep.subr.mxu0 0.0
        %1510 = vmatpush1.msra.mxu0 0.0
        %1511 = vmatprep.subr.mxu0 0.0
        %1512 = vmatpush1.msra.mxu0 0.0
        %1513 = vmatprep.subr.mxu0 0.0
        %1514 = vmatpush1.msra.mxu0 0.0
        %1515 = vmatprep.subr.mxu0 0.0
        %1516 = vmatpush1.msra.mxu0 0.0
        %1517 = vmatprep.subr.mxu0 0.0
        %1518 = vmatpush1.msra.mxu0 0.0
        %1519 = vmatprep.subr.mxu0 0.0
        %1520 = vmatpush1.msra.mxu0 0.0
        %1521 = vmatprep.mubr.f32.mxu0 0.0
        %1522 = vmatmul.mubr.f32.gmra.mrb[0].mxu0 %v1455
        %v1523 = vpop.f32.mrb[0].mxu0
        %v1524 = vadd.f32 0.0, %v1523
        %v1525 = vpop.f32.mrb[0].mxu0
        %1526 = vdwg.mxu0
        %1528 = vrot.lane.b32.xlu0 %v1194, 8
        %v1529 = vpop.permute.xlu0 %1528
        %1532 = vrot.lane.b32.xlu0 %v1359, 16
        %v1533 = vpop.permute.xlu0 %1532
        %1536 = vrot.lane.b32.xlu0 %v1524, 24
        %v1537 = vpop.permute.xlu0 %1536
        %v1539 = vsel %vm870, %v1029, %v1529
        %vm1540 = vcmask 130048
        %v1541 = vsel %vm1540, %v1539, %v1533
        %vm1542 = vcmask 195584
        %v1543 = vsel %vm1542, %v1541, %v1537
        %v1544 = vld [vmem:[#allocation8] sm:$0xff]
        %v1545 = vld [vmem:[#allocation8 + $0x8] sm:$0xff]
        %v1546 = vld [vmem:[#allocation8 + $0x10] sm:$0xff]
        %v1547 = vld [vmem:[#allocation8 + $0x18] sm:$0xff]
        %v1548 = vld [vmem:[%s6] sm:$0x1]
        %v1550 = vlaneseq
        %v1551 = vshrl.u32 %v1550, 7
        %v1552 = vsub.s32 0, %v1551
        %v1553 = vrot.slane %v1548, %v1552
        %v1556 = vsel %vm594, %v1543, 0
        %1558 = vmatprep.subr.mxu0 0.0
        %1559 = vmatpush1.msra.mxu0 %v1544
        %1560 = vmatprep.subr.mxu0 0.0
        %1561 = vmatpush1.msra.mxu0 %v1545
        %1562 = vmatprep.subr.mxu0 0.0
        %1563 = vmatpush1.msra.mxu0 %v1546
        %1564 = vmatprep.subr.mxu0 0.0
        %1565 = vmatpush1.msra.mxu0 %v1547
        %1566 = vmatprep.subr.mxu0 0.0
        %1567 = vmatpush1.msra.mxu0 0.0
        %1568 = vmatprep.subr.mxu0 0.0
        %1569 = vmatpush1.msra.mxu0 0.0
        %1570 = vmatprep.subr.mxu0 0.0
        %1571 = vmatpush1.msra.mxu0 0.0
        %1572 = vmatprep.subr.mxu0 0.0
        %1573 = vmatpush1.msra.mxu0 0.0
        %1574 = vmatprep.subr.mxu0 0.0
        %1575 = vmatpush1.msra.mxu0 0.0
        %1576 = vmatprep.subr.mxu0 0.0
        %1577 = vmatpush1.msra.mxu0 0.0
        %1578 = vmatprep.subr.mxu0 0.0
        %1579 = vmatpush1.msra.mxu0 0.0
        %1580 = vmatprep.subr.mxu0 0.0
        %1581 = vmatpush1.msra.mxu0 0.0
        %1582 = vmatprep.subr.mxu0 0.0
        %1583 = vmatpush1.msra.mxu0 0.0
        %1584 = vmatprep.subr.mxu0 0.0
        %1585 = vmatpush1.msra.mxu0 0.0
        %1586 = vmatprep.subr.mxu0 0.0
        %1587 = vmatpush1.msra.mxu0 0.0
        %1588 = vmatprep.subr.mxu0 0.0
        %1589 = vmatpush1.msra.mxu0 0.0
        %1590 = vmatprep.subr.mxu0 0.0
        %1591 = vmatpush1.msra.mxu0 0.0
        %1592 = vmatprep.subr.mxu0 0.0
        %1593 = vmatpush1.msra.mxu0 0.0
        %1594 = vmatprep.subr.mxu0 0.0
        %1595 = vmatpush1.msra.mxu0 0.0
        %1596 = vmatprep.subr.mxu0 0.0
        %1597 = vmatpush1.msra.mxu0 0.0
        %1598 = vmatprep.subr.mxu0 0.0
        %1599 = vmatpush1.msra.mxu0 0.0
        %1600 = vmatprep.subr.mxu0 0.0
        %1601 = vmatpush1.msra.mxu0 0.0
        %1602 = vmatprep.subr.mxu0 0.0
        %1603 = vmatpush1.msra.mxu0 0.0
        %1604 = vmatprep.subr.mxu0 0.0
        %1605 = vmatpush1.msra.mxu0 0.0
        %1606 = vmatprep.subr.mxu0 0.0
        %1607 = vmatpush1.msra.mxu0 0.0
        %1608 = vmatprep.subr.mxu0 0.0
        %1609 = vmatpush1.msra.mxu0 0.0
        %1610 = vmatprep.subr.mxu0 0.0
        %1611 = vmatpush1.msra.mxu0 0.0
        %1612 = vmatprep.subr.mxu0 0.0
        %1613 = vmatpush1.msra.mxu0 0.0
        %1614 = vmatprep.subr.mxu0 0.0
        %1615 = vmatpush1.msra.mxu0 0.0
        %1616 = vmatprep.subr.mxu0 0.0
        %1617 = vmatpush1.msra.mxu0 0.0
        %1618 = vmatprep.subr.mxu0 0.0
        %1619 = vmatpush1.msra.mxu0 0.0
        %1620 = vmatprep.subr.mxu0 0.0
        %1621 = vmatpush1.msra.mxu0 0.0
        %1622 = vmatprep.mubr.f32.mxu0 0.0
        %1623 = vmatmul.mubr.f32.gmra.mrb[0].mxu0 %v1556
        %v1624 = vpop.f32.mrb[0].mxu0
        %v1625 = vadd.f32 %v1553, %v1624
        %v1626 = vpop.f32.mrb[0].mxu0
        %1627 = vdwg.mxu0
        %v1628 = vadd.f32 %v1625, %v782
        %v1629 = vsel %vm594, %v1628, 0.0
        %1630 = vadd.xlane.f32.xlu0 %v1629
        %v1631 = vpop.xlane.xlu0 %1630
        %v1632 = vrcp.pop 32.0
        %v1633 = vmul.f32 %v1631, %v1632
        %v1634 = vmul.f32 %v1628, %v1628
        %v1635 = vsel %vm594, %v1634, 0.0
        %1636 = vadd.xlane.f32.xlu0 %v1635
        %v1637 = vpop.xlane.xlu0 %1636
        %v1638 = vmul.f32 %v1637, %v1632
        %v1639 = vmul.f32 %v1633, %v1633
        %v1640 = vsub.f32 %v1638, %v1639
        %v1641 = vsub.f32 %v1628, %v1633
        %v1642 = vadd.f32 %v1640, 1e-05
        %v1643 = vrsqrt.pop %v1642
        %v1644 = vmul.f32 %v1641, %v1643
        %v1645 = vld [vmem:[%s7] sm:$0x1]
        %v1647 = vlaneseq
        %v1648 = vshrl.u32 %v1647, 7
        %v1649 = vsub.s32 0, %v1648
        %v1650 = vrot.slane %v1645, %v1649
        %v1652 = vmul.f32 %v1644, %v1650
        %v1653 = vld [vmem:[%s8] sm:$0x1]
        %v1655 = vlaneseq
        %v1656 = vshrl.u32 %v1655, 7
        %v1657 = vsub.s32 0, %v1656
        %v1658 = vrot.slane %v1653, %v1657
        %v1660 = vadd.f32 %v1652, %v1658
        %v1663 = vsel %vm594, %v1660, 0
        %1665 = vmatprep.subr.mxu0 0.0
        %1666 = vmatpush1.msra.mxu0 %v564
        %1667 = vmatprep.subr.mxu0 0.0
        %1668 = vmatpush1.msra.mxu0 %v565
        %1669 = vmatprep.subr.mxu0 0.0
        %1670 = vmatpush1.msra.mxu0 %v566
        %1671 = vmatprep.subr.mxu0 0.0
        %1672 = vmatpush1.msra.mxu0 %v567
        %1673 = vmatprep.subr.mxu0 0.0
        %1674 = vmatpush1.msra.mxu0 0.0
        %1675 = vmatprep.subr.mxu0 0.0
        %1676 = vmatpush1.msra.mxu0 0.0
        %1677 = vmatprep.subr.mxu0 0.0
        %1678 = vmatpush1.msra.mxu0 0.0
        %1679 = vmatprep.subr.mxu0 0.0
        %1680 = vmatpush1.msra.mxu0 0.0
        %1681 = vmatprep.subr.mxu0 0.0
        %1682 = vmatpush1.msra.mxu0 0.0
        %1683 = vmatprep.subr.mxu0 0.0
        %1684 = vmatpush1.msra.mxu0 0.0
        %1685 = vmatprep.subr.mxu0 0.0
        %1686 = vmatpush1.msra.mxu0 0.0
        %1687 = vmatprep.subr.mxu0 0.0
        %1688 = vmatpush1.msra.mxu0 0.0
        %1689 = vmatprep.subr.mxu0 0.0
        %1690 = vmatpush1.msra.mxu0 0.0
        %1691 = vmatprep.subr.mxu0 0.0
        %1692 = vmatpush1.msra.mxu0 0.0
        %1693 = vmatprep.subr.mxu0 0.0
        %1694 = vmatpush1.msra.mxu0 0.0
        %1695 = vmatprep.subr.mxu0 0.0
        %1696 = vmatpush1.msra.mxu0 0.0
        %1697 = vmatprep.subr.mxu0 0.0
        %1698 = vmatpush1.msra.mxu0 0.0
        %1699 = vmatprep.subr.mxu0 0.0
        %1700 = vmatpush1.msra.mxu0 0.0
        %1701 = vmatprep.subr.mxu0 0.0
        %1702 = vmatpush1.msra.mxu0 0.0
        %1703 = vmatprep.subr.mxu0 0.0
        %1704 = vmatpush1.msra.mxu0 0.0
        %1705 = vmatprep.subr.mxu0 0.0
        %1706 = vmatpush1.msra.mxu0 0.0
        %1707 = vmatprep.subr.mxu0 0.0
        %1708 = vmatpush1.msra.mxu0 0.0
        %1709 = vmatprep.subr.mxu0 0.0
        %1710 = vmatpush1.msra.mxu0 0.0
        %1711 = vmatprep.subr.mxu0 0.0
        %1712 = vmatpush1.msra.mxu0 0.0
        %1713 = vmatprep.subr.mxu0 0.0
        %1714 = vmatpush1.msra.mxu0 0.0
        %1715 = vmatprep.subr.mxu0 0.0
        %1716 = vmatpush1.msra.mxu0 0.0
        %1717 = vmatprep.subr.mxu0 0.0
        %1718 = vmatpush1.msra.mxu0 0.0
        %1719 = vmatprep.subr.mxu0 0.0
        %1720 = vmatpush1.msra.mxu0 0.0
        %1721 = vmatprep.subr.mxu0 0.0
        %1722 = vmatpush1.msra.mxu0 0.0
        %1723 = vmatprep.subr.mxu0 0.0
        %1724 = vmatpush1.msra.mxu0 0.0
        %1725 = vmatprep.subr.mxu0 0.0
        %1726 = vmatpush1.msra.mxu0 0.0
        %1727 = vmatprep.subr.mxu0 0.0
        %1728 = vmatpush1.msra.mxu0 0.0
        %1729 = vmatprep.mubr.f32.mxu0 0.0
        %1730 = vmatmul.mubr.f32.gmra.mrb[0].mxu0 %v1663
        %v1731 = vpop.f32.mrb[0].mxu0
        %v1732 = vadd.f32 %v574, %v1731
        %v1733 = vpop.f32.mrb[0].mxu0
        %1734 = vdwg.mxu0
        %v1736 = vlaneseq
        %v1737 = vshrl.u32 %v1736, 7
        %v1738 = vsub.s32 0, %v1737
        %v1739 = vrot.slane %v556, %v1738
        %v1742 = vsel %vm870, %v1732, 0
        %v1745 = vsel %vm870, %v668, 0
        %v1748 = vsel %vm870, %v673, 0
        %1750 = vmatprep.subr.mxu0 0.0
        %1751 = vmatpush1.xpose.msra.mxu0 %v1745
        %1752 = vmatprep.subr.mxu0 0.0
        %1753 = vmatpush1.xpose.msra.mxu0 %v1748
        %1754 = vmatprep.subr.mxu0 0.0
        %1755 = vmatpush1.xpose.msra.mxu0 0.0
        %1756 = vmatprep.subr.mxu0 0.0
        %1757 = vmatpush1.xpose.msra.mxu0 0.0
        %1758 = vmatprep.subr.mxu0 0.0
        %1759 = vmatpush1.xpose.msra.mxu0 0.0
        %1760 = vmatprep.subr.mxu0 0.0
        %1761 = vmatpush1.xpose.msra.mxu0 0.0
        %1762 = vmatprep.subr.mxu0 0.0
        %1763 = vmatpush1.xpose.msra.mxu0 0.0
        %1764 = vmatprep.subr.mxu0 0.0
        %1765 = vmatpush1.xpose.msra.mxu0 0.0
        %1766 = vmatprep.subr.mxu0 0.0
        %1767 = vmatpush1.xpose.msra.mxu0 0.0
        %1768 = vmatprep.subr.mxu0 0.0
        %1769 = vmatpush1.xpose.msra.mxu0 0.0
        %1770 = vmatprep.subr.mxu0 0.0
        %1771 = vmatpush1.xpose.msra.mxu0 0.0
        %1772 = vmatprep.subr.mxu0 0.0
        %1773 = vmatpush1.xpose.msra.mxu0 0.0
        %1774 = vmatprep.subr.mxu0 0.0
        %1775 = vmatpush1.xpose.msra.mxu0 0.0
        %1776 = vmatprep.subr.mxu0 0.0
        %1777 = vmatpush1.xpose.msra.mxu0 0.0
        %1778 = vmatprep.subr.mxu0 0.0
        %1779 = vmatpush1.xpose.msra.mxu0 0.0
        %1780 = vmatprep.subr.mxu0 0.0
        %1781 = vmatpush1.xpose.msra.mxu0 0.0
        %1782 = vmatprep.subr.mxu0 0.0
        %1783 = vmatpush1.xpose.msra.mxu0 0.0
        %1784 = vmatprep.subr.mxu0 0.0
        %1785 = vmatpush1.xpose.msra.mxu0 0.0
        %1786 = vmatprep.subr.mxu0 0.0
        %1787 = vmatpush1.xpose.msra.mxu0 0.0
        %1788 = vmatprep.subr.mxu0 0.0
        %1789 = vmatpush1.xpose.msra.mxu0 0.0
        %1790 = vmatprep.subr.mxu0 0.0
        %1791 = vmatpush1.xpose.msra.mxu0 0.0
        %1792 = vmatprep.subr.mxu0 0.0
        %1793 = vmatpush1.xpose.msra.mxu0 0.0
        %1794 = vmatprep.subr.mxu0 0.0
        %1795 = vmatpush1.xpose.msra.mxu0 0.0
        %1796 = vmatprep.subr.mxu0 0.0
        %1797 = vmatpush1.xpose.msra.mxu0 0.0
        %1798 = vmatprep.subr.mxu0 0.0
        %1799 = vmatpush1.xpose.msra.mxu0 0.0
        %1800 = vmatprep.subr.mxu0 0.0
        %1801 = vmatpush1.xpose.msra.mxu0 0.0
        %1802 = vmatprep.subr.mxu0 0.0
        %1803 = vmatpush1.xpose.msra.mxu0 0.0
        %1804 = vmatprep.subr.mxu0 0.0
        %1805 = vmatpush1.xpose.msra.mxu0 0.0
        %1806 = vmatprep.subr.mxu0 0.0
        %1807 = vmatpush1.xpose.msra.mxu0 0.0
        %1808 = vmatprep.subr.mxu0 0.0
        %1809 = vmatpush1.xpose.msra.mxu0 0.0
        %1810 = vmatprep.subr.mxu0 0.0
        %1811 = vmatpush1.xpose.msra.mxu0 0.0
        %1812 = vmatprep.subr.mxu0 0.0
        %1813 = vmatpush1.xpose.msra.mxu0 0.0
        %1814 = vmatprep.mubr.f32.mxu0 0.0
        %1815 = vmatmul.mubr.f32.gmra.mrb[0].mxu0 %v1742
        %v1816 = vpop.f32.mrb[0].mxu0
        %v1817 = vadd.f32 %v1739, %v1816
        %v1818 = vpop.f32.mrb[0].mxu0
        %1819 = vdwg.mxu0
        %v1820 = vsel %vm1540, %v1817, -inf
        %1821 = vmax.xlane.f32.xlu0 %v1820
        %v1822 = vpop.xlane.xlu0 %1821
        %v1823 = vsub.f32 %v1817, %v1822
        %v1824 = vmul.f32 %v1823, 1.442695
        %v1825 = vpow.pop %v1824
        %v1826 = vsel %vm1540, %v1825, 0.0
        %1827 = vadd.xlane.f32.xlu0 %v1826
        %v1828 = vpop.xlane.xlu0 %1827
        %v1829 = vrcp.pop %v1828
        %v1830 = vmul.f32 %v1825, %v1829
        %1831 = vrot.lane.b32.xlu0 %v668, 96
        %v1832 = vpop.permute.xlu0 %1831
        %1833 = vrot.lane.b32.xlu0 %v673, 96
        %v1834 = vpop.permute.xlu0 %1833
        %v1838 = vsel %vm1540, %v1830, 0
        %1840 = vmatprep.subr.mxu0 0.0
        %1841 = vmatpush1.msra.mxu0 %v1832
        %1842 = vmatprep.subr.mxu0 0.0
        %1843 = vmatpush1.msra.mxu0 %v1834
        %1844 = vmatprep.subr.mxu0 0.0
        %1845 = vmatpush1.msra.mxu0 0.0
        %1846 = vmatprep.subr.mxu0 0.0
        %1847 = vmatpush1.msra.mxu0 0.0
        %1848 = vmatprep.subr.mxu0 0.0
        %1849 = vmatpush1.msra.mxu0 0.0
        %1850 = vmatprep.subr.mxu0 0.0
        %1851 = vmatpush1.msra.mxu0 0.0
        %1852 = vmatprep.subr.mxu0 0.0
        %1853 = vmatpush1.msra.mxu0 0.0
        %1854 = vmatprep.subr.mxu0 0.0
        %1855 = vmatpush1.msra.mxu0 0.0
        %1856 = vmatprep.subr.mxu0 0.0
        %1857 = vmatpush1.msra.mxu0 0.0
        %1858 = vmatprep.subr.mxu0 0.0
        %1859 = vmatpush1.msra.mxu0 0.0
        %1860 = vmatprep.subr.mxu0 0.0
        %1861 = vmatpush1.msra.mxu0 0.0
        %1862 = vmatprep.subr.mxu0 0.0
        %1863 = vmatpush1.msra.mxu0 0.0
        %1864 = vmatprep.subr.mxu0 0.0
        %1865 = vmatpush1.msra.mxu0 0.0
        %1866 = vmatprep.subr.mxu0 0.0
        %1867 = vmatpush1.msra.mxu0 0.0
        %1868 = vmatprep.subr.mxu0 0.0
        %1869 = vmatpush1.msra.mxu0 0.0
        %1870 = vmatprep.subr.mxu0 0.0
        %1871 = vmatpush1.msra.mxu0 0.0
        %1872 = vmatprep.subr.mxu0 0.0
        %1873 = vmatpush1.msra.mxu0 0.0
        %1874 = vmatprep.subr.mxu0 0.0
        %1875 = vmatpush1.msra.mxu0 0.0
        %1876 = vmatprep.subr.mxu0 0.0
        %1877 = vmatpush1.msra.mxu0 0.0
        %1878 = vmatprep.subr.mxu0 0.0
        %1879 = vmatpush1.msra.mxu0 0.0
        %1880 = vmatprep.subr.mxu0 0.0
        %1881 = vmatpush1.msra.mxu0 0.0
        %1882 = vmatprep.subr.mxu0 0.0
        %1883 = vmatpush1.msra.mxu0 0.0
        %1884 = vmatprep.subr.mxu0 0.0
        %1885 = vmatpush1.msra.mxu0 0.0
        %1886 = vmatprep.subr.mxu0 0.0
        %1887 = vmatpush1.msra.mxu0 0.0
        %1888 = vmatprep.subr.mxu0 0.0
        %1889 = vmatpush1.msra.mxu0 0.0
        %1890 = vmatprep.subr.mxu0 0.0
        %1891 = vmatpush1.msra.mxu0 0.0
        %1892 = vmatprep.subr.mxu0 0.0
        %1893 = vmatpush1.msra.mxu0 0.0
        %1894 = vmatprep.subr.mxu0 0.0
        %1895 = vmatpush1.msra.mxu0 0.0
        %1896 = vmatprep.subr.mxu0 0.0
        %1897 = vmatpush1.msra.mxu0 0.0
        %1898 = vmatprep.subr.mxu0 0.0
        %1899 = vmatpush1.msra.mxu0 0.0
        %1900 = vmatprep.subr.mxu0 0.0
        %1901 = vmatpush1.msra.mxu0 0.0
        %1902 = vmatprep.subr.mxu0 0.0
        %1903 = vmatpush1.msra.mxu0 0.0
        %1904 = vmatprep.mubr.f32.mxu0 0.0
        %1905 = vmatmul.mubr.f32.gmra.mrb[0].mxu0 %v1838
        %v1906 = vpop.f32.mrb[0].mxu0
        %v1907 = vadd.f32 0.0, %v1906
        %v1908 = vpop.f32.mrb[0].mxu0
        %1909 = vdwg.mxu0
        %1910 = vrot.lane.b32.xlu0 %v1732, 120
        %v1911 = vpop.permute.xlu0 %1910
        %1912 = vrot.lane.b32.xlu0 %v668, 120
        %v1913 = vpop.permute.xlu0 %1912
        %1914 = vrot.lane.b32.xlu0 %v673, 120
        %v1915 = vpop.permute.xlu0 %1914
        %v1916 = vsel %vm870, %v1911, 0
        %v1918 = vsel %vm870, %v1913, 0
        %v1920 = vsel %vm870, %v1915, 0
        %1922 = vmatprep.subr.mxu0 0.0
        %1923 = vmatpush1.xpose.msra.mxu0 %v1918
        %1924 = vmatprep.subr.mxu0 0.0
        %1925 = vmatpush1.xpose.msra.mxu0 %v1920
        %1926 = vmatprep.subr.mxu0 0.0
        %1927 = vmatpush1.xpose.msra.mxu0 0.0
        %1928 = vmatprep.subr.mxu0 0.0
        %1929 = vmatpush1.xpose.msra.mxu0 0.0
        %1930 = vmatprep.subr.mxu0 0.0
        %1931 = vmatpush1.xpose.msra.mxu0 0.0
        %1932 = vmatprep.subr.mxu0 0.0
        %1933 = vmatpush1.xpose.msra.mxu0 0.0
        %1934 = vmatprep.subr.mxu0 0.0
        %1935 = vmatpush1.xpose.msra.mxu0 0.0
        %1936 = vmatprep.subr.mxu0 0.0
        %1937 = vmatpush1.xpose.msra.mxu0 0.0
        %1938 = vmatprep.subr.mxu0 0.0
        %1939 = vmatpush1.xpose.msra.mxu0 0.0
        %1940 = vmatprep.subr.mxu0 0.0
        %1941 = vmatpush1.xpose.msra.mxu0 0.0
        %1942 = vmatprep.subr.mxu0 0.0
        %1943 = vmatpush1.xpose.msra.mxu0 0.0
        %1944 = vmatprep.subr.mxu0 0.0
        %1945 = vmatpush1.xpose.msra.mxu0 0.0
        %1946 = vmatprep.subr.mxu0 0.0
        %1947 = vmatpush1.xpose.msra.mxu0 0.0
        %1948 = vmatprep.subr.mxu0 0.0
        %1949 = vmatpush1.xpose.msra.mxu0 0.0
        %1950 = vmatprep.subr.mxu0 0.0
        %1951 = vmatpush1.xpose.msra.mxu0 0.0
        %1952 = vmatprep.subr.mxu0 0.0
        %1953 = vmatpush1.xpose.msra.mxu0 0.0
        %1954 = vmatprep.subr.mxu0 0.0
        %1955 = vmatpush1.xpose.msra.mxu0 0.0
        %1956 = vmatprep.subr.mxu0 0.0
        %1957 = vmatpush1.xpose.msra.mxu0 0.0
        %1958 = vmatprep.subr.mxu0 0.0
        %1959 = vmatpush1.xpose.msra.mxu0 0.0
        %1960 = vmatprep.subr.mxu0 0.0
        %1961 = vmatpush1.xpose.msra.mxu0 0.0
        %1962 = vmatprep.subr.mxu0 0.0
        %1963 = vmatpush1.xpose.msra.mxu0 0.0
        %1964 = vmatprep.subr.mxu0 0.0
        %1965 = vmatpush1.xpose.msra.mxu0 0.0
        %1966 = vmatprep.subr.mxu0 0.0
        %1967 = vmatpush1.xpose.msra.mxu0 0.0
        %1968 = vmatprep.subr.mxu0 0.0
        %1969 = vmatpush1.xpose.msra.mxu0 0.0
        %1970 = vmatprep.subr.mxu0 0.0
        %1971 = vmatpush1.xpose.msra.mxu0 0.0
        %1972 = vmatprep.subr.mxu0 0.0
        %1973 = vmatpush1.xpose.msra.mxu0 0.0
        %1974 = vmatprep.subr.mxu0 0.0
        %1975 = vmatpush1.xpose.msra.mxu0 0.0
        %1976 = vmatprep.subr.mxu0 0.0
        %1977 = vmatpush1.xpose.msra.mxu0 0.0
        %1978 = vmatprep.subr.mxu0 0.0
        %1979 = vmatpush1.xpose.msra.mxu0 0.0
        %1980 = vmatprep.subr.mxu0 0.0
        %1981 = vmatpush1.xpose.msra.mxu0 0.0
        %1982 = vmatprep.subr.mxu0 0.0
        %1983 = vmatpush1.xpose.msra.mxu0 0.0
        %1984 = vmatprep.subr.mxu0 0.0
        %1985 = vmatpush1.xpose.msra.mxu0 0.0
        %1986 = vmatprep.mubr.f32.mxu0 0.0
        %1987 = vmatmul.mubr.f32.gmra.mrb[0].mxu0 %v1916
        %v1988 = vpop.f32.mrb[0].mxu0
        %v1989 = vadd.f32 %v1739, %v1988
        %v1990 = vpop.f32.mrb[0].mxu0
        %1991 = vdwg.mxu0
        %v1992 = vsel %vm1540, %v1989, -inf
        %1993 = vmax.xlane.f32.xlu0 %v1992
        %v1994 = vpop.xlane.xlu0 %1993
        %v1995 = vsub.f32 %v1989, %v1994
        %v1996 = vmul.f32 %v1995, 1.442695
        %v1997 = vpow.pop %v1996
        %v1998 = vsel %vm1540, %v1997, 0.0
        %1999 = vadd.xlane.f32.xlu0 %v1998
        %v2000 = vpop.xlane.xlu0 %1999
        %v2001 = vrcp.pop %v2000
        %v2002 = vmul.f32 %v1997, %v2001
        %2003 = vrot.lane.b32.xlu0 %v668, 88
        %v2004 = vpop.permute.xlu0 %2003
        %2005 = vrot.lane.b32.xlu0 %v673, 88
        %v2006 = vpop.permute.xlu0 %2005
        %v2010 = vsel %vm1540, %v2002, 0
        %2012 = vmatprep.subr.mxu0 0.0
        %2013 = vmatpush1.msra.mxu0 %v2004
        %2014 = vmatprep.subr.mxu0 0.0
        %2015 = vmatpush1.msra.mxu0 %v2006
        %2016 = vmatprep.subr.mxu0 0.0
        %2017 = vmatpush1.msra.mxu0 0.0
        %2018 = vmatprep.subr.mxu0 0.0
        %2019 = vmatpush1.msra.mxu0 0.0
        %2020 = vmatprep.subr.mxu0 0.0
        %2021 = vmatpush1.msra.mxu0 0.0
        %2022 = vmatprep.subr.mxu0 0.0
        %2023 = vmatpush1.msra.mxu0 0.0
        %2024 = vmatprep.subr.mxu0 0.0
        %2025 = vmatpush1.msra.mxu0 0.0
        %2026 = vmatprep.subr.mxu0 0.0
        %2027 = vmatpush1.msra.mxu0 0.0
        %2028 = vmatprep.subr.mxu0 0.0
        %2029 = vmatpush1.msra.mxu0 0.0
        %2030 = vmatprep.subr.mxu0 0.0
        %2031 = vmatpush1.msra.mxu0 0.0
        %2032 = vmatprep.subr.mxu0 0.0
        %2033 = vmatpush1.msra.mxu0 0.0
        %2034 = vmatprep.subr.mxu0 0.0
        %2035 = vmatpush1.msra.mxu0 0.0
        %2036 = vmatprep.subr.mxu0 0.0
        %2037 = vmatpush1.msra.mxu0 0.0
        %2038 = vmatprep.subr.mxu0 0.0
        %2039 = vmatpush1.msra.mxu0 0.0
        %2040 = vmatprep.subr.mxu0 0.0
        %2041 = vmatpush1.msra.mxu0 0.0
        %2042 = vmatprep.subr.mxu0 0.0
        %2043 = vmatpush1.msra.mxu0 0.0
        %2044 = vmatprep.subr.mxu0 0.0
        %2045 = vmatpush1.msra.mxu0 0.0
        %2046 = vmatprep.subr.mxu0 0.0
        %2047 = vmatpush1.msra.mxu0 0.0
        %2048 = vmatprep.subr.mxu0 0.0
        %2049 = vmatpush1.msra.mxu0 0.0
        %2050 = vmatprep.subr.mxu0 0.0
        %2051 = vmatpush1.msra.mxu0 0.0
        %2052 = vmatprep.subr.mxu0 0.0
        %2053 = vmatpush1.msra.mxu0 0.0
        %2054 = vmatprep.subr.mxu0 0.0
        %2055 = vmatpush1.msra.mxu0 0.0
        %2056 = vmatprep.subr.mxu0 0.0
        %2057 = vmatpush1.msra.mxu0 0.0
        %2058 = vmatprep.subr.mxu0 0.0
        %2059 = vmatpush1.msra.mxu0 0.0
        %2060 = vmatprep.subr.mxu0 0.0
        %2061 = vmatpush1.msra.mxu0 0.0
        %2062 = vmatprep.subr.mxu0 0.0
        %2063 = vmatpush1.msra.mxu0 0.0
        %2064 = vmatprep.subr.mxu0 0.0
        %2065 = vmatpush1.msra.mxu0 0.0
        %2066 = vmatprep.subr.mxu0 0.0
        %2067 = vmatpush1.msra.mxu0 0.0
        %2068 = vmatprep.subr.mxu0 0.0
        %2069 = vmatpush1.msra.mxu0 0.0
        %2070 = vmatprep.subr.mxu0 0.0
        %2071 = vmatpush1.msra.mxu0 0.0
        %2072 = vmatprep.subr.mxu0 0.0
        %2073 = vmatpush1.msra.mxu0 0.0
        %2074 = vmatprep.subr.mxu0 0.0
        %2075 = vmatpush1.msra.mxu0 0.0
        %2076 = vmatprep.mubr.f32.mxu0 0.0
        %2077 = vmatmul.mubr.f32.gmra.mrb[0].mxu0 %v2010
        %v2078 = vpop.f32.mrb[0].mxu0
        %v2079 = vadd.f32 0.0, %v2078
        %v2080 = vpop.f32.mrb[0].mxu0
        %2081 = vdwg.mxu0
        %2082 = vrot.lane.b32.xlu0 %v1732, 112
        %v2083 = vpop.permute.xlu0 %2082
        %2084 = vrot.lane.b32.xlu0 %v668, 112
        %v2085 = vpop.permute.xlu0 %2084
        %2086 = vrot.lane.b32.xlu0 %v673, 112
        %v2087 = vpop.permute.xlu0 %2086
        %v2088 = vsel %vm870, %v2083, 0
        %v2090 = vsel %vm870, %v2085, 0
        %v2092 = vsel %vm870, %v2087, 0
        %2094 = vmatprep.subr.mxu0 0.0
        %2095 = vmatpush1.xpose.msra.mxu0 %v2090
        %2096 = vmatprep.subr.mxu0 0.0
        %2097 = vmatpush1.xpose.msra.mxu0 %v2092
        %2098 = vmatprep.subr.mxu0 0.0
        %2099 = vmatpush1.xpose.msra.mxu0 0.0
        %2100 = vmatprep.subr.mxu0 0.0
        %2101 = vmatpush1.xpose.msra.mxu0 0.0
        %2102 = vmatprep.subr.mxu0 0.0
        %2103 = vmatpush1.xpose.msra.mxu0 0.0
        %2104 = vmatprep.subr.mxu0 0.0
        %2105 = vmatpush1.xpose.msra.mxu0 0.0
        %2106 = vmatprep.subr.mxu0 0.0
        %2107 = vmatpush1.xpose.msra.mxu0 0.0
        %2108 = vmatprep.subr.mxu0 0.0
        %2109 = vmatpush1.xpose.msra.mxu0 0.0
        %2110 = vmatprep.subr.mxu0 0.0
        %2111 = vmatpush1.xpose.msra.mxu0 0.0
        %2112 = vmatprep.subr.mxu0 0.0
        %2113 = vmatpush1.xpose.msra.mxu0 0.0
        %2114 = vmatprep.subr.mxu0 0.0
        %2115 = vmatpush1.xpose.msra.mxu0 0.0
        %2116 = vmatprep.subr.mxu0 0.0
        %2117 = vmatpush1.xpose.msra.mxu0 0.0
        %2118 = vmatprep.subr.mxu0 0.0
        %2119 = vmatpush1.xpose.msra.mxu0 0.0
        %2120 = vmatprep.subr.mxu0 0.0
        %2121 = vmatpush1.xpose.msra.mxu0 0.0
        %2122 = vmatprep.subr.mxu0 0.0
        %2123 = vmatpush1.xpose.msra.mxu0 0.0
        %2124 = vmatprep.subr.mxu0 0.0
        %2125 = vmatpush1.xpose.msra.mxu0 0.0
        %2126 = vmatprep.subr.mxu0 0.0
        %2127 = vmatpush1.xpose.msra.mxu0 0.0
        %2128 = vmatprep.subr.mxu0 0.0
        %2129 = vmatpush1.xpose.msra.mxu0 0.0
        %2130 = vmatprep.subr.mxu0 0.0
        %2131 = vmatpush1.xpose.msra.mxu0 0.0
        %2132 = vmatprep.subr.mxu0 0.0
        %2133 = vmatpush1.xpose.msra.mxu0 0.0
        %2134 = vmatprep.subr.mxu0 0.0
        %2135 = vmatpush1.xpose.msra.mxu0 0.0
        %2136 = vmatprep.subr.mxu0 0.0
        %2137 = vmatpush1.xpose.msra.mxu0 0.0
        %2138 = vmatprep.subr.mxu0 0.0
        %2139 = vmatpush1.xpose.msra.mxu0 0.0
        %2140 = vmatprep.subr.mxu0 0.0
        %2141 = vmatpush1.xpose.msra.mxu0 0.0
        %2142 = vmatprep.subr.mxu0 0.0
        %2143 = vmatpush1.xpose.msra.mxu0 0.0
        %2144 = vmatprep.subr.mxu0 0.0
        %2145 = vmatpush1.xpose.msra.mxu0 0.0
        %2146 = vmatprep.subr.mxu0 0.0
        %2147 = vmatpush1.xpose.msra.mxu0 0.0
        %2148 = vmatprep.subr.mxu0 0.0
        %2149 = vmatpush1.xpose.msra.mxu0 0.0
        %2150 = vmatprep.subr.mxu0 0.0
        %2151 = vmatpush1.xpose.msra.mxu0 0.0
        %2152 = vmatprep.subr.mxu0 0.0
        %2153 = vmatpush1.xpose.msra.mxu0 0.0
        %2154 = vmatprep.subr.mxu0 0.0
        %2155 = vmatpush1.xpose.msra.mxu0 0.0
        %2156 = vmatprep.subr.mxu0 0.0
        %2157 = vmatpush1.xpose.msra.mxu0 0.0
        %2158 = vmatprep.mubr.f32.mxu0 0.0
        %2159 = vmatmul.mubr.f32.gmra.mrb[0].mxu0 %v2088
        %v2160 = vpop.f32.mrb[0].mxu0
        %v2161 = vadd.f32 %v1739, %v2160
        %v2162 = vpop.f32.mrb[0].mxu0
        %2163 = vdwg.mxu0
        %v2164 = vsel %vm1540, %v2161, -inf
        %2165 = vmax.xlane.f32.xlu0 %v2164
        %v2166 = vpop.xlane.xlu0 %2165
        %v2167 = vsub.f32 %v2161, %v2166
        %v2168 = vmul.f32 %v2167, 1.442695
        %v2169 = vpow.pop %v2168
        %v2170 = vsel %vm1540, %v2169, 0.0
        %2171 = vadd.xlane.f32.xlu0 %v2170
        %v2172 = vpop.xlane.xlu0 %2171
        %v2173 = vrcp.pop %v2172
        %v2174 = vmul.f32 %v2169, %v2173
        %2175 = vrot.lane.b32.xlu0 %v668, 80
        %v2176 = vpop.permute.xlu0 %2175
        %2177 = vrot.lane.b32.xlu0 %v673, 80
        %v2178 = vpop.permute.xlu0 %2177
        %v2182 = vsel %vm1540, %v2174, 0
        %2184 = vmatprep.subr.mxu0 0.0
        %2185 = vmatpush1.msra.mxu0 %v2176
        %2186 = vmatprep.subr.mxu0 0.0
        %2187 = vmatpush1.msra.mxu0 %v2178
        %2188 = vmatprep.subr.mxu0 0.0
        %2189 = vmatpush1.msra.mxu0 0.0
        %2190 = vmatprep.subr.mxu0 0.0
        %2191 = vmatpush1.msra.mxu0 0.0
        %2192 = vmatprep.subr.mxu0 0.0
        %2193 = vmatpush1.msra.mxu0 0.0
        %2194 = vmatprep.subr.mxu0 0.0
        %2195 = vmatpush1.msra.mxu0 0.0
        %2196 = vmatprep.subr.mxu0 0.0
        %2197 = vmatpush1.msra.mxu0 0.0
        %2198 = vmatprep.subr.mxu0 0.0
        %2199 = vmatpush1.msra.mxu0 0.0
        %2200 = vmatprep.subr.mxu0 0.0
        %2201 = vmatpush1.msra.mxu0 0.0
        %2202 = vmatprep.subr.mxu0 0.0
        %2203 = vmatpush1.msra.mxu0 0.0
        %2204 = vmatprep.subr.mxu0 0.0
        %2205 = vmatpush1.msra.mxu0 0.0
        %2206 = vmatprep.subr.mxu0 0.0
        %2207 = vmatpush1.msra.mxu0 0.0
        %2208 = vmatprep.subr.mxu0 0.0
        %2209 = vmatpush1.msra.mxu0 0.0
        %2210 = vmatprep.subr.mxu0 0.0
        %2211 = vmatpush1.msra.mxu0 0.0
        %2212 = vmatprep.subr.mxu0 0.0
        %2213 = vmatpush1.msra.mxu0 0.0
        %2214 = vmatprep.subr.mxu0 0.0
        %2215 = vmatpush1.msra.mxu0 0.0
        %2216 = vmatprep.subr.mxu0 0.0
        %2217 = vmatpush1.msra.mxu0 0.0
        %2218 = vmatprep.subr.mxu0 0.0
        %2219 = vmatpush1.msra.mxu0 0.0
        %2220 = vmatprep.subr.mxu0 0.0
        %2221 = vmatpush1.msra.mxu0 0.0
        %2222 = vmatprep.subr.mxu0 0.0
        %2223 = vmatpush1.msra.mxu0 0.0
        %2224 = vmatprep.subr.mxu0 0.0
        %2225 = vmatpush1.msra.mxu0 0.0
        %2226 = vmatprep.subr.mxu0 0.0
        %2227 = vmatpush1.msra.mxu0 0.0
        %2228 = vmatprep.subr.mxu0 0.0
        %2229 = vmatpush1.msra.mxu0 0.0
        %2230 = vmatprep.subr.mxu0 0.0
        %2231 = vmatpush1.msra.mxu0 0.0
        %2232 = vmatprep.subr.mxu0 0.0
        %2233 = vmatpush1.msra.mxu0 0.0
        %2234 = vmatprep.subr.mxu0 0.0
        %2235 = vmatpush1.msra.mxu0 0.0
        %2236 = vmatprep.subr.mxu0 0.0
        %2237 = vmatpush1.msra.mxu0 0.0
        %2238 = vmatprep.subr.mxu0 0.0
        %2239 = vmatpush1.msra.mxu0 0.0
        %2240 = vmatprep.subr.mxu0 0.0
        %2241 = vmatpush1.msra.mxu0 0.0
        %2242 = vmatprep.subr.mxu0 0.0
        %2243 = vmatpush1.msra.mxu0 0.0
        %2244 = vmatprep.subr.mxu0 0.0
        %2245 = vmatpush1.msra.mxu0 0.0
        %2246 = vmatprep.subr.mxu0 0.0
        %2247 = vmatpush1.msra.mxu0 0.0
        %2248 = vmatprep.mubr.f32.mxu0 0.0
        %2249 = vmatmul.mubr.f32.gmra.mrb[0].mxu0 %v2182
        %v2250 = vpop.f32.mrb[0].mxu0
        %v2251 = vadd.f32 0.0, %v2250
        %v2252 = vpop.f32.mrb[0].mxu0
        %2253 = vdwg.mxu0
        %2254 = vrot.lane.b32.xlu0 %v1732, 104
        %v2255 = vpop.permute.xlu0 %2254
        %2256 = vrot.lane.b32.xlu0 %v668, 104
        %v2257 = vpop.permute.xlu0 %2256
        %2258 = vrot.lane.b32.xlu0 %v673, 104
        %v2259 = vpop.permute.xlu0 %2258
        %v2260 = vsel %vm870, %v2255, 0
        %v2262 = vsel %vm870, %v2257, 0
        %v2264 = vsel %vm870, %v2259, 0
        %2266 = vmatprep.subr.mxu0 0.0
        %2267 = vmatpush1.xpose.msra.mxu0 %v2262
        %2268 = vmatprep.subr.mxu0 0.0
        %2269 = vmatpush1.xpose.msra.mxu0 %v2264
        %2270 = vmatprep.subr.mxu0 0.0
        %2271 = vmatpush1.xpose.msra.mxu0 0.0
        %2272 = vmatprep.subr.mxu0 0.0
        %2273 = vmatpush1.xpose.msra.mxu0 0.0
        %2274 = vmatprep.subr.mxu0 0.0
        %2275 = vmatpush1.xpose.msra.mxu0 0.0
        %2276 = vmatprep.subr.mxu0 0.0
        %2277 = vmatpush1.xpose.msra.mxu0 0.0
        %2278 = vmatprep.subr.mxu0 0.0
        %2279 = vmatpush1.xpose.msra.mxu0 0.0
        %2280 = vmatprep.subr.mxu0 0.0
        %2281 = vmatpush1.xpose.msra.mxu0 0.0
        %2282 = vmatprep.subr.mxu0 0.0
        %2283 = vmatpush1.xpose.msra.mxu0 0.0
        %2284 = vmatprep.subr.mxu0 0.0
        %2285 = vmatpush1.xpose.msra.mxu0 0.0
        %2286 = vmatprep.subr.mxu0 0.0
        %2287 = vmatpush1.xpose.msra.mxu0 0.0
        %2288 = vmatprep.subr.mxu0 0.0
        %2289 = vmatpush1.xpose.msra.mxu0 0.0
        %2290 = vmatprep.subr.mxu0 0.0
        %2291 = vmatpush1.xpose.msra.mxu0 0.0
        %2292 = vmatprep.subr.mxu0 0.0
        %2293 = vmatpush1.xpose.msra.mxu0 0.0
        %2294 = vmatprep.subr.mxu0 0.0
        %2295 = vmatpush1.xpose.msra.mxu0 0.0
        %2296 = vmatprep.subr.mxu0 0.0
        %2297 = vmatpush1.xpose.msra.mxu0 0.0
        %2298 = vmatprep.subr.mxu0 0.0
        %2299 = vmatpush1.xpose.msra.mxu0 0.0
        %2300 = vmatprep.subr.mxu0 0.0
        %2301 = vmatpush1.xpose.msra.mxu0 0.0
        %2302 = vmatprep.subr.mxu0 0.0
        %2303 = vmatpush1.xpose.msra.mxu0 0.0
        %2304 = vmatprep.subr.mxu0 0.0
        %2305 = vmatpush1.xpose.msra.mxu0 0.0
        %2306 = vmatprep.subr.mxu0 0.0
        %2307 = vmatpush1.xpose.msra.mxu0 0.0
        %2308 = vmatprep.subr.mxu0 0.0
        %2309 = vmatpush1.xpose.msra.mxu0 0.0
        %2310 = vmatprep.subr.mxu0 0.0
        %2311 = vmatpush1.xpose.msra.mxu0 0.0
        %2312 = vmatprep.subr.mxu0 0.0
        %2313 = vmatpush1.xpose.msra.mxu0 0.0
        %2314 = vmatprep.subr.mxu0 0.0
        %2315 = vmatpush1.xpose.msra.mxu0 0.0
        %2316 = vmatprep.subr.mxu0 0.0
        %2317 = vmatpush1.xpose.msra.mxu0 0.0
        %2318 = vmatprep.subr.mxu0 0.0
        %2319 = vmatpush1.xpose.msra.mxu0 0.0
        %2320 = vmatprep.subr.mxu0 0.0
        %2321 = vmatpush1.xpose.msra.mxu0 0.0
        %2322 = vmatprep.subr.mxu0 0.0
        %2323 = vmatpush1.xpose.msra.mxu0 0.0
        %2324 = vmatprep.subr.mxu0 0.0
        %2325 = vmatpush1.xpose.msra.mxu0 0.0
        %2326 = vmatprep.subr.mxu0 0.0
        %2327 = vmatpush1.xpose.msra.mxu0 0.0
        %2328 = vmatprep.subr.mxu0 0.0
        %2329 = vmatpush1.xpose.msra.mxu0 0.0
        %2330 = vmatprep.mubr.f32.mxu0 0.0
        %2331 = vmatmul.mubr.f32.gmra.mrb[0].mxu0 %v2260
        %v2332 = vpop.f32.mrb[0].mxu0
        %v2333 = vadd.f32 %v1739, %v2332
        %v2334 = vpop.f32.mrb[0].mxu0
        %2335 = vdwg.mxu0
        %v2336 = vsel %vm1540, %v2333, -inf
        %2337 = vmax.xlane.f32.xlu0 %v2336
        %v2338 = vpop.xlane.xlu0 %2337
        %v2339 = vsub.f32 %v2333, %v2338
        %v2340 = vmul.f32 %v2339, 1.442695
        %v2341 = vpow.pop %v2340
        %v2342 = vsel %vm1540, %v2341, 0.0
        %2343 = vadd.xlane.f32.xlu0 %v2342
        %v2344 = vpop.xlane.xlu0 %2343
        %v2345 = vrcp.pop %v2344
        %v2346 = vmul.f32 %v2341, %v2345
        %2347 = vrot.lane.b32.xlu0 %v668, 72
        %v2348 = vpop.permute.xlu0 %2347
        %2349 = vrot.lane.b32.xlu0 %v673, 72
        %v2350 = vpop.permute.xlu0 %2349
        %v2354 = vsel %vm1540, %v2346, 0
        %2356 = vmatprep.subr.mxu0 0.0
        %2357 = vmatpush1.msra.mxu0 %v2348
        %2358 = vmatprep.subr.mxu0 0.0
        %2359 = vmatpush1.msra.mxu0 %v2350
        %2360 = vmatprep.subr.mxu0 0.0
        %2361 = vmatpush1.msra.mxu0 0.0
        %2362 = vmatprep.subr.mxu0 0.0
        %2363 = vmatpush1.msra.mxu0 0.0
        %2364 = vmatprep.subr.mxu0 0.0
        %2365 = vmatpush1.msra.mxu0 0.0
        %2366 = vmatprep.subr.mxu0 0.0
        %2367 = vmatpush1.msra.mxu0 0.0
        %2368 = vmatprep.subr.mxu0 0.0
        %2369 = vmatpush1.msra.mxu0 0.0
        %2370 = vmatprep.subr.mxu0 0.0
        %2371 = vmatpush1.msra.mxu0 0.0
        %2372 = vmatprep.subr.mxu0 0.0
        %2373 = vmatpush1.msra.mxu0 0.0
        %2374 = vmatprep.subr.mxu0 0.0
        %2375 = vmatpush1.msra.mxu0 0.0
        %2376 = vmatprep.subr.mxu0 0.0
        %2377 = vmatpush1.msra.mxu0 0.0
        %2378 = vmatprep.subr.mxu0 0.0
        %2379 = vmatpush1.msra.mxu0 0.0
        %2380 = vmatprep.subr.mxu0 0.0
        %2381 = vmatpush1.msra.mxu0 0.0
        %2382 = vmatprep.subr.mxu0 0.0
        %2383 = vmatpush1.msra.mxu0 0.0
        %2384 = vmatprep.subr.mxu0 0.0
        %2385 = vmatpush1.msra.mxu0 0.0
        %2386 = vmatprep.subr.mxu0 0.0
        %2387 = vmatpush1.msra.mxu0 0.0
        %2388 = vmatprep.subr.mxu0 0.0
        %2389 = vmatpush1.msra.mxu0 0.0
        %2390 = vmatprep.subr.mxu0 0.0
        %2391 = vmatpush1.msra.mxu0 0.0
        %2392 = vmatprep.subr.mxu0 0.0
        %2393 = vmatpush1.msra.mxu0 0.0
        %2394 = vmatprep.subr.mxu0 0.0
        %2395 = vmatpush1.msra.mxu0 0.0
        %2396 = vmatprep.subr.mxu0 0.0
        %2397 = vmatpush1.msra.mxu0 0.0
        %2398 = vmatprep.subr.mxu0 0.0
        %2399 = vmatpush1.msra.mxu0 0.0
        %2400 = vmatprep.subr.mxu0 0.0
        %2401 = vmatpush1.msra.mxu0 0.0
        %2402 = vmatprep.subr.mxu0 0.0
        %2403 = vmatpush1.msra.mxu0 0.0
        %2404 = vmatprep.subr.mxu0 0.0
        %2405 = vmatpush1.msra.mxu0 0.0
        %2406 = vmatprep.subr.mxu0 0.0
        %2407 = vmatpush1.msra.mxu0 0.0
        %2408 = vmatprep.subr.mxu0 0.0
        %2409 = vmatpush1.msra.mxu0 0.0
        %2410 = vmatprep.subr.mxu0 0.0
        %2411 = vmatpush1.msra.mxu0 0.0
        %2412 = vmatprep.subr.mxu0 0.0
        %2413 = vmatpush1.msra.mxu0 0.0
        %2414 = vmatprep.subr.mxu0 0.0
        %2415 = vmatpush1.msra.mxu0 0.0
        %2416 = vmatprep.subr.mxu0 0.0
        %2417 = vmatpush1.msra.mxu0 0.0
        %2418 = vmatprep.subr.mxu0 0.0
        %2419 = vmatpush1.msra.mxu0 0.0
        %2420 = vmatprep.mubr.f32.mxu0 0.0
        %2421 = vmatmul.mubr.f32.gmra.mrb[0].mxu0 %v2354
        %v2422 = vpop.f32.mrb[0].mxu0
        %v2423 = vadd.f32 0.0, %v2422
        %v2424 = vpop.f32.mrb[0].mxu0
        %2425 = vdwg.mxu0
        %2427 = vrot.lane.b32.xlu0 %v2079, 8
        %v2428 = vpop.permute.xlu0 %2427
        %2431 = vrot.lane.b32.xlu0 %v2251, 16
        %v2432 = vpop.permute.xlu0 %2431
        %2435 = vrot.lane.b32.xlu0 %v2423, 24
        %v2436 = vpop.permute.xlu0 %2435
        %v2438 = vsel %vm870, %v1907, %v2428
        %v2439 = vsel %vm1540, %v2438, %v2432
        %v2440 = vsel %vm1542, %v2439, %v2436
        %s2441 = scalar_lea.vmem [#allocation8], 32
        %v2442 = vld [vmem:[%s2441] sm:$0xff]
        %v2443 = vld [vmem:[%s2441 + $0x8] sm:$0xff]
        %v2444 = vld [vmem:[%s2441 + $0x10] sm:$0xff]
        %v2445 = vld [vmem:[%s2441 + $0x18] sm:$0xff]
        %s2446 = scalar_lea.vmem %s6, 1
        %v2447 = vld [vmem:[%s2446] sm:$0x1]
        %v2449 = vlaneseq
        %v2450 = vshrl.u32 %v2449, 7
        %v2451 = vsub.s32 0, %v2450
        %v2452 = vrot.slane %v2447, %v2451
        %v2455 = vsel %vm594, %v2440, 0
        %2457 = vmatprep.subr.mxu0 0.0
        %2458 = vmatpush1.msra.mxu0 %v2442
        %2459 = vmatprep.subr.mxu0 0.0
        %2460 = vmatpush1.msra.mxu0 %v2443
        %2461 = vmatprep.subr.mxu0 0.0
        %2462 = vmatpush1.msra.mxu0 %v2444
        %2463 = vmatprep.subr.mxu0 0.0
        %2464 = vmatpush1.msra.mxu0 %v2445
        %2465 = vmatprep.subr.mxu0 0.0
        %2466 = vmatpush1.msra.mxu0 0.0
        %2467 = vmatprep.subr.mxu0 0.0
        %2468 = vmatpush1.msra.mxu0 0.0
        %2469 = vmatprep.subr.mxu0 0.0
        %2470 = vmatpush1.msra.mxu0 0.0
        %2471 = vmatprep.subr.mxu0 0.0
        %2472 = vmatpush1.msra.mxu0 0.0
        %2473 = vmatprep.subr.mxu0 0.0
        %2474 = vmatpush1.msra.mxu0 0.0
        %2475 = vmatprep.subr.mxu0 0.0
        %2476 = vmatpush1.msra.mxu0 0.0
        %2477 = vmatprep.subr.mxu0 0.0
        %2478 = vmatpush1.msra.mxu0 0.0
        %2479 = vmatprep.subr.mxu0 0.0
        %2480 = vmatpush1.msra.mxu0 0.0
        %2481 = vmatprep.subr.mxu0 0.0
        %2482 = vmatpush1.msra.mxu0 0.0
        %2483 = vmatprep.subr.mxu0 0.0
        %2484 = vmatpush1.msra.mxu0 0.0
        %2485 = vmatprep.subr.mxu0 0.0
        %2486 = vmatpush1.msra.mxu0 0.0
        %2487 = vmatprep.subr.mxu0 0.0
        %2488 = vmatpush1.msra.mxu0 0.0
        %2489 = vmatprep.subr.mxu0 0.0
        %2490 = vmatpush1.msra.mxu0 0.0
        %2491 = vmatprep.subr.mxu0 0.0
        %2492 = vmatpush1.msra.mxu0 0.0
        %2493 = vmatprep.subr.mxu0 0.0
        %2494 = vmatpush1.msra.mxu0 0.0
        %2495 = vmatprep.subr.mxu0 0.0
        %2496 = vmatpush1.msra.mxu0 0.0
        %2497 = vmatprep.subr.mxu0 0.0
        %2498 = vmatpush1.msra.mxu0 0.0
        %2499 = vmatprep.subr.mxu0 0.0
        %2500 = vmatpush1.msra.mxu0 0.0
        %2501 = vmatprep.subr.mxu0 0.0
        %2502 = vmatpush1.msra.mxu0 0.0
        %2503 = vmatprep.subr.mxu0 0.0
        %2504 = vmatpush1.msra.mxu0 0.0
        %2505 = vmatprep.subr.mxu0 0.0
        %2506 = vmatpush1.msra.mxu0 0.0
        %2507 = vmatprep.subr.mxu0 0.0
        %2508 = vmatpush1.msra.mxu0 0.0
        %2509 = vmatprep.subr.mxu0 0.0
        %2510 = vmatpush1.msra.mxu0 0.0
        %2511 = vmatprep.subr.mxu0 0.0
        %2512 = vmatpush1.msra.mxu0 0.0
        %2513 = vmatprep.subr.mxu0 0.0
        %2514 = vmatpush1.msra.mxu0 0.0
        %2515 = vmatprep.subr.mxu0 0.0
        %2516 = vmatpush1.msra.mxu0 0.0
        %2517 = vmatprep.subr.mxu0 0.0
        %2518 = vmatpush1.msra.mxu0 0.0
        %2519 = vmatprep.subr.mxu0 0.0
        %2520 = vmatpush1.msra.mxu0 0.0
        %2521 = vmatprep.mubr.f32.mxu0 0.0
        %2522 = vmatmul.mubr.f32.gmra.mrb[0].mxu0 %v2455
        %v2523 = vpop.f32.mrb[0].mxu0
        %v2524 = vadd.f32 %v2452, %v2523
        %v2525 = vpop.f32.mrb[0].mxu0
        %2526 = vdwg.mxu0
        %v2527 = vadd.f32 %v2524, %v1660
        %v2528 = vsel %vm594, %v2527, 0.0
        %2529 = vadd.xlane.f32.xlu0 %v2528
        %v2530 = vpop.xlane.xlu0 %2529
        %v2531 = vmul.f32 %v2530, %v1632
        %v2532 = vmul.f32 %v2527, %v2527
        %v2533 = vsel %vm594, %v2532, 0.0
        %2534 = vadd.xlane.f32.xlu0 %v2533
        %v2535 = vpop.xlane.xlu0 %2534
        %v2536 = vmul.f32 %v2535, %v1632
        %v2537 = vmul.f32 %v2531, %v2531
        %v2538 = vsub.f32 %v2536, %v2537
        %v2539 = vsub.f32 %v2527, %v2531
        %v2540 = vadd.f32 %v2538, 1e-05
        %v2541 = vrsqrt.pop %v2540
        %v2542 = vmul.f32 %v2539, %v2541
        %s2543 = scalar_lea.vmem %s7, 1
        %v2544 = vld [vmem:[%s2543] sm:$0x1]
        %v2546 = vlaneseq
        %v2547 = vshrl.u32 %v2546, 7
        %v2548 = vsub.s32 0, %v2547
        %v2549 = vrot.slane %v2544, %v2548
        %v2551 = vmul.f32 %v2542, %v2549
        %s2552 = scalar_lea.vmem %s8, 1
        %v2553 = vld [vmem:[%s2552] sm:$0x1]
        %v2555 = vlaneseq
        %v2556 = vshrl.u32 %v2555, 7
        %v2557 = vsub.s32 0, %v2556
        %v2558 = vrot.slane %v2553, %v2557
        %v2560 = vadd.f32 %v2551, %v2558
        %v2561 = vld [vmem:[#allocation10] sm:$0xff]
        %v2562 = vld [vmem:[#allocation10 + $0x8] sm:$0xff]
        %v2563 = vld [vmem:[#allocation10 + $0x10] sm:$0xff]
        %v2564 = vld [vmem:[#allocation10 + $0x18] sm:$0xff]
        %v2565 = vld [vmem:[%s10] sm:$0x1]
        %v2567 = vlaneseq
        %v2568 = vshrl.u32 %v2567, 7
        %v2569 = vsub.s32 0, %v2568
        %v2570 = vrot.slane %v2565, %v2569
        %v2573 = vsel %vm594, %v2560, 0
        %2575 = vmatprep.subr.mxu0 0.0
        %2576 = vmatpush1.msra.mxu0 %v2561
        %2577 = vmatprep.subr.mxu0 0.0
        %2578 = vmatpush1.msra.mxu0 %v2562
        %2579 = vmatprep.subr.mxu0 0.0
        %2580 = vmatpush1.msra.mxu0 %v2563
        %2581 = vmatprep.subr.mxu0 0.0
        %2582 = vmatpush1.msra.mxu0 %v2564
        %2583 = vmatprep.subr.mxu0 0.0
        %2584 = vmatpush1.msra.mxu0 0.0
        %2585 = vmatprep.subr.mxu0 0.0
        %2586 = vmatpush1.msra.mxu0 0.0
        %2587 = vmatprep.subr.mxu0 0.0
        %2588 = vmatpush1.msra.mxu0 0.0
        %2589 = vmatprep.subr.mxu0 0.0
        %2590 = vmatpush1.msra.mxu0 0.0
        %2591 = vmatprep.subr.mxu0 0.0
        %2592 = vmatpush1.msra.mxu0 0.0
        %2593 = vmatprep.subr.mxu0 0.0
        %2594 = vmatpush1.msra.mxu0 0.0
        %2595 = vmatprep.subr.mxu0 0.0
        %2596 = vmatpush1.msra.mxu0 0.0
        %2597 = vmatprep.subr.mxu0 0.0
        %2598 = vmatpush1.msra.mxu0 0.0
        %2599 = vmatprep.subr.mxu0 0.0
        %2600 = vmatpush1.msra.mxu0 0.0
        %2601 = vmatprep.subr.mxu0 0.0
        %2602 = vmatpush1.msra.mxu0 0.0
        %2603 = vmatprep.subr.mxu0 0.0
        %2604 = vmatpush1.msra.mxu0 0.0
        %2605 = vmatprep.subr.mxu0 0.0
        %2606 = vmatpush1.msra.mxu0 0.0
        %2607 = vmatprep.subr.mxu0 0.0
        %2608 = vmatpush1.msra.mxu0 0.0
        %2609 = vmatprep.subr.mxu0 0.0
        %2610 = vmatpush1.msra.mxu0 0.0
        %2611 = vmatprep.subr.mxu0 0.0
        %2612 = vmatpush1.msra.mxu0 0.0
        %2613 = vmatprep.subr.mxu0 0.0
        %2614 = vmatpush1.msra.mxu0 0.0
        %2615 = vmatprep.subr.mxu0 0.0
        %2616 = vmatpush1.msra.mxu0 0.0
        %2617 = vmatprep.subr.mxu0 0.0
        %2618 = vmatpush1.msra.mxu0 0.0
        %2619 = vmatprep.subr.mxu0 0.0
        %2620 = vmatpush1.msra.mxu0 0.0
        %2621 = vmatprep.subr.mxu0 0.0
        %2622 = vmatpush1.msra.mxu0 0.0
        %2623 = vmatprep.subr.mxu0 0.0
        %2624 = vmatpush1.msra.mxu0 0.0
        %2625 = vmatprep.subr.mxu0 0.0
        %2626 = vmatpush1.msra.mxu0 0.0
        %2627 = vmatprep.subr.mxu0 0.0
        %2628 = vmatpush1.msra.mxu0 0.0
        %2629 = vmatprep.subr.mxu0 0.0
        %2630 = vmatpush1.msra.mxu0 0.0
        %2631 = vmatprep.subr.mxu0 0.0
        %2632 = vmatpush1.msra.mxu0 0.0
        %2633 = vmatprep.subr.mxu0 0.0
        %2634 = vmatpush1.msra.mxu0 0.0
        %2635 = vmatprep.subr.mxu0 0.0
        %2636 = vmatpush1.msra.mxu0 0.0
        %2637 = vmatprep.subr.mxu0 0.0
        %2638 = vmatpush1.msra.mxu0 0.0
        %2639 = vmatprep.mubr.f32.mxu0 0.0
        %2640 = vmatmul.mubr.f32.gmra.mrb[0].mxu0 %v2573
        %v2641 = vpop.f32.mrb[0].mxu0
        %v2642 = vadd.f32 %v2570, %v2641
        %v2643 = vpop.f32.mrb[0].mxu0
        %2644 = vdwg.mxu0
        %v2645 = vmax.f32 %v2642, 0.0
        %v2646 = vld [vmem:[#allocation11] sm:$0xff]
        %v2647 = vld [vmem:[#allocation11 + $0x8] sm:$0xff]
        %v2648 = vld [vmem:[#allocation11 + $0x10] sm:$0xff]
        %v2649 = vld [vmem:[#allocation11 + $0x18] sm:$0xff]
        %v2650 = vld [vmem:[#allocation11 + $0x20] sm:$0xff]
        %v2651 = vld [vmem:[#allocation11 + $0x28] sm:$0xff]
        %v2652 = vld [vmem:[#allocation11 + $0x30] sm:$0xff]
        %v2653 = vld [vmem:[#allocation11 + $0x38] sm:$0xff]
        %v2654 = vld [vmem:[%s12] sm:$0x1]
        %v2656 = vlaneseq
        %v2657 = vshrl.u32 %v2656, 7
        %v2658 = vsub.s32 0, %v2657
        %v2659 = vrot.slane %v2654, %v2658
        %vm2661 = vcmask 523264
        %v2663 = vsel %vm2661, %v2645, 0
        %2665 = vmatprep.subr.mxu0 0.0
        %2666 = vmatpush1.msra.mxu0 %v2646
        %2667 = vmatprep.subr.mxu0 0.0
        %2668 = vmatpush1.msra.mxu0 %v2647
        %2669 = vmatprep.subr.mxu0 0.0
        %2670 = vmatpush1.msra.mxu0 %v2648
        %2671 = vmatprep.subr.mxu0 0.0
        %2672 = vmatpush1.msra.mxu0 %v2649
        %2673 = vmatprep.subr.mxu0 0.0
        %2674 = vmatpush1.msra.mxu0 %v2650
        %2675 = vmatprep.subr.mxu0 0.0
        %2676 = vmatpush1.msra.mxu0 %v2651
        %2677 = vmatprep.subr.mxu0 0.0
        %2678 = vmatpush1.msra.mxu0 %v2652
        %2679 = vmatprep.subr.mxu0 0.0
        %2680 = vmatpush1.msra.mxu0 %v2653
        %2681 = vmatprep.subr.mxu0 0.0
        %2682 = vmatpush1.msra.mxu0 0.0
        %2683 = vmatprep.subr.mxu0 0.0
        %2684 = vmatpush1.msra.mxu0 0.0
        %2685 = vmatprep.subr.mxu0 0.0
        %2686 = vmatpush1.msra.mxu0 0.0
        %2687 = vmatprep.subr.mxu0 0.0
        %2688 = vmatpush1.msra.mxu0 0.0
        %2689 = vmatprep.subr.mxu0 0.0
        %2690 = vmatpush1.msra.mxu0 0.0
        %2691 = vmatprep.subr.mxu0 0.0
        %2692 = vmatpush1.msra.mxu0 0.0
        %2693 = vmatprep.subr.mxu0 0.0
        %2694 = vmatpush1.msra.mxu0 0.0
        %2695 = vmatprep.subr.mxu0 0.0
        %2696 = vmatpush1.msra.mxu0 0.0
        %2697 = vmatprep.subr.mxu0 0.0
        %2698 = vmatpush1.msra.mxu0 0.0
        %2699 = vmatprep.subr.mxu0 0.0
        %2700 = vmatpush1.msra.mxu0 0.0
        %2701 = vmatprep.subr.mxu0 0.0
        %2702 = vmatpush1.msra.mxu0 0.0
        %2703 = vmatprep.subr.mxu0 0.0
        %2704 = vmatpush1.msra.mxu0 0.0
        %2705 = vmatprep.subr.mxu0 0.0
        %2706 = vmatpush1.msra.mxu0 0.0
        %2707 = vmatprep.subr.mxu0 0.0
        %2708 = vmatpush1.msra.mxu0 0.0
        %2709 = vmatprep.subr.mxu0 0.0
        %2710 = vmatpush1.msra.mxu0 0.0
        %2711 = vmatprep.subr.mxu0 0.0
        %2712 = vmatpush1.msra.mxu0 0.0
        %2713 = vmatprep.subr.mxu0 0.0
        %2714 = vmatpush1.msra.mxu0 0.0
        %2715 = vmatprep.subr.mxu0 0.0
        %2716 = vmatpush1.msra.mxu0 0.0
        %2717 = vmatprep.subr.mxu0 0.0
        %2718 = vmatpush1.msra.mxu0 0.0
        %2719 = vmatprep.subr.mxu0 0.0
        %2720 = vmatpush1.msra.mxu0 0.0
        %2721 = vmatprep.subr.mxu0 0.0
        %2722 = vmatpush1.msra.mxu0 0.0
        %2723 = vmatprep.subr.mxu0 0.0
        %2724 = vmatpush1.msra.mxu0 0.0
        %2725 = vmatprep.subr.mxu0 0.0
        %2726 = vmatpush1.msra.mxu0 0.0
        %2727 = vmatprep.subr.mxu0 0.0
        %2728 = vmatpush1.msra.mxu0 0.0
        %2729 = vmatprep.mubr.f32.mxu0 0.0
        %2730 = vmatmul.mubr.f32.gmra.mrb[0].mxu0 %v2663
        %v2731 = vpop.f32.mrb[0].mxu0
        %v2732 = vadd.f32 %v2659, %v2731
        %v2733 = vpop.f32.mrb[0].mxu0
        %2734 = vdwg.mxu0
        %v2735 = vadd.f32 %v2732, %v2560
        %v2736 = vsel %vm594, %v2735, 0.0
        %2737 = vadd.xlane.f32.xlu0 %v2736
        %v2738 = vpop.xlane.xlu0 %2737
        %v2739 = vmul.f32 %v2738, %v1632
        %v2740 = vmul.f32 %v2735, %v2735
        %v2741 = vsel %vm594, %v2740, 0.0
        %2742 = vadd.xlane.f32.xlu0 %v2741
        %v2743 = vpop.xlane.xlu0 %2742
        %v2744 = vmul.f32 %v2743, %v1632
        %v2745 = vmul.f32 %v2739, %v2739
        %v2746 = vsub.f32 %v2744, %v2745
        %v2747 = vsub.f32 %v2735, %v2739
        %v2748 = vadd.f32 %v2746, 1e-05
        %v2749 = vrsqrt.pop %v2748
        %v2750 = vmul.f32 %v2747, %v2749
        %s2751 = scalar_lea.vmem %s7, 2
        %v2752 = vld [vmem:[%s2751] sm:$0x1]
        %v2754 = vlaneseq
        %v2755 = vshrl.u32 %v2754, 7
        %v2756 = vsub.s32 0, %v2755
        %v2757 = vrot.slane %v2752, %v2756
        %v2759 = vmul.f32 %v2750, %v2757
        %s2760 = scalar_lea.vmem %s8, 2
        %v2761 = vld [vmem:[%s2760] sm:$0x1]
        %v2763 = vlaneseq
        %v2764 = vshrl.u32 %v2763, 7
        %v2765 = vsub.s32 0, %v2764
        %v2766 = vrot.slane %v2761, %v2765
        %v2768 = vadd.f32 %v2759, %v2766
        loop: start=0, step=1, limit=2
        $region97: #{perceiver_forward.1} parent=71 // loop_pre_header
          _
        $region98: #{perceiver_forward.1} parent=71 // loop_header
          %s2770 = sphi 0, %s2774
          %p2771 = scmp.ge.s32.totalorder %s2770, 2
          %v2775 = vphi %v2768, %v5876
        $region99: #{perceiver_forward.1} parent=71 // loop_header_branch
          %2773 = sbr.rel (%p2771) target = $region103
        $region100: #{perceiver_forward.1} parent=71 // loop_body
          loop: start=0, step=1, limit=2
          $region104: #{perceiver_forward.1} parent=100 // loop_pre_header
            _
          $region105: #{perceiver_forward.1} parent=100 // loop_header
            %s2777 = sphi 0, %s2781
            %p2778 = scmp.ge.s32.totalorder %s2777, 2
            %v2782 = vphi %v2775, %v3881
          $region106: #{perceiver_forward.1} parent=100 // loop_header_branch
            %2780 = sbr.rel (%p2778) target = $region110
          $region107: #{perceiver_forward.1} parent=100 // loop_body
            %s2783 = sadd.s32 %s2777, 4
            %s2784 = smul.u32 %s2777, 2
            %s2785 = sadd.s32 %s2784, 6
            %s2786 = sadd.s32 %s2777, 2
            %s2787 = smul.u32 %s2783, 32
            %s2788 = scalar_lea.vmem [#allocation7], %s2787
            %v2789 = vld [vmem:[%s2788] sm:$0xff]
            %v2790 = vld [vmem:[%s2788 + $0x8] sm:$0xff]
            %v2791 = vld [vmem:[%s2788 + $0x10] sm:$0xff]
            %v2792 = vld [vmem:[%s2788 + $0x18] sm:$0xff]
            %s2793 = scalar_lea.vmem %s4, %s2783
            %v2794 = vld [vmem:[%s2793] sm:$0x1]
            %v2796 = vlaneseq
            %v2797 = vshrl.u32 %v2796, 7
            %v2798 = vsub.s32 0, %v2797
            %v2799 = vrot.slane %v2794, %v2798
            %v2802 = vsel %vm594, %v2782, 0
            %2804 = vmatprep.subr.mxu0 0.0
            %2805 = vmatpush1.msra.mxu0 %v2789
            %2806 = vmatprep.subr.mxu0 0.0
            %2807 = vmatpush1.msra.mxu0 %v2790
            %2808 = vmatprep.subr.mxu0 0.0
            %2809 = vmatpush1.msra.mxu0 %v2791
            %2810 = vmatprep.subr.mxu0 0.0
            %2811 = vmatpush1.msra.mxu0 %v2792
            %2812 = vmatprep.subr.mxu0 0.0
            %2813 = vmatpush1.msra.mxu0 0.0
            %2814 = vmatprep.subr.mxu0 0.0
            %2815 = vmatpush1.msra.mxu0 0.0
            %2816 = vmatprep.subr.mxu0 0.0
            %2817 = vmatpush1.msra.mxu0 0.0
            %2818 = vmatprep.subr.mxu0 0.0
            %2819 = vmatpush1.msra.mxu0 0.0
            %2820 = vmatprep.subr.mxu0 0.0
            %2821 = vmatpush1.msra.mxu0 0.0
            %2822 = vmatprep.subr.mxu0 0.0
            %2823 = vmatpush1.msra.mxu0 0.0
            %2824 = vmatprep.subr.mxu0 0.0
            %2825 = vmatpush1.msra.mxu0 0.0
            %2826 = vmatprep.subr.mxu0 0.0
            %2827 = vmatpush1.msra.mxu0 0.0
            %2828 = vmatprep.subr.mxu0 0.0
            %2829 = vmatpush1.msra.mxu0 0.0
            %2830 = vmatprep.subr.mxu0 0.0
            %2831 = vmatpush1.msra.mxu0 0.0
            %2832 = vmatprep.subr.mxu0 0.0
            %2833 = vmatpush1.msra.mxu0 0.0
            %2834 = vmatprep.subr.mxu0 0.0
            %2835 = vmatpush1.msra.mxu0 0.0
            %2836 = vmatprep.subr.mxu0 0.0
            %2837 = vmatpush1.msra.mxu0 0.0
            %2838 = vmatprep.subr.mxu0 0.0
            %2839 = vmatpush1.msra.mxu0 0.0
            %2840 = vmatprep.subr.mxu0 0.0
            %2841 = vmatpush1.msra.mxu0 0.0
            %2842 = vmatprep.subr.mxu0 0.0
            %2843 = vmatpush1.msra.mxu0 0.0
            %2844 = vmatprep.subr.mxu0 0.0
            %2845 = vmatpush1.msra.mxu0 0.0
            %2846 = vmatprep.subr.mxu0 0.0
            %2847 = vmatpush1.msra.mxu0 0.0
            %2848 = vmatprep.subr.mxu0 0.0
            %2849 = vmatpush1.msra.mxu0 0.0
            %2850 = vmatprep.subr.mxu0 0.0
            %2851 = vmatpush1.msra.mxu0 0.0
            %2852 = vmatprep.subr.mxu0 0.0
            %2853 = vmatpush1.msra.mxu0 0.0
            %2854 = vmatprep.subr.mxu0 0.0
            %2855 = vmatpush1.msra.mxu0 0.0
            %2856 = vmatprep.subr.mxu0 0.0
            %2857 = vmatpush1.msra.mxu0 0.0
            %2858 = vmatprep.subr.mxu0 0.0
            %2859 = vmatpush1.msra.mxu0 0.0
            %2860 = vmatprep.subr.mxu0 0.0
            %2861 = vmatpush1.msra.mxu0 0.0
            %2862 = vmatprep.subr.mxu0 0.0
            %2863 = vmatpush1.msra.mxu0 0.0
            %2864 = vmatprep.subr.mxu0 0.0
            %2865 = vmatpush1.msra.mxu0 0.0
            %2866 = vmatprep.subr.mxu0 0.0
            %2867 = vmatpush1.msra.mxu0 0.0
            %2868 = vmatprep.mubr.f32.mxu0 0.0
            %2869 = vmatmul.mubr.f32.gmra.mrb[0].mxu0 %v2802
            %v2870 = vpop.f32.mrb[0].mxu0
            %v2871 = vadd.f32 %v2799, %v2870
            %v2872 = vpop.f32.mrb[0].mxu0
            %2873 = vdwg.mxu0
            %2875 = vrot.lane.b32.xlu0 %v2871, 96
            %v2876 = vpop.permute.xlu0 %2875
            %v2877 = vsel %vm870, %v2871, 0
            %v2879 = vsel %vm870, %v2876, 0
            %2881 = vmatprep.subr.mxu0 0.0
            %2882 = vmatpush1.xpose.msra.mxu0 %v2879
            %2883 = vmatprep.subr.mxu0 0.0
            %2884 = vmatpush1.xpose.msra.mxu0 0.0
            %2885 = vmatprep.subr.mxu0 0.0
            %2886 = vmatpush1.xpose.msra.mxu0 0.0
            %2887 = vmatprep.subr.mxu0 0.0
            %2888 = vmatpush1.xpose.msra.mxu0 0.0
            %2889 = vmatprep.subr.mxu0 0.0
            %2890 = vmatpush1.xpose.msra.mxu0 0.0
            %2891 = vmatprep.subr.mxu0 0.0
            %2892 = vmatpush1.xpose.msra.mxu0 0.0
            %2893 = vmatprep.subr.mxu0 0.0
            %2894 = vmatpush1.xpose.msra.mxu0 0.0
            %2895 = vmatprep.subr.mxu0 0.0
            %2896 = vmatpush1.xpose.msra.mxu0 0.0
            %2897 = vmatprep.subr.mxu0 0.0
            %2898 = vmatpush1.xpose.msra.mxu0 0.0
            %2899 = vmatprep.subr.mxu0 0.0
            %2900 = vmatpush1.xpose.msra.mxu0 0.0
            %2901 = vmatprep.subr.mxu0 0.0
            %2902 = vmatpush1.xpose.msra.mxu0 0.0
            %2903 = vmatprep.subr.mxu0 0.0
            %2904 = vmatpush1.xpose.msra.mxu0 0.0
            %2905 = vmatprep.subr.mxu0 0.0
            %2906 = vmatpush1.xpose.msra.mxu0 0.0
            %2907 = vmatprep.subr.mxu0 0.0
            %2908 = vmatpush1.xpose.msra.mxu0 0.0
            %2909 = vmatprep.subr.mxu0 0.0
            %2910 = vmatpush1.xpose.msra.mxu0 0.0
            %2911 = vmatprep.subr.mxu0 0.0
            %2912 = vmatpush1.xpose.msra.mxu0 0.0
            %2913 = vmatprep.subr.mxu0 0.0
            %2914 = vmatpush1.xpose.msra.mxu0 0.0
            %2915 = vmatprep.subr.mxu0 0.0
            %2916 = vmatpush1.xpose.msra.mxu0 0.0
            %2917 = vmatprep.subr.mxu0 0.0
            %2918 = vmatpush1.xpose.msra.mxu0 0.0
            %2919 = vmatprep.subr.mxu0 0.0
            %2920 = vmatpush1.xpose.msra.mxu0 0.0
            %2921 = vmatprep.subr.mxu0 0.0
            %2922 = vmatpush1.xpose.msra.mxu0 0.0
            %2923 = vmatprep.subr.mxu0 0.0
            %2924 = vmatpush1.xpose.msra.mxu0 0.0
            %2925 = vmatprep.subr.mxu0 0.0
            %2926 = vmatpush1.xpose.msra.mxu0 0.0
            %2927 = vmatprep.subr.mxu0 0.0
            %2928 = vmatpush1.xpose.msra.mxu0 0.0
            %2929 = vmatprep.subr.mxu0 0.0
            %2930 = vmatpush1.xpose.msra.mxu0 0.0
            %2931 = vmatprep.subr.mxu0 0.0
            %2932 = vmatpush1.xpose.msra.mxu0 0.0
            %2933 = vmatprep.subr.mxu0 0.0
            %2934 = vmatpush1.xpose.msra.mxu0 0.0
            %2935 = vmatprep.subr.mxu0 0.0
            %2936 = vmatpush1.xpose.msra.mxu0 0.0
            %2937 = vmatprep.subr.mxu0 0.0
            %2938 = vmatpush1.xpose.msra.mxu0 0.0
            %2939 = vmatprep.subr.mxu0 0.0
            %2940 = vmatpush1.xpose.msra.mxu0 0.0
            %2941 = vmatprep.subr.mxu0 0.0
            %2942 = vmatpush1.xpose.msra.mxu0 0.0
            %2943 = vmatprep.subr.mxu0 0.0
            %2944 = vmatpush1.xpose.msra.mxu0 0.0
            %2945 = vmatprep.mubr.f32.mxu0 0.0
            %2946 = vmatmul.mubr.f32.gmra.mrb[0].mxu0 %v2877
            %v2947 = vpop.f32.mrb[0].mxu0
            %v2948 = vadd.f32 0.0, %v2947
            %v2949 = vpop.f32.mrb[0].mxu0
            %2950 = vdwg.mxu0
            %v2951 = vsel %vm870, %v2948, -inf
            %2952 = vmax.xlane.f32.xlu0 %v2951
            %v2953 = vpop.xlane.xlu0 %2952
            %v2954 = vsub.f32 %v2948, %v2953
            %v2955 = vmul.f32 %v2954, 1.442695
            %v2956 = vpow.pop %v2955
            %v2957 = vsel %vm870, %v2956, 0.0
            %2958 = vadd.xlane.f32.xlu0 %v2957
            %v2959 = vpop.xlane.xlu0 %2958
            %v2960 = vrcp.pop %v2959
            %v2961 = vmul.f32 %v2956, %v2960
            %2962 = vrot.lane.b32.xlu0 %v2871, 64
            %v2963 = vpop.permute.xlu0 %2962
            %v2966 = vsel %vm870, %v2961, 0
            %2968 = vmatprep.subr.mxu0 0.0
            %2969 = vmatpush1.msra.mxu0 %v2963
            %2970 = vmatprep.subr.mxu0 0.0
            %2971 = vmatpush1.msra.mxu0 0.0
            %2972 = vmatprep.subr.mxu0 0.0
            %2973 = vmatpush1.msra.mxu0 0.0
            %2974 = vmatprep.subr.mxu0 0.0
            %2975 = vmatpush1.msra.mxu0 0.0
            %2976 = vmatprep.subr.mxu0 0.0
            %2977 = vmatpush1.msra.mxu0 0.0
            %2978 = vmatprep.subr.mxu0 0.0
            %2979 = vmatpush1.msra.mxu0 0.0
            %2980 = vmatprep.subr.mxu0 0.0
            %2981 = vmatpush1.msra.mxu0 0.0
            %2982 = vmatprep.subr.mxu0 0.0
            %2983 = vmatpush1.msra.mxu0 0.0
            %2984 = vmatprep.subr.mxu0 0.0
            %2985 = vmatpush1.msra.mxu0 0.0
            %2986 = vmatprep.subr.mxu0 0.0
            %2987 = vmatpush1.msra.mxu0 0.0
            %2988 = vmatprep.subr.mxu0 0.0
            %2989 = vmatpush1.msra.mxu0 0.0
            %2990 = vmatprep.subr.mxu0 0.0
            %2991 = vmatpush1.msra.mxu0 0.0
            %2992 = vmatprep.subr.mxu0 0.0
            %2993 = vmatpush1.msra.mxu0 0.0
            %2994 = vmatprep.subr.mxu0 0.0
            %2995 = vmatpush1.msra.mxu0 0.0
            %2996 = vmatprep.subr.mxu0 0.0
            %2997 = vmatpush1.msra.mxu0 0.0
            %2998 = vmatprep.subr.mxu0 0.0
            %2999 = vmatpush1.msra.mxu0 0.0
            %3000 = vmatprep.subr.mxu0 0.0
            %3001 = vmatpush1.msra.mxu0 0.0
            %3002 = vmatprep.subr.mxu0 0.0
            %3003 = vmatpush1.msra.mxu0 0.0
            %3004 = vmatprep.subr.mxu0 0.0
            %3005 = vmatpush1.msra.mxu0 0.0
            %3006 = vmatprep.subr.mxu0 0.0
            %3007 = vmatpush1.msra.mxu0 0.0
            %3008 = vmatprep.subr.mxu0 0.0
            %3009 = vmatpush1.msra.mxu0 0.0
            %3010 = vmatprep.subr.mxu0 0.0
            %3011 = vmatpush1.msra.mxu0 0.0
            %3012 = vmatprep.subr.mxu0 0.0
            %3013 = vmatpush1.msra.mxu0 0.0
            %3014 = vmatprep.subr.mxu0 0.0
            %3015 = vmatpush1.msra.mxu0 0.0
            %3016 = vmatprep.subr.mxu0 0.0
            %3017 = vmatpush1.msra.mxu0 0.0
            %3018 = vmatprep.subr.mxu0 0.0
            %3019 = vmatpush1.msra.mxu0 0.0
            %3020 = vmatprep.subr.mxu0 0.0
            %3021 = vmatpush1.msra.mxu0 0.0
            %3022 = vmatprep.subr.mxu0 0.0
            %3023 = vmatpush1.msra.mxu0 0.0
            %3024 = vmatprep.subr.mxu0 0.0
            %3025 = vmatpush1.msra.mxu0 0.0
            %3026 = vmatprep.subr.mxu0 0.0
            %3027 = vmatpush1.msra.mxu0 0.0
            %3028 = vmatprep.subr.mxu0 0.0
            %3029 = vmatpush1.msra.mxu0 0.0
            %3030 = vmatprep.subr.mxu0 0.0
            %3031 = vmatpush1.msra.mxu0 0.0
            %3032 = vmatprep.mubr.f32.mxu0 0.0
            %3033 = vmatmul.mubr.f32.gmra.mrb[0].mxu0 %v2966
            %v3034 = vpop.f32.mrb[0].mxu0
            %v3035 = vadd.f32 0.0, %v3034
            %v3036 = vpop.f32.mrb[0].mxu0
            %3037 = vdwg.mxu0
            %3038 = vrot.lane.b32.xlu0 %v2871, 120
            %v3039 = vpop.permute.xlu0 %3038
            %3040 = vrot.lane.b32.xlu0 %v2871, 88
            %v3041 = vpop.permute.xlu0 %3040
            %v3042 = vsel %vm870, %v3039, 0
            %v3044 = vsel %vm870, %v3041, 0
            %3046 = vmatprep.subr.mxu0 0.0
            %3047 = vmatpush1.xpose.msra.mxu0 %v3044
            %3048 = vmatprep.subr.mxu0 0.0
            %3049 = vmatpush1.xpose.msra.mxu0 0.0
            %3050 = vmatprep.subr.mxu0 0.0
            %3051 = vmatpush1.xpose.msra.mxu0 0.0
            %3052 = vmatprep.subr.mxu0 0.0
            %3053 = vmatpush1.xpose.msra.mxu0 0.0
            %3054 = vmatprep.subr.mxu0 0.0
            %3055 = vmatpush1.xpose.msra.mxu0 0.0
            %3056 = vmatprep.subr.mxu0 0.0
            %3057 = vmatpush1.xpose.msra.mxu0 0.0
            %3058 = vmatprep.subr.mxu0 0.0
            %3059 = vmatpush1.xpose.msra.mxu0 0.0
            %3060 = vmatprep.subr.mxu0 0.0
            %3061 = vmatpush1.xpose.msra.mxu0 0.0
            %3062 = vmatprep.subr.mxu0 0.0
            %3063 = vmatpush1.xpose.msra.mxu0 0.0
            %3064 = vmatprep.subr.mxu0 0.0
            %3065 = vmatpush1.xpose.msra.mxu0 0.0
            %3066 = vmatprep.subr.mxu0 0.0
            %3067 = vmatpush1.xpose.msra.mxu0 0.0
            %3068 = vmatprep.subr.mxu0 0.0
            %3069 = vmatpush1.xpose.msra.mxu0 0.0
            %3070 = vmatprep.subr.mxu0 0.0
            %3071 = vmatpush1.xpose.msra.mxu0 0.0
            %3072 = vmatprep.subr.mxu0 0.0
            %3073 = vmatpush1.xpose.msra.mxu0 0.0
            %3074 = vmatprep.subr.mxu0 0.0
            %3075 = vmatpush1.xpose.msra.mxu0 0.0
            %3076 = vmatprep.subr.mxu0 0.0
            %3077 = vmatpush1.xpose.msra.mxu0 0.0
            %3078 = vmatprep.subr.mxu0 0.0
            %3079 = vmatpush1.xpose.msra.mxu0 0.0
            %3080 = vmatprep.subr.mxu0 0.0
            %3081 = vmatpush1.xpose.msra.mxu0 0.0
            %3082 = vmatprep.subr.mxu0 0.0
            %3083 = vmatpush1.xpose.msra.mxu0 0.0
            %3084 = vmatprep.subr.mxu0 0.0
            %3085 = vmatpush1.xpose.msra.mxu0 0.0
            %3086 = vmatprep.subr.mxu0 0.0
            %3087 = vmatpush1.xpose.msra.mxu0 0.0
            %3088 = vmatprep.subr.mxu0 0.0
            %3089 = vmatpush1.xpose.msra.mxu0 0.0
            %3090 = vmatprep.subr.mxu0 0.0
            %3091 = vmatpush1.xpose.msra.mxu0 0.0
            %3092 = vmatprep.subr.mxu0 0.0
            %3093 = vmatpush1.xpose.msra.mxu0 0.0
            %3094 = vmatprep.subr.mxu0 0.0
            %3095 = vmatpush1.xpose.msra.mxu0 0.0
            %3096 = vmatprep.subr.mxu0 0.0
            %3097 = vmatpush1.xpose.msra.mxu0 0.0
            %3098 = vmatprep.subr.mxu0 0.0
            %3099 = vmatpush1.xpose.msra.mxu0 0.0
            %3100 = vmatprep.subr.mxu0 0.0
            %3101 = vmatpush1.xpose.msra.mxu0 0.0
            %3102 = vmatprep.subr.mxu0 0.0
            %3103 = vmatpush1.xpose.msra.mxu0 0.0
            %3104 = vmatprep.subr.mxu0 0.0
            %3105 = vmatpush1.xpose.msra.mxu0 0.0
            %3106 = vmatprep.subr.mxu0 0.0
            %3107 = vmatpush1.xpose.msra.mxu0 0.0
            %3108 = vmatprep.subr.mxu0 0.0
            %3109 = vmatpush1.xpose.msra.mxu0 0.0
            %3110 = vmatprep.mubr.f32.mxu0 0.0
            %3111 = vmatmul.mubr.f32.gmra.mrb[0].mxu0 %v3042
            %v3112 = vpop.f32.mrb[0].mxu0
            %v3113 = vadd.f32 0.0, %v3112
            %v3114 = vpop.f32.mrb[0].mxu0
            %3115 = vdwg.mxu0
            %v3116 = vsel %vm870, %v3113, -inf
            %3117 = vmax.xlane.f32.xlu0 %v3116
            %v3118 = vpop.xlane.xlu0 %3117
            %v3119 = vsub.f32 %v3113, %v3118
            %v3120 = vmul.f32 %v3119, 1.442695
            %v3121 = vpow.pop %v3120
            %v3122 = vsel %vm870, %v3121, 0.0
            %3123 = vadd.xlane.f32.xlu0 %v3122
            %v3124 = vpop.xlane.xlu0 %3123
            %v3125 = vrcp.pop %v3124
            %v3126 = vmul.f32 %v3121, %v3125
            %3127 = vrot.lane.b32.xlu0 %v2871, 56
            %v3128 = vpop.permute.xlu0 %3127
            %v3131 = vsel %vm870, %v3126, 0
            %3133 = vmatprep.subr.mxu0 0.0
            %3134 = vmatpush1.msra.mxu0 %v3128
            %3135 = vmatprep.subr.mxu0 0.0
            %3136 = vmatpush1.msra.mxu0 0.0
            %3137 = vmatprep.subr.mxu0 0.0
            %3138 = vmatpush1.msra.mxu0 0.0
            %3139 = vmatprep.subr.mxu0 0.0
            %3140 = vmatpush1.msra.mxu0 0.0
            %3141 = vmatprep.subr.mxu0 0.0
            %3142 = vmatpush1.msra.mxu0 0.0
            %3143 = vmatprep.subr.mxu0 0.0
            %3144 = vmatpush1.msra.mxu0 0.0
            %3145 = vmatprep.subr.mxu0 0.0
            %3146 = vmatpush1.msra.mxu0 0.0
            %3147 = vmatprep.subr.mxu0 0.0
            %3148 = vmatpush1.msra.mxu0 0.0
            %3149 = vmatprep.subr.mxu0 0.0
            %3150 = vmatpush1.msra.mxu0 0.0
            %3151 = vmatprep.subr.mxu0 0.0
            %3152 = vmatpush1.msra.mxu0 0.0
            %3153 = vmatprep.subr.mxu0 0.0
            %3154 = vmatpush1.msra.mxu0 0.0
            %3155 = vmatprep.subr.mxu0 0.0
            %3156 = vmatpush1.msra.mxu0 0.0
            %3157 = vmatprep.subr.mxu0 0.0
            %3158 = vmatpush1.msra.mxu0 0.0
            %3159 = vmatprep.subr.mxu0 0.0
            %3160 = vmatpush1.msra.mxu0 0.0
            %3161 = vmatprep.subr.mxu0 0.0
            %3162 = vmatpush1.msra.mxu0 0.0
            %3163 = vmatprep.subr.mxu0 0.0
            %3164 = vmatpush1.msra.mxu0 0.0
            %3165 = vmatprep.subr.mxu0 0.0
            %3166 = vmatpush1.msra.mxu0 0.0
            %3167 = vmatprep.subr.mxu0 0.0
            %3168 = vmatpush1.msra.mxu0 0.0
            %3169 = vmatprep.subr.mxu0 0.0
            %3170 = vmatpush1.msra.mxu0 0.0
            %3171 = vmatprep.subr.mxu0 0.0
            %3172 = vmatpush1.msra.mxu0 0.0
            %3173 = vmatprep.subr.mxu0 0.0
            %3174 = vmatpush1.msra.mxu0 0.0
            %3175 = vmatprep.subr.mxu0 0.0
            %3176 = vmatpush1.msra.mxu0 0.0
            %3177 = vmatprep.subr.mxu0 0.0
            %3178 = vmatpush1.msra.mxu0 0.0
            %3179 = vmatprep.subr.mxu0 0.0
            %3180 = vmatpush1.msra.mxu0 0.0
            %3181 = vmatprep.subr.mxu0 0.0
            %3182 = vmatpush1.msra.mxu0 0.0
            %3183 = vmatprep.subr.mxu0 0.0
            %3184 = vmatpush1.msra.mxu0 0.0
            %3185 = vmatprep.subr.mxu0 0.0
            %3186 = vmatpush1.msra.mxu0 0.0
            %3187 = vmatprep.subr.mxu0 0.0
            %3188 = vmatpush1.msra.mxu0 0.0
            %3189 = vmatprep.subr.mxu0 0.0
            %3190 = vmatpush1.msra.mxu0 0.0
            %3191 = vmatprep.subr.mxu0 0.0
            %3192 = vmatpush1.msra.mxu0 0.0
            %3193 = vmatprep.subr.mxu0 0.0
            %3194 = vmatpush1.msra.mxu0 0.0
            %3195 = vmatprep.subr.mxu0 0.0
            %3196 = vmatpush1.msra.mxu0 0.0
            %3197 = vmatprep.mubr.f32.mxu0 0.0
            %3198 = vmatmul.mubr.f32.gmra.mrb[0].mxu0 %v3131
            %v3199 = vpop.f32.mrb[0].mxu0
            %v3200 = vadd.f32 0.0, %v3199
            %v3201 = vpop.f32.mrb[0].mxu0
            %3202 = vdwg.mxu0
            %3203 = vrot.lane.b32.xlu0 %v2871, 112
            %v3204 = vpop.permute.xlu0 %3203
            %3205 = vrot.lane.b32.xlu0 %v2871, 80
            %v3206 = vpop.permute.xlu0 %3205
            %v3207 = vsel %vm870, %v3204, 0
            %v3209 = vsel %vm870, %v3206, 0
            %3211 = vmatprep.subr.mxu0 0.0
            %3212 = vmatpush1.xpose.msra.mxu0 %v3209
            %3213 = vmatprep.subr.mxu0 0.0
            %3214 = vmatpush1.xpose.msra.mxu0 0.0
            %3215 = vmatprep.subr.mxu0 0.0
            %3216 = vmatpush1.xpose.msra.mxu0 0.0
            %3217 = vmatprep.subr.mxu0 0.0
            %3218 = vmatpush1.xpose.msra.mxu0 0.0
            %3219 = vmatprep.subr.mxu0 0.0
            %3220 = vmatpush1.xpose.msra.mxu0 0.0
            %3221 = vmatprep.subr.mxu0 0.0
            %3222 = vmatpush1.xpose.msra.mxu0 0.0
            %3223 = vmatprep.subr.mxu0 0.0
            %3224 = vmatpush1.xpose.msra.mxu0 0.0
            %3225 = vmatprep.subr.mxu0 0.0
            %3226 = vmatpush1.xpose.msra.mxu0 0.0
            %3227 = vmatprep.subr.mxu0 0.0
            %3228 = vmatpush1.xpose.msra.mxu0 0.0
            %3229 = vmatprep.subr.mxu0 0.0
            %3230 = vmatpush1.xpose.msra.mxu0 0.0
            %3231 = vmatprep.subr.mxu0 0.0
            %3232 = vmatpush1.xpose.msra.mxu0 0.0
            %3233 = vmatprep.subr.mxu0 0.0
            %3234 = vmatpush1.xpose.msra.mxu0 0.0
            %3235 = vmatprep.subr.mxu0 0.0
            %3236 = vmatpush1.xpose.msra.mxu0 0.0
            %3237 = vmatprep.subr.mxu0 0.0
            %3238 = vmatpush1.xpose.msra.mxu0 0.0
            %3239 = vmatprep.subr.mxu0 0.0
            %3240 = vmatpush1.xpose.msra.mxu0 0.0
            %3241 = vmatprep.subr.mxu0 0.0
            %3242 = vmatpush1.xpose.msra.mxu0 0.0
            %3243 = vmatprep.subr.mxu0 0.0
            %3244 = vmatpush1.xpose.msra.mxu0 0.0
            %3245 = vmatprep.subr.mxu0 0.0
            %3246 = vmatpush1.xpose.msra.mxu0 0.0
            %3247 = vmatprep.subr.mxu0 0.0
            %3248 = vmatpush1.xpose.msra.mxu0 0.0
            %3249 = vmatprep.subr.mxu0 0.0
            %3250 = vmatpush1.xpose.msra.mxu0 0.0
            %3251 = vmatprep.subr.mxu0 0.0
            %3252 = vmatpush1.xpose.msra.mxu0 0.0
            %3253 = vmatprep.subr.mxu0 0.0
            %3254 = vmatpush1.xpose.msra.mxu0 0.0
            %3255 = vmatprep.subr.mxu0 0.0
            %3256 = vmatpush1.xpose.msra.mxu0 0.0
            %3257 = vmatprep.subr.mxu0 0.0
            %3258 = vmatpush1.xpose.msra.mxu0 0.0
            %3259 = vmatprep.subr.mxu0 0.0
            %3260 = vmatpush1.xpose.msra.mxu0 0.0
            %3261 = vmatprep.subr.mxu0 0.0
            %3262 = vmatpush1.xpose.msra.mxu0 0.0
            %3263 = vmatprep.subr.mxu0 0.0
            %3264 = vmatpush1.xpose.msra.mxu0 0.0
            %3265 = vmatprep.subr.mxu0 0.0
            %3266 = vmatpush1.xpose.msra.mxu0 0.0
            %3267 = vmatprep.subr.mxu0 0.0
            %3268 = vmatpush1.xpose.msra.mxu0 0.0
            %3269 = vmatprep.subr.mxu0 0.0
            %3270 = vmatpush1.xpose.msra.mxu0 0.0
            %3271 = vmatprep.subr.mxu0 0.0
            %3272 = vmatpush1.xpose.msra.mxu0 0.0
            %3273 = vmatprep.subr.mxu0 0.0
            %3274 = vmatpush1.xpose.msra.mxu0 0.0
            %3275 = vmatprep.mubr.f32.mxu0 0.0
            %3276 = vmatmul.mubr.f32.gmra.mrb[0].mxu0 %v3207
            %v3277 = vpop.f32.mrb[0].mxu0
            %v3278 = vadd.f32 0.0, %v3277
            %v3279 = vpop.f32.mrb[0].mxu0
            %3280 = vdwg.mxu0
            %v3281 = vsel %vm870, %v3278, -inf
            %3282 = vmax.xlane.f32.xlu0 %v3281
            %v3283 = vpop.xlane.xlu0 %3282
            %v3284 = vsub.f32 %v3278, %v3283
            %v3285 = vmul.f32 %v3284, 1.442695
            %v3286 = vpow.pop %v3285
            %v3287 = vsel %vm870, %v3286, 0.0
            %3288 = vadd.xlane.f32.xlu0 %v3287
            %v3289 = vpop.xlane.xlu0 %3288
            %v3290 = vrcp.pop %v3289
            %v3291 = vmul.f32 %v3286, %v3290
            %3292 = vrot.lane.b32.xlu0 %v2871, 48
            %v3293 = vpop.permute.xlu0 %3292
            %v3296 = vsel %vm870, %v3291, 0
            %3298 = vmatprep.subr.mxu0 0.0
            %3299 = vmatpush1.msra.mxu0 %v3293
            %3300 = vmatprep.subr.mxu0 0.0
            %3301 = vmatpush1.msra.mxu0 0.0
            %3302 = vmatprep.subr.mxu0 0.0
            %3303 = vmatpush1.msra.mxu0 0.0
            %3304 = vmatprep.subr.mxu0 0.0
            %3305 = vmatpush1.msra.mxu0 0.0
            %3306 = vmatprep.subr.mxu0 0.0
            %3307 = vmatpush1.msra.mxu0 0.0
            %3308 = vmatprep.subr.mxu0 0.0
            %3309 = vmatpush1.msra.mxu0 0.0
            %3310 = vmatprep.subr.mxu0 0.0
            %3311 = vmatpush1.msra.mxu0 0.0
            %3312 = vmatprep.subr.mxu0 0.0
            %3313 = vmatpush1.msra.mxu0 0.0
            %3314 = vmatprep.subr.mxu0 0.0
            %3315 = vmatpush1.msra.mxu0 0.0
            %3316 = vmatprep.subr.mxu0 0.0
            %3317 = vmatpush1.msra.mxu0 0.0
            %3318 = vmatprep.subr.mxu0 0.0
            %3319 = vmatpush1.msra.mxu0 0.0
            %3320 = vmatprep.subr.mxu0 0.0
            %3321 = vmatpush1.msra.mxu0 0.0
            %3322 = vmatprep.subr.mxu0 0.0
            %3323 = vmatpush1.msra.mxu0 0.0
            %3324 = vmatprep.subr.mxu0 0.0
            %3325 = vmatpush1.msra.mxu0 0.0
            %3326 = vmatprep.subr.mxu0 0.0
            %3327 = vmatpush1.msra.mxu0 0.0
            %3328 = vmatprep.subr.mxu0 0.0
            %3329 = vmatpush1.msra.mxu0 0.0
            %3330 = vmatprep.subr.mxu0 0.0
            %3331 = vmatpush1.msra.mxu0 0.0
            %3332 = vmatprep.subr.mxu0 0.0
            %3333 = vmatpush1.msra.mxu0 0.0
            %3334 = vmatprep.subr.mxu0 0.0
            %3335 = vmatpush1.msra.mxu0 0.0
            %3336 = vmatprep.subr.mxu0 0.0
            %3337 = vmatpush1.msra.mxu0 0.0
            %3338 = vmatprep.subr.mxu0 0.0
            %3339 = vmatpush1.msra.mxu0 0.0
            %3340 = vmatprep.subr.mxu0 0.0
            %3341 = vmatpush1.msra.mxu0 0.0
            %3342 = vmatprep.subr.mxu0 0.0
            %3343 = vmatpush1.msra.mxu0 0.0
            %3344 = vmatprep.subr.mxu0 0.0
            %3345 = vmatpush1.msra.mxu0 0.0
            %3346 = vmatprep.subr.mxu0 0.0
            %3347 = vmatpush1.msra.mxu0 0.0
            %3348 = vmatprep.subr.mxu0 0.0
            %3349 = vmatpush1.msra.mxu0 0.0
            %3350 = vmatprep.subr.mxu0 0.0
            %3351 = vmatpush1.msra.mxu0 0.0
            %3352 = vmatprep.subr.mxu0 0.0
            %3353 = vmatpush1.msra.mxu0 0.0
            %3354 = vmatprep.subr.mxu0 0.0
            %3355 = vmatpush1.msra.mxu0 0.0
            %3356 = vmatprep.subr.mxu0 0.0
            %3357 = vmatpush1.msra.mxu0 0.0
            %3358 = vmatprep.subr.mxu0 0.0
            %3359 = vmatpush1.msra.mxu0 0.0
            %3360 = vmatprep.subr.mxu0 0.0
            %3361 = vmatpush1.msra.mxu0 0.0
            %3362 = vmatprep.mubr.f32.mxu0 0.0
            %3363 = vmatmul.mubr.f32.gmra.mrb[0].mxu0 %v3296
            %v3364 = vpop.f32.mrb[0].mxu0
            %v3365 = vadd.f32 0.0, %v3364
            %v3366 = vpop.f32.mrb[0].mxu0
            %3367 = vdwg.mxu0
            %3368 = vrot.lane.b32.xlu0 %v2871, 104
            %v3369 = vpop.permute.xlu0 %3368
            %3370 = vrot.lane.b32.xlu0 %v2871, 72
            %v3371 = vpop.permute.xlu0 %3370
            %v3372 = vsel %vm870, %v3369, 0
            %v3374 = vsel %vm870, %v3371, 0
            %3376 = vmatprep.subr.mxu0 0.0
            %3377 = vmatpush1.xpose.msra.mxu0 %v3374
            %3378 = vmatprep.subr.mxu0 0.0
            %3379 = vmatpush1.xpose.msra.mxu0 0.0
            %3380 = vmatprep.subr.mxu0 0.0
            %3381 = vmatpush1.xpose.msra.mxu0 0.0
            %3382 = vmatprep.subr.mxu0 0.0
            %3383 = vmatpush1.xpose.msra.mxu0 0.0
            %3384 = vmatprep.subr.mxu0 0.0
            %3385 = vmatpush1.xpose.msra.mxu0 0.0
            %3386 = vmatprep.subr.mxu0 0.0
            %3387 = vmatpush1.xpose.msra.mxu0 0.0
            %3388 = vmatprep.subr.mxu0 0.0
            %3389 = vmatpush1.xpose.msra.mxu0 0.0
            %3390 = vmatprep.subr.mxu0 0.0
            %3391 = vmatpush1.xpose.msra.mxu0 0.0
            %3392 = vmatprep.subr.mxu0 0.0
            %3393 = vmatpush1.xpose.msra.mxu0 0.0
            %3394 = vmatprep.subr.mxu0 0.0
            %3395 = vmatpush1.xpose.msra.mxu0 0.0
            %3396 = vmatprep.subr.mxu0 0.0
            %3397 = vmatpush1.xpose.msra.mxu0 0.0
            %3398 = vmatprep.subr.mxu0 0.0
            %3399 = vmatpush1.xpose.msra.mxu0 0.0
            %3400 = vmatprep.subr.mxu0 0.0
            %3401 = vmatpush1.xpose.msra.mxu0 0.0
            %3402 = vmatprep.subr.mxu0 0.0
            %3403 = vmatpush1.xpose.msra.mxu0 0.0
            %3404 = vmatprep.subr.mxu0 0.0
            %3405 = vmatpush1.xpose.msra.mxu0 0.0
            %3406 = vmatprep.subr.mxu0 0.0
            %3407 = vmatpush1.xpose.msra.mxu0 0.0
            %3408 = vmatprep.subr.mxu0 0.0
            %3409 = vmatpush1.xpose.msra.mxu0 0.0
            %3410 = vmatprep.subr.mxu0 0.0
            %3411 = vmatpush1.xpose.msra.mxu0 0.0
            %3412 = vmatprep.subr.mxu0 0.0
            %3413 = vmatpush1.xpose.msra.mxu0 0.0
            %3414 = vmatprep.subr.mxu0 0.0
            %3415 = vmatpush1.xpose.msra.mxu0 0.0
            %3416 = vmatprep.subr.mxu0 0.0
            %3417 = vmatpush1.xpose.msra.mxu0 0.0
            %3418 = vmatprep.subr.mxu0 0.0
            %3419 = vmatpush1.xpose.msra.mxu0 0.0
            %3420 = vmatprep.subr.mxu0 0.0
            %3421 = vmatpush1.xpose.msra.mxu0 0.0
            %3422 = vmatprep.subr.mxu0 0.0
            %3423 = vmatpush1.xpose.msra.mxu0 0.0
            %3424 = vmatprep.subr.mxu0 0.0
            %3425 = vmatpush1.xpose.msra.mxu0 0.0
            %3426 = vmatprep.subr.mxu0 0.0
            %3427 = vmatpush1.xpose.msra.mxu0 0.0
            %3428 = vmatprep.subr.mxu0 0.0
            %3429 = vmatpush1.xpose.msra.mxu0 0.0
            %3430 = vmatprep.subr.mxu0 0.0
            %3431 = vmatpush1.xpose.msra.mxu0 0.0
            %3432 = vmatprep.subr.mxu0 0.0
            %3433 = vmatpush1.xpose.msra.mxu0 0.0
            %3434 = vmatprep.subr.mxu0 0.0
            %3435 = vmatpush1.xpose.msra.mxu0 0.0
            %3436 = vmatprep.subr.mxu0 0.0
            %3437 = vmatpush1.xpose.msra.mxu0 0.0
            %3438 = vmatprep.subr.mxu0 0.0
            %3439 = vmatpush1.xpose.msra.mxu0 0.0
            %3440 = vmatprep.mubr.f32.mxu0 0.0
            %3441 = vmatmul.mubr.f32.gmra.mrb[0].mxu0 %v3372
            %v3442 = vpop.f32.mrb[0].mxu0
            %v3443 = vadd.f32 0.0, %v3442
            %v3444 = vpop.f32.mrb[0].mxu0
            %3445 = vdwg.mxu0
            %v3446 = vsel %vm870, %v3443, -inf
            %3447 = vmax.xlane.f32.xlu0 %v3446
            %v3448 = vpop.xlane.xlu0 %3447
            %v3449 = vsub.f32 %v3443, %v3448
            %v3450 = vmul.f32 %v3449, 1.442695
            %v3451 = vpow.pop %v3450
            %v3452 = vsel %vm870, %v3451, 0.0
            %3453 = vadd.xlane.f32.xlu0 %v3452
            %v3454 = vpop.xlane.xlu0 %3453
            %v3455 = vrcp.pop %v3454
            %v3456 = vmul.f32 %v3451, %v3455
            %3457 = vrot.lane.b32.xlu0 %v2871, 40
            %v3458 = vpop.permute.xlu0 %3457
            %v3461 = vsel %vm870, %v3456, 0
            %3463 = vmatprep.subr.mxu0 0.0
            %3464 = vmatpush1.msra.mxu0 %v3458
            %3465 = vmatprep.subr.mxu0 0.0
            %3466 = vmatpush1.msra.mxu0 0.0
            %3467 = vmatprep.subr.mxu0 0.0
            %3468 = vmatpush1.msra.mxu0 0.0
            %3469 = vmatprep.subr.mxu0 0.0
            %3470 = vmatpush1.msra.mxu0 0.0
            %3471 = vmatprep.subr.mxu0 0.0
            %3472 = vmatpush1.msra.mxu0 0.0
            %3473 = vmatprep.subr.mxu0 0.0
            %3474 = vmatpush1.msra.mxu0 0.0
            %3475 = vmatprep.subr.mxu0 0.0
            %3476 = vmatpush1.msra.mxu0 0.0
            %3477 = vmatprep.subr.mxu0 0.0
            %3478 = vmatpush1.msra.mxu0 0.0
            %3479 = vmatprep.subr.mxu0 0.0
            %3480 = vmatpush1.msra.mxu0 0.0
            %3481 = vmatprep.subr.mxu0 0.0
            %3482 = vmatpush1.msra.mxu0 0.0
            %3483 = vmatprep.subr.mxu0 0.0
            %3484 = vmatpush1.msra.mxu0 0.0
            %3485 = vmatprep.subr.mxu0 0.0
            %3486 = vmatpush1.msra.mxu0 0.0
            %3487 = vmatprep.subr.mxu0 0.0
            %3488 = vmatpush1.msra.mxu0 0.0
            %3489 = vmatprep.subr.mxu0 0.0
            %3490 = vmatpush1.msra.mxu0 0.0
            %3491 = vmatprep.subr.mxu0 0.0
            %3492 = vmatpush1.msra.mxu0 0.0
            %3493 = vmatprep.subr.mxu0 0.0
            %3494 = vmatpush1.msra.mxu0 0.0
            %3495 = vmatprep.subr.mxu0 0.0
            %3496 = vmatpush1.msra.mxu0 0.0
            %3497 = vmatprep.subr.mxu0 0.0
            %3498 = vmatpush1.msra.mxu0 0.0
            %3499 = vmatprep.subr.mxu0 0.0
            %3500 = vmatpush1.msra.mxu0 0.0
            %3501 = vmatprep.subr.mxu0 0.0
            %3502 = vmatpush1.msra.mxu0 0.0
            %3503 = vmatprep.subr.mxu0 0.0
            %3504 = vmatpush1.msra.mxu0 0.0
            %3505 = vmatprep.subr.mxu0 0.0
            %3506 = vmatpush1.msra.mxu0 0.0
            %3507 = vmatprep.subr.mxu0 0.0
            %3508 = vmatpush1.msra.mxu0 0.0
            %3509 = vmatprep.subr.mxu0 0.0
            %3510 = vmatpush1.msra.mxu0 0.0
            %3511 = vmatprep.subr.mxu0 0.0
            %3512 = vmatpush1.msra.mxu0 0.0
            %3513 = vmatprep.subr.mxu0 0.0
            %3514 = vmatpush1.msra.mxu0 0.0
            %3515 = vmatprep.subr.mxu0 0.0
            %3516 = vmatpush1.msra.mxu0 0.0
            %3517 = vmatprep.subr.mxu0 0.0
            %3518 = vmatpush1.msra.mxu0 0.0
            %3519 = vmatprep.subr.mxu0 0.0
            %3520 = vmatpush1.msra.mxu0 0.0
            %3521 = vmatprep.subr.mxu0 0.0
            %3522 = vmatpush1.msra.mxu0 0.0
            %3523 = vmatprep.subr.mxu0 0.0
            %3524 = vmatpush1.msra.mxu0 0.0
            %3525 = vmatprep.subr.mxu0 0.0
            %3526 = vmatpush1.msra.mxu0 0.0
            %3527 = vmatprep.mubr.f32.mxu0 0.0
            %3528 = vmatmul.mubr.f32.gmra.mrb[0].mxu0 %v3461
            %v3529 = vpop.f32.mrb[0].mxu0
            %v3530 = vadd.f32 0.0, %v3529
            %v3531 = vpop.f32.mrb[0].mxu0
            %3532 = vdwg.mxu0
            %3534 = vrot.lane.b32.xlu0 %v3200, 8
            %v3535 = vpop.permute.xlu0 %3534
            %3538 = vrot.lane.b32.xlu0 %v3365, 16
            %v3539 = vpop.permute.xlu0 %3538
            %3542 = vrot.lane.b32.xlu0 %v3530, 24
            %v3543 = vpop.permute.xlu0 %3542
            %v3545 = vsel %vm870, %v3035, %v3535
            %v3546 = vsel %vm1540, %v3545, %v3539
            %v3547 = vsel %vm1542, %v3546, %v3543
            %s3548 = scalar_lea.vmem [#allocation8], %s2787
            %v3549 = vld [vmem:[%s3548] sm:$0xff]
            %v3550 = vld [vmem:[%s3548 + $0x8] sm:$0xff]
            %v3551 = vld [vmem:[%s3548 + $0x10] sm:$0xff]
            %v3552 = vld [vmem:[%s3548 + $0x18] sm:$0xff]
            %s3553 = scalar_lea.vmem %s6, %s2783
            %v3554 = vld [vmem:[%s3553] sm:$0x1]
            %v3556 = vlaneseq
            %v3557 = vshrl.u32 %v3556, 7
            %v3558 = vsub.s32 0, %v3557
            %v3559 = vrot.slane %v3554, %v3558
            %v3562 = vsel %vm594, %v3547, 0
            %3564 = vmatprep.subr.mxu0 0.0
            %3565 = vmatpush1.msra.mxu0 %v3549
            %3566 = vmatprep.subr.mxu0 0.0
            %3567 = vmatpush1.msra.mxu0 %v3550
            %3568 = vmatprep.subr.mxu0 0.0
            %3569 = vmatpush1.msra.mxu0 %v3551
            %3570 = vmatprep.subr.mxu0 0.0
            %3571 = vmatpush1.msra.mxu0 %v3552
            %3572 = vmatprep.subr.mxu0 0.0
            %3573 = vmatpush1.msra.mxu0 0.0
            %3574 = vmatprep.subr.mxu0 0.0
            %3575 = vmatpush1.msra.mxu0 0.0
            %3576 = vmatprep.subr.mxu0 0.0
            %3577 = vmatpush1.msra.mxu0 0.0
            %3578 = vmatprep.subr.mxu0 0.0
            %3579 = vmatpush1.msra.mxu0 0.0
            %3580 = vmatprep.subr.mxu0 0.0
            %3581 = vmatpush1.msra.mxu0 0.0
            %3582 = vmatprep.subr.mxu0 0.0
            %3583 = vmatpush1.msra.mxu0 0.0
            %3584 = vmatprep.subr.mxu0 0.0
            %3585 = vmatpush1.msra.mxu0 0.0
            %3586 = vmatprep.subr.mxu0 0.0
            %3587 = vmatpush1.msra.mxu0 0.0
            %3588 = vmatprep.subr.mxu0 0.0
            %3589 = vmatpush1.msra.mxu0 0.0
            %3590 = vmatprep.subr.mxu0 0.0
            %3591 = vmatpush1.msra.mxu0 0.0
            %3592 = vmatprep.subr.mxu0 0.0
            %3593 = vmatpush1.msra.mxu0 0.0
            %3594 = vmatprep.subr.mxu0 0.0
            %3595 = vmatpush1.msra.mxu0 0.0
            %3596 = vmatprep.subr.mxu0 0.0
            %3597 = vmatpush1.msra.mxu0 0.0
            %3598 = vmatprep.subr.mxu0 0.0
            %3599 = vmatpush1.msra.mxu0 0.0
            %3600 = vmatprep.subr.mxu0 0.0
            %3601 = vmatpush1.msra.mxu0 0.0
            %3602 = vmatprep.subr.mxu0 0.0
            %3603 = vmatpush1.msra.mxu0 0.0
            %3604 = vmatprep.subr.mxu0 0.0
            %3605 = vmatpush1.msra.mxu0 0.0
            %3606 = vmatprep.subr.mxu0 0.0
            %3607 = vmatpush1.msra.mxu0 0.0
            %3608 = vmatprep.subr.mxu0 0.0
            %3609 = vmatpush1.msra.mxu0 0.0
            %3610 = vmatprep.subr.mxu0 0.0
            %3611 = vmatpush1.msra.mxu0 0.0
            %3612 = vmatprep.subr.mxu0 0.0
            %3613 = vmatpush1.msra.mxu0 0.0
            %3614 = vmatprep.subr.mxu0 0.0
            %3615 = vmatpush1.msra.mxu0 0.0
            %3616 = vmatprep.subr.mxu0 0.0
            %3617 = vmatpush1.msra.mxu0 0.0
            %3618 = vmatprep.subr.mxu0 0.0
            %3619 = vmatpush1.msra.mxu0 0.0
            %3620 = vmatprep.subr.mxu0 0.0
            %3621 = vmatpush1.msra.mxu0 0.0
            %3622 = vmatprep.subr.mxu0 0.0
            %3623 = vmatpush1.msra.mxu0 0.0
            %3624 = vmatprep.subr.mxu0 0.0
            %3625 = vmatpush1.msra.mxu0 0.0
            %3626 = vmatprep.subr.mxu0 0.0
            %3627 = vmatpush1.msra.mxu0 0.0
            %3628 = vmatprep.mubr.f32.mxu0 0.0
            %3629 = vmatmul.mubr.f32.gmra.mrb[0].mxu0 %v3562
            %v3630 = vpop.f32.mrb[0].mxu0
            %v3631 = vadd.f32 %v3559, %v3630
            %v3632 = vpop.f32.mrb[0].mxu0
            %3633 = vdwg.mxu0
            %v3634 = vadd.f32 %v3631, %v2782
            %v3635 = vsel %vm594, %v3634, 0.0
            %3636 = vadd.xlane.f32.xlu0 %v3635
            %v3637 = vpop.xlane.xlu0 %3636
            %v3638 = vmul.f32 %v3637, %v1632
            %v3639 = vmul.f32 %v3634, %v3634
            %v3640 = vsel %vm594, %v3639, 0.0
            %3641 = vadd.xlane.f32.xlu0 %v3640
            %v3642 = vpop.xlane.xlu0 %3641
            %v3643 = vmul.f32 %v3642, %v1632
            %v3644 = vmul.f32 %v3638, %v3638
            %v3645 = vsub.f32 %v3643, %v3644
            %v3646 = vsub.f32 %v3634, %v3638
            %v3647 = vadd.f32 %v3645, 1e-05
            %v3648 = vrsqrt.pop %v3647
            %v3649 = vmul.f32 %v3646, %v3648
            %s3650 = scalar_lea.vmem %s7, %s2785
            %v3651 = vld [vmem:[%s3650] sm:$0x1]
            %v3653 = vlaneseq
            %v3654 = vshrl.u32 %v3653, 7
            %v3655 = vsub.s32 0, %v3654
            %v3656 = vrot.slane %v3651, %v3655
            %v3658 = vmul.f32 %v3649, %v3656
            %s3659 = scalar_lea.vmem %s8, %s2785
            %v3660 = vld [vmem:[%s3659] sm:$0x1]
            %v3662 = vlaneseq
            %v3663 = vshrl.u32 %v3662, 7
            %v3664 = vsub.s32 0, %v3663
            %v3665 = vrot.slane %v3660, %v3664
            %v3667 = vadd.f32 %v3658, %v3665
            %s3668 = smul.u32 %s2786, 32
            %s3669 = scalar_lea.vmem [#allocation10], %s3668
            %v3670 = vld [vmem:[%s3669] sm:$0xff]
            %v3671 = vld [vmem:[%s3669 + $0x8] sm:$0xff]
            %v3672 = vld [vmem:[%s3669 + $0x10] sm:$0xff]
            %v3673 = vld [vmem:[%s3669 + $0x18] sm:$0xff]
            %s3674 = scalar_lea.vmem %s10, %s2786
            %v3675 = vld [vmem:[%s3674] sm:$0x1]
            %v3677 = vlaneseq
            %v3678 = vshrl.u32 %v3677, 7
            %v3679 = vsub.s32 0, %v3678
            %v3680 = vrot.slane %v3675, %v3679
            %v3683 = vsel %vm594, %v3667, 0
            %3685 = vmatprep.subr.mxu0 0.0
            %3686 = vmatpush1.msra.mxu0 %v3670
            %3687 = vmatprep.subr.mxu0 0.0
            %3688 = vmatpush1.msra.mxu0 %v3671
            %3689 = vmatprep.subr.mxu0 0.0
            %3690 = vmatpush1.msra.mxu0 %v3672
            %3691 = vmatprep.subr.mxu0 0.0
            %3692 = vmatpush1.msra.mxu0 %v3673
            %3693 = vmatprep.subr.mxu0 0.0
            %3694 = vmatpush1.msra.mxu0 0.0
            %3695 = vmatprep.subr.mxu0 0.0
            %3696 = vmatpush1.msra.mxu0 0.0
            %3697 = vmatprep.subr.mxu0 0.0
            %3698 = vmatpush1.msra.mxu0 0.0
            %3699 = vmatprep.subr.mxu0 0.0
            %3700 = vmatpush1.msra.mxu0 0.0
            %3701 = vmatprep.subr.mxu0 0.0
            %3702 = vmatpush1.msra.mxu0 0.0
            %3703 = vmatprep.subr.mxu0 0.0
            %3704 = vmatpush1.msra.mxu0 0.0
            %3705 = vmatprep.subr.mxu0 0.0
            %3706 = vmatpush1.msra.mxu0 0.0
            %3707 = vmatprep.subr.mxu0 0.0
            %3708 = vmatpush1.msra.mxu0 0.0
            %3709 = vmatprep.subr.mxu0 0.0
            %3710 = vmatpush1.msra.mxu0 0.0
            %3711 = vmatprep.subr.mxu0 0.0
            %3712 = vmatpush1.msra.mxu0 0.0
            %3713 = vmatprep.subr.mxu0 0.0
            %3714 = vmatpush1.msra.mxu0 0.0
            %3715 = vmatprep.subr.mxu0 0.0
            %3716 = vmatpush1.msra.mxu0 0.0
            %3717 = vmatprep.subr.mxu0 0.0
            %3718 = vmatpush1.msra.mxu0 0.0
            %3719 = vmatprep.subr.mxu0 0.0
            %3720 = vmatpush1.msra.mxu0 0.0
            %3721 = vmatprep.subr.mxu0 0.0
            %3722 = vmatpush1.msra.mxu0 0.0
            %3723 = vmatprep.subr.mxu0 0.0
            %3724 = vmatpush1.msra.mxu0 0.0
            %3725 = vmatprep.subr.mxu0 0.0
            %3726 = vmatpush1.msra.mxu0 0.0
            %3727 = vmatprep.subr.mxu0 0.0
            %3728 = vmatpush1.msra.mxu0 0.0
            %3729 = vmatprep.subr.mxu0 0.0
            %3730 = vmatpush1.msra.mxu0 0.0
            %3731 = vmatprep.subr.mxu0 0.0
            %3732 = vmatpush1.msra.mxu0 0.0
            %3733 = vmatprep.subr.mxu0 0.0
            %3734 = vmatpush1.msra.mxu0 0.0
            %3735 = vmatprep.subr.mxu0 0.0
            %3736 = vmatpush1.msra.mxu0 0.0
            %3737 = vmatprep.subr.mxu0 0.0
            %3738 = vmatpush1.msra.mxu0 0.0
            %3739 = vmatprep.subr.mxu0 0.0
            %3740 = vmatpush1.msra.mxu0 0.0
            %3741 = vmatprep.subr.mxu0 0.0
            %3742 = vmatpush1.msra.mxu0 0.0
            %3743 = vmatprep.subr.mxu0 0.0
            %3744 = vmatpush1.msra.mxu0 0.0
            %3745 = vmatprep.subr.mxu0 0.0
            %3746 = vmatpush1.msra.mxu0 0.0
            %3747 = vmatprep.subr.mxu0 0.0
            %3748 = vmatpush1.msra.mxu0 0.0
            %3749 = vmatprep.mubr.f32.mxu0 0.0
            %3750 = vmatmul.mubr.f32.gmra.mrb[0].mxu0 %v3683
            %v3751 = vpop.f32.mrb[0].mxu0
            %v3752 = vadd.f32 %v3680, %v3751
            %v3753 = vpop.f32.mrb[0].mxu0
            %3754 = vdwg.mxu0
            %v3755 = vmax.f32 %v3752, 0.0
            %s3756 = smul.u32 %s2786, 64
            %s3757 = scalar_lea.vmem [#allocation11], %s3756
            %v3758 = vld [vmem:[%s3757] sm:$0xff]
            %v3759 = vld [vmem:[%s3757 + $0x8] sm:$0xff]
            %v3760 = vld [vmem:[%s3757 + $0x10] sm:$0xff]
            %v3761 = vld [vmem:[%s3757 + $0x18] sm:$0xff]
            %v3762 = vld [vmem:[%s3757 + $0x20] sm:$0xff]
            %v3763 = vld [vmem:[%s3757 + $0x28] sm:$0xff]
            %v3764 = vld [vmem:[%s3757 + $0x30] sm:$0xff]
            %v3765 = vld [vmem:[%s3757 + $0x38] sm:$0xff]
            %s3766 = scalar_lea.vmem %s12, %s2786
            %v3767 = vld [vmem:[%s3766] sm:$0x1]
            %v3769 = vlaneseq
            %v3770 = vshrl.u32 %v3769, 7
            %v3771 = vsub.s32 0, %v3770
            %v3772 = vrot.slane %v3767, %v3771
            %v3775 = vsel %vm2661, %v3755, 0
            %3777 = vmatprep.subr.mxu0 0.0
            %3778 = vmatpush1.msra.mxu0 %v3758
            %3779 = vmatprep.subr.mxu0 0.0
            %3780 = vmatpush1.msra.mxu0 %v3759
            %3781 = vmatprep.subr.mxu0 0.0
            %3782 = vmatpush1.msra.mxu0 %v3760
            %3783 = vmatprep.subr.mxu0 0.0
            %3784 = vmatpush1.msra.mxu0 %v3761
            %3785 = vmatprep.subr.mxu0 0.0
            %3786 = vmatpush1.msra.mxu0 %v3762
            %3787 = vmatprep.subr.mxu0 0.0
            %3788 = vmatpush1.msra.mxu0 %v3763
            %3789 = vmatprep.subr.mxu0 0.0
            %3790 = vmatpush1.msra.mxu0 %v3764
            %3791 = vmatprep.subr.mxu0 0.0
            %3792 = vmatpush1.msra.mxu0 %v3765
            %3793 = vmatprep.subr.mxu0 0.0
            %3794 = vmatpush1.msra.mxu0 0.0
            %3795 = vmatprep.subr.mxu0 0.0
            %3796 = vmatpush1.msra.mxu0 0.0
            %3797 = vmatprep.subr.mxu0 0.0
            %3798 = vmatpush1.msra.mxu0 0.0
            %3799 = vmatprep.subr.mxu0 0.0
            %3800 = vmatpush1.msra.mxu0 0.0
            %3801 = vmatprep.subr.mxu0 0.0
            %3802 = vmatpush1.msra.mxu0 0.0
            %3803 = vmatprep.subr.mxu0 0.0
            %3804 = vmatpush1.msra.mxu0 0.0
            %3805 = vmatprep.subr.mxu0 0.0
            %3806 = vmatpush1.msra.mxu0 0.0
            %3807 = vmatprep.subr.mxu0 0.0
            %3808 = vmatpush1.msra.mxu0 0.0
            %3809 = vmatprep.subr.mxu0 0.0
            %3810 = vmatpush1.msra.mxu0 0.0
            %3811 = vmatprep.subr.mxu0 0.0
            %3812 = vmatpush1.msra.mxu0 0.0
            %3813 = vmatprep.subr.mxu0 0.0
            %3814 = vmatpush1.msra.mxu0 0.0
            %3815 = vmatprep.subr.mxu0 0.0
            %3816 = vmatpush1.msra.mxu0 0.0
            %3817 = vmatprep.subr.mxu0 0.0
            %3818 = vmatpush1.msra.mxu0 0.0
            %3819 = vmatprep.subr.mxu0 0.0
            %3820 = vmatpush1.msra.mxu0 0.0
            %3821 = vmatprep.subr.mxu0 0.0
            %3822 = vmatpush1.msra.mxu0 0.0
            %3823 = vmatprep.subr.mxu0 0.0
            %3824 = vmatpush1.msra.mxu0 0.0
            %3825 = vmatprep.subr.mxu0 0.0
            %3826 = vmatpush1.msra.mxu0 0.0
            %3827 = vmatprep.subr.mxu0 0.0
            %3828 = vmatpush1.msra.mxu0 0.0
            %3829 = vmatprep.subr.mxu0 0.0
            %3830 = vmatpush1.msra.mxu0 0.0
            %3831 = vmatprep.subr.mxu0 0.0
            %3832 = vmatpush1.msra.mxu0 0.0
            %3833 = vmatprep.subr.mxu0 0.0
            %3834 = vmatpush1.msra.mxu0 0.0
            %3835 = vmatprep.subr.mxu0 0.0
            %3836 = vmatpush1.msra.mxu0 0.0
            %3837 = vmatprep.subr.mxu0 0.0
            %3838 = vmatpush1.msra.mxu0 0.0
            %3839 = vmatprep.subr.mxu0 0.0
            %3840 = vmatpush1.msra.mxu0 0.0
            %3841 = vmatprep.mubr.f32.mxu0 0.0
            %3842 = vmatmul.mubr.f32.gmra.mrb[0].mxu0 %v3775
            %v3843 = vpop.f32.mrb[0].mxu0
            %v3844 = vadd.f32 %v3772, %v3843
            %v3845 = vpop.f32.mrb[0].mxu0
            %3846 = vdwg.mxu0
            %s3847 = sadd.s32 %s2784, 7
            %v3848 = vadd.f32 %v3844, %v3667
            %v3849 = vsel %vm594, %v3848, 0.0
            %3850 = vadd.xlane.f32.xlu0 %v3849
            %v3851 = vpop.xlane.xlu0 %3850
            %v3852 = vmul.f32 %v3851, %v1632
            %v3853 = vmul.f32 %v3848, %v3848
            %v3854 = vsel %vm594, %v3853, 0.0
            %3855 = vadd.xlane.f32.xlu0 %v3854
            %v3856 = vpop.xlane.xlu0 %3855
            %v3857 = vmul.f32 %v3856, %v1632
            %v3858 = vmul.f32 %v3852, %v3852
            %v3859 = vsub.f32 %v3857, %v3858
            %v3860 = vsub.f32 %v3848, %v3852
            %v3861 = vadd.f32 %v3859, 1e-05
            %v3862 = vrsqrt.pop %v3861
            %v3863 = vmul.f32 %v3860, %v3862
            %s3864 = scalar_lea.vmem %s7, %s3847
            %v3865 = vld [vmem:[%s3864] sm:$0x1]
            %v3867 = vlaneseq
            %v3868 = vshrl.u32 %v3867, 7
            %v3869 = vsub.s32 0, %v3868
            %v3870 = vrot.slane %v3865, %v3869
            %v3872 = vmul.f32 %v3863, %v3870
            %s3873 = scalar_lea.vmem %s8, %s3847
            %v3874 = vld [vmem:[%s3873] sm:$0x1]
            %v3876 = vlaneseq
            %v3877 = vshrl.u32 %v3876, 7
            %v3878 = vsub.s32 0, %v3877
            %v3879 = vrot.slane %v3874, %v3878
            %v3881 = vadd.f32 %v3872, %v3879
          $region108: #{perceiver_forward.1} parent=100 // loop_footer
            %s2781 = sadd.s32 1, %s2777
          $region109: #{perceiver_forward.1} parent=100 // loop_footer_branch
            %2776 = sbr.rel target = $region105
          $region110: #{perceiver_forward.1} parent=100 // loop_exit
            _
          %s3882 = scalar_lea.vmem [#allocation7], 64
          %v3883 = vld [vmem:[%s3882] sm:$0xff]
          %v3884 = vld [vmem:[%s3882 + $0x8] sm:$0xff]
          %v3885 = vld [vmem:[%s3882 + $0x10] sm:$0xff]
          %v3886 = vld [vmem:[%s3882 + $0x18] sm:$0xff]
          %s3887 = scalar_lea.vmem %s4, 2
          %v3888 = vld [vmem:[%s3887] sm:$0x1]
          %v3890 = vlaneseq
          %v3891 = vshrl.u32 %v3890, 7
          %v3892 = vsub.s32 0, %v3891
          %v3893 = vrot.slane %v3888, %v3892
          %v3896 = vsel %vm594, %v2782, 0
          %3898 = vmatprep.subr.mxu0 0.0
          %3899 = vmatpush1.msra.mxu0 %v3883
          %3900 = vmatprep.subr.mxu0 0.0
          %3901 = vmatpush1.msra.mxu0 %v3884
          %3902 = vmatprep.subr.mxu0 0.0
          %3903 = vmatpush1.msra.mxu0 %v3885
          %3904 = vmatprep.subr.mxu0 0.0
          %3905 = vmatpush1.msra.mxu0 %v3886
          %3906 = vmatprep.subr.mxu0 0.0
          %3907 = vmatpush1.msra.mxu0 0.0
          %3908 = vmatprep.subr.mxu0 0.0
          %3909 = vmatpush1.msra.mxu0 0.0
          %3910 = vmatprep.subr.mxu0 0.0
          %3911 = vmatpush1.msra.mxu0 0.0
          %3912 = vmatprep.subr.mxu0 0.0
          %3913 = vmatpush1.msra.mxu0 0.0
          %3914 = vmatprep.subr.mxu0 0.0
          %3915 = vmatpush1.msra.mxu0 0.0
          %3916 = vmatprep.subr.mxu0 0.0
          %3917 = vmatpush1.msra.mxu0 0.0
          %3918 = vmatprep.subr.mxu0 0.0
          %3919 = vmatpush1.msra.mxu0 0.0
          %3920 = vmatprep.subr.mxu0 0.0
          %3921 = vmatpush1.msra.mxu0 0.0
          %3922 = vmatprep.subr.mxu0 0.0
          %3923 = vmatpush1.msra.mxu0 0.0
          %3924 = vmatprep.subr.mxu0 0.0
          %3925 = vmatpush1.msra.mxu0 0.0
          %3926 = vmatprep.subr.mxu0 0.0
          %3927 = vmatpush1.msra.mxu0 0.0
          %3928 = vmatprep.subr.mxu0 0.0
          %3929 = vmatpush1.msra.mxu0 0.0
          %3930 = vmatprep.subr.mxu0 0.0
          %3931 = vmatpush1.msra.mxu0 0.0
          %3932 = vmatprep.subr.mxu0 0.0
          %3933 = vmatpush1.msra.mxu0 0.0
          %3934 = vmatprep.subr.mxu0 0.0
          %3935 = vmatpush1.msra.mxu0 0.0
          %3936 = vmatprep.subr.mxu0 0.0
          %3937 = vmatpush1.msra.mxu0 0.0
          %3938 = vmatprep.subr.mxu0 0.0
          %3939 = vmatpush1.msra.mxu0 0.0
          %3940 = vmatprep.subr.mxu0 0.0
          %3941 = vmatpush1.msra.mxu0 0.0
          %3942 = vmatprep.subr.mxu0 0.0
          %3943 = vmatpush1.msra.mxu0 0.0
          %3944 = vmatprep.subr.mxu0 0.0
          %3945 = vmatpush1.msra.mxu0 0.0
          %3946 = vmatprep.subr.mxu0 0.0
          %3947 = vmatpush1.msra.mxu0 0.0
          %3948 = vmatprep.subr.mxu0 0.0
          %3949 = vmatpush1.msra.mxu0 0.0
          %3950 = vmatprep.subr.mxu0 0.0
          %3951 = vmatpush1.msra.mxu0 0.0
          %3952 = vmatprep.subr.mxu0 0.0
          %3953 = vmatpush1.msra.mxu0 0.0
          %3954 = vmatprep.subr.mxu0 0.0
          %3955 = vmatpush1.msra.mxu0 0.0
          %3956 = vmatprep.subr.mxu0 0.0
          %3957 = vmatpush1.msra.mxu0 0.0
          %3958 = vmatprep.subr.mxu0 0.0
          %3959 = vmatpush1.msra.mxu0 0.0
          %3960 = vmatprep.subr.mxu0 0.0
          %3961 = vmatpush1.msra.mxu0 0.0
          %3962 = vmatprep.mubr.f32.mxu0 0.0
          %3963 = vmatmul.mubr.f32.gmra.mrb[0].mxu0 %v3896
          %v3964 = vpop.f32.mrb[0].mxu0
          %v3965 = vadd.f32 %v3893, %v3964
          %v3966 = vpop.f32.mrb[0].mxu0
          %3967 = vdwg.mxu0
          %3969 = vrot.lane.b32.xlu0 %v3965, 96
          %v3970 = vpop.permute.xlu0 %3969
          %v3971 = vsel %vm870, %v3965, 0
          %v3973 = vsel %vm870, %v3970, 0
          %3975 = vmatprep.subr.mxu0 0.0
          %3976 = vmatpush1.xpose.msra.mxu0 %v3973
          %3977 = vmatprep.subr.mxu0 0.0
          %3978 = vmatpush1.xpose.msra.mxu0 0.0
          %3979 = vmatprep.subr.mxu0 0.0
          %3980 = vmatpush1.xpose.msra.mxu0 0.0
          %3981 = vmatprep.subr.mxu0 0.0
          %3982 = vmatpush1.xpose.msra.mxu0 0.0
          %3983 = vmatprep.subr.mxu0 0.0
          %3984 = vmatpush1.xpose.msra.mxu0 0.0
          %3985 = vmatprep.subr.mxu0 0.0
          %3986 = vmatpush1.xpose.msra.mxu0 0.0
          %3987 = vmatprep.subr.mxu0 0.0
          %3988 = vmatpush1.xpose.msra.mxu0 0.0
          %3989 = vmatprep.subr.mxu0 0.0
          %3990 = vmatpush1.xpose.msra.mxu0 0.0
          %3991 = vmatprep.subr.mxu0 0.0
          %3992 = vmatpush1.xpose.msra.mxu0 0.0
          %3993 = vmatprep.subr.mxu0 0.0
          %3994 = vmatpush1.xpose.msra.mxu0 0.0
          %3995 = vmatprep.subr.mxu0 0.0
          %3996 = vmatpush1.xpose.msra.mxu0 0.0
          %3997 = vmatprep.subr.mxu0 0.0
          %3998 = vmatpush1.xpose.msra.mxu0 0.0
          %3999 = vmatprep.subr.mxu0 0.0
          %4000 = vmatpush1.xpose.msra.mxu0 0.0
          %4001 = vmatprep.subr.mxu0 0.0
          %4002 = vmatpush1.xpose.msra.mxu0 0.0
          %4003 = vmatprep.subr.mxu0 0.0
          %4004 = vmatpush1.xpose.msra.mxu0 0.0
          %4005 = vmatprep.subr.mxu0 0.0
          %4006 = vmatpush1.xpose.msra.mxu0 0.0
          %4007 = vmatprep.subr.mxu0 0.0
          %4008 = vmatpush1.xpose.msra.mxu0 0.0
          %4009 = vmatprep.subr.mxu0 0.0
          %4010 = vmatpush1.xpose.msra.mxu0 0.0
          %4011 = vmatprep.subr.mxu0 0.0
          %4012 = vmatpush1.xpose.msra.mxu0 0.0
          %4013 = vmatprep.subr.mxu0 0.0
          %4014 = vmatpush1.xpose.msra.mxu0 0.0
          %4015 = vmatprep.subr.mxu0 0.0
          %4016 = vmatpush1.xpose.msra.mxu0 0.0
          %4017 = vmatprep.subr.mxu0 0.0
          %4018 = vmatpush1.xpose.msra.mxu0 0.0
          %4019 = vmatprep.subr.mxu0 0.0
          %4020 = vmatpush1.xpose.msra.mxu0 0.0
          %4021 = vmatprep.subr.mxu0 0.0
          %4022 = vmatpush1.xpose.msra.mxu0 0.0
          %4023 = vmatprep.subr.mxu0 0.0
          %4024 = vmatpush1.xpose.msra.mxu0 0.0
          %4025 = vmatprep.subr.mxu0 0.0
          %4026 = vmatpush1.xpose.msra.mxu0 0.0
          %4027 = vmatprep.subr.mxu0 0.0
          %4028 = vmatpush1.xpose.msra.mxu0 0.0
          %4029 = vmatprep.subr.mxu0 0.0
          %4030 = vmatpush1.xpose.msra.mxu0 0.0
          %4031 = vmatprep.subr.mxu0 0.0
          %4032 = vmatpush1.xpose.msra.mxu0 0.0
          %4033 = vmatprep.subr.mxu0 0.0
          %4034 = vmatpush1.xpose.msra.mxu0 0.0
          %4035 = vmatprep.subr.mxu0 0.0
          %4036 = vmatpush1.xpose.msra.mxu0 0.0
          %4037 = vmatprep.subr.mxu0 0.0
          %4038 = vmatpush1.xpose.msra.mxu0 0.0
          %4039 = vmatprep.mubr.f32.mxu0 0.0
          %4040 = vmatmul.mubr.f32.gmra.mrb[0].mxu0 %v3971
          %v4041 = vpop.f32.mrb[0].mxu0
          %v4042 = vadd.f32 %v562, %v4041
          %v4043 = vpop.f32.mrb[0].mxu0
          %4044 = vdwg.mxu0
          %v4045 = vsel %vm870, %v4042, -inf
          %4046 = vmax.xlane.f32.xlu0 %v4045
          %v4047 = vpop.xlane.xlu0 %4046
          %v4048 = vsub.f32 %v4042, %v4047
          %v4049 = vmul.f32 %v4048, 1.442695
          %v4050 = vpow.pop %v4049
          %v4051 = vsel %vm870, %v4050, 0.0
          %4052 = vadd.xlane.f32.xlu0 %v4051
          %v4053 = vpop.xlane.xlu0 %4052
          %v4054 = vrcp.pop %v4053
          %v4055 = vmul.f32 %v4050, %v4054
          %4056 = vrot.lane.b32.xlu0 %v3965, 64
          %v4057 = vpop.permute.xlu0 %4056
          %v4060 = vsel %vm870, %v4055, 0
          %4062 = vmatprep.subr.mxu0 0.0
          %4063 = vmatpush1.msra.mxu0 %v4057
          %4064 = vmatprep.subr.mxu0 0.0
          %4065 = vmatpush1.msra.mxu0 0.0
          %4066 = vmatprep.subr.mxu0 0.0
          %4067 = vmatpush1.msra.mxu0 0.0
          %4068 = vmatprep.subr.mxu0 0.0
          %4069 = vmatpush1.msra.mxu0 0.0
          %4070 = vmatprep.subr.mxu0 0.0
          %4071 = vmatpush1.msra.mxu0 0.0
          %4072 = vmatprep.subr.mxu0 0.0
          %4073 = vmatpush1.msra.mxu0 0.0
          %4074 = vmatprep.subr.mxu0 0.0
          %4075 = vmatpush1.msra.mxu0 0.0
          %4076 = vmatprep.subr.mxu0 0.0
          %4077 = vmatpush1.msra.mxu0 0.0
          %4078 = vmatprep.subr.mxu0 0.0
          %4079 = vmatpush1.msra.mxu0 0.0
          %4080 = vmatprep.subr.mxu0 0.0
          %4081 = vmatpush1.msra.mxu0 0.0
          %4082 = vmatprep.subr.mxu0 0.0
          %4083 = vmatpush1.msra.mxu0 0.0
          %4084 = vmatprep.subr.mxu0 0.0
          %4085 = vmatpush1.msra.mxu0 0.0
          %4086 = vmatprep.subr.mxu0 0.0
          %4087 = vmatpush1.msra.mxu0 0.0
          %4088 = vmatprep.subr.mxu0 0.0
          %4089 = vmatpush1.msra.mxu0 0.0
          %4090 = vmatprep.subr.mxu0 0.0
          %4091 = vmatpush1.msra.mxu0 0.0
          %4092 = vmatprep.subr.mxu0 0.0
          %4093 = vmatpush1.msra.mxu0 0.0
          %4094 = vmatprep.subr.mxu0 0.0
          %4095 = vmatpush1.msra.mxu0 0.0
          %4096 = vmatprep.subr.mxu0 0.0
          %4097 = vmatpush1.msra.mxu0 0.0
          %4098 = vmatprep.subr.mxu0 0.0
          %4099 = vmatpush1.msra.mxu0 0.0
          %4100 = vmatprep.subr.mxu0 0.0
          %4101 = vmatpush1.msra.mxu0 0.0
          %4102 = vmatprep.subr.mxu0 0.0
          %4103 = vmatpush1.msra.mxu0 0.0
          %4104 = vmatprep.subr.mxu0 0.0
          %4105 = vmatpush1.msra.mxu0 0.0
          %4106 = vmatprep.subr.mxu0 0.0
          %4107 = vmatpush1.msra.mxu0 0.0
          %4108 = vmatprep.subr.mxu0 0.0
          %4109 = vmatpush1.msra.mxu0 0.0
          %4110 = vmatprep.subr.mxu0 0.0
          %4111 = vmatpush1.msra.mxu0 0.0
          %4112 = vmatprep.subr.mxu0 0.0
          %4113 = vmatpush1.msra.mxu0 0.0
          %4114 = vmatprep.subr.mxu0 0.0
          %4115 = vmatpush1.msra.mxu0 0.0
          %4116 = vmatprep.subr.mxu0 0.0
          %4117 = vmatpush1.msra.mxu0 0.0
          %4118 = vmatprep.subr.mxu0 0.0
          %4119 = vmatpush1.msra.mxu0 0.0
          %4120 = vmatprep.subr.mxu0 0.0
          %4121 = vmatpush1.msra.mxu0 0.0
          %4122 = vmatprep.subr.mxu0 0.0
          %4123 = vmatpush1.msra.mxu0 0.0
          %4124 = vmatprep.subr.mxu0 0.0
          %4125 = vmatpush1.msra.mxu0 0.0
          %4126 = vmatprep.mubr.f32.mxu0 0.0
          %4127 = vmatmul.mubr.f32.gmra.mrb[0].mxu0 %v4060
          %v4128 = vpop.f32.mrb[0].mxu0
          %v4129 = vadd.f32 0.0, %v4128
          %v4130 = vpop.f32.mrb[0].mxu0
          %4131 = vdwg.mxu0
          %4132 = vrot.lane.b32.xlu0 %v3965, 120
          %v4133 = vpop.permute.xlu0 %4132
          %4134 = vrot.lane.b32.xlu0 %v3965, 88
          %v4135 = vpop.permute.xlu0 %4134
          %v4136 = vsel %vm870, %v4133, 0
          %v4138 = vsel %vm870, %v4135, 0
          %4140 = vmatprep.subr.mxu0 0.0
          %4141 = vmatpush1.xpose.msra.mxu0 %v4138
          %4142 = vmatprep.subr.mxu0 0.0
          %4143 = vmatpush1.xpose.msra.mxu0 0.0
          %4144 = vmatprep.subr.mxu0 0.0
          %4145 = vmatpush1.xpose.msra.mxu0 0.0
          %4146 = vmatprep.subr.mxu0 0.0
          %4147 = vmatpush1.xpose.msra.mxu0 0.0
          %4148 = vmatprep.subr.mxu0 0.0
          %4149 = vmatpush1.xpose.msra.mxu0 0.0
          %4150 = vmatprep.subr.mxu0 0.0
          %4151 = vmatpush1.xpose.msra.mxu0 0.0
          %4152 = vmatprep.subr.mxu0 0.0
          %4153 = vmatpush1.xpose.msra.mxu0 0.0
          %4154 = vmatprep.subr.mxu0 0.0
          %4155 = vmatpush1.xpose.msra.mxu0 0.0
          %4156 = vmatprep.subr.mxu0 0.0
          %4157 = vmatpush1.xpose.msra.mxu0 0.0
          %4158 = vmatprep.subr.mxu0 0.0
          %4159 = vmatpush1.xpose.msra.mxu0 0.0
          %4160 = vmatprep.subr.mxu0 0.0
          %4161 = vmatpush1.xpose.msra.mxu0 0.0
          %4162 = vmatprep.subr.mxu0 0.0
          %4163 = vmatpush1.xpose.msra.mxu0 0.0
          %4164 = vmatprep.subr.mxu0 0.0
          %4165 = vmatpush1.xpose.msra.mxu0 0.0
          %4166 = vmatprep.subr.mxu0 0.0
          %4167 = vmatpush1.xpose.msra.mxu0 0.0
          %4168 = vmatprep.subr.mxu0 0.0
          %4169 = vmatpush1.xpose.msra.mxu0 0.0
          %4170 = vmatprep.subr.mxu0 0.0
          %4171 = vmatpush1.xpose.msra.mxu0 0.0
          %4172 = vmatprep.subr.mxu0 0.0
          %4173 = vmatpush1.xpose.msra.mxu0 0.0
          %4174 = vmatprep.subr.mxu0 0.0
          %4175 = vmatpush1.xpose.msra.mxu0 0.0
          %4176 = vmatprep.subr.mxu0 0.0
          %4177 = vmatpush1.xpose.msra.mxu0 0.0
          %4178 = vmatprep.subr.mxu0 0.0
          %4179 = vmatpush1.xpose.msra.mxu0 0.0
          %4180 = vmatprep.subr.mxu0 0.0
          %4181 = vmatpush1.xpose.msra.mxu0 0.0
          %4182 = vmatprep.subr.mxu0 0.0
          %4183 = vmatpush1.xpose.msra.mxu0 0.0
          %4184 = vmatprep.subr.mxu0 0.0
          %4185 = vmatpush1.xpose.msra.mxu0 0.0
          %4186 = vmatprep.subr.mxu0 0.0
          %4187 = vmatpush1.xpose.msra.mxu0 0.0
          %4188 = vmatprep.subr.mxu0 0.0
          %4189 = vmatpush1.xpose.msra.mxu0 0.0
          %4190 = vmatprep.subr.mxu0 0.0
          %4191 = vmatpush1.xpose.msra.mxu0 0.0
          %4192 = vmatprep.subr.mxu0 0.0
          %4193 = vmatpush1.xpose.msra.mxu0 0.0
          %4194 = vmatprep.subr.mxu0 0.0
          %4195 = vmatpush1.xpose.msra.mxu0 0.0
          %4196 = vmatprep.subr.mxu0 0.0
          %4197 = vmatpush1.xpose.msra.mxu0 0.0
          %4198 = vmatprep.subr.mxu0 0.0
          %4199 = vmatpush1.xpose.msra.mxu0 0.0
          %4200 = vmatprep.subr.mxu0 0.0
          %4201 = vmatpush1.xpose.msra.mxu0 0.0
          %4202 = vmatprep.subr.mxu0 0.0
          %4203 = vmatpush1.xpose.msra.mxu0 0.0
          %4204 = vmatprep.mubr.f32.mxu0 0.0
          %4205 = vmatmul.mubr.f32.gmra.mrb[0].mxu0 %v4136
          %v4206 = vpop.f32.mrb[0].mxu0
          %v4207 = vadd.f32 %v562, %v4206
          %v4208 = vpop.f32.mrb[0].mxu0
          %4209 = vdwg.mxu0
          %v4210 = vsel %vm870, %v4207, -inf
          %4211 = vmax.xlane.f32.xlu0 %v4210
          %v4212 = vpop.xlane.xlu0 %4211
          %v4213 = vsub.f32 %v4207, %v4212
          %v4214 = vmul.f32 %v4213, 1.442695
          %v4215 = vpow.pop %v4214
          %v4216 = vsel %vm870, %v4215, 0.0
          %4217 = vadd.xlane.f32.xlu0 %v4216
          %v4218 = vpop.xlane.xlu0 %4217
          %v4219 = vrcp.pop %v4218
          %v4220 = vmul.f32 %v4215, %v4219
          %4221 = vrot.lane.b32.xlu0 %v3965, 56
          %v4222 = vpop.permute.xlu0 %4221
          %v4225 = vsel %vm870, %v4220, 0
          %4227 = vmatprep.subr.mxu0 0.0
          %4228 = vmatpush1.msra.mxu0 %v4222
          %4229 = vmatprep.subr.mxu0 0.0
          %4230 = vmatpush1.msra.mxu0 0.0
          %4231 = vmatprep.subr.mxu0 0.0
          %4232 = vmatpush1.msra.mxu0 0.0
          %4233 = vmatprep.subr.mxu0 0.0
          %4234 = vmatpush1.msra.mxu0 0.0
          %4235 = vmatprep.subr.mxu0 0.0
          %4236 = vmatpush1.msra.mxu0 0.0
          %4237 = vmatprep.subr.mxu0 0.0
          %4238 = vmatpush1.msra.mxu0 0.0
          %4239 = vmatprep.subr.mxu0 0.0
          %4240 = vmatpush1.msra.mxu0 0.0
          %4241 = vmatprep.subr.mxu0 0.0
          %4242 = vmatpush1.msra.mxu0 0.0
          %4243 = vmatprep.subr.mxu0 0.0
          %4244 = vmatpush1.msra.mxu0 0.0
          %4245 = vmatprep.subr.mxu0 0.0
          %4246 = vmatpush1.msra.mxu0 0.0
          %4247 = vmatprep.subr.mxu0 0.0
          %4248 = vmatpush1.msra.mxu0 0.0
          %4249 = vmatprep.subr.mxu0 0.0
          %4250 = vmatpush1.msra.mxu0 0.0
          %4251 = vmatprep.subr.mxu0 0.0
          %4252 = vmatpush1.msra.mxu0 0.0
          %4253 = vmatprep.subr.mxu0 0.0
          %4254 = vmatpush1.msra.mxu0 0.0
          %4255 = vmatprep.subr.mxu0 0.0
          %4256 = vmatpush1.msra.mxu0 0.0
          %4257 = vmatprep.subr.mxu0 0.0
          %4258 = vmatpush1.msra.mxu0 0.0
          %4259 = vmatprep.subr.mxu0 0.0
          %4260 = vmatpush1.msra.mxu0 0.0
          %4261 = vmatprep.subr.mxu0 0.0
          %4262 = vmatpush1.msra.mxu0 0.0
          %4263 = vmatprep.subr.mxu0 0.0
          %4264 = vmatpush1.msra.mxu0 0.0
          %4265 = vmatprep.subr.mxu0 0.0
          %4266 = vmatpush1.msra.mxu0 0.0
          %4267 = vmatprep.subr.mxu0 0.0
          %4268 = vmatpush1.msra.mxu0 0.0
          %4269 = vmatprep.subr.mxu0 0.0
          %4270 = vmatpush1.msra.mxu0 0.0
          %4271 = vmatprep.subr.mxu0 0.0
          %4272 = vmatpush1.msra.mxu0 0.0
          %4273 = vmatprep.subr.mxu0 0.0
          %4274 = vmatpush1.msra.mxu0 0.0
          %4275 = vmatprep.subr.mxu0 0.0
          %4276 = vmatpush1.msra.mxu0 0.0
          %4277 = vmatprep.subr.mxu0 0.0
          %4278 = vmatpush1.msra.mxu0 0.0
          %4279 = vmatprep.subr.mxu0 0.0
          %4280 = vmatpush1.msra.mxu0 0.0
          %4281 = vmatprep.subr.mxu0 0.0
          %4282 = vmatpush1.msra.mxu0 0.0
          %4283 = vmatprep.subr.mxu0 0.0
          %4284 = vmatpush1.msra.mxu0 0.0
          %4285 = vmatprep.subr.mxu0 0.0
          %4286 = vmatpush1.msra.mxu0 0.0
          %4287 = vmatprep.subr.mxu0 0.0
          %4288 = vmatpush1.msra.mxu0 0.0
          %4289 = vmatprep.subr.mxu0 0.0
          %4290 = vmatpush1.msra.mxu0 0.0
          %4291 = vmatprep.mubr.f32.mxu0 0.0
          %4292 = vmatmul.mubr.f32.gmra.mrb[0].mxu0 %v4225
          %v4293 = vpop.f32.mrb[0].mxu0
          %v4294 = vadd.f32 0.0, %v4293
          %v4295 = vpop.f32.mrb[0].mxu0
          %4296 = vdwg.mxu0
          %4297 = vrot.lane.b32.xlu0 %v3965, 112
          %v4298 = vpop.permute.xlu0 %4297
          %4299 = vrot.lane.b32.xlu0 %v3965, 80
          %v4300 = vpop.permute.xlu0 %4299
          %v4301 = vsel %vm870, %v4298, 0
          %v4303 = vsel %vm870, %v4300, 0
          %4305 = vmatprep.subr.mxu0 0.0
          %4306 = vmatpush1.xpose.msra.mxu0 %v4303
          %4307 = vmatprep.subr.mxu0 0.0
          %4308 = vmatpush1.xpose.msra.mxu0 0.0
          %4309 = vmatprep.subr.mxu0 0.0
          %4310 = vmatpush1.xpose.msra.mxu0 0.0
          %4311 = vmatprep.subr.mxu0 0.0
          %4312 = vmatpush1.xpose.msra.mxu0 0.0
          %4313 = vmatprep.subr.mxu0 0.0
          %4314 = vmatpush1.xpose.msra.mxu0 0.0
          %4315 = vmatprep.subr.mxu0 0.0
          %4316 = vmatpush1.xpose.msra.mxu0 0.0
          %4317 = vmatprep.subr.mxu0 0.0
          %4318 = vmatpush1.xpose.msra.mxu0 0.0
          %4319 = vmatprep.subr.mxu0 0.0
          %4320 = vmatpush1.xpose.msra.mxu0 0.0
          %4321 = vmatprep.subr.mxu0 0.0
          %4322 = vmatpush1.xpose.msra.mxu0 0.0
          %4323 = vmatprep.subr.mxu0 0.0
          %4324 = vmatpush1.xpose.msra.mxu0 0.0
          %4325 = vmatprep.subr.mxu0 0.0
          %4326 = vmatpush1.xpose.msra.mxu0 0.0
          %4327 = vmatprep.subr.mxu0 0.0
          %4328 = vmatpush1.xpose.msra.mxu0 0.0
          %4329 = vmatprep.subr.mxu0 0.0
          %4330 = vmatpush1.xpose.msra.mxu0 0.0
          %4331 = vmatprep.subr.mxu0 0.0
          %4332 = vmatpush1.xpose.msra.mxu0 0.0
          %4333 = vmatprep.subr.mxu0 0.0
          %4334 = vmatpush1.xpose.msra.mxu0 0.0
          %4335 = vmatprep.subr.mxu0 0.0
          %4336 = vmatpush1.xpose.msra.mxu0 0.0
          %4337 = vmatprep.subr.mxu0 0.0
          %4338 = vmatpush1.xpose.msra.mxu0 0.0
          %4339 = vmatprep.subr.mxu0 0.0
          %4340 = vmatpush1.xpose.msra.mxu0 0.0
          %4341 = vmatprep.subr.mxu0 0.0
          %4342 = vmatpush1.xpose.msra.mxu0 0.0
          %4343 = vmatprep.subr.mxu0 0.0
          %4344 = vmatpush1.xpose.msra.mxu0 0.0
          %4345 = vmatprep.subr.mxu0 0.0
          %4346 = vmatpush1.xpose.msra.mxu0 0.0
          %4347 = vmatprep.subr.mxu0 0.0
          %4348 = vmatpush1.xpose.msra.mxu0 0.0
          %4349 = vmatprep.subr.mxu0 0.0
          %4350 = vmatpush1.xpose.msra.mxu0 0.0
          %4351 = vmatprep.subr.mxu0 0.0
          %4352 = vmatpush1.xpose.msra.mxu0 0.0
          %4353 = vmatprep.subr.mxu0 0.0
          %4354 = vmatpush1.xpose.msra.mxu0 0.0
          %4355 = vmatprep.subr.mxu0 0.0
          %4356 = vmatpush1.xpose.msra.mxu0 0.0
          %4357 = vmatprep.subr.mxu0 0.0
          %4358 = vmatpush1.xpose.msra.mxu0 0.0
          %4359 = vmatprep.subr.mxu0 0.0
          %4360 = vmatpush1.xpose.msra.mxu0 0.0
          %4361 = vmatprep.subr.mxu0 0.0
          %4362 = vmatpush1.xpose.msra.mxu0 0.0
          %4363 = vmatprep.subr.mxu0 0.0
          %4364 = vmatpush1.xpose.msra.mxu0 0.0
          %4365 = vmatprep.subr.mxu0 0.0
          %4366 = vmatpush1.xpose.msra.mxu0 0.0
          %4367 = vmatprep.subr.mxu0 0.0
          %4368 = vmatpush1.xpose.msra.mxu0 0.0
          %4369 = vmatprep.mubr.f32.mxu0 0.0
          %4370 = vmatmul.mubr.f32.gmra.mrb[0].mxu0 %v4301
          %v4371 = vpop.f32.mrb[0].mxu0
          %v4372 = vadd.f32 %v562, %v4371
          %v4373 = vpop.f32.mrb[0].mxu0
          %4374 = vdwg.mxu0
          %v4375 = vsel %vm870, %v4372, -inf
          %4376 = vmax.xlane.f32.xlu0 %v4375
          %v4377 = vpop.xlane.xlu0 %4376
          %v4378 = vsub.f32 %v4372, %v4377
          %v4379 = vmul.f32 %v4378, 1.442695
          %v4380 = vpow.pop %v4379
          %v4381 = vsel %vm870, %v4380, 0.0
          %4382 = vadd.xlane.f32.xlu0 %v4381
          %v4383 = vpop.xlane.xlu0 %4382
          %v4384 = vrcp.pop %v4383
          %v4385 = vmul.f32 %v4380, %v4384
          %4386 = vrot.lane.b32.xlu0 %v3965, 48
          %v4387 = vpop.permute.xlu0 %4386
          %v4390 = vsel %vm870, %v4385, 0
          %4392 = vmatprep.subr.mxu0 0.0
          %4393 = vmatpush1.msra.mxu0 %v4387
          %4394 = vmatprep.subr.mxu0 0.0
          %4395 = vmatpush1.msra.mxu0 0.0
          %4396 = vmatprep.subr.mxu0 0.0
          %4397 = vmatpush1.msra.mxu0 0.0
          %4398 = vmatprep.subr.mxu0 0.0
          %4399 = vmatpush1.msra.mxu0 0.0
          %4400 = vmatprep.subr.mxu0 0.0
          %4401 = vmatpush1.msra.mxu0 0.0
          %4402 = vmatprep.subr.mxu0 0.0
          %4403 = vmatpush1.msra.mxu0 0.0
          %4404 = vmatprep.subr.mxu0 0.0
          %4405 = vmatpush1.msra.mxu0 0.0
          %4406 = vmatprep.subr.mxu0 0.0
          %4407 = vmatpush1.msra.mxu0 0.0
          %4408 = vmatprep.subr.mxu0 0.0
          %4409 = vmatpush1.msra.mxu0 0.0
          %4410 = vmatprep.subr.mxu0 0.0
          %4411 = vmatpush1.msra.mxu0 0.0
          %4412 = vmatprep.subr.mxu0 0.0
          %4413 = vmatpush1.msra.mxu0 0.0
          %4414 = vmatprep.subr.mxu0 0.0
          %4415 = vmatpush1.msra.mxu0 0.0
          %4416 = vmatprep.subr.mxu0 0.0
          %4417 = vmatpush1.msra.mxu0 0.0
          %4418 = vmatprep.subr.mxu0 0.0
          %4419 = vmatpush1.msra.mxu0 0.0
          %4420 = vmatprep.subr.mxu0 0.0
          %4421 = vmatpush1.msra.mxu0 0.0
          %4422 = vmatprep.subr.mxu0 0.0
          %4423 = vmatpush1.msra.mxu0 0.0
          %4424 = vmatprep.subr.mxu0 0.0
          %4425 = vmatpush1.msra.mxu0 0.0
          %4426 = vmatprep.subr.mxu0 0.0
          %4427 = vmatpush1.msra.mxu0 0.0
          %4428 = vmatprep.subr.mxu0 0.0
          %4429 = vmatpush1.msra.mxu0 0.0
          %4430 = vmatprep.subr.mxu0 0.0
          %4431 = vmatpush1.msra.mxu0 0.0
          %4432 = vmatprep.subr.mxu0 0.0
          %4433 = vmatpush1.msra.mxu0 0.0
          %4434 = vmatprep.subr.mxu0 0.0
          %4435 = vmatpush1.msra.mxu0 0.0
          %4436 = vmatprep.subr.mxu0 0.0
          %4437 = vmatpush1.msra.mxu0 0.0
          %4438 = vmatprep.subr.mxu0 0.0
          %4439 = vmatpush1.msra.mxu0 0.0
          %4440 = vmatprep.subr.mxu0 0.0
          %4441 = vmatpush1.msra.mxu0 0.0
          %4442 = vmatprep.subr.mxu0 0.0
          %4443 = vmatpush1.msra.mxu0 0.0
          %4444 = vmatprep.subr.mxu0 0.0
          %4445 = vmatpush1.msra.mxu0 0.0
          %4446 = vmatprep.subr.mxu0 0.0
          %4447 = vmatpush1.msra.mxu0 0.0
          %4448 = vmatprep.subr.mxu0 0.0
          %4449 = vmatpush1.msra.mxu0 0.0
          %4450 = vmatprep.subr.mxu0 0.0
          %4451 = vmatpush1.msra.mxu0 0.0
          %4452 = vmatprep.subr.mxu0 0.0
          %4453 = vmatpush1.msra.mxu0 0.0
          %4454 = vmatprep.subr.mxu0 0.0
          %4455 = vmatpush1.msra.mxu0 0.0
          %4456 = vmatprep.mubr.f32.mxu0 0.0
          %4457 = vmatmul.mubr.f32.gmra.mrb[0].mxu0 %v4390
          %v4458 = vpop.f32.mrb[0].mxu0
          %v4459 = vadd.f32 0.0, %v4458
          %v4460 = vpop.f32.mrb[0].mxu0
          %4461 = vdwg.mxu0
          %4462 = vrot.lane.b32.xlu0 %v3965, 104
          %v4463 = vpop.permute.xlu0 %4462
          %4464 = vrot.lane.b32.xlu0 %v3965, 72
          %v4465 = vpop.permute.xlu0 %4464
          %v4466 = vsel %vm870, %v4463, 0
          %v4468 = vsel %vm870, %v4465, 0
          %4470 = vmatprep.subr.mxu0 0.0
          %4471 = vmatpush1.xpose.msra.mxu0 %v4468
          %4472 = vmatprep.subr.mxu0 0.0
          %4473 = vmatpush1.xpose.msra.mxu0 0.0
          %4474 = vmatprep.subr.mxu0 0.0
          %4475 = vmatpush1.xpose.msra.mxu0 0.0
          %4476 = vmatprep.subr.mxu0 0.0
          %4477 = vmatpush1.xpose.msra.mxu0 0.0
          %4478 = vmatprep.subr.mxu0 0.0
          %4479 = vmatpush1.xpose.msra.mxu0 0.0
          %4480 = vmatprep.subr.mxu0 0.0
          %4481 = vmatpush1.xpose.msra.mxu0 0.0
          %4482 = vmatprep.subr.mxu0 0.0
          %4483 = vmatpush1.xpose.msra.mxu0 0.0
          %4484 = vmatprep.subr.mxu0 0.0
          %4485 = vmatpush1.xpose.msra.mxu0 0.0
          %4486 = vmatprep.subr.mxu0 0.0
          %4487 = vmatpush1.xpose.msra.mxu0 0.0
          %4488 = vmatprep.subr.mxu0 0.0
          %4489 = vmatpush1.xpose.msra.mxu0 0.0
          %4490 = vmatprep.subr.mxu0 0.0
          %4491 = vmatpush1.xpose.msra.mxu0 0.0
          %4492 = vmatprep.subr.mxu0 0.0
          %4493 = vmatpush1.xpose.msra.mxu0 0.0
          %4494 = vmatprep.subr.mxu0 0.0
          %4495 = vmatpush1.xpose.msra.mxu0 0.0
          %4496 = vmatprep.subr.mxu0 0.0
          %4497 = vmatpush1.xpose.msra.mxu0 0.0
          %4498 = vmatprep.subr.mxu0 0.0
          %4499 = vmatpush1.xpose.msra.mxu0 0.0
          %4500 = vmatprep.subr.mxu0 0.0
          %4501 = vmatpush1.xpose.msra.mxu0 0.0
          %4502 = vmatprep.subr.mxu0 0.0
          %4503 = vmatpush1.xpose.msra.mxu0 0.0
          %4504 = vmatprep.subr.mxu0 0.0
          %4505 = vmatpush1.xpose.msra.mxu0 0.0
          %4506 = vmatprep.subr.mxu0 0.0
          %4507 = vmatpush1.xpose.msra.mxu0 0.0
          %4508 = vmatprep.subr.mxu0 0.0
          %4509 = vmatpush1.xpose.msra.mxu0 0.0
          %4510 = vmatprep.subr.mxu0 0.0
          %4511 = vmatpush1.xpose.msra.mxu0 0.0
          %4512 = vmatprep.subr.mxu0 0.0
          %4513 = vmatpush1.xpose.msra.mxu0 0.0
          %4514 = vmatprep.subr.mxu0 0.0
          %4515 = vmatpush1.xpose.msra.mxu0 0.0
          %4516 = vmatprep.subr.mxu0 0.0
          %4517 = vmatpush1.xpose.msra.mxu0 0.0
          %4518 = vmatprep.subr.mxu0 0.0
          %4519 = vmatpush1.xpose.msra.mxu0 0.0
          %4520 = vmatprep.subr.mxu0 0.0
          %4521 = vmatpush1.xpose.msra.mxu0 0.0
          %4522 = vmatprep.subr.mxu0 0.0
          %4523 = vmatpush1.xpose.msra.mxu0 0.0
          %4524 = vmatprep.subr.mxu0 0.0
          %4525 = vmatpush1.xpose.msra.mxu0 0.0
          %4526 = vmatprep.subr.mxu0 0.0
          %4527 = vmatpush1.xpose.msra.mxu0 0.0
          %4528 = vmatprep.subr.mxu0 0.0
          %4529 = vmatpush1.xpose.msra.mxu0 0.0
          %4530 = vmatprep.subr.mxu0 0.0
          %4531 = vmatpush1.xpose.msra.mxu0 0.0
          %4532 = vmatprep.subr.mxu0 0.0
          %4533 = vmatpush1.xpose.msra.mxu0 0.0
          %4534 = vmatprep.mubr.f32.mxu0 0.0
          %4535 = vmatmul.mubr.f32.gmra.mrb[0].mxu0 %v4466
          %v4536 = vpop.f32.mrb[0].mxu0
          %v4537 = vadd.f32 %v562, %v4536
          %v4538 = vpop.f32.mrb[0].mxu0
          %4539 = vdwg.mxu0
          %v4540 = vsel %vm870, %v4537, -inf
          %4541 = vmax.xlane.f32.xlu0 %v4540
          %v4542 = vpop.xlane.xlu0 %4541
          %v4543 = vsub.f32 %v4537, %v4542
          %v4544 = vmul.f32 %v4543, 1.442695
          %v4545 = vpow.pop %v4544
          %v4546 = vsel %vm870, %v4545, 0.0
          %4547 = vadd.xlane.f32.xlu0 %v4546
          %v4548 = vpop.xlane.xlu0 %4547
          %v4549 = vrcp.pop %v4548
          %v4550 = vmul.f32 %v4545, %v4549
          %4551 = vrot.lane.b32.xlu0 %v3965, 40
          %v4552 = vpop.permute.xlu0 %4551
          %v4555 = vsel %vm870, %v4550, 0
          %4557 = vmatprep.subr.mxu0 0.0
          %4558 = vmatpush1.msra.mxu0 %v4552
          %4559 = vmatprep.subr.mxu0 0.0
          %4560 = vmatpush1.msra.mxu0 0.0
          %4561 = vmatprep.subr.mxu0 0.0
          %4562 = vmatpush1.msra.mxu0 0.0
          %4563 = vmatprep.subr.mxu0 0.0
          %4564 = vmatpush1.msra.mxu0 0.0
          %4565 = vmatprep.subr.mxu0 0.0
          %4566 = vmatpush1.msra.mxu0 0.0
          %4567 = vmatprep.subr.mxu0 0.0
          %4568 = vmatpush1.msra.mxu0 0.0
          %4569 = vmatprep.subr.mxu0 0.0
          %4570 = vmatpush1.msra.mxu0 0.0
          %4571 = vmatprep.subr.mxu0 0.0
          %4572 = vmatpush1.msra.mxu0 0.0
          %4573 = vmatprep.subr.mxu0 0.0
          %4574 = vmatpush1.msra.mxu0 0.0
          %4575 = vmatprep.subr.mxu0 0.0
          %4576 = vmatpush1.msra.mxu0 0.0
          %4577 = vmatprep.subr.mxu0 0.0
          %4578 = vmatpush1.msra.mxu0 0.0
          %4579 = vmatprep.subr.mxu0 0.0
          %4580 = vmatpush1.msra.mxu0 0.0
          %4581 = vmatprep.subr.mxu0 0.0
          %4582 = vmatpush1.msra.mxu0 0.0
          %4583 = vmatprep.subr.mxu0 0.0
          %4584 = vmatpush1.msra.mxu0 0.0
          %4585 = vmatprep.subr.mxu0 0.0
          %4586 = vmatpush1.msra.mxu0 0.0
          %4587 = vmatprep.subr.mxu0 0.0
          %4588 = vmatpush1.msra.mxu0 0.0
          %4589 = vmatprep.subr.mxu0 0.0
          %4590 = vmatpush1.msra.mxu0 0.0
          %4591 = vmatprep.subr.mxu0 0.0
          %4592 = vmatpush1.msra.mxu0 0.0
          %4593 = vmatprep.subr.mxu0 0.0
          %4594 = vmatpush1.msra.mxu0 0.0
          %4595 = vmatprep.subr.mxu0 0.0
          %4596 = vmatpush1.msra.mxu0 0.0
          %4597 = vmatprep.subr.mxu0 0.0
          %4598 = vmatpush1.msra.mxu0 0.0
          %4599 = vmatprep.subr.mxu0 0.0
          %4600 = vmatpush1.msra.mxu0 0.0
          %4601 = vmatprep.subr.mxu0 0.0
          %4602 = vmatpush1.msra.mxu0 0.0
          %4603 = vmatprep.subr.mxu0 0.0
          %4604 = vmatpush1.msra.mxu0 0.0
          %4605 = vmatprep.subr.mxu0 0.0
          %4606 = vmatpush1.msra.mxu0 0.0
          %4607 = vmatprep.subr.mxu0 0.0
          %4608 = vmatpush1.msra.mxu0 0.0
          %4609 = vmatprep.subr.mxu0 0.0
          %4610 = vmatpush1.msra.mxu0 0.0
          %4611 = vmatprep.subr.mxu0 0.0
          %4612 = vmatpush1.msra.mxu0 0.0
          %4613 = vmatprep.subr.mxu0 0.0
          %4614 = vmatpush1.msra.mxu0 0.0
          %4615 = vmatprep.subr.mxu0 0.0
          %4616 = vmatpush1.msra.mxu0 0.0
          %4617 = vmatprep.subr.mxu0 0.0
          %4618 = vmatpush1.msra.mxu0 0.0
          %4619 = vmatprep.subr.mxu0 0.0
          %4620 = vmatpush1.msra.mxu0 0.0
          %4621 = vmatprep.mubr.f32.mxu0 0.0
          %4622 = vmatmul.mubr.f32.gmra.mrb[0].mxu0 %v4555
          %v4623 = vpop.f32.mrb[0].mxu0
          %v4624 = vadd.f32 0.0, %v4623
          %v4625 = vpop.f32.mrb[0].mxu0
          %4626 = vdwg.mxu0
          %4628 = vrot.lane.b32.xlu0 %v4294, 8
          %v4629 = vpop.permute.xlu0 %4628
          %4632 = vrot.lane.b32.xlu0 %v4459, 16
          %v4633 = vpop.permute.xlu0 %4632
          %4636 = vrot.lane.b32.xlu0 %v4624, 24
          %v4637 = vpop.permute.xlu0 %4636
          %v4639 = vsel %vm870, %v4129, %v4629
          %v4640 = vsel %vm1540, %v4639, %v4633
          %v4641 = vsel %vm1542, %v4640, %v4637
          %s4642 = scalar_lea.vmem [#allocation8], 64
          %v4643 = vld [vmem:[%s4642] sm:$0xff]
          %v4644 = vld [vmem:[%s4642 + $0x8] sm:$0xff]
          %v4645 = vld [vmem:[%s4642 + $0x10] sm:$0xff]
          %v4646 = vld [vmem:[%s4642 + $0x18] sm:$0xff]
          %s4647 = scalar_lea.vmem %s6, 2
          %v4648 = vld [vmem:[%s4647] sm:$0x1]
          %v4650 = vlaneseq
          %v4651 = vshrl.u32 %v4650, 7
          %v4652 = vsub.s32 0, %v4651
          %v4653 = vrot.slane %v4648, %v4652
          %v4656 = vsel %vm594, %v4641, 0
          %4658 = vmatprep.subr.mxu0 0.0
          %4659 = vmatpush1.msra.mxu0 %v4643
          %4660 = vmatprep.subr.mxu0 0.0
          %4661 = vmatpush1.msra.mxu0 %v4644
          %4662 = vmatprep.subr.mxu0 0.0
          %4663 = vmatpush1.msra.mxu0 %v4645
          %4664 = vmatprep.subr.mxu0 0.0
          %4665 = vmatpush1.msra.mxu0 %v4646
          %4666 = vmatprep.subr.mxu0 0.0
          %4667 = vmatpush1.msra.mxu0 0.0
          %4668 = vmatprep.subr.mxu0 0.0
          %4669 = vmatpush1.msra.mxu0 0.0
          %4670 = vmatprep.subr.mxu0 0.0
          %4671 = vmatpush1.msra.mxu0 0.0
          %4672 = vmatprep.subr.mxu0 0.0
          %4673 = vmatpush1.msra.mxu0 0.0
          %4674 = vmatprep.subr.mxu0 0.0
          %4675 = vmatpush1.msra.mxu0 0.0
          %4676 = vmatprep.subr.mxu0 0.0
          %4677 = vmatpush1.msra.mxu0 0.0
          %4678 = vmatprep.subr.mxu0 0.0
          %4679 = vmatpush1.msra.mxu0 0.0
          %4680 = vmatprep.subr.mxu0 0.0
          %4681 = vmatpush1.msra.mxu0 0.0
          %4682 = vmatprep.subr.mxu0 0.0
          %4683 = vmatpush1.msra.mxu0 0.0
          %4684 = vmatprep.subr.mxu0 0.0
          %4685 = vmatpush1.msra.mxu0 0.0
          %4686 = vmatprep.subr.mxu0 0.0
          %4687 = vmatpush1.msra.mxu0 0.0
          %4688 = vmatprep.subr.mxu0 0.0
          %4689 = vmatpush1.msra.mxu0 0.0
          %4690 = vmatprep.subr.mxu0 0.0
          %4691 = vmatpush1.msra.mxu0 0.0
          %4692 = vmatprep.subr.mxu0 0.0
          %4693 = vmatpush1.msra.mxu0 0.0
          %4694 = vmatprep.subr.mxu0 0.0
          %4695 = vmatpush1.msra.mxu0 0.0
          %4696 = vmatprep.subr.mxu0 0.0
          %4697 = vmatpush1.msra.mxu0 0.0
          %4698 = vmatprep.subr.mxu0 0.0
          %4699 = vmatpush1.msra.mxu0 0.0
          %4700 = vmatprep.subr.mxu0 0.0
          %4701 = vmatpush1.msra.mxu0 0.0
          %4702 = vmatprep.subr.mxu0 0.0
          %4703 = vmatpush1.msra.mxu0 0.0
          %4704 = vmatprep.subr.mxu0 0.0
          %4705 = vmatpush1.msra.mxu0 0.0
          %4706 = vmatprep.subr.mxu0 0.0
          %4707 = vmatpush1.msra.mxu0 0.0
          %4708 = vmatprep.subr.mxu0 0.0
          %4709 = vmatpush1.msra.mxu0 0.0
          %4710 = vmatprep.subr.mxu0 0.0
          %4711 = vmatpush1.msra.mxu0 0.0
          %4712 = vmatprep.subr.mxu0 0.0
          %4713 = vmatpush1.msra.mxu0 0.0
          %4714 = vmatprep.subr.mxu0 0.0
          %4715 = vmatpush1.msra.mxu0 0.0
          %4716 = vmatprep.subr.mxu0 0.0
          %4717 = vmatpush1.msra.mxu0 0.0
          %4718 = vmatprep.subr.mxu0 0.0
          %4719 = vmatpush1.msra.mxu0 0.0
          %4720 = vmatprep.subr.mxu0 0.0
          %4721 = vmatpush1.msra.mxu0 0.0
          %4722 = vmatprep.mubr.f32.mxu0 0.0
          %4723 = vmatmul.mubr.f32.gmra.mrb[0].mxu0 %v4656
          %v4724 = vpop.f32.mrb[0].mxu0
          %v4725 = vadd.f32 %v4653, %v4724
          %v4726 = vpop.f32.mrb[0].mxu0
          %4727 = vdwg.mxu0
          %v4728 = vadd.f32 %v4725, %v2782
          %v4729 = vsel %vm594, %v4728, 0.0
          %4730 = vadd.xlane.f32.xlu0 %v4729
          %v4731 = vpop.xlane.xlu0 %4730
          %v4732 = vmul.f32 %v4731, %v1632
          %v4733 = vmul.f32 %v4728, %v4728
          %v4734 = vsel %vm594, %v4733, 0.0
          %4735 = vadd.xlane.f32.xlu0 %v4734
          %v4736 = vpop.xlane.xlu0 %4735
          %v4737 = vmul.f32 %v4736, %v1632
          %v4738 = vmul.f32 %v4732, %v4732
          %v4739 = vsub.f32 %v4737, %v4738
          %v4740 = vsub.f32 %v4728, %v4732
          %v4741 = vadd.f32 %v4739, 1e-05
          %v4742 = vrsqrt.pop %v4741
          %v4743 = vmul.f32 %v4740, %v4742
          %s4744 = scalar_lea.vmem %s7, 3
          %v4745 = vld [vmem:[%s4744] sm:$0x1]
          %v4747 = vlaneseq
          %v4748 = vshrl.u32 %v4747, 7
          %v4749 = vsub.s32 0, %v4748
          %v4750 = vrot.slane %v4745, %v4749
          %v4752 = vmul.f32 %v4743, %v4750
          %s4753 = scalar_lea.vmem %s8, 3
          %v4754 = vld [vmem:[%s4753] sm:$0x1]
          %v4756 = vlaneseq
          %v4757 = vshrl.u32 %v4756, 7
          %v4758 = vsub.s32 0, %v4757
          %v4759 = vrot.slane %v4754, %v4758
          %v4761 = vadd.f32 %v4752, %v4759
          %v4762 = vld [vmem:[%s676] sm:$0xff]
          %v4763 = vld [vmem:[%s676 + $0x8] sm:$0xff]
          %v4764 = vld [vmem:[%s676 + $0x10] sm:$0xff]
          %v4765 = vld [vmem:[%s676 + $0x18] sm:$0xff]
          %v4766 = vld [vmem:[%s681] sm:$0x1]
          %v4768 = vlaneseq
          %v4769 = vshrl.u32 %v4768, 7
          %v4770 = vsub.s32 0, %v4769
          %v4771 = vrot.slane %v4766, %v4770
          %v4774 = vsel %vm594, %v4761, 0
          %4776 = vmatprep.subr.mxu0 0.0
          %4777 = vmatpush1.msra.mxu0 %v4762
          %4778 = vmatprep.subr.mxu0 0.0
          %4779 = vmatpush1.msra.mxu0 %v4763
          %4780 = vmatprep.subr.mxu0 0.0
          %4781 = vmatpush1.msra.mxu0 %v4764
          %4782 = vmatprep.subr.mxu0 0.0
          %4783 = vmatpush1.msra.mxu0 %v4765
          %4784 = vmatprep.subr.mxu0 0.0
          %4785 = vmatpush1.msra.mxu0 0.0
          %4786 = vmatprep.subr.mxu0 0.0
          %4787 = vmatpush1.msra.mxu0 0.0
          %4788 = vmatprep.subr.mxu0 0.0
          %4789 = vmatpush1.msra.mxu0 0.0
          %4790 = vmatprep.subr.mxu0 0.0
          %4791 = vmatpush1.msra.mxu0 0.0
          %4792 = vmatprep.subr.mxu0 0.0
          %4793 = vmatpush1.msra.mxu0 0.0
          %4794 = vmatprep.subr.mxu0 0.0
          %4795 = vmatpush1.msra.mxu0 0.0
          %4796 = vmatprep.subr.mxu0 0.0
          %4797 = vmatpush1.msra.mxu0 0.0
          %4798 = vmatprep.subr.mxu0 0.0
          %4799 = vmatpush1.msra.mxu0 0.0
          %4800 = vmatprep.subr.mxu0 0.0
          %4801 = vmatpush1.msra.mxu0 0.0
          %4802 = vmatprep.subr.mxu0 0.0
          %4803 = vmatpush1.msra.mxu0 0.0
          %4804 = vmatprep.subr.mxu0 0.0
          %4805 = vmatpush1.msra.mxu0 0.0
          %4806 = vmatprep.subr.mxu0 0.0
          %4807 = vmatpush1.msra.mxu0 0.0
          %4808 = vmatprep.subr.mxu0 0.0
          %4809 = vmatpush1.msra.mxu0 0.0
          %4810 = vmatprep.subr.mxu0 0.0
          %4811 = vmatpush1.msra.mxu0 0.0
          %4812 = vmatprep.subr.mxu0 0.0
          %4813 = vmatpush1.msra.mxu0 0.0
          %4814 = vmatprep.subr.mxu0 0.0
          %4815 = vmatpush1.msra.mxu0 0.0
          %4816 = vmatprep.subr.mxu0 0.0
          %4817 = vmatpush1.msra.mxu0 0.0
          %4818 = vmatprep.subr.mxu0 0.0
          %4819 = vmatpush1.msra.mxu0 0.0
          %4820 = vmatprep.subr.mxu0 0.0
          %4821 = vmatpush1.msra.mxu0 0.0
          %4822 = vmatprep.subr.mxu0 0.0
          %4823 = vmatpush1.msra.mxu0 0.0
          %4824 = vmatprep.subr.mxu0 0.0
          %4825 = vmatpush1.msra.mxu0 0.0
          %4826 = vmatprep.subr.mxu0 0.0
          %4827 = vmatpush1.msra.mxu0 0.0
          %4828 = vmatprep.subr.mxu0 0.0
          %4829 = vmatpush1.msra.mxu0 0.0
          %4830 = vmatprep.subr.mxu0 0.0
          %4831 = vmatpush1.msra.mxu0 0.0
          %4832 = vmatprep.subr.mxu0 0.0
          %4833 = vmatpush1.msra.mxu0 0.0
          %4834 = vmatprep.subr.mxu0 0.0
          %4835 = vmatpush1.msra.mxu0 0.0
          %4836 = vmatprep.subr.mxu0 0.0
          %4837 = vmatpush1.msra.mxu0 0.0
          %4838 = vmatprep.subr.mxu0 0.0
          %4839 = vmatpush1.msra.mxu0 0.0
          %4840 = vmatprep.mubr.f32.mxu0 0.0
          %4841 = vmatmul.mubr.f32.gmra.mrb[0].mxu0 %v4774
          %v4842 = vpop.f32.mrb[0].mxu0
          %v4843 = vadd.f32 %v4771, %v4842
          %v4844 = vpop.f32.mrb[0].mxu0
          %4845 = vdwg.mxu0
          %v4847 = vsel %vm870, %v4843, 0
          %v4850 = vsel %vm870, %v774, 0
          %v4853 = vsel %vm870, %v779, 0
          %4855 = vmatprep.subr.mxu0 0.0
          %4856 = vmatpush1.xpose.msra.mxu0 %v4850
          %4857 = vmatprep.subr.mxu0 0.0
          %4858 = vmatpush1.xpose.msra.mxu0 %v4853
          %4859 = vmatprep.subr.mxu0 0.0
          %4860 = vmatpush1.xpose.msra.mxu0 0.0
          %4861 = vmatprep.subr.mxu0 0.0
          %4862 = vmatpush1.xpose.msra.mxu0 0.0
          %4863 = vmatprep.subr.mxu0 0.0
          %4864 = vmatpush1.xpose.msra.mxu0 0.0
          %4865 = vmatprep.subr.mxu0 0.0
          %4866 = vmatpush1.xpose.msra.mxu0 0.0
          %4867 = vmatprep.subr.mxu0 0.0
          %4868 = vmatpush1.xpose.msra.mxu0 0.0
          %4869 = vmatprep.subr.mxu0 0.0
          %4870 = vmatpush1.xpose.msra.mxu0 0.0
          %4871 = vmatprep.subr.mxu0 0.0
          %4872 = vmatpush1.xpose.msra.mxu0 0.0
          %4873 = vmatprep.subr.mxu0 0.0
          %4874 = vmatpush1.xpose.msra.mxu0 0.0
          %4875 = vmatprep.subr.mxu0 0.0
          %4876 = vmatpush1.xpose.msra.mxu0 0.0
          %4877 = vmatprep.subr.mxu0 0.0
          %4878 = vmatpush1.xpose.msra.mxu0 0.0
          %4879 = vmatprep.subr.mxu0 0.0
          %4880 = vmatpush1.xpose.msra.mxu0 0.0
          %4881 = vmatprep.subr.mxu0 0.0
          %4882 = vmatpush1.xpose.msra.mxu0 0.0
          %4883 = vmatprep.subr.mxu0 0.0
          %4884 = vmatpush1.xpose.msra.mxu0 0.0
          %4885 = vmatprep.subr.mxu0 0.0
          %4886 = vmatpush1.xpose.msra.mxu0 0.0
          %4887 = vmatprep.subr.mxu0 0.0
          %4888 = vmatpush1.xpose.msra.mxu0 0.0
          %4889 = vmatprep.subr.mxu0 0.0
          %4890 = vmatpush1.xpose.msra.mxu0 0.0
          %4891 = vmatprep.subr.mxu0 0.0
          %4892 = vmatpush1.xpose.msra.mxu0 0.0
          %4893 = vmatprep.subr.mxu0 0.0
          %4894 = vmatpush1.xpose.msra.mxu0 0.0
          %4895 = vmatprep.subr.mxu0 0.0
          %4896 = vmatpush1.xpose.msra.mxu0 0.0
          %4897 = vmatprep.subr.mxu0 0.0
          %4898 = vmatpush1.xpose.msra.mxu0 0.0
          %4899 = vmatprep.subr.mxu0 0.0
          %4900 = vmatpush1.xpose.msra.mxu0 0.0
          %4901 = vmatprep.subr.mxu0 0.0
          %4902 = vmatpush1.xpose.msra.mxu0 0.0
          %4903 = vmatprep.subr.mxu0 0.0
          %4904 = vmatpush1.xpose.msra.mxu0 0.0
          %4905 = vmatprep.subr.mxu0 0.0
          %4906 = vmatpush1.xpose.msra.mxu0 0.0
          %4907 = vmatprep.subr.mxu0 0.0
          %4908 = vmatpush1.xpose.msra.mxu0 0.0
          %4909 = vmatprep.subr.mxu0 0.0
          %4910 = vmatpush1.xpose.msra.mxu0 0.0
          %4911 = vmatprep.subr.mxu0 0.0
          %4912 = vmatpush1.xpose.msra.mxu0 0.0
          %4913 = vmatprep.subr.mxu0 0.0
          %4914 = vmatpush1.xpose.msra.mxu0 0.0
          %4915 = vmatprep.subr.mxu0 0.0
          %4916 = vmatpush1.xpose.msra.mxu0 0.0
          %4917 = vmatprep.subr.mxu0 0.0
          %4918 = vmatpush1.xpose.msra.mxu0 0.0
          %4919 = vmatprep.mubr.f32.mxu0 0.0
          %4920 = vmatmul.mubr.f32.gmra.mrb[0].mxu0 %v4847
          %v4921 = vpop.f32.mrb[0].mxu0
          %v4922 = vadd.f32 %v1739, %v4921
          %v4923 = vpop.f32.mrb[0].mxu0
          %4924 = vdwg.mxu0
          %v4925 = vsel %vm1540, %v4922, -inf
          %4926 = vmax.xlane.f32.xlu0 %v4925
          %v4927 = vpop.xlane.xlu0 %4926
          %v4928 = vsub.f32 %v4922, %v4927
          %v4929 = vmul.f32 %v4928, 1.442695
          %v4930 = vpow.pop %v4929
          %v4931 = vsel %vm1540, %v4930, 0.0
          %4932 = vadd.xlane.f32.xlu0 %v4931
          %v4933 = vpop.xlane.xlu0 %4932
          %v4934 = vrcp.pop %v4933
          %v4935 = vmul.f32 %v4930, %v4934
          %4936 = vrot.lane.b32.xlu0 %v774, 96
          %v4937 = vpop.permute.xlu0 %4936
          %4938 = vrot.lane.b32.xlu0 %v779, 96
          %v4939 = vpop.permute.xlu0 %4938
          %v4943 = vsel %vm1540, %v4935, 0
          %4945 = vmatprep.subr.mxu0 0.0
          %4946 = vmatpush1.msra.mxu0 %v4937
          %4947 = vmatprep.subr.mxu0 0.0
          %4948 = vmatpush1.msra.mxu0 %v4939
          %4949 = vmatprep.subr.mxu0 0.0
          %4950 = vmatpush1.msra.mxu0 0.0
          %4951 = vmatprep.subr.mxu0 0.0
          %4952 = vmatpush1.msra.mxu0 0.0
          %4953 = vmatprep.subr.mxu0 0.0
          %4954 = vmatpush1.msra.mxu0 0.0
          %4955 = vmatprep.subr.mxu0 0.0
          %4956 = vmatpush1.msra.mxu0 0.0
          %4957 = vmatprep.subr.mxu0 0.0
          %4958 = vmatpush1.msra.mxu0 0.0
          %4959 = vmatprep.subr.mxu0 0.0
          %4960 = vmatpush1.msra.mxu0 0.0
          %4961 = vmatprep.subr.mxu0 0.0
          %4962 = vmatpush1.msra.mxu0 0.0
          %4963 = vmatprep.subr.mxu0 0.0
          %4964 = vmatpush1.msra.mxu0 0.0
          %4965 = vmatprep.subr.mxu0 0.0
          %4966 = vmatpush1.msra.mxu0 0.0
          %4967 = vmatprep.subr.mxu0 0.0
          %4968 = vmatpush1.msra.mxu0 0.0
          %4969 = vmatprep.subr.mxu0 0.0
          %4970 = vmatpush1.msra.mxu0 0.0
          %4971 = vmatprep.subr.mxu0 0.0
          %4972 = vmatpush1.msra.mxu0 0.0
          %4973 = vmatprep.subr.mxu0 0.0
          %4974 = vmatpush1.msra.mxu0 0.0
          %4975 = vmatprep.subr.mxu0 0.0
          %4976 = vmatpush1.msra.mxu0 0.0
          %4977 = vmatprep.subr.mxu0 0.0
          %4978 = vmatpush1.msra.mxu0 0.0
          %4979 = vmatprep.subr.mxu0 0.0
          %4980 = vmatpush1.msra.mxu0 0.0
          %4981 = vmatprep.subr.mxu0 0.0
          %4982 = vmatpush1.msra.mxu0 0.0
          %4983 = vmatprep.subr.mxu0 0.0
          %4984 = vmatpush1.msra.mxu0 0.0
          %4985 = vmatprep.subr.mxu0 0.0
          %4986 = vmatpush1.msra.mxu0 0.0
          %4987 = vmatprep.subr.mxu0 0.0
          %4988 = vmatpush1.msra.mxu0 0.0
          %4989 = vmatprep.subr.mxu0 0.0
          %4990 = vmatpush1.msra.mxu0 0.0
          %4991 = vmatprep.subr.mxu0 0.0
          %4992 = vmatpush1.msra.mxu0 0.0
          %4993 = vmatprep.subr.mxu0 0.0
          %4994 = vmatpush1.msra.mxu0 0.0
          %4995 = vmatprep.subr.mxu0 0.0
          %4996 = vmatpush1.msra.mxu0 0.0
          %4997 = vmatprep.subr.mxu0 0.0
          %4998 = vmatpush1.msra.mxu0 0.0
          %4999 = vmatprep.subr.mxu0 0.0
          %5000 = vmatpush1.msra.mxu0 0.0
          %5001 = vmatprep.subr.mxu0 0.0
          %5002 = vmatpush1.msra.mxu0 0.0
          %5003 = vmatprep.subr.mxu0 0.0
          %5004 = vmatpush1.msra.mxu0 0.0
          %5005 = vmatprep.subr.mxu0 0.0
          %5006 = vmatpush1.msra.mxu0 0.0
          %5007 = vmatprep.subr.mxu0 0.0
          %5008 = vmatpush1.msra.mxu0 0.0
          %5009 = vmatprep.mubr.f32.mxu0 0.0
          %5010 = vmatmul.mubr.f32.gmra.mrb[0].mxu0 %v4943
          %v5011 = vpop.f32.mrb[0].mxu0
          %v5012 = vadd.f32 0.0, %v5011
          %v5013 = vpop.f32.mrb[0].mxu0
          %5014 = vdwg.mxu0
          %5015 = vrot.lane.b32.xlu0 %v4843, 120
          %v5016 = vpop.permute.xlu0 %5015
          %5017 = vrot.lane.b32.xlu0 %v774, 120
          %v5018 = vpop.permute.xlu0 %5017
          %5019 = vrot.lane.b32.xlu0 %v779, 120
          %v5020 = vpop.permute.xlu0 %5019
          %v5021 = vsel %vm870, %v5016, 0
          %v5023 = vsel %vm870, %v5018, 0
          %v5025 = vsel %vm870, %v5020, 0
          %5027 = vmatprep.subr.mxu0 0.0
          %5028 = vmatpush1.xpose.msra.mxu0 %v5023
          %5029 = vmatprep.subr.mxu0 0.0
          %5030 = vmatpush1.xpose.msra.mxu0 %v5025
          %5031 = vmatprep.subr.mxu0 0.0
          %5032 = vmatpush1.xpose.msra.mxu0 0.0
          %5033 = vmatprep.subr.mxu0 0.0
          %5034 = vmatpush1.xpose.msra.mxu0 0.0
          %5035 = vmatprep.subr.mxu0 0.0
          %5036 = vmatpush1.xpose.msra.mxu0 0.0
          %5037 = vmatprep.subr.mxu0 0.0
          %5038 = vmatpush1.xpose.msra.mxu0 0.0
          %5039 = vmatprep.subr.mxu0 0.0
          %5040 = vmatpush1.xpose.msra.mxu0 0.0
          %5041 = vmatprep.subr.mxu0 0.0
          %5042 = vmatpush1.xpose.msra.mxu0 0.0
          %5043 = vmatprep.subr.mxu0 0.0
          %5044 = vmatpush1.xpose.msra.mxu0 0.0
          %5045 = vmatprep.subr.mxu0 0.0
          %5046 = vmatpush1.xpose.msra.mxu0 0.0
          %5047 = vmatprep.subr.mxu0 0.0
          %5048 = vmatpush1.xpose.msra.mxu0 0.0
          %5049 = vmatprep.subr.mxu0 0.0
          %5050 = vmatpush1.xpose.msra.mxu0 0.0
          %5051 = vmatprep.subr.mxu0 0.0
          %5052 = vmatpush1.xpose.msra.mxu0 0.0
          %5053 = vmatprep.subr.mxu0 0.0
          %5054 = vmatpush1.xpose.msra.mxu0 0.0
          %5055 = vmatprep.subr.mxu0 0.0
          %5056 = vmatpush1.xpose.msra.mxu0 0.0
          %5057 = vmatprep.subr.mxu0 0.0
          %5058 = vmatpush1.xpose.msra.mxu0 0.0
          %5059 = vmatprep.subr.mxu0 0.0
          %5060 = vmatpush1.xpose.msra.mxu0 0.0
          %5061 = vmatprep.subr.mxu0 0.0
          %5062 = vmatpush1.xpose.msra.mxu0 0.0
          %5063 = vmatprep.subr.mxu0 0.0
          %5064 = vmatpush1.xpose.msra.mxu0 0.0
          %5065 = vmatprep.subr.mxu0 0.0
          %5066 = vmatpush1.xpose.msra.mxu0 0.0
          %5067 = vmatprep.subr.mxu0 0.0
          %5068 = vmatpush1.xpose.msra.mxu0 0.0
          %5069 = vmatprep.subr.mxu0 0.0
          %5070 = vmatpush1.xpose.msra.mxu0 0.0
          %5071 = vmatprep.subr.mxu0 0.0
          %5072 = vmatpush1.xpose.msra.mxu0 0.0
          %5073 = vmatprep.subr.mxu0 0.0
          %5074 = vmatpush1.xpose.msra.mxu0 0.0
          %5075 = vmatprep.subr.mxu0 0.0
          %5076 = vmatpush1.xpose.msra.mxu0 0.0
          %5077 = vmatprep.subr.mxu0 0.0
          %5078 = vmatpush1.xpose.msra.mxu0 0.0
          %5079 = vmatprep.subr.mxu0 0.0
          %5080 = vmatpush1.xpose.msra.mxu0 0.0
          %5081 = vmatprep.subr.mxu0 0.0
          %5082 = vmatpush1.xpose.msra.mxu0 0.0
          %5083 = vmatprep.subr.mxu0 0.0
          %5084 = vmatpush1.xpose.msra.mxu0 0.0
          %5085 = vmatprep.subr.mxu0 0.0
          %5086 = vmatpush1.xpose.msra.mxu0 0.0
          %5087 = vmatprep.subr.mxu0 0.0
          %5088 = vmatpush1.xpose.msra.mxu0 0.0
          %5089 = vmatprep.subr.mxu0 0.0
          %5090 = vmatpush1.xpose.msra.mxu0 0.0
          %5091 = vmatprep.mubr.f32.mxu0 0.0
          %5092 = vmatmul.mubr.f32.gmra.mrb[0].mxu0 %v5021
          %v5093 = vpop.f32.mrb[0].mxu0
          %v5094 = vadd.f32 %v1739, %v5093
          %v5095 = vpop.f32.mrb[0].mxu0
          %5096 = vdwg.mxu0
          %v5097 = vsel %vm1540, %v5094, -inf
          %5098 = vmax.xlane.f32.xlu0 %v5097
          %v5099 = vpop.xlane.xlu0 %5098
          %v5100 = vsub.f32 %v5094, %v5099
          %v5101 = vmul.f32 %v5100, 1.442695
          %v5102 = vpow.pop %v5101
          %v5103 = vsel %vm1540, %v5102, 0.0
          %5104 = vadd.xlane.f32.xlu0 %v5103
          %v5105 = vpop.xlane.xlu0 %5104
          %v5106 = vrcp.pop %v5105
          %v5107 = vmul.f32 %v5102, %v5106
          %5108 = vrot.lane.b32.xlu0 %v774, 88
          %v5109 = vpop.permute.xlu0 %5108
          %5110 = vrot.lane.b32.xlu0 %v779, 88
          %v5111 = vpop.permute.xlu0 %5110
          %v5115 = vsel %vm1540, %v5107, 0
          %5117 = vmatprep.subr.mxu0 0.0
          %5118 = vmatpush1.msra.mxu0 %v5109
          %5119 = vmatprep.subr.mxu0 0.0
          %5120 = vmatpush1.msra.mxu0 %v5111
          %5121 = vmatprep.subr.mxu0 0.0
          %5122 = vmatpush1.msra.mxu0 0.0
          %5123 = vmatprep.subr.mxu0 0.0
          %5124 = vmatpush1.msra.mxu0 0.0
          %5125 = vmatprep.subr.mxu0 0.0
          %5126 = vmatpush1.msra.mxu0 0.0
          %5127 = vmatprep.subr.mxu0 0.0
          %5128 = vmatpush1.msra.mxu0 0.0
          %5129 = vmatprep.subr.mxu0 0.0
          %5130 = vmatpush1.msra.mxu0 0.0
          %5131 = vmatprep.subr.mxu0 0.0
          %5132 = vmatpush1.msra.mxu0 0.0
          %5133 = vmatprep.subr.mxu0 0.0
          %5134 = vmatpush1.msra.mxu0 0.0
          %5135 = vmatprep.subr.mxu0 0.0
          %5136 = vmatpush1.msra.mxu0 0.0
          %5137 = vmatprep.subr.mxu0 0.0
          %5138 = vmatpush1.msra.mxu0 0.0
          %5139 = vmatprep.subr.mxu0 0.0
          %5140 = vmatpush1.msra.mxu0 0.0
          %5141 = vmatprep.subr.mxu0 0.0
          %5142 = vmatpush1.msra.mxu0 0.0
          %5143 = vmatprep.subr.mxu0 0.0
          %5144 = vmatpush1.msra.mxu0 0.0
          %5145 = vmatprep.subr.mxu0 0.0
          %5146 = vmatpush1.msra.mxu0 0.0
          %5147 = vmatprep.subr.mxu0 0.0
          %5148 = vmatpush1.msra.mxu0 0.0
          %5149 = vmatprep.subr.mxu0 0.0
          %5150 = vmatpush1.msra.mxu0 0.0
          %5151 = vmatprep.subr.mxu0 0.0
          %5152 = vmatpush1.msra.mxu0 0.0
          %5153 = vmatprep.subr.mxu0 0.0
          %5154 = vmatpush1.msra.mxu0 0.0
          %5155 = vmatprep.subr.mxu0 0.0
          %5156 = vmatpush1.msra.mxu0 0.0
          %5157 = vmatprep.subr.mxu0 0.0
          %5158 = vmatpush1.msra.mxu0 0.0
          %5159 = vmatprep.subr.mxu0 0.0
          %5160 = vmatpush1.msra.mxu0 0.0
          %5161 = vmatprep.subr.mxu0 0.0
          %5162 = vmatpush1.msra.mxu0 0.0
          %5163 = vmatprep.subr.mxu0 0.0
          %5164 = vmatpush1.msra.mxu0 0.0
          %5165 = vmatprep.subr.mxu0 0.0
          %5166 = vmatpush1.msra.mxu0 0.0
          %5167 = vmatprep.subr.mxu0 0.0
          %5168 = vmatpush1.msra.mxu0 0.0
          %5169 = vmatprep.subr.mxu0 0.0
          %5170 = vmatpush1.msra.mxu0 0.0
          %5171 = vmatprep.subr.mxu0 0.0
          %5172 = vmatpush1.msra.mxu0 0.0
          %5173 = vmatprep.subr.mxu0 0.0
          %5174 = vmatpush1.msra.mxu0 0.0
          %5175 = vmatprep.subr.mxu0 0.0
          %5176 = vmatpush1.msra.mxu0 0.0
          %5177 = vmatprep.subr.mxu0 0.0
          %5178 = vmatpush1.msra.mxu0 0.0
          %5179 = vmatprep.subr.mxu0 0.0
          %5180 = vmatpush1.msra.mxu0 0.0
          %5181 = vmatprep.mubr.f32.mxu0 0.0
          %5182 = vmatmul.mubr.f32.gmra.mrb[0].mxu0 %v5115
          %v5183 = vpop.f32.mrb[0].mxu0
          %v5184 = vadd.f32 0.0, %v5183
          %v5185 = vpop.f32.mrb[0].mxu0
          %5186 = vdwg.mxu0
          %5187 = vrot.lane.b32.xlu0 %v4843, 112
          %v5188 = vpop.permute.xlu0 %5187
          %5189 = vrot.lane.b32.xlu0 %v774, 112
          %v5190 = vpop.permute.xlu0 %5189
          %5191 = vrot.lane.b32.xlu0 %v779, 112
          %v5192 = vpop.permute.xlu0 %5191
          %v5193 = vsel %vm870, %v5188, 0
          %v5195 = vsel %vm870, %v5190, 0
          %v5197 = vsel %vm870, %v5192, 0
          %5199 = vmatprep.subr.mxu0 0.0
          %5200 = vmatpush1.xpose.msra.mxu0 %v5195
          %5201 = vmatprep.subr.mxu0 0.0
          %5202 = vmatpush1.xpose.msra.mxu0 %v5197
          %5203 = vmatprep.subr.mxu0 0.0
          %5204 = vmatpush1.xpose.msra.mxu0 0.0
          %5205 = vmatprep.subr.mxu0 0.0
          %5206 = vmatpush1.xpose.msra.mxu0 0.0
          %5207 = vmatprep.subr.mxu0 0.0
          %5208 = vmatpush1.xpose.msra.mxu0 0.0
          %5209 = vmatprep.subr.mxu0 0.0
          %5210 = vmatpush1.xpose.msra.mxu0 0.0
          %5211 = vmatprep.subr.mxu0 0.0
          %5212 = vmatpush1.xpose.msra.mxu0 0.0
          %5213 = vmatprep.subr.mxu0 0.0
          %5214 = vmatpush1.xpose.msra.mxu0 0.0
          %5215 = vmatprep.subr.mxu0 0.0
          %5216 = vmatpush1.xpose.msra.mxu0 0.0
          %5217 = vmatprep.subr.mxu0 0.0
          %5218 = vmatpush1.xpose.msra.mxu0 0.0
          %5219 = vmatprep.subr.mxu0 0.0
          %5220 = vmatpush1.xpose.msra.mxu0 0.0
          %5221 = vmatprep.subr.mxu0 0.0
          %5222 = vmatpush1.xpose.msra.mxu0 0.0
          %5223 = vmatprep.subr.mxu0 0.0
          %5224 = vmatpush1.xpose.msra.mxu0 0.0
          %5225 = vmatprep.subr.mxu0 0.0
          %5226 = vmatpush1.xpose.msra.mxu0 0.0
          %5227 = vmatprep.subr.mxu0 0.0
          %5228 = vmatpush1.xpose.msra.mxu0 0.0
          %5229 = vmatprep.subr.mxu0 0.0
          %5230 = vmatpush1.xpose.msra.mxu0 0.0
          %5231 = vmatprep.subr.mxu0 0.0
          %5232 = vmatpush1.xpose.msra.mxu0 0.0
          %5233 = vmatprep.subr.mxu0 0.0
          %5234 = vmatpush1.xpose.msra.mxu0 0.0
          %5235 = vmatprep.subr.mxu0 0.0
          %5236 = vmatpush1.xpose.msra.mxu0 0.0
          %5237 = vmatprep.subr.mxu0 0.0
          %5238 = vmatpush1.xpose.msra.mxu0 0.0
          %5239 = vmatprep.subr.mxu0 0.0
          %5240 = vmatpush1.xpose.msra.mxu0 0.0
          %5241 = vmatprep.subr.mxu0 0.0
          %5242 = vmatpush1.xpose.msra.mxu0 0.0
          %5243 = vmatprep.subr.mxu0 0.0
          %5244 = vmatpush1.xpose.msra.mxu0 0.0
          %5245 = vmatprep.subr.mxu0 0.0
          %5246 = vmatpush1.xpose.msra.mxu0 0.0
          %5247 = vmatprep.subr.mxu0 0.0
          %5248 = vmatpush1.xpose.msra.mxu0 0.0
          %5249 = vmatprep.subr.mxu0 0.0
          %5250 = vmatpush1.xpose.msra.mxu0 0.0
          %5251 = vmatprep.subr.mxu0 0.0
          %5252 = vmatpush1.xpose.msra.mxu0 0.0
          %5253 = vmatprep.subr.mxu0 0.0
          %5254 = vmatpush1.xpose.msra.mxu0 0.0
          %5255 = vmatprep.subr.mxu0 0.0
          %5256 = vmatpush1.xpose.msra.mxu0 0.0
          %5257 = vmatprep.subr.mxu0 0.0
          %5258 = vmatpush1.xpose.msra.mxu0 0.0
          %5259 = vmatprep.subr.mxu0 0.0
          %5260 = vmatpush1.xpose.msra.mxu0 0.0
          %5261 = vmatprep.subr.mxu0 0.0
          %5262 = vmatpush1.xpose.msra.mxu0 0.0
          %5263 = vmatprep.mubr.f32.mxu0 0.0
          %5264 = vmatmul.mubr.f32.gmra.mrb[0].mxu0 %v5193
          %v5265 = vpop.f32.mrb[0].mxu0
          %v5266 = vadd.f32 %v1739, %v5265
          %v5267 = vpop.f32.mrb[0].mxu0
          %5268 = vdwg.mxu0
          %v5269 = vsel %vm1540, %v5266, -inf
          %5270 = vmax.xlane.f32.xlu0 %v5269
          %v5271 = vpop.xlane.xlu0 %5270
          %v5272 = vsub.f32 %v5266, %v5271
          %v5273 = vmul.f32 %v5272, 1.442695
          %v5274 = vpow.pop %v5273
          %v5275 = vsel %vm1540, %v5274, 0.0
          %5276 = vadd.xlane.f32.xlu0 %v5275
          %v5277 = vpop.xlane.xlu0 %5276
          %v5278 = vrcp.pop %v5277
          %v5279 = vmul.f32 %v5274, %v5278
          %5280 = vrot.lane.b32.xlu0 %v774, 80
          %v5281 = vpop.permute.xlu0 %5280
          %5282 = vrot.lane.b32.xlu0 %v779, 80
          %v5283 = vpop.permute.xlu0 %5282
          %v5287 = vsel %vm1540, %v5279, 0
          %5289 = vmatprep.subr.mxu0 0.0
          %5290 = vmatpush1.msra.mxu0 %v5281
          %5291 = vmatprep.subr.mxu0 0.0
          %5292 = vmatpush1.msra.mxu0 %v5283
          %5293 = vmatprep.subr.mxu0 0.0
          %5294 = vmatpush1.msra.mxu0 0.0
          %5295 = vmatprep.subr.mxu0 0.0
          %5296 = vmatpush1.msra.mxu0 0.0
          %5297 = vmatprep.subr.mxu0 0.0
          %5298 = vmatpush1.msra.mxu0 0.0
          %5299 = vmatprep.subr.mxu0 0.0
          %5300 = vmatpush1.msra.mxu0 0.0
          %5301 = vmatprep.subr.mxu0 0.0
          %5302 = vmatpush1.msra.mxu0 0.0
          %5303 = vmatprep.subr.mxu0 0.0
          %5304 = vmatpush1.msra.mxu0 0.0
          %5305 = vmatprep.subr.mxu0 0.0
          %5306 = vmatpush1.msra.mxu0 0.0
          %5307 = vmatprep.subr.mxu0 0.0
          %5308 = vmatpush1.msra.mxu0 0.0
          %5309 = vmatprep.subr.mxu0 0.0
          %5310 = vmatpush1.msra.mxu0 0.0
          %5311 = vmatprep.subr.mxu0 0.0
          %5312 = vmatpush1.msra.mxu0 0.0
          %5313 = vmatprep.subr.mxu0 0.0
          %5314 = vmatpush1.msra.mxu0 0.0
          %5315 = vmatprep.subr.mxu0 0.0
          %5316 = vmatpush1.msra.mxu0 0.0
          %5317 = vmatprep.subr.mxu0 0.0
          %5318 = vmatpush1.msra.mxu0 0.0
          %5319 = vmatprep.subr.mxu0 0.0
          %5320 = vmatpush1.msra.mxu0 0.0
          %5321 = vmatprep.subr.mxu0 0.0
          %5322 = vmatpush1.msra.mxu0 0.0
          %5323 = vmatprep.subr.mxu0 0.0
          %5324 = vmatpush1.msra.mxu0 0.0
          %5325 = vmatprep.subr.mxu0 0.0
          %5326 = vmatpush1.msra.mxu0 0.0
          %5327 = vmatprep.subr.mxu0 0.0
          %5328 = vmatpush1.msra.mxu0 0.0
          %5329 = vmatprep.subr.mxu0 0.0
          %5330 = vmatpush1.msra.mxu0 0.0
          %5331 = vmatprep.subr.mxu0 0.0
          %5332 = vmatpush1.msra.mxu0 0.0
          %5333 = vmatprep.subr.mxu0 0.0
          %5334 = vmatpush1.msra.mxu0 0.0
          %5335 = vmatprep.subr.mxu0 0.0
          %5336 = vmatpush1.msra.mxu0 0.0
          %5337 = vmatprep.subr.mxu0 0.0
          %5338 = vmatpush1.msra.mxu0 0.0
          %5339 = vmatprep.subr.mxu0 0.0
          %5340 = vmatpush1.msra.mxu0 0.0
          %5341 = vmatprep.subr.mxu0 0.0
          %5342 = vmatpush1.msra.mxu0 0.0
          %5343 = vmatprep.subr.mxu0 0.0
          %5344 = vmatpush1.msra.mxu0 0.0
          %5345 = vmatprep.subr.mxu0 0.0
          %5346 = vmatpush1.msra.mxu0 0.0
          %5347 = vmatprep.subr.mxu0 0.0
          %5348 = vmatpush1.msra.mxu0 0.0
          %5349 = vmatprep.subr.mxu0 0.0
          %5350 = vmatpush1.msra.mxu0 0.0
          %5351 = vmatprep.subr.mxu0 0.0
          %5352 = vmatpush1.msra.mxu0 0.0
          %5353 = vmatprep.mubr.f32.mxu0 0.0
          %5354 = vmatmul.mubr.f32.gmra.mrb[0].mxu0 %v5287
          %v5355 = vpop.f32.mrb[0].mxu0
          %v5356 = vadd.f32 0.0, %v5355
          %v5357 = vpop.f32.mrb[0].mxu0
          %5358 = vdwg.mxu0
          %5359 = vrot.lane.b32.xlu0 %v4843, 104
          %v5360 = vpop.permute.xlu0 %5359
          %5361 = vrot.lane.b32.xlu0 %v774, 104
          %v5362 = vpop.permute.xlu0 %5361
          %5363 = vrot.lane.b32.xlu0 %v779, 104
          %v5364 = vpop.permute.xlu0 %5363
          %v5365 = vsel %vm870, %v5360, 0
          %v5367 = vsel %vm870, %v5362, 0
          %v5369 = vsel %vm870, %v5364, 0
          %5371 = vmatprep.subr.mxu0 0.0
          %5372 = vmatpush1.xpose.msra.mxu0 %v5367
          %5373 = vmatprep.subr.mxu0 0.0
          %5374 = vmatpush1.xpose.msra.mxu0 %v5369
          %5375 = vmatprep.subr.mxu0 0.0
          %5376 = vmatpush1.xpose.msra.mxu0 0.0
          %5377 = vmatprep.subr.mxu0 0.0
          %5378 = vmatpush1.xpose.msra.mxu0 0.0
          %5379 = vmatprep.subr.mxu0 0.0
          %5380 = vmatpush1.xpose.msra.mxu0 0.0
          %5381 = vmatprep.subr.mxu0 0.0
          %5382 = vmatpush1.xpose.msra.mxu0 0.0
          %5383 = vmatprep.subr.mxu0 0.0
          %5384 = vmatpush1.xpose.msra.mxu0 0.0
          %5385 = vmatprep.subr.mxu0 0.0
          %5386 = vmatpush1.xpose.msra.mxu0 0.0
          %5387 = vmatprep.subr.mxu0 0.0
          %5388 = vmatpush1.xpose.msra.mxu0 0.0
          %5389 = vmatprep.subr.mxu0 0.0
          %5390 = vmatpush1.xpose.msra.mxu0 0.0
          %5391 = vmatprep.subr.mxu0 0.0
          %5392 = vmatpush1.xpose.msra.mxu0 0.0
          %5393 = vmatprep.subr.mxu0 0.0
          %5394 = vmatpush1.xpose.msra.mxu0 0.0
          %5395 = vmatprep.subr.mxu0 0.0
          %5396 = vmatpush1.xpose.msra.mxu0 0.0
          %5397 = vmatprep.subr.mxu0 0.0
          %5398 = vmatpush1.xpose.msra.mxu0 0.0
          %5399 = vmatprep.subr.mxu0 0.0
          %5400 = vmatpush1.xpose.msra.mxu0 0.0
          %5401 = vmatprep.subr.mxu0 0.0
          %5402 = vmatpush1.xpose.msra.mxu0 0.0
          %5403 = vmatprep.subr.mxu0 0.0
          %5404 = vmatpush1.xpose.msra.mxu0 0.0
          %5405 = vmatprep.subr.mxu0 0.0
          %5406 = vmatpush1.xpose.msra.mxu0 0.0
          %5407 = vmatprep.subr.mxu0 0.0
          %5408 = vmatpush1.xpose.msra.mxu0 0.0
          %5409 = vmatprep.subr.mxu0 0.0
          %5410 = vmatpush1.xpose.msra.mxu0 0.0
          %5411 = vmatprep.subr.mxu0 0.0
          %5412 = vmatpush1.xpose.msra.mxu0 0.0
          %5413 = vmatprep.subr.mxu0 0.0
          %5414 = vmatpush1.xpose.msra.mxu0 0.0
          %5415 = vmatprep.subr.mxu0 0.0
          %5416 = vmatpush1.xpose.msra.mxu0 0.0
          %5417 = vmatprep.subr.mxu0 0.0
          %5418 = vmatpush1.xpose.msra.mxu0 0.0
          %5419 = vmatprep.subr.mxu0 0.0
          %5420 = vmatpush1.xpose.msra.mxu0 0.0
          %5421 = vmatprep.subr.mxu0 0.0
          %5422 = vmatpush1.xpose.msra.mxu0 0.0
          %5423 = vmatprep.subr.mxu0 0.0
          %5424 = vmatpush1.xpose.msra.mxu0 0.0
          %5425 = vmatprep.subr.mxu0 0.0
          %5426 = vmatpush1.xpose.msra.mxu0 0.0
          %5427 = vmatprep.subr.mxu0 0.0
          %5428 = vmatpush1.xpose.msra.mxu0 0.0
          %5429 = vmatprep.subr.mxu0 0.0
          %5430 = vmatpush1.xpose.msra.mxu0 0.0
          %5431 = vmatprep.subr.mxu0 0.0
          %5432 = vmatpush1.xpose.msra.mxu0 0.0
          %5433 = vmatprep.subr.mxu0 0.0
          %5434 = vmatpush1.xpose.msra.mxu0 0.0
          %5435 = vmatprep.mubr.f32.mxu0 0.0
          %5436 = vmatmul.mubr.f32.gmra.mrb[0].mxu0 %v5365
          %v5437 = vpop.f32.mrb[0].mxu0
          %v5438 = vadd.f32 %v1739, %v5437
          %v5439 = vpop.f32.mrb[0].mxu0
          %5440 = vdwg.mxu0
          %v5441 = vsel %vm1540, %v5438, -inf
          %5442 = vmax.xlane.f32.xlu0 %v5441
          %v5443 = vpop.xlane.xlu0 %5442
          %v5444 = vsub.f32 %v5438, %v5443
          %v5445 = vmul.f32 %v5444, 1.442695
          %v5446 = vpow.pop %v5445
          %v5447 = vsel %vm1540, %v5446, 0.0
          %5448 = vadd.xlane.f32.xlu0 %v5447
          %v5449 = vpop.xlane.xlu0 %5448
          %v5450 = vrcp.pop %v5449
          %v5451 = vmul.f32 %v5446, %v5450
          %5452 = vrot.lane.b32.xlu0 %v774, 72
          %v5453 = vpop.permute.xlu0 %5452
          %5454 = vrot.lane.b32.xlu0 %v779, 72
          %v5455 = vpop.permute.xlu0 %5454
          %v5459 = vsel %vm1540, %v5451, 0
          %5461 = vmatprep.subr.mxu0 0.0
          %5462 = vmatpush1.msra.mxu0 %v5453
          %5463 = vmatprep.subr.mxu0 0.0
          %5464 = vmatpush1.msra.mxu0 %v5455
          %5465 = vmatprep.subr.mxu0 0.0
          %5466 = vmatpush1.msra.mxu0 0.0
          %5467 = vmatprep.subr.mxu0 0.0
          %5468 = vmatpush1.msra.mxu0 0.0
          %5469 = vmatprep.subr.mxu0 0.0
          %5470 = vmatpush1.msra.mxu0 0.0
          %5471 = vmatprep.subr.mxu0 0.0
          %5472 = vmatpush1.msra.mxu0 0.0
          %5473 = vmatprep.subr.mxu0 0.0
          %5474 = vmatpush1.msra.mxu0 0.0
          %5475 = vmatprep.subr.mxu0 0.0
          %5476 = vmatpush1.msra.mxu0 0.0
          %5477 = vmatprep.subr.mxu0 0.0
          %5478 = vmatpush1.msra.mxu0 0.0
          %5479 = vmatprep.subr.mxu0 0.0
          %5480 = vmatpush1.msra.mxu0 0.0
          %5481 = vmatprep.subr.mxu0 0.0
          %5482 = vmatpush1.msra.mxu0 0.0
          %5483 = vmatprep.subr.mxu0 0.0
          %5484 = vmatpush1.msra.mxu0 0.0
          %5485 = vmatprep.subr.mxu0 0.0
          %5486 = vmatpush1.msra.mxu0 0.0
          %5487 = vmatprep.subr.mxu0 0.0
          %5488 = vmatpush1.msra.mxu0 0.0
          %5489 = vmatprep.subr.mxu0 0.0
          %5490 = vmatpush1.msra.mxu0 0.0
          %5491 = vmatprep.subr.mxu0 0.0
          %5492 = vmatpush1.msra.mxu0 0.0
          %5493 = vmatprep.subr.mxu0 0.0
          %5494 = vmatpush1.msra.mxu0 0.0
          %5495 = vmatprep.subr.mxu0 0.0
          %5496 = vmatpush1.msra.mxu0 0.0
          %5497 = vmatprep.subr.mxu0 0.0
          %5498 = vmatpush1.msra.mxu0 0.0
          %5499 = vmatprep.subr.mxu0 0.0
          %5500 = vmatpush1.msra.mxu0 0.0
          %5501 = vmatprep.subr.mxu0 0.0
          %5502 = vmatpush1.msra.mxu0 0.0
          %5503 = vmatprep.subr.mxu0 0.0
          %5504 = vmatpush1.msra.mxu0 0.0
          %5505 = vmatprep.subr.mxu0 0.0
          %5506 = vmatpush1.msra.mxu0 0.0
          %5507 = vmatprep.subr.mxu0 0.0
          %5508 = vmatpush1.msra.mxu0 0.0
          %5509 = vmatprep.subr.mxu0 0.0
          %5510 = vmatpush1.msra.mxu0 0.0
          %5511 = vmatprep.subr.mxu0 0.0
          %5512 = vmatpush1.msra.mxu0 0.0
          %5513 = vmatprep.subr.mxu0 0.0
          %5514 = vmatpush1.msra.mxu0 0.0
          %5515 = vmatprep.subr.mxu0 0.0
          %5516 = vmatpush1.msra.mxu0 0.0
          %5517 = vmatprep.subr.mxu0 0.0
          %5518 = vmatpush1.msra.mxu0 0.0
          %5519 = vmatprep.subr.mxu0 0.0
          %5520 = vmatpush1.msra.mxu0 0.0
          %5521 = vmatprep.subr.mxu0 0.0
          %5522 = vmatpush1.msra.mxu0 0.0
          %5523 = vmatprep.subr.mxu0 0.0
          %5524 = vmatpush1.msra.mxu0 0.0
          %5525 = vmatprep.mubr.f32.mxu0 0.0
          %5526 = vmatmul.mubr.f32.gmra.mrb[0].mxu0 %v5459
          %v5527 = vpop.f32.mrb[0].mxu0
          %v5528 = vadd.f32 0.0, %v5527
          %v5529 = vpop.f32.mrb[0].mxu0
          %5530 = vdwg.mxu0
          %5532 = vrot.lane.b32.xlu0 %v5184, 8
          %v5533 = vpop.permute.xlu0 %5532
          %5536 = vrot.lane.b32.xlu0 %v5356, 16
          %v5537 = vpop.permute.xlu0 %5536
          %5540 = vrot.lane.b32.xlu0 %v5528, 24
          %v5541 = vpop.permute.xlu0 %5540
          %v5543 = vsel %vm870, %v5012, %v5533
          %v5544 = vsel %vm1540, %v5543, %v5537
          %v5545 = vsel %vm1542, %v5544, %v5541
          %s5546 = scalar_lea.vmem [#allocation8], 96
          %v5547 = vld [vmem:[%s5546] sm:$0xff]
          %v5548 = vld [vmem:[%s5546 + $0x8] sm:$0xff]
          %v5549 = vld [vmem:[%s5546 + $0x10] sm:$0xff]
          %v5550 = vld [vmem:[%s5546 + $0x18] sm:$0xff]
          %s5551 = scalar_lea.vmem %s6, 3
          %v5552 = vld [vmem:[%s5551] sm:$0x1]
          %v5554 = vlaneseq
          %v5555 = vshrl.u32 %v5554, 7
          %v5556 = vsub.s32 0, %v5555
          %v5557 = vrot.slane %v5552, %v5556
          %v5560 = vsel %vm594, %v5545, 0
          %5562 = vmatprep.subr.mxu0 0.0
          %5563 = vmatpush1.msra.mxu0 %v5547
          %5564 = vmatprep.subr.mxu0 0.0
          %5565 = vmatpush1.msra.mxu0 %v5548
          %5566 = vmatprep.subr.mxu0 0.0
          %5567 = vmatpush1.msra.mxu0 %v5549
          %5568 = vmatprep.subr.mxu0 0.0
          %5569 = vmatpush1.msra.mxu0 %v5550
          %5570 = vmatprep.subr.mxu0 0.0
          %5571 = vmatpush1.msra.mxu0 0.0
          %5572 = vmatprep.subr.mxu0 0.0
          %5573 = vmatpush1.msra.mxu0 0.0
          %5574 = vmatprep.subr.mxu0 0.0
          %5575 = vmatpush1.msra.mxu0 0.0
          %5576 = vmatprep.subr.mxu0 0.0
          %5577 = vmatpush1.msra.mxu0 0.0
          %5578 = vmatprep.subr.mxu0 0.0
          %5579 = vmatpush1.msra.mxu0 0.0
          %5580 = vmatprep.subr.mxu0 0.0
          %5581 = vmatpush1.msra.mxu0 0.0
          %5582 = vmatprep.subr.mxu0 0.0
          %5583 = vmatpush1.msra.mxu0 0.0
          %5584 = vmatprep.subr.mxu0 0.0
          %5585 = vmatpush1.msra.mxu0 0.0
          %5586 = vmatprep.subr.mxu0 0.0
          %5587 = vmatpush1.msra.mxu0 0.0
          %5588 = vmatprep.subr.mxu0 0.0
          %5589 = vmatpush1.msra.mxu0 0.0
          %5590 = vmatprep.subr.mxu0 0.0
          %5591 = vmatpush1.msra.mxu0 0.0
          %5592 = vmatprep.subr.mxu0 0.0
          %5593 = vmatpush1.msra.mxu0 0.0
          %5594 = vmatprep.subr.mxu0 0.0
          %5595 = vmatpush1.msra.mxu0 0.0
          %5596 = vmatprep.subr.mxu0 0.0
          %5597 = vmatpush1.msra.mxu0 0.0
          %5598 = vmatprep.subr.mxu0 0.0
          %5599 = vmatpush1.msra.mxu0 0.0
          %5600 = vmatprep.subr.mxu0 0.0
          %5601 = vmatpush1.msra.mxu0 0.0
          %5602 = vmatprep.subr.mxu0 0.0
          %5603 = vmatpush1.msra.mxu0 0.0
          %5604 = vmatprep.subr.mxu0 0.0
          %5605 = vmatpush1.msra.mxu0 0.0
          %5606 = vmatprep.subr.mxu0 0.0
          %5607 = vmatpush1.msra.mxu0 0.0
          %5608 = vmatprep.subr.mxu0 0.0
          %5609 = vmatpush1.msra.mxu0 0.0
          %5610 = vmatprep.subr.mxu0 0.0
          %5611 = vmatpush1.msra.mxu0 0.0
          %5612 = vmatprep.subr.mxu0 0.0
          %5613 = vmatpush1.msra.mxu0 0.0
          %5614 = vmatprep.subr.mxu0 0.0
          %5615 = vmatpush1.msra.mxu0 0.0
          %5616 = vmatprep.subr.mxu0 0.0
          %5617 = vmatpush1.msra.mxu0 0.0
          %5618 = vmatprep.subr.mxu0 0.0
          %5619 = vmatpush1.msra.mxu0 0.0
          %5620 = vmatprep.subr.mxu0 0.0
          %5621 = vmatpush1.msra.mxu0 0.0
          %5622 = vmatprep.subr.mxu0 0.0
          %5623 = vmatpush1.msra.mxu0 0.0
          %5624 = vmatprep.subr.mxu0 0.0
          %5625 = vmatpush1.msra.mxu0 0.0
          %5626 = vmatprep.mubr.f32.mxu0 0.0
          %5627 = vmatmul.mubr.f32.gmra.mrb[0].mxu0 %v5560
          %v5628 = vpop.f32.mrb[0].mxu0
          %v5629 = vadd.f32 %v5557, %v5628
          %v5630 = vpop.f32.mrb[0].mxu0
          %5631 = vdwg.mxu0
          %v5632 = vadd.f32 %v5629, %v4761
          %v5633 = vsel %vm594, %v5632, 0.0
          %5634 = vadd.xlane.f32.xlu0 %v5633
          %v5635 = vpop.xlane.xlu0 %5634
          %v5636 = vmul.f32 %v5635, %v1632
          %v5637 = vmul.f32 %v5632, %v5632
          %v5638 = vsel %vm594, %v5637, 0.0
          %5639 = vadd.xlane.f32.xlu0 %v5638
          %v5640 = vpop.xlane.xlu0 %5639
          %v5641 = vmul.f32 %v5640, %v1632
          %v5642 = vmul.f32 %v5636, %v5636
          %v5643 = vsub.f32 %v5641, %v5642
          %v5644 = vsub.f32 %v5632, %v5636
          %v5645 = vadd.f32 %v5643, 1e-05
          %v5646 = vrsqrt.pop %v5645
          %v5647 = vmul.f32 %v5644, %v5646
          %s5648 = scalar_lea.vmem %s7, 4
          %v5649 = vld [vmem:[%s5648] sm:$0x1]
          %v5651 = vlaneseq
          %v5652 = vshrl.u32 %v5651, 7
          %v5653 = vsub.s32 0, %v5652
          %v5654 = vrot.slane %v5649, %v5653
          %v5656 = vmul.f32 %v5647, %v5654
          %s5657 = scalar_lea.vmem %s8, 4
          %v5658 = vld [vmem:[%s5657] sm:$0x1]
          %v5660 = vlaneseq
          %v5661 = vshrl.u32 %v5660, 7
          %v5662 = vsub.s32 0, %v5661
          %v5663 = vrot.slane %v5658, %v5662
          %v5665 = vadd.f32 %v5656, %v5663
          %s5666 = scalar_lea.vmem [#allocation10], 32
          %v5667 = vld [vmem:[%s5666] sm:$0xff]
          %v5668 = vld [vmem:[%s5666 + $0x8] sm:$0xff]
          %v5669 = vld [vmem:[%s5666 + $0x10] sm:$0xff]
          %v5670 = vld [vmem:[%s5666 + $0x18] sm:$0xff]
          %s5671 = scalar_lea.vmem %s10, 1
          %v5672 = vld [vmem:[%s5671] sm:$0x1]
          %v5674 = vlaneseq
          %v5675 = vshrl.u32 %v5674, 7
          %v5676 = vsub.s32 0, %v5675
          %v5677 = vrot.slane %v5672, %v5676
          %v5680 = vsel %vm594, %v5665, 0
          %5682 = vmatprep.subr.mxu0 0.0
          %5683 = vmatpush1.msra.mxu0 %v5667
          %5684 = vmatprep.subr.mxu0 0.0
          %5685 = vmatpush1.msra.mxu0 %v5668
          %5686 = vmatprep.subr.mxu0 0.0
          %5687 = vmatpush1.msra.mxu0 %v5669
          %5688 = vmatprep.subr.mxu0 0.0
          %5689 = vmatpush1.msra.mxu0 %v5670
          %5690 = vmatprep.subr.mxu0 0.0
          %5691 = vmatpush1.msra.mxu0 0.0
          %5692 = vmatprep.subr.mxu0 0.0
          %5693 = vmatpush1.msra.mxu0 0.0
          %5694 = vmatprep.subr.mxu0 0.0
          %5695 = vmatpush1.msra.mxu0 0.0
          %5696 = vmatprep.subr.mxu0 0.0
          %5697 = vmatpush1.msra.mxu0 0.0
          %5698 = vmatprep.subr.mxu0 0.0
          %5699 = vmatpush1.msra.mxu0 0.0
          %5700 = vmatprep.subr.mxu0 0.0
          %5701 = vmatpush1.msra.mxu0 0.0
          %5702 = vmatprep.subr.mxu0 0.0
          %5703 = vmatpush1.msra.mxu0 0.0
          %5704 = vmatprep.subr.mxu0 0.0
          %5705 = vmatpush1.msra.mxu0 0.0
          %5706 = vmatprep.subr.mxu0 0.0
          %5707 = vmatpush1.msra.mxu0 0.0
          %5708 = vmatprep.subr.mxu0 0.0
          %5709 = vmatpush1.msra.mxu0 0.0
          %5710 = vmatprep.subr.mxu0 0.0
          %5711 = vmatpush1.msra.mxu0 0.0
          %5712 = vmatprep.subr.mxu0 0.0
          %5713 = vmatpush1.msra.mxu0 0.0
          %5714 = vmatprep.subr.mxu0 0.0
          %5715 = vmatpush1.msra.mxu0 0.0
          %5716 = vmatprep.subr.mxu0 0.0
          %5717 = vmatpush1.msra.mxu0 0.0
          %5718 = vmatprep.subr.mxu0 0.0
          %5719 = vmatpush1.msra.mxu0 0.0
          %5720 = vmatprep.subr.mxu0 0.0
          %5721 = vmatpush1.msra.mxu0 0.0
          %5722 = vmatprep.subr.mxu0 0.0
          %5723 = vmatpush1.msra.mxu0 0.0
          %5724 = vmatprep.subr.mxu0 0.0
          %5725 = vmatpush1.msra.mxu0 0.0
          %5726 = vmatprep.subr.mxu0 0.0
          %5727 = vmatpush1.msra.mxu0 0.0
          %5728 = vmatprep.subr.mxu0 0.0
          %5729 = vmatpush1.msra.mxu0 0.0
          %5730 = vmatprep.subr.mxu0 0.0
          %5731 = vmatpush1.msra.mxu0 0.0
          %5732 = vmatprep.subr.mxu0 0.0
          %5733 = vmatpush1.msra.mxu0 0.0
          %5734 = vmatprep.subr.mxu0 0.0
          %5735 = vmatpush1.msra.mxu0 0.0
          %5736 = vmatprep.subr.mxu0 0.0
          %5737 = vmatpush1.msra.mxu0 0.0
          %5738 = vmatprep.subr.mxu0 0.0
          %5739 = vmatpush1.msra.mxu0 0.0
          %5740 = vmatprep.subr.mxu0 0.0
          %5741 = vmatpush1.msra.mxu0 0.0
          %5742 = vmatprep.subr.mxu0 0.0
          %5743 = vmatpush1.msra.mxu0 0.0
          %5744 = vmatprep.subr.mxu0 0.0
          %5745 = vmatpush1.msra.mxu0 0.0
          %5746 = vmatprep.mubr.f32.mxu0 0.0
          %5747 = vmatmul.mubr.f32.gmra.mrb[0].mxu0 %v5680
          %v5748 = vpop.f32.mrb[0].mxu0
          %v5749 = vadd.f32 %v5677, %v5748
          %v5750 = vpop.f32.mrb[0].mxu0
          %5751 = vdwg.mxu0
          %v5752 = vmax.f32 %v5749, 0.0
          %s5753 = scalar_lea.vmem [#allocation11], 64
          %v5754 = vld [vmem:[%s5753] sm:$0xff]
          %v5755 = vld [vmem:[%s5753 + $0x8] sm:$0xff]
          %v5756 = vld [vmem:[%s5753 + $0x10] sm:$0xff]
          %v5757 = vld [vmem:[%s5753 + $0x18] sm:$0xff]
          %v5758 = vld [vmem:[%s5753 + $0x20] sm:$0xff]
          %v5759 = vld [vmem:[%s5753 + $0x28] sm:$0xff]
          %v5760 = vld [vmem:[%s5753 + $0x30] sm:$0xff]
          %v5761 = vld [vmem:[%s5753 + $0x38] sm:$0xff]
          %s5762 = scalar_lea.vmem %s12, 1
          %v5763 = vld [vmem:[%s5762] sm:$0x1]
          %v5765 = vlaneseq
          %v5766 = vshrl.u32 %v5765, 7
          %v5767 = vsub.s32 0, %v5766
          %v5768 = vrot.slane %v5763, %v5767
          %v5771 = vsel %vm2661, %v5752, 0
          %5773 = vmatprep.subr.mxu0 0.0
          %5774 = vmatpush1.msra.mxu0 %v5754
          %5775 = vmatprep.subr.mxu0 0.0
          %5776 = vmatpush1.msra.mxu0 %v5755
          %5777 = vmatprep.subr.mxu0 0.0
          %5778 = vmatpush1.msra.mxu0 %v5756
          %5779 = vmatprep.subr.mxu0 0.0
          %5780 = vmatpush1.msra.mxu0 %v5757
          %5781 = vmatprep.subr.mxu0 0.0
          %5782 = vmatpush1.msra.mxu0 %v5758
          %5783 = vmatprep.subr.mxu0 0.0
          %5784 = vmatpush1.msra.mxu0 %v5759
          %5785 = vmatprep.subr.mxu0 0.0
          %5786 = vmatpush1.msra.mxu0 %v5760
          %5787 = vmatprep.subr.mxu0 0.0
          %5788 = vmatpush1.msra.mxu0 %v5761
          %5789 = vmatprep.subr.mxu0 0.0
          %5790 = vmatpush1.msra.mxu0 0.0
          %5791 = vmatprep.subr.mxu0 0.0
          %5792 = vmatpush1.msra.mxu0 0.0
          %5793 = vmatprep.subr.mxu0 0.0
          %5794 = vmatpush1.msra.mxu0 0.0
          %5795 = vmatprep.subr.mxu0 0.0
          %5796 = vmatpush1.msra.mxu0 0.0
          %5797 = vmatprep.subr.mxu0 0.0
          %5798 = vmatpush1.msra.mxu0 0.0
          %5799 = vmatprep.subr.mxu0 0.0
          %5800 = vmatpush1.msra.mxu0 0.0
          %5801 = vmatprep.subr.mxu0 0.0
          %5802 = vmatpush1.msra.mxu0 0.0
          %5803 = vmatprep.subr.mxu0 0.0
          %5804 = vmatpush1.msra.mxu0 0.0
          %5805 = vmatprep.subr.mxu0 0.0
          %5806 = vmatpush1.msra.mxu0 0.0
          %5807 = vmatprep.subr.mxu0 0.0
          %5808 = vmatpush1.msra.mxu0 0.0
          %5809 = vmatprep.subr.mxu0 0.0
          %5810 = vmatpush1.msra.mxu0 0.0
          %5811 = vmatprep.subr.mxu0 0.0
          %5812 = vmatpush1.msra.mxu0 0.0
          %5813 = vmatprep.subr.mxu0 0.0
          %5814 = vmatpush1.msra.mxu0 0.0
          %5815 = vmatprep.subr.mxu0 0.0
          %5816 = vmatpush1.msra.mxu0 0.0
          %5817 = vmatprep.subr.mxu0 0.0
          %5818 = vmatpush1.msra.mxu0 0.0
          %5819 = vmatprep.subr.mxu0 0.0
          %5820 = vmatpush1.msra.mxu0 0.0
          %5821 = vmatprep.subr.mxu0 0.0
          %5822 = vmatpush1.msra.mxu0 0.0
          %5823 = vmatprep.subr.mxu0 0.0
          %5824 = vmatpush1.msra.mxu0 0.0
          %5825 = vmatprep.subr.mxu0 0.0
          %5826 = vmatpush1.msra.mxu0 0.0
          %5827 = vmatprep.subr.mxu0 0.0
          %5828 = vmatpush1.msra.mxu0 0.0
          %5829 = vmatprep.subr.mxu0 0.0
          %5830 = vmatpush1.msra.mxu0 0.0
          %5831 = vmatprep.subr.mxu0 0.0
          %5832 = vmatpush1.msra.mxu0 0.0
          %5833 = vmatprep.subr.mxu0 0.0
          %5834 = vmatpush1.msra.mxu0 0.0
          %5835 = vmatprep.subr.mxu0 0.0
          %5836 = vmatpush1.msra.mxu0 0.0
          %5837 = vmatprep.mubr.f32.mxu0 0.0
          %5838 = vmatmul.mubr.f32.gmra.mrb[0].mxu0 %v5771
          %v5839 = vpop.f32.mrb[0].mxu0
          %v5840 = vadd.f32 %v5768, %v5839
          %v5841 = vpop.f32.mrb[0].mxu0
          %5842 = vdwg.mxu0
          %v5843 = vadd.f32 %v5840, %v5665
          %v5844 = vsel %vm594, %v5843, 0.0
          %5845 = vadd.xlane.f32.xlu0 %v5844
          %v5846 = vpop.xlane.xlu0 %5845
          %v5847 = vmul.f32 %v5846, %v1632
          %v5848 = vmul.f32 %v5843, %v5843
          %v5849 = vsel %vm594, %v5848, 0.0
          %5850 = vadd.xlane.f32.xlu0 %v5849
          %v5851 = vpop.xlane.xlu0 %5850
          %v5852 = vmul.f32 %v5851, %v1632
          %v5853 = vmul.f32 %v5847, %v5847
          %v5854 = vsub.f32 %v5852, %v5853
          %v5855 = vsub.f32 %v5843, %v5847
          %v5856 = vadd.f32 %v5854, 1e-05
          %v5857 = vrsqrt.pop %v5856
          %v5858 = vmul.f32 %v5855, %v5857
          %s5859 = scalar_lea.vmem %s7, 5
          %v5860 = vld [vmem:[%s5859] sm:$0x1]
          %v5862 = vlaneseq
          %v5863 = vshrl.u32 %v5862, 7
          %v5864 = vsub.s32 0, %v5863
          %v5865 = vrot.slane %v5860, %v5864
          %v5867 = vmul.f32 %v5858, %v5865
          %s5868 = scalar_lea.vmem %s8, 5
          %v5869 = vld [vmem:[%s5868] sm:$0x1]
          %v5871 = vlaneseq
          %v5872 = vshrl.u32 %v5871, 7
          %v5873 = vsub.s32 0, %v5872
          %v5874 = vrot.slane %v5869, %v5873
          %v5876 = vadd.f32 %v5867, %v5874
        $region101: #{perceiver_forward.1} parent=71 // loop_footer
          %s2774 = sadd.s32 1, %s2770
        $region102: #{perceiver_forward.1} parent=71 // loop_footer_branch
          %2769 = sbr.rel target = $region98
        $region103: #{perceiver_forward.1} parent=71 // loop_exit
          _
        loop: start=0, step=1, limit=2
        $region111: #{perceiver_forward.1} parent=71 // loop_pre_header
          _
        $region112: #{perceiver_forward.1} parent=71 // loop_header
          %s5878 = sphi 0, %s5882
          %p5879 = scmp.ge.s32.totalorder %s5878, 2
          %v5883 = vphi %v2775, %v6982
        $region113: #{perceiver_forward.1} parent=71 // loop_header_branch
          %5881 = sbr.rel (%p5879) target = $region117
        $region114: #{perceiver_forward.1} parent=71 // loop_body
          %s5884 = sadd.s32 %s5878, 4
          %s5885 = smul.u32 %s5878, 2
          %s5886 = sadd.s32 %s5885, 6
          %s5887 = sadd.s32 %s5878, 2
          %s5888 = smul.u32 %s5884, 32
          %s5889 = scalar_lea.vmem [#allocation7], %s5888
          %v5890 = vld [vmem:[%s5889] sm:$0xff]
          %v5891 = vld [vmem:[%s5889 + $0x8] sm:$0xff]
          %v5892 = vld [vmem:[%s5889 + $0x10] sm:$0xff]
          %v5893 = vld [vmem:[%s5889 + $0x18] sm:$0xff]
          %s5894 = scalar_lea.vmem %s4, %s5884
          %v5895 = vld [vmem:[%s5894] sm:$0x1]
          %v5897 = vlaneseq
          %v5898 = vshrl.u32 %v5897, 7
          %v5899 = vsub.s32 0, %v5898
          %v5900 = vrot.slane %v5895, %v5899
          %v5903 = vsel %vm594, %v5883, 0
          %5905 = vmatprep.subr.mxu0 0.0
          %5906 = vmatpush1.msra.mxu0 %v5890
          %5907 = vmatprep.subr.mxu0 0.0
          %5908 = vmatpush1.msra.mxu0 %v5891
          %5909 = vmatprep.subr.mxu0 0.0
          %5910 = vmatpush1.msra.mxu0 %v5892
          %5911 = vmatprep.subr.mxu0 0.0
          %5912 = vmatpush1.msra.mxu0 %v5893
          %5913 = vmatprep.subr.mxu0 0.0
          %5914 = vmatpush1.msra.mxu0 0.0
          %5915 = vmatprep.subr.mxu0 0.0
          %5916 = vmatpush1.msra.mxu0 0.0
          %5917 = vmatprep.subr.mxu0 0.0
          %5918 = vmatpush1.msra.mxu0 0.0
          %5919 = vmatprep.subr.mxu0 0.0
          %5920 = vmatpush1.msra.mxu0 0.0
          %5921 = vmatprep.subr.mxu0 0.0
          %5922 = vmatpush1.msra.mxu0 0.0
          %5923 = vmatprep.subr.mxu0 0.0
          %5924 = vmatpush1.msra.mxu0 0.0
          %5925 = vmatprep.subr.mxu0 0.0
          %5926 = vmatpush1.msra.mxu0 0.0
          %5927 = vmatprep.subr.mxu0 0.0
          %5928 = vmatpush1.msra.mxu0 0.0
          %5929 = vmatprep.subr.mxu0 0.0
          %5930 = vmatpush1.msra.mxu0 0.0
          %5931 = vmatprep.subr.mxu0 0.0
          %5932 = vmatpush1.msra.mxu0 0.0
          %5933 = vmatprep.subr.mxu0 0.0
          %5934 = vmatpush1.msra.mxu0 0.0
          %5935 = vmatprep.subr.mxu0 0.0
          %5936 = vmatpush1.msra.mxu0 0.0
          %5937 = vmatprep.subr.mxu0 0.0
          %5938 = vmatpush1.msra.mxu0 0.0
          %5939 = vmatprep.subr.mxu0 0.0
          %5940 = vmatpush1.msra.mxu0 0.0
          %5941 = vmatprep.subr.mxu0 0.0
          %5942 = vmatpush1.msra.mxu0 0.0
          %5943 = vmatprep.subr.mxu0 0.0
          %5944 = vmatpush1.msra.mxu0 0.0
          %5945 = vmatprep.subr.mxu0 0.0
          %5946 = vmatpush1.msra.mxu0 0.0
          %5947 = vmatprep.subr.mxu0 0.0
          %5948 = vmatpush1.msra.mxu0 0.0
          %5949 = vmatprep.subr.mxu0 0.0
          %5950 = vmatpush1.msra.mxu0 0.0
          %5951 = vmatprep.subr.mxu0 0.0
          %5952 = vmatpush1.msra.mxu0 0.0
          %5953 = vmatprep.subr.mxu0 0.0
          %5954 = vmatpush1.msra.mxu0 0.0
          %5955 = vmatprep.subr.mxu0 0.0
          %5956 = vmatpush1.msra.mxu0 0.0
          %5957 = vmatprep.subr.mxu0 0.0
          %5958 = vmatpush1.msra.mxu0 0.0
          %5959 = vmatprep.subr.mxu0 0.0
          %5960 = vmatpush1.msra.mxu0 0.0
          %5961 = vmatprep.subr.mxu0 0.0
          %5962 = vmatpush1.msra.mxu0 0.0
          %5963 = vmatprep.subr.mxu0 0.0
          %5964 = vmatpush1.msra.mxu0 0.0
          %5965 = vmatprep.subr.mxu0 0.0
          %5966 = vmatpush1.msra.mxu0 0.0
          %5967 = vmatprep.subr.mxu0 0.0
          %5968 = vmatpush1.msra.mxu0 0.0
          %5969 = vmatprep.mubr.f32.mxu0 0.0
          %5970 = vmatmul.mubr.f32.gmra.mrb[0].mxu0 %v5903
          %v5971 = vpop.f32.mrb[0].mxu0
          %v5972 = vadd.f32 %v5900, %v5971
          %v5973 = vpop.f32.mrb[0].mxu0
          %5974 = vdwg.mxu0
          %5976 = vrot.lane.b32.xlu0 %v5972, 96
          %v5977 = vpop.permute.xlu0 %5976
          %v5978 = vsel %vm870, %v5972, 0
          %v5980 = vsel %vm870, %v5977, 0
          %5982 = vmatprep.subr.mxu0 0.0
          %5983 = vmatpush1.xpose.msra.mxu0 %v5980
          %5984 = vmatprep.subr.mxu0 0.0
          %5985 = vmatpush1.xpose.msra.mxu0 0.0
          %5986 = vmatprep.subr.mxu0 0.0
          %5987 = vmatpush1.xpose.msra.mxu0 0.0
          %5988 = vmatprep.subr.mxu0 0.0
          %5989 = vmatpush1.xpose.msra.mxu0 0.0
          %5990 = vmatprep.subr.mxu0 0.0
          %5991 = vmatpush1.xpose.msra.mxu0 0.0
          %5992 = vmatprep.subr.mxu0 0.0
          %5993 = vmatpush1.xpose.msra.mxu0 0.0
          %5994 = vmatprep.subr.mxu0 0.0
          %5995 = vmatpush1.xpose.msra.mxu0 0.0
          %5996 = vmatprep.subr.mxu0 0.0
          %5997 = vmatpush1.xpose.msra.mxu0 0.0
          %5998 = vmatprep.subr.mxu0 0.0
          %5999 = vmatpush1.xpose.msra.mxu0 0.0
          %6000 = vmatprep.subr.mxu0 0.0
          %6001 = vmatpush1.xpose.msra.mxu0 0.0
          %6002 = vmatprep.subr.mxu0 0.0
          %6003 = vmatpush1.xpose.msra.mxu0 0.0
          %6004 = vmatprep.subr.mxu0 0.0
          %6005 = vmatpush1.xpose.msra.mxu0 0.0
          %6006 = vmatprep.subr.mxu0 0.0
          %6007 = vmatpush1.xpose.msra.mxu0 0.0
          %6008 = vmatprep.subr.mxu0 0.0
          %6009 = vmatpush1.xpose.msra.mxu0 0.0
          %6010 = vmatprep.subr.mxu0 0.0
          %6011 = vmatpush1.xpose.msra.mxu0 0.0
          %6012 = vmatprep.subr.mxu0 0.0
          %6013 = vmatpush1.xpose.msra.mxu0 0.0
          %6014 = vmatprep.subr.mxu0 0.0
          %6015 = vmatpush1.xpose.msra.mxu0 0.0
          %6016 = vmatprep.subr.mxu0 0.0
          %6017 = vmatpush1.xpose.msra.mxu0 0.0
          %6018 = vmatprep.subr.mxu0 0.0
          %6019 = vmatpush1.xpose.msra.mxu0 0.0
          %6020 = vmatprep.subr.mxu0 0.0
          %6021 = vmatpush1.xpose.msra.mxu0 0.0
          %6022 = vmatprep.subr.mxu0 0.0
          %6023 = vmatpush1.xpose.msra.mxu0 0.0
          %6024 = vmatprep.subr.mxu0 0.0
          %6025 = vmatpush1.xpose.msra.mxu0 0.0
          %6026 = vmatprep.subr.mxu0 0.0
          %6027 = vmatpush1.xpose.msra.mxu0 0.0
          %6028 = vmatprep.subr.mxu0 0.0
          %6029 = vmatpush1.xpose.msra.mxu0 0.0
          %6030 = vmatprep.subr.mxu0 0.0
          %6031 = vmatpush1.xpose.msra.mxu0 0.0
          %6032 = vmatprep.subr.mxu0 0.0
          %6033 = vmatpush1.xpose.msra.mxu0 0.0
          %6034 = vmatprep.subr.mxu0 0.0
          %6035 = vmatpush1.xpose.msra.mxu0 0.0
          %6036 = vmatprep.subr.mxu0 0.0
          %6037 = vmatpush1.xpose.msra.mxu0 0.0
          %6038 = vmatprep.subr.mxu0 0.0
          %6039 = vmatpush1.xpose.msra.mxu0 0.0
          %6040 = vmatprep.subr.mxu0 0.0
          %6041 = vmatpush1.xpose.msra.mxu0 0.0
          %6042 = vmatprep.subr.mxu0 0.0
          %6043 = vmatpush1.xpose.msra.mxu0 0.0
          %6044 = vmatprep.subr.mxu0 0.0
          %6045 = vmatpush1.xpose.msra.mxu0 0.0
          %6046 = vmatprep.mubr.f32.mxu0 0.0
          %6047 = vmatmul.mubr.f32.gmra.mrb[0].mxu0 %v5978
          %v6048 = vpop.f32.mrb[0].mxu0
          %v6049 = vadd.f32 0.0, %v6048
          %v6050 = vpop.f32.mrb[0].mxu0
          %6051 = vdwg.mxu0
          %v6052 = vsel %vm870, %v6049, -inf
          %6053 = vmax.xlane.f32.xlu0 %v6052
          %v6054 = vpop.xlane.xlu0 %6053
          %v6055 = vsub.f32 %v6049, %v6054
          %v6056 = vmul.f32 %v6055, 1.442695
          %v6057 = vpow.pop %v6056
          %v6058 = vsel %vm870, %v6057, 0.0
          %6059 = vadd.xlane.f32.xlu0 %v6058
          %v6060 = vpop.xlane.xlu0 %6059
          %v6061 = vrcp.pop %v6060
          %v6062 = vmul.f32 %v6057, %v6061
          %6063 = vrot.lane.b32.xlu0 %v5972, 64
          %v6064 = vpop.permute.xlu0 %6063
          %v6067 = vsel %vm870, %v6062, 0
          %6069 = vmatprep.subr.mxu0 0.0
          %6070 = vmatpush1.msra.mxu0 %v6064
          %6071 = vmatprep.subr.mxu0 0.0
          %6072 = vmatpush1.msra.mxu0 0.0
          %6073 = vmatprep.subr.mxu0 0.0
          %6074 = vmatpush1.msra.mxu0 0.0
          %6075 = vmatprep.subr.mxu0 0.0
          %6076 = vmatpush1.msra.mxu0 0.0
          %6077 = vmatprep.subr.mxu0 0.0
          %6078 = vmatpush1.msra.mxu0 0.0
          %6079 = vmatprep.subr.mxu0 0.0
          %6080 = vmatpush1.msra.mxu0 0.0
          %6081 = vmatprep.subr.mxu0 0.0
          %6082 = vmatpush1.msra.mxu0 0.0
          %6083 = vmatprep.subr.mxu0 0.0
          %6084 = vmatpush1.msra.mxu0 0.0
          %6085 = vmatprep.subr.mxu0 0.0
          %6086 = vmatpush1.msra.mxu0 0.0
          %6087 = vmatprep.subr.mxu0 0.0
          %6088 = vmatpush1.msra.mxu0 0.0
          %6089 = vmatprep.subr.mxu0 0.0
          %6090 = vmatpush1.msra.mxu0 0.0
          %6091 = vmatprep.subr.mxu0 0.0
          %6092 = vmatpush1.msra.mxu0 0.0
          %6093 = vmatprep.subr.mxu0 0.0
          %6094 = vmatpush1.msra.mxu0 0.0
          %6095 = vmatprep.subr.mxu0 0.0
          %6096 = vmatpush1.msra.mxu0 0.0
          %6097 = vmatprep.subr.mxu0 0.0
          %6098 = vmatpush1.msra.mxu0 0.0
          %6099 = vmatprep.subr.mxu0 0.0
          %6100 = vmatpush1.msra.mxu0 0.0
          %6101 = vmatprep.subr.mxu0 0.0
          %6102 = vmatpush1.msra.mxu0 0.0
          %6103 = vmatprep.subr.mxu0 0.0
          %6104 = vmatpush1.msra.mxu0 0.0
          %6105 = vmatprep.subr.mxu0 0.0
          %6106 = vmatpush1.msra.mxu0 0.0
          %6107 = vmatprep.subr.mxu0 0.0
          %6108 = vmatpush1.msra.mxu0 0.0
          %6109 = vmatprep.subr.mxu0 0.0
          %6110 = vmatpush1.msra.mxu0 0.0
          %6111 = vmatprep.subr.mxu0 0.0
          %6112 = vmatpush1.msra.mxu0 0.0
          %6113 = vmatprep.subr.mxu0 0.0
          %6114 = vmatpush1.msra.mxu0 0.0
          %6115 = vmatprep.subr.mxu0 0.0
          %6116 = vmatpush1.msra.mxu0 0.0
          %6117 = vmatprep.subr.mxu0 0.0
          %6118 = vmatpush1.msra.mxu0 0.0
          %6119 = vmatprep.subr.mxu0 0.0
          %6120 = vmatpush1.msra.mxu0 0.0
          %6121 = vmatprep.subr.mxu0 0.0
          %6122 = vmatpush1.msra.mxu0 0.0
          %6123 = vmatprep.subr.mxu0 0.0
          %6124 = vmatpush1.msra.mxu0 0.0
          %6125 = vmatprep.subr.mxu0 0.0
          %6126 = vmatpush1.msra.mxu0 0.0
          %6127 = vmatprep.subr.mxu0 0.0
          %6128 = vmatpush1.msra.mxu0 0.0
          %6129 = vmatprep.subr.mxu0 0.0
          %6130 = vmatpush1.msra.mxu0 0.0
          %6131 = vmatprep.subr.mxu0 0.0
          %6132 = vmatpush1.msra.mxu0 0.0
          %6133 = vmatprep.mubr.f32.mxu0 0.0
          %6134 = vmatmul.mubr.f32.gmra.mrb[0].mxu0 %v6067
          %v6135 = vpop.f32.mrb[0].mxu0
          %v6136 = vadd.f32 0.0, %v6135
          %v6137 = vpop.f32.mrb[0].mxu0
          %6138 = vdwg.mxu0
          %6139 = vrot.lane.b32.xlu0 %v5972, 120
          %v6140 = vpop.permute.xlu0 %6139
          %6141 = vrot.lane.b32.xlu0 %v5972, 88
          %v6142 = vpop.permute.xlu0 %6141
          %v6143 = vsel %vm870, %v6140, 0
          %v6145 = vsel %vm870, %v6142, 0
          %6147 = vmatprep.subr.mxu0 0.0
          %6148 = vmatpush1.xpose.msra.mxu0 %v6145
          %6149 = vmatprep.subr.mxu0 0.0
          %6150 = vmatpush1.xpose.msra.mxu0 0.0
          %6151 = vmatprep.subr.mxu0 0.0
          %6152 = vmatpush1.xpose.msra.mxu0 0.0
          %6153 = vmatprep.subr.mxu0 0.0
          %6154 = vmatpush1.xpose.msra.mxu0 0.0
          %6155 = vmatprep.subr.mxu0 0.0
          %6156 = vmatpush1.xpose.msra.mxu0 0.0
          %6157 = vmatprep.subr.mxu0 0.0
          %6158 = vmatpush1.xpose.msra.mxu0 0.0
          %6159 = vmatprep.subr.mxu0 0.0
          %6160 = vmatpush1.xpose.msra.mxu0 0.0
          %6161 = vmatprep.subr.mxu0 0.0
          %6162 = vmatpush1.xpose.msra.mxu0 0.0
          %6163 = vmatprep.subr.mxu0 0.0
          %6164 = vmatpush1.xpose.msra.mxu0 0.0
          %6165 = vmatprep.subr.mxu0 0.0
          %6166 = vmatpush1.xpose.msra.mxu0 0.0
          %6167 = vmatprep.subr.mxu0 0.0
          %6168 = vmatpush1.xpose.msra.mxu0 0.0
          %6169 = vmatprep.subr.mxu0 0.0
          %6170 = vmatpush1.xpose.msra.mxu0 0.0
          %6171 = vmatprep.subr.mxu0 0.0
          %6172 = vmatpush1.xpose.msra.mxu0 0.0
          %6173 = vmatprep.subr.mxu0 0.0
          %6174 = vmatpush1.xpose.msra.mxu0 0.0
          %6175 = vmatprep.subr.mxu0 0.0
          %6176 = vmatpush1.xpose.msra.mxu0 0.0
          %6177 = vmatprep.subr.mxu0 0.0
          %6178 = vmatpush1.xpose.msra.mxu0 0.0
          %6179 = vmatprep.subr.mxu0 0.0
          %6180 = vmatpush1.xpose.msra.mxu0 0.0
          %6181 = vmatprep.subr.mxu0 0.0
          %6182 = vmatpush1.xpose.msra.mxu0 0.0
          %6183 = vmatprep.subr.mxu0 0.0
          %6184 = vmatpush1.xpose.msra.mxu0 0.0
          %6185 = vmatprep.subr.mxu0 0.0
          %6186 = vmatpush1.xpose.msra.mxu0 0.0
          %6187 = vmatprep.subr.mxu0 0.0
          %6188 = vmatpush1.xpose.msra.mxu0 0.0
          %6189 = vmatprep.subr.mxu0 0.0
          %6190 = vmatpush1.xpose.msra.mxu0 0.0
          %6191 = vmatprep.subr.mxu0 0.0
          %6192 = vmatpush1.xpose.msra.mxu0 0.0
          %6193 = vmatprep.subr.mxu0 0.0
          %6194 = vmatpush1.xpose.msra.mxu0 0.0
          %6195 = vmatprep.subr.mxu0 0.0
          %6196 = vmatpush1.xpose.msra.mxu0 0.0
          %6197 = vmatprep.subr.mxu0 0.0
          %6198 = vmatpush1.xpose.msra.mxu0 0.0
          %6199 = vmatprep.subr.mxu0 0.0
          %6200 = vmatpush1.xpose.msra.mxu0 0.0
          %6201 = vmatprep.subr.mxu0 0.0
          %6202 = vmatpush1.xpose.msra.mxu0 0.0
          %6203 = vmatprep.subr.mxu0 0.0
          %6204 = vmatpush1.xpose.msra.mxu0 0.0
          %6205 = vmatprep.subr.mxu0 0.0
          %6206 = vmatpush1.xpose.msra.mxu0 0.0
          %6207 = vmatprep.subr.mxu0 0.0
          %6208 = vmatpush1.xpose.msra.mxu0 0.0
          %6209 = vmatprep.subr.mxu0 0.0
          %6210 = vmatpush1.xpose.msra.mxu0 0.0
          %6211 = vmatprep.mubr.f32.mxu0 0.0
          %6212 = vmatmul.mubr.f32.gmra.mrb[0].mxu0 %v6143
          %v6213 = vpop.f32.mrb[0].mxu0
          %v6214 = vadd.f32 0.0, %v6213
          %v6215 = vpop.f32.mrb[0].mxu0
          %6216 = vdwg.mxu0
          %v6217 = vsel %vm870, %v6214, -inf
          %6218 = vmax.xlane.f32.xlu0 %v6217
          %v6219 = vpop.xlane.xlu0 %6218
          %v6220 = vsub.f32 %v6214, %v6219
          %v6221 = vmul.f32 %v6220, 1.442695
          %v6222 = vpow.pop %v6221
          %v6223 = vsel %vm870, %v6222, 0.0
          %6224 = vadd.xlane.f32.xlu0 %v6223
          %v6225 = vpop.xlane.xlu0 %6224
          %v6226 = vrcp.pop %v6225
          %v6227 = vmul.f32 %v6222, %v6226
          %6228 = vrot.lane.b32.xlu0 %v5972, 56
          %v6229 = vpop.permute.xlu0 %6228
          %v6232 = vsel %vm870, %v6227, 0
          %6234 = vmatprep.subr.mxu0 0.0
          %6235 = vmatpush1.msra.mxu0 %v6229
          %6236 = vmatprep.subr.mxu0 0.0
          %6237 = vmatpush1.msra.mxu0 0.0
          %6238 = vmatprep.subr.mxu0 0.0
          %6239 = vmatpush1.msra.mxu0 0.0
          %6240 = vmatprep.subr.mxu0 0.0
          %6241 = vmatpush1.msra.mxu0 0.0
          %6242 = vmatprep.subr.mxu0 0.0
          %6243 = vmatpush1.msra.mxu0 0.0
          %6244 = vmatprep.subr.mxu0 0.0
          %6245 = vmatpush1.msra.mxu0 0.0
          %6246 = vmatprep.subr.mxu0 0.0
          %6247 = vmatpush1.msra.mxu0 0.0
          %6248 = vmatprep.subr.mxu0 0.0
          %6249 = vmatpush1.msra.mxu0 0.0
          %6250 = vmatprep.subr.mxu0 0.0
          %6251 = vmatpush1.msra.mxu0 0.0
          %6252 = vmatprep.subr.mxu0 0.0
          %6253 = vmatpush1.msra.mxu0 0.0
          %6254 = vmatprep.subr.mxu0 0.0
          %6255 = vmatpush1.msra.mxu0 0.0
          %6256 = vmatprep.subr.mxu0 0.0
          %6257 = vmatpush1.msra.mxu0 0.0
          %6258 = vmatprep.subr.mxu0 0.0
          %6259 = vmatpush1.msra.mxu0 0.0
          %6260 = vmatprep.subr.mxu0 0.0
          %6261 = vmatpush1.msra.mxu0 0.0
          %6262 = vmatprep.subr.mxu0 0.0
          %6263 = vmatpush1.msra.mxu0 0.0
          %6264 = vmatprep.subr.mxu0 0.0
          %6265 = vmatpush1.msra.mxu0 0.0
          %6266 = vmatprep.subr.mxu0 0.0
          %6267 = vmatpush1.msra.mxu0 0.0
          %6268 = vmatprep.subr.mxu0 0.0
          %6269 = vmatpush1.msra.mxu0 0.0
          %6270 = vmatprep.subr.mxu0 0.0
          %6271 = vmatpush1.msra.mxu0 0.0
          %6272 = vmatprep.subr.mxu0 0.0
          %6273 = vmatpush1.msra.mxu0 0.0
          %6274 = vmatprep.subr.mxu0 0.0
          %6275 = vmatpush1.msra.mxu0 0.0
          %6276 = vmatprep.subr.mxu0 0.0
          %6277 = vmatpush1.msra.mxu0 0.0
          %6278 = vmatprep.subr.mxu0 0.0
          %6279 = vmatpush1.msra.mxu0 0.0
          %6280 = vmatprep.subr.mxu0 0.0
          %6281 = vmatpush1.msra.mxu0 0.0
          %6282 = vmatprep.subr.mxu0 0.0
          %6283 = vmatpush1.msra.mxu0 0.0
          %6284 = vmatprep.subr.mxu0 0.0
          %6285 = vmatpush1.msra.mxu0 0.0
          %6286 = vmatprep.subr.mxu0 0.0
          %6287 = vmatpush1.msra.mxu0 0.0
          %6288 = vmatprep.subr.mxu0 0.0
          %6289 = vmatpush1.msra.mxu0 0.0
          %6290 = vmatprep.subr.mxu0 0.0
          %6291 = vmatpush1.msra.mxu0 0.0
          %6292 = vmatprep.subr.mxu0 0.0
          %6293 = vmatpush1.msra.mxu0 0.0
          %6294 = vmatprep.subr.mxu0 0.0
          %6295 = vmatpush1.msra.mxu0 0.0
          %6296 = vmatprep.subr.mxu0 0.0
          %6297 = vmatpush1.msra.mxu0 0.0
          %6298 = vmatprep.mubr.f32.mxu0 0.0
          %6299 = vmatmul.mubr.f32.gmra.mrb[0].mxu0 %v6232
          %v6300 = vpop.f32.mrb[0].mxu0
          %v6301 = vadd.f32 0.0, %v6300
          %v6302 = vpop.f32.mrb[0].mxu0
          %6303 = vdwg.mxu0
          %6304 = vrot.lane.b32.xlu0 %v5972, 112
          %v6305 = vpop.permute.xlu0 %6304
          %6306 = vrot.lane.b32.xlu0 %v5972, 80
          %v6307 = vpop.permute.xlu0 %6306
          %v6308 = vsel %vm870, %v6305, 0
          %v6310 = vsel %vm870, %v6307, 0
          %6312 = vmatprep.subr.mxu0 0.0
          %6313 = vmatpush1.xpose.msra.mxu0 %v6310
          %6314 = vmatprep.subr.mxu0 0.0
          %6315 = vmatpush1.xpose.msra.mxu0 0.0
          %6316 = vmatprep.subr.mxu0 0.0
          %6317 = vmatpush1.xpose.msra.mxu0 0.0
          %6318 = vmatprep.subr.mxu0 0.0
          %6319 = vmatpush1.xpose.msra.mxu0 0.0
          %6320 = vmatprep.subr.mxu0 0.0
          %6321 = vmatpush1.xpose.msra.mxu0 0.0
          %6322 = vmatprep.subr.mxu0 0.0
          %6323 = vmatpush1.xpose.msra.mxu0 0.0
          %6324 = vmatprep.subr.mxu0 0.0
          %6325 = vmatpush1.xpose.msra.mxu0 0.0
          %6326 = vmatprep.subr.mxu0 0.0
          %6327 = vmatpush1.xpose.msra.mxu0 0.0
          %6328 = vmatprep.subr.mxu0 0.0
          %6329 = vmatpush1.xpose.msra.mxu0 0.0
          %6330 = vmatprep.subr.mxu0 0.0
          %6331 = vmatpush1.xpose.msra.mxu0 0.0
          %6332 = vmatprep.subr.mxu0 0.0
          %6333 = vmatpush1.xpose.msra.mxu0 0.0
          %6334 = vmatprep.subr.mxu0 0.0
          %6335 = vmatpush1.xpose.msra.mxu0 0.0
          %6336 = vmatprep.subr.mxu0 0.0
          %6337 = vmatpush1.xpose.msra.mxu0 0.0
          %6338 = vmatprep.subr.mxu0 0.0
          %6339 = vmatpush1.xpose.msra.mxu0 0.0
          %6340 = vmatprep.subr.mxu0 0.0
          %6341 = vmatpush1.xpose.msra.mxu0 0.0
          %6342 = vmatprep.subr.mxu0 0.0
          %6343 = vmatpush1.xpose.msra.mxu0 0.0
          %6344 = vmatprep.subr.mxu0 0.0
          %6345 = vmatpush1.xpose.msra.mxu0 0.0
          %6346 = vmatprep.subr.mxu0 0.0
          %6347 = vmatpush1.xpose.msra.mxu0 0.0
          %6348 = vmatprep.subr.mxu0 0.0
          %6349 = vmatpush1.xpose.msra.mxu0 0.0
          %6350 = vmatprep.subr.mxu0 0.0
          %6351 = vmatpush1.xpose.msra.mxu0 0.0
          %6352 = vmatprep.subr.mxu0 0.0
          %6353 = vmatpush1.xpose.msra.mxu0 0.0
          %6354 = vmatprep.subr.mxu0 0.0
          %6355 = vmatpush1.xpose.msra.mxu0 0.0
          %6356 = vmatprep.subr.mxu0 0.0
          %6357 = vmatpush1.xpose.msra.mxu0 0.0
          %6358 = vmatprep.subr.mxu0 0.0
          %6359 = vmatpush1.xpose.msra.mxu0 0.0
          %6360 = vmatprep.subr.mxu0 0.0
          %6361 = vmatpush1.xpose.msra.mxu0 0.0
          %6362 = vmatprep.subr.mxu0 0.0
          %6363 = vmatpush1.xpose.msra.mxu0 0.0
          %6364 = vmatprep.subr.mxu0 0.0
          %6365 = vmatpush1.xpose.msra.mxu0 0.0
          %6366 = vmatprep.subr.mxu0 0.0
          %6367 = vmatpush1.xpose.msra.mxu0 0.0
          %6368 = vmatprep.subr.mxu0 0.0
          %6369 = vmatpush1.xpose.msra.mxu0 0.0
          %6370 = vmatprep.subr.mxu0 0.0
          %6371 = vmatpush1.xpose.msra.mxu0 0.0
          %6372 = vmatprep.subr.mxu0 0.0
          %6373 = vmatpush1.xpose.msra.mxu0 0.0
          %6374 = vmatprep.subr.mxu0 0.0
          %6375 = vmatpush1.xpose.msra.mxu0 0.0
          %6376 = vmatprep.mubr.f32.mxu0 0.0
          %6377 = vmatmul.mubr.f32.gmra.mrb[0].mxu0 %v6308
          %v6378 = vpop.f32.mrb[0].mxu0
          %v6379 = vadd.f32 0.0, %v6378
          %v6380 = vpop.f32.mrb[0].mxu0
          %6381 = vdwg.mxu0
          %v6382 = vsel %vm870, %v6379, -inf
          %6383 = vmax.xlane.f32.xlu0 %v6382
          %v6384 = vpop.xlane.xlu0 %6383
          %v6385 = vsub.f32 %v6379, %v6384
          %v6386 = vmul.f32 %v6385, 1.442695
          %v6387 = vpow.pop %v6386
          %v6388 = vsel %vm870, %v6387, 0.0
          %6389 = vadd.xlane.f32.xlu0 %v6388
          %v6390 = vpop.xlane.xlu0 %6389
          %v6391 = vrcp.pop %v6390
          %v6392 = vmul.f32 %v6387, %v6391
          %6393 = vrot.lane.b32.xlu0 %v5972, 48
          %v6394 = vpop.permute.xlu0 %6393
          %v6397 = vsel %vm870, %v6392, 0
          %6399 = vmatprep.subr.mxu0 0.0
          %6400 = vmatpush1.msra.mxu0 %v6394
          %6401 = vmatprep.subr.mxu0 0.0
          %6402 = vmatpush1.msra.mxu0 0.0
          %6403 = vmatprep.subr.mxu0 0.0
          %6404 = vmatpush1.msra.mxu0 0.0
          %6405 = vmatprep.subr.mxu0 0.0
          %6406 = vmatpush1.msra.mxu0 0.0
          %6407 = vmatprep.subr.mxu0 0.0
          %6408 = vmatpush1.msra.mxu0 0.0
          %6409 = vmatprep.subr.mxu0 0.0
          %6410 = vmatpush1.msra.mxu0 0.0
          %6411 = vmatprep.subr.mxu0 0.0
          %6412 = vmatpush1.msra.mxu0 0.0
          %6413 = vmatprep.subr.mxu0 0.0
          %6414 = vmatpush1.msra.mxu0 0.0
          %6415 = vmatprep.subr.mxu0 0.0
          %6416 = vmatpush1.msra.mxu0 0.0
          %6417 = vmatprep.subr.mxu0 0.0
          %6418 = vmatpush1.msra.mxu0 0.0
          %6419 = vmatprep.subr.mxu0 0.0
          %6420 = vmatpush1.msra.mxu0 0.0
          %6421 = vmatprep.subr.mxu0 0.0
          %6422 = vmatpush1.msra.mxu0 0.0
          %6423 = vmatprep.subr.mxu0 0.0
          %6424 = vmatpush1.msra.mxu0 0.0
          %6425 = vmatprep.subr.mxu0 0.0
          %6426 = vmatpush1.msra.mxu0 0.0
          %6427 = vmatprep.subr.mxu0 0.0
          %6428 = vmatpush1.msra.mxu0 0.0
          %6429 = vmatprep.subr.mxu0 0.0
          %6430 = vmatpush1.msra.mxu0 0.0
          %6431 = vmatprep.subr.mxu0 0.0
          %6432 = vmatpush1.msra.mxu0 0.0
          %6433 = vmatprep.subr.mxu0 0.0
          %6434 = vmatpush1.msra.mxu0 0.0
          %6435 = vmatprep.subr.mxu0 0.0
          %6436 = vmatpush1.msra.mxu0 0.0
          %6437 = vmatprep.subr.mxu0 0.0
          %6438 = vmatpush1.msra.mxu0 0.0
          %6439 = vmatprep.subr.mxu0 0.0
          %6440 = vmatpush1.msra.mxu0 0.0
          %6441 = vmatprep.subr.mxu0 0.0
          %6442 = vmatpush1.msra.mxu0 0.0
          %6443 = vmatprep.subr.mxu0 0.0
          %6444 = vmatpush1.msra.mxu0 0.0
          %6445 = vmatprep.subr.mxu0 0.0
          %6446 = vmatpush1.msra.mxu0 0.0
          %6447 = vmatprep.subr.mxu0 0.0
          %6448 = vmatpush1.msra.mxu0 0.0
          %6449 = vmatprep.subr.mxu0 0.0
          %6450 = vmatpush1.msra.mxu0 0.0
          %6451 = vmatprep.subr.mxu0 0.0
          %6452 = vmatpush1.msra.mxu0 0.0
          %6453 = vmatprep.subr.mxu0 0.0
          %6454 = vmatpush1.msra.mxu0 0.0
          %6455 = vmatprep.subr.mxu0 0.0
          %6456 = vmatpush1.msra.mxu0 0.0
          %6457 = vmatprep.subr.mxu0 0.0
          %6458 = vmatpush1.msra.mxu0 0.0
          %6459 = vmatprep.subr.mxu0 0.0
          %6460 = vmatpush1.msra.mxu0 0.0
          %6461 = vmatprep.subr.mxu0 0.0
          %6462 = vmatpush1.msra.mxu0 0.0
          %6463 = vmatprep.mubr.f32.mxu0 0.0
          %6464 = vmatmul.mubr.f32.gmra.mrb[0].mxu0 %v6397
          %v6465 = vpop.f32.mrb[0].mxu0
          %v6466 = vadd.f32 0.0, %v6465
          %v6467 = vpop.f32.mrb[0].mxu0
          %6468 = vdwg.mxu0
          %6469 = vrot.lane.b32.xlu0 %v5972, 104
          %v6470 = vpop.permute.xlu0 %6469
          %6471 = vrot.lane.b32.xlu0 %v5972, 72
          %v6472 = vpop.permute.xlu0 %6471
          %v6473 = vsel %vm870, %v6470, 0
          %v6475 = vsel %vm870, %v6472, 0
          %6477 = vmatprep.subr.mxu0 0.0
          %6478 = vmatpush1.xpose.msra.mxu0 %v6475
          %6479 = vmatprep.subr.mxu0 0.0
          %6480 = vmatpush1.xpose.msra.mxu0 0.0
          %6481 = vmatprep.subr.mxu0 0.0
          %6482 = vmatpush1.xpose.msra.mxu0 0.0
          %6483 = vmatprep.subr.mxu0 0.0
          %6484 = vmatpush1.xpose.msra.mxu0 0.0
          %6485 = vmatprep.subr.mxu0 0.0
          %6486 = vmatpush1.xpose.msra.mxu0 0.0
          %6487 = vmatprep.subr.mxu0 0.0
          %6488 = vmatpush1.xpose.msra.mxu0 0.0
          %6489 = vmatprep.subr.mxu0 0.0
          %6490 = vmatpush1.xpose.msra.mxu0 0.0
          %6491 = vmatprep.subr.mxu0 0.0
          %6492 = vmatpush1.xpose.msra.mxu0 0.0
          %6493 = vmatprep.subr.mxu0 0.0
          %6494 = vmatpush1.xpose.msra.mxu0 0.0
          %6495 = vmatprep.subr.mxu0 0.0
          %6496 = vmatpush1.xpose.msra.mxu0 0.0
          %6497 = vmatprep.subr.mxu0 0.0
          %6498 = vmatpush1.xpose.msra.mxu0 0.0
          %6499 = vmatprep.subr.mxu0 0.0
          %6500 = vmatpush1.xpose.msra.mxu0 0.0
          %6501 = vmatprep.subr.mxu0 0.0
          %6502 = vmatpush1.xpose.msra.mxu0 0.0
          %6503 = vmatprep.subr.mxu0 0.0
          %6504 = vmatpush1.xpose.msra.mxu0 0.0
          %6505 = vmatprep.subr.mxu0 0.0
          %6506 = vmatpush1.xpose.msra.mxu0 0.0
          %6507 = vmatprep.subr.mxu0 0.0
          %6508 = vmatpush1.xpose.msra.mxu0 0.0
          %6509 = vmatprep.subr.mxu0 0.0
          %6510 = vmatpush1.xpose.msra.mxu0 0.0
          %6511 = vmatprep.subr.mxu0 0.0
          %6512 = vmatpush1.xpose.msra.mxu0 0.0
          %6513 = vmatprep.subr.mxu0 0.0
          %6514 = vmatpush1.xpose.msra.mxu0 0.0
          %6515 = vmatprep.subr.mxu0 0.0
          %6516 = vmatpush1.xpose.msra.mxu0 0.0
          %6517 = vmatprep.subr.mxu0 0.0
          %6518 = vmatpush1.xpose.msra.mxu0 0.0
          %6519 = vmatprep.subr.mxu0 0.0
          %6520 = vmatpush1.xpose.msra.mxu0 0.0
          %6521 = vmatprep.subr.mxu0 0.0
          %6522 = vmatpush1.xpose.msra.mxu0 0.0
          %6523 = vmatprep.subr.mxu0 0.0
          %6524 = vmatpush1.xpose.msra.mxu0 0.0
          %6525 = vmatprep.subr.mxu0 0.0
          %6526 = vmatpush1.xpose.msra.mxu0 0.0
          %6527 = vmatprep.subr.mxu0 0.0
          %6528 = vmatpush1.xpose.msra.mxu0 0.0
          %6529 = vmatprep.subr.mxu0 0.0
          %6530 = vmatpush1.xpose.msra.mxu0 0.0
          %6531 = vmatprep.subr.mxu0 0.0
          %6532 = vmatpush1.xpose.msra.mxu0 0.0
          %6533 = vmatprep.subr.mxu0 0.0
          %6534 = vmatpush1.xpose.msra.mxu0 0.0
          %6535 = vmatprep.subr.mxu0 0.0
          %6536 = vmatpush1.xpose.msra.mxu0 0.0
          %6537 = vmatprep.subr.mxu0 0.0
          %6538 = vmatpush1.xpose.msra.mxu0 0.0
          %6539 = vmatprep.subr.mxu0 0.0
          %6540 = vmatpush1.xpose.msra.mxu0 0.0
          %6541 = vmatprep.mubr.f32.mxu0 0.0
          %6542 = vmatmul.mubr.f32.gmra.mrb[0].mxu0 %v6473
          %v6543 = vpop.f32.mrb[0].mxu0
          %v6544 = vadd.f32 0.0, %v6543
          %v6545 = vpop.f32.mrb[0].mxu0
          %6546 = vdwg.mxu0
          %v6547 = vsel %vm870, %v6544, -inf
          %6548 = vmax.xlane.f32.xlu0 %v6547
          %v6549 = vpop.xlane.xlu0 %6548
          %v6550 = vsub.f32 %v6544, %v6549
          %v6551 = vmul.f32 %v6550, 1.442695
          %v6552 = vpow.pop %v6551
          %v6553 = vsel %vm870, %v6552, 0.0
          %6554 = vadd.xlane.f32.xlu0 %v6553
          %v6555 = vpop.xlane.xlu0 %6554
          %v6556 = vrcp.pop %v6555
          %v6557 = vmul.f32 %v6552, %v6556
          %6558 = vrot.lane.b32.xlu0 %v5972, 40
          %v6559 = vpop.permute.xlu0 %6558
          %v6562 = vsel %vm870, %v6557, 0
          %6564 = vmatprep.subr.mxu0 0.0
          %6565 = vmatpush1.msra.mxu0 %v6559
          %6566 = vmatprep.subr.mxu0 0.0
          %6567 = vmatpush1.msra.mxu0 0.0
          %6568 = vmatprep.subr.mxu0 0.0
          %6569 = vmatpush1.msra.mxu0 0.0
          %6570 = vmatprep.subr.mxu0 0.0
          %6571 = vmatpush1.msra.mxu0 0.0
          %6572 = vmatprep.subr.mxu0 0.0
          %6573 = vmatpush1.msra.mxu0 0.0
          %6574 = vmatprep.subr.mxu0 0.0
          %6575 = vmatpush1.msra.mxu0 0.0
          %6576 = vmatprep.subr.mxu0 0.0
          %6577 = vmatpush1.msra.mxu0 0.0
          %6578 = vmatprep.subr.mxu0 0.0
          %6579 = vmatpush1.msra.mxu0 0.0
          %6580 = vmatprep.subr.mxu0 0.0
          %6581 = vmatpush1.msra.mxu0 0.0
          %6582 = vmatprep.subr.mxu0 0.0
          %6583 = vmatpush1.msra.mxu0 0.0
          %6584 = vmatprep.subr.mxu0 0.0
          %6585 = vmatpush1.msra.mxu0 0.0
          %6586 = vmatprep.subr.mxu0 0.0
          %6587 = vmatpush1.msra.mxu0 0.0
          %6588 = vmatprep.subr.mxu0 0.0
          %6589 = vmatpush1.msra.mxu0 0.0
          %6590 = vmatprep.subr.mxu0 0.0
          %6591 = vmatpush1.msra.mxu0 0.0
          %6592 = vmatprep.subr.mxu0 0.0
          %6593 = vmatpush1.msra.mxu0 0.0
          %6594 = vmatprep.subr.mxu0 0.0
          %6595 = vmatpush1.msra.mxu0 0.0
          %6596 = vmatprep.subr.mxu0 0.0
          %6597 = vmatpush1.msra.mxu0 0.0
          %6598 = vmatprep.subr.mxu0 0.0
          %6599 = vmatpush1.msra.mxu0 0.0
          %6600 = vmatprep.subr.mxu0 0.0
          %6601 = vmatpush1.msra.mxu0 0.0
          %6602 = vmatprep.subr.mxu0 0.0
          %6603 = vmatpush1.msra.mxu0 0.0
          %6604 = vmatprep.subr.mxu0 0.0
          %6605 = vmatpush1.msra.mxu0 0.0
          %6606 = vmatprep.subr.mxu0 0.0
          %6607 = vmatpush1.msra.mxu0 0.0
          %6608 = vmatprep.subr.mxu0 0.0
          %6609 = vmatpush1.msra.mxu0 0.0
          %6610 = vmatprep.subr.mxu0 0.0
          %6611 = vmatpush1.msra.mxu0 0.0
          %6612 = vmatprep.subr.mxu0 0.0
          %6613 = vmatpush1.msra.mxu0 0.0
          %6614 = vmatprep.subr.mxu0 0.0
          %6615 = vmatpush1.msra.mxu0 0.0
          %6616 = vmatprep.subr.mxu0 0.0
          %6617 = vmatpush1.msra.mxu0 0.0
          %6618 = vmatprep.subr.mxu0 0.0
          %6619 = vmatpush1.msra.mxu0 0.0
          %6620 = vmatprep.subr.mxu0 0.0
          %6621 = vmatpush1.msra.mxu0 0.0
          %6622 = vmatprep.subr.mxu0 0.0
          %6623 = vmatpush1.msra.mxu0 0.0
          %6624 = vmatprep.subr.mxu0 0.0
          %6625 = vmatpush1.msra.mxu0 0.0
          %6626 = vmatprep.subr.mxu0 0.0
          %6627 = vmatpush1.msra.mxu0 0.0
          %6628 = vmatprep.mubr.f32.mxu0 0.0
          %6629 = vmatmul.mubr.f32.gmra.mrb[0].mxu0 %v6562
          %v6630 = vpop.f32.mrb[0].mxu0
          %v6631 = vadd.f32 0.0, %v6630
          %v6632 = vpop.f32.mrb[0].mxu0
          %6633 = vdwg.mxu0
          %6635 = vrot.lane.b32.xlu0 %v6301, 8
          %v6636 = vpop.permute.xlu0 %6635
          %6639 = vrot.lane.b32.xlu0 %v6466, 16
          %v6640 = vpop.permute.xlu0 %6639
          %6643 = vrot.lane.b32.xlu0 %v6631, 24
          %v6644 = vpop.permute.xlu0 %6643
          %v6646 = vsel %vm870, %v6136, %v6636
          %v6647 = vsel %vm1540, %v6646, %v6640
          %v6648 = vsel %vm1542, %v6647, %v6644
          %s6649 = scalar_lea.vmem [#allocation8], %s5888
          %v6650 = vld [vmem:[%s6649] sm:$0xff]
          %v6651 = vld [vmem:[%s6649 + $0x8] sm:$0xff]
          %v6652 = vld [vmem:[%s6649 + $0x10] sm:$0xff]
          %v6653 = vld [vmem:[%s6649 + $0x18] sm:$0xff]
          %s6654 = scalar_lea.vmem %s6, %s5884
          %v6655 = vld [vmem:[%s6654] sm:$0x1]
          %v6657 = vlaneseq
          %v6658 = vshrl.u32 %v6657, 7
          %v6659 = vsub.s32 0, %v6658
          %v6660 = vrot.slane %v6655, %v6659
          %v6663 = vsel %vm594, %v6648, 0
          %6665 = vmatprep.subr.mxu0 0.0
          %6666 = vmatpush1.msra.mxu0 %v6650
          %6667 = vmatprep.subr.mxu0 0.0
          %6668 = vmatpush1.msra.mxu0 %v6651
          %6669 = vmatprep.subr.mxu0 0.0
          %6670 = vmatpush1.msra.mxu0 %v6652
          %6671 = vmatprep.subr.mxu0 0.0
          %6672 = vmatpush1.msra.mxu0 %v6653
          %6673 = vmatprep.subr.mxu0 0.0
          %6674 = vmatpush1.msra.mxu0 0.0
          %6675 = vmatprep.subr.mxu0 0.0
          %6676 = vmatpush1.msra.mxu0 0.0
          %6677 = vmatprep.subr.mxu0 0.0
          %6678 = vmatpush1.msra.mxu0 0.0
          %6679 = vmatprep.subr.mxu0 0.0
          %6680 = vmatpush1.msra.mxu0 0.0
          %6681 = vmatprep.subr.mxu0 0.0
          %6682 = vmatpush1.msra.mxu0 0.0
          %6683 = vmatprep.subr.mxu0 0.0
          %6684 = vmatpush1.msra.mxu0 0.0
          %6685 = vmatprep.subr.mxu0 0.0
          %6686 = vmatpush1.msra.mxu0 0.0
          %6687 = vmatprep.subr.mxu0 0.0
          %6688 = vmatpush1.msra.mxu0 0.0
          %6689 = vmatprep.subr.mxu0 0.0
          %6690 = vmatpush1.msra.mxu0 0.0
          %6691 = vmatprep.subr.mxu0 0.0
          %6692 = vmatpush1.msra.mxu0 0.0
          %6693 = vmatprep.subr.mxu0 0.0
          %6694 = vmatpush1.msra.mxu0 0.0
          %6695 = vmatprep.subr.mxu0 0.0
          %6696 = vmatpush1.msra.mxu0 0.0
          %6697 = vmatprep.subr.mxu0 0.0
          %6698 = vmatpush1.msra.mxu0 0.0
          %6699 = vmatprep.subr.mxu0 0.0
          %6700 = vmatpush1.msra.mxu0 0.0
          %6701 = vmatprep.subr.mxu0 0.0
          %6702 = vmatpush1.msra.mxu0 0.0
          %6703 = vmatprep.subr.mxu0 0.0
          %6704 = vmatpush1.msra.mxu0 0.0
          %6705 = vmatprep.subr.mxu0 0.0
          %6706 = vmatpush1.msra.mxu0 0.0
          %6707 = vmatprep.subr.mxu0 0.0
          %6708 = vmatpush1.msra.mxu0 0.0
          %6709 = vmatprep.subr.mxu0 0.0
          %6710 = vmatpush1.msra.mxu0 0.0
          %6711 = vmatprep.subr.mxu0 0.0
          %6712 = vmatpush1.msra.mxu0 0.0
          %6713 = vmatprep.subr.mxu0 0.0
          %6714 = vmatpush1.msra.mxu0 0.0
          %6715 = vmatprep.subr.mxu0 0.0
          %6716 = vmatpush1.msra.mxu0 0.0
          %6717 = vmatprep.subr.mxu0 0.0
          %6718 = vmatpush1.msra.mxu0 0.0
          %6719 = vmatprep.subr.mxu0 0.0
          %6720 = vmatpush1.msra.mxu0 0.0
          %6721 = vmatprep.subr.mxu0 0.0
          %6722 = vmatpush1.msra.mxu0 0.0
          %6723 = vmatprep.subr.mxu0 0.0
          %6724 = vmatpush1.msra.mxu0 0.0
          %6725 = vmatprep.subr.mxu0 0.0
          %6726 = vmatpush1.msra.mxu0 0.0
          %6727 = vmatprep.subr.mxu0 0.0
          %6728 = vmatpush1.msra.mxu0 0.0
          %6729 = vmatprep.mubr.f32.mxu0 0.0
          %6730 = vmatmul.mubr.f32.gmra.mrb[0].mxu0 %v6663
          %v6731 = vpop.f32.mrb[0].mxu0
          %v6732 = vadd.f32 %v6660, %v6731
          %v6733 = vpop.f32.mrb[0].mxu0
          %6734 = vdwg.mxu0
          %v6735 = vadd.f32 %v6732, %v5883
          %v6736 = vsel %vm594, %v6735, 0.0
          %6737 = vadd.xlane.f32.xlu0 %v6736
          %v6738 = vpop.xlane.xlu0 %6737
          %v6739 = vmul.f32 %v6738, %v1632
          %v6740 = vmul.f32 %v6735, %v6735
          %v6741 = vsel %vm594, %v6740, 0.0
          %6742 = vadd.xlane.f32.xlu0 %v6741
          %v6743 = vpop.xlane.xlu0 %6742
          %v6744 = vmul.f32 %v6743, %v1632
          %v6745 = vmul.f32 %v6739, %v6739
          %v6746 = vsub.f32 %v6744, %v6745
          %v6747 = vsub.f32 %v6735, %v6739
          %v6748 = vadd.f32 %v6746, 1e-05
          %v6749 = vrsqrt.pop %v6748
          %v6750 = vmul.f32 %v6747, %v6749
          %s6751 = scalar_lea.vmem %s7, %s5886
          %v6752 = vld [vmem:[%s6751] sm:$0x1]
          %v6754 = vlaneseq
          %v6755 = vshrl.u32 %v6754, 7
          %v6756 = vsub.s32 0, %v6755
          %v6757 = vrot.slane %v6752, %v6756
          %v6759 = vmul.f32 %v6750, %v6757
          %s6760 = scalar_lea.vmem %s8, %s5886
          %v6761 = vld [vmem:[%s6760] sm:$0x1]
          %v6763 = vlaneseq
          %v6764 = vshrl.u32 %v6763, 7
          %v6765 = vsub.s32 0, %v6764
          %v6766 = vrot.slane %v6761, %v6765
          %v6768 = vadd.f32 %v6759, %v6766
          %s6769 = smul.u32 %s5887, 32
          %s6770 = scalar_lea.vmem [#allocation10], %s6769
          %v6771 = vld [vmem:[%s6770] sm:$0xff]
          %v6772 = vld [vmem:[%s6770 + $0x8] sm:$0xff]
          %v6773 = vld [vmem:[%s6770 + $0x10] sm:$0xff]
          %v6774 = vld [vmem:[%s6770 + $0x18] sm:$0xff]
          %s6775 = scalar_lea.vmem %s10, %s5887
          %v6776 = vld [vmem:[%s6775] sm:$0x1]
          %v6778 = vlaneseq
          %v6779 = vshrl.u32 %v6778, 7
          %v6780 = vsub.s32 0, %v6779
          %v6781 = vrot.slane %v6776, %v6780
          %v6784 = vsel %vm594, %v6768, 0
          %6786 = vmatprep.subr.mxu0 0.0
          %6787 = vmatpush1.msra.mxu0 %v6771
          %6788 = vmatprep.subr.mxu0 0.0
          %6789 = vmatpush1.msra.mxu0 %v6772
          %6790 = vmatprep.subr.mxu0 0.0
          %6791 = vmatpush1.msra.mxu0 %v6773
          %6792 = vmatprep.subr.mxu0 0.0
          %6793 = vmatpush1.msra.mxu0 %v6774
          %6794 = vmatprep.subr.mxu0 0.0
          %6795 = vmatpush1.msra.mxu0 0.0
          %6796 = vmatprep.subr.mxu0 0.0
          %6797 = vmatpush1.msra.mxu0 0.0
          %6798 = vmatprep.subr.mxu0 0.0
          %6799 = vmatpush1.msra.mxu0 0.0
          %6800 = vmatprep.subr.mxu0 0.0
          %6801 = vmatpush1.msra.mxu0 0.0
          %6802 = vmatprep.subr.mxu0 0.0
          %6803 = vmatpush1.msra.mxu0 0.0
          %6804 = vmatprep.subr.mxu0 0.0
          %6805 = vmatpush1.msra.mxu0 0.0
          %6806 = vmatprep.subr.mxu0 0.0
          %6807 = vmatpush1.msra.mxu0 0.0
          %6808 = vmatprep.subr.mxu0 0.0
          %6809 = vmatpush1.msra.mxu0 0.0
          %6810 = vmatprep.subr.mxu0 0.0
          %6811 = vmatpush1.msra.mxu0 0.0
          %6812 = vmatprep.subr.mxu0 0.0
          %6813 = vmatpush1.msra.mxu0 0.0
          %6814 = vmatprep.subr.mxu0 0.0
          %6815 = vmatpush1.msra.mxu0 0.0
          %6816 = vmatprep.subr.mxu0 0.0
          %6817 = vmatpush1.msra.mxu0 0.0
          %6818 = vmatprep.subr.mxu0 0.0
          %6819 = vmatpush1.msra.mxu0 0.0
          %6820 = vmatprep.subr.mxu0 0.0
          %6821 = vmatpush1.msra.mxu0 0.0
          %6822 = vmatprep.subr.mxu0 0.0
          %6823 = vmatpush1.msra.mxu0 0.0
          %6824 = vmatprep.subr.mxu0 0.0
          %6825 = vmatpush1.msra.mxu0 0.0
          %6826 = vmatprep.subr.mxu0 0.0
          %6827 = vmatpush1.msra.mxu0 0.0
          %6828 = vmatprep.subr.mxu0 0.0
          %6829 = vmatpush1.msra.mxu0 0.0
          %6830 = vmatprep.subr.mxu0 0.0
          %6831 = vmatpush1.msra.mxu0 0.0
          %6832 = vmatprep.subr.mxu0 0.0
          %6833 = vmatpush1.msra.mxu0 0.0
          %6834 = vmatprep.subr.mxu0 0.0
          %6835 = vmatpush1.msra.mxu0 0.0
          %6836 = vmatprep.subr.mxu0 0.0
          %6837 = vmatpush1.msra.mxu0 0.0
          %6838 = vmatprep.subr.mxu0 0.0
          %6839 = vmatpush1.msra.mxu0 0.0
          %6840 = vmatprep.subr.mxu0 0.0
          %6841 = vmatpush1.msra.mxu0 0.0
          %6842 = vmatprep.subr.mxu0 0.0
          %6843 = vmatpush1.msra.mxu0 0.0
          %6844 = vmatprep.subr.mxu0 0.0
          %6845 = vmatpush1.msra.mxu0 0.0
          %6846 = vmatprep.subr.mxu0 0.0
          %6847 = vmatpush1.msra.mxu0 0.0
          %6848 = vmatprep.subr.mxu0 0.0
          %6849 = vmatpush1.msra.mxu0 0.0
          %6850 = vmatprep.mubr.f32.mxu0 0.0
          %6851 = vmatmul.mubr.f32.gmra.mrb[0].mxu0 %v6784
          %v6852 = vpop.f32.mrb[0].mxu0
          %v6853 = vadd.f32 %v6781, %v6852
          %v6854 = vpop.f32.mrb[0].mxu0
          %6855 = vdwg.mxu0
          %v6856 = vmax.f32 %v6853, 0.0
          %s6857 = smul.u32 %s5887, 64
          %s6858 = scalar_lea.vmem [#allocation11], %s6857
          %v6859 = vld [vmem:[%s6858] sm:$0xff]
          %v6860 = vld [vmem:[%s6858 + $0x8] sm:$0xff]
          %v6861 = vld [vmem:[%s6858 + $0x10] sm:$0xff]
          %v6862 = vld [vmem:[%s6858 + $0x18] sm:$0xff]
          %v6863 = vld [vmem:[%s6858 + $0x20] sm:$0xff]
          %v6864 = vld [vmem:[%s6858 + $0x28] sm:$0xff]
          %v6865 = vld [vmem:[%s6858 + $0x30] sm:$0xff]
          %v6866 = vld [vmem:[%s6858 + $0x38] sm:$0xff]
          %s6867 = scalar_lea.vmem %s12, %s5887
          %v6868 = vld [vmem:[%s6867] sm:$0x1]
          %v6870 = vlaneseq
          %v6871 = vshrl.u32 %v6870, 7
          %v6872 = vsub.s32 0, %v6871
          %v6873 = vrot.slane %v6868, %v6872
          %v6876 = vsel %vm2661, %v6856, 0
          %6878 = vmatprep.subr.mxu0 0.0
          %6879 = vmatpush1.msra.mxu0 %v6859
          %6880 = vmatprep.subr.mxu0 0.0
          %6881 = vmatpush1.msra.mxu0 %v6860
          %6882 = vmatprep.subr.mxu0 0.0
          %6883 = vmatpush1.msra.mxu0 %v6861
          %6884 = vmatprep.subr.mxu0 0.0
          %6885 = vmatpush1.msra.mxu0 %v6862
          %6886 = vmatprep.subr.mxu0 0.0
          %6887 = vmatpush1.msra.mxu0 %v6863
          %6888 = vmatprep.subr.mxu0 0.0
          %6889 = vmatpush1.msra.mxu0 %v6864
          %6890 = vmatprep.subr.mxu0 0.0
          %6891 = vmatpush1.msra.mxu0 %v6865
          %6892 = vmatprep.subr.mxu0 0.0
          %6893 = vmatpush1.msra.mxu0 %v6866
          %6894 = vmatprep.subr.mxu0 0.0
          %6895 = vmatpush1.msra.mxu0 0.0
          %6896 = vmatprep.subr.mxu0 0.0
          %6897 = vmatpush1.msra.mxu0 0.0
          %6898 = vmatprep.subr.mxu0 0.0
          %6899 = vmatpush1.msra.mxu0 0.0
          %6900 = vmatprep.subr.mxu0 0.0
          %6901 = vmatpush1.msra.mxu0 0.0
          %6902 = vmatprep.subr.mxu0 0.0
          %6903 = vmatpush1.msra.mxu0 0.0
          %6904 = vmatprep.subr.mxu0 0.0
          %6905 = vmatpush1.msra.mxu0 0.0
          %6906 = vmatprep.subr.mxu0 0.0
          %6907 = vmatpush1.msra.mxu0 0.0
          %6908 = vmatprep.subr.mxu0 0.0
          %6909 = vmatpush1.msra.mxu0 0.0
          %6910 = vmatprep.subr.mxu0 0.0
          %6911 = vmatpush1.msra.mxu0 0.0
          %6912 = vmatprep.subr.mxu0 0.0
          %6913 = vmatpush1.msra.mxu0 0.0
          %6914 = vmatprep.subr.mxu0 0.0
          %6915 = vmatpush1.msra.mxu0 0.0
          %6916 = vmatprep.subr.mxu0 0.0
          %6917 = vmatpush1.msra.mxu0 0.0
          %6918 = vmatprep.subr.mxu0 0.0
          %6919 = vmatpush1.msra.mxu0 0.0
          %6920 = vmatprep.subr.mxu0 0.0
          %6921 = vmatpush1.msra.mxu0 0.0
          %6922 = vmatprep.subr.mxu0 0.0
          %6923 = vmatpush1.msra.mxu0 0.0
          %6924 = vmatprep.subr.mxu0 0.0
          %6925 = vmatpush1.msra.mxu0 0.0
          %6926 = vmatprep.subr.mxu0 0.0
          %6927 = vmatpush1.msra.mxu0 0.0
          %6928 = vmatprep.subr.mxu0 0.0
          %6929 = vmatpush1.msra.mxu0 0.0
          %6930 = vmatprep.subr.mxu0 0.0
          %6931 = vmatpush1.msra.mxu0 0.0
          %6932 = vmatprep.subr.mxu0 0.0
          %6933 = vmatpush1.msra.mxu0 0.0
          %6934 = vmatprep.subr.mxu0 0.0
          %6935 = vmatpush1.msra.mxu0 0.0
          %6936 = vmatprep.subr.mxu0 0.0
          %6937 = vmatpush1.msra.mxu0 0.0
          %6938 = vmatprep.subr.mxu0 0.0
          %6939 = vmatpush1.msra.mxu0 0.0
          %6940 = vmatprep.subr.mxu0 0.0
          %6941 = vmatpush1.msra.mxu0 0.0
          %6942 = vmatprep.mubr.f32.mxu0 0.0
          %6943 = vmatmul.mubr.f32.gmra.mrb[0].mxu0 %v6876
          %v6944 = vpop.f32.mrb[0].mxu0
          %v6945 = vadd.f32 %v6873, %v6944
          %v6946 = vpop.f32.mrb[0].mxu0
          %6947 = vdwg.mxu0
          %s6948 = sadd.s32 %s5885, 7
          %v6949 = vadd.f32 %v6945, %v6768
          %v6950 = vsel %vm594, %v6949, 0.0
          %6951 = vadd.xlane.f32.xlu0 %v6950
          %v6952 = vpop.xlane.xlu0 %6951
          %v6953 = vmul.f32 %v6952, %v1632
          %v6954 = vmul.f32 %v6949, %v6949
          %v6955 = vsel %vm594, %v6954, 0.0
          %6956 = vadd.xlane.f32.xlu0 %v6955
          %v6957 = vpop.xlane.xlu0 %6956
          %v6958 = vmul.f32 %v6957, %v1632
          %v6959 = vmul.f32 %v6953, %v6953
          %v6960 = vsub.f32 %v6958, %v6959
          %v6961 = vsub.f32 %v6949, %v6953
          %v6962 = vadd.f32 %v6960, 1e-05
          %v6963 = vrsqrt.pop %v6962
          %v6964 = vmul.f32 %v6961, %v6963
          %s6965 = scalar_lea.vmem %s7, %s6948
          %v6966 = vld [vmem:[%s6965] sm:$0x1]
          %v6968 = vlaneseq
          %v6969 = vshrl.u32 %v6968, 7
          %v6970 = vsub.s32 0, %v6969
          %v6971 = vrot.slane %v6966, %v6970
          %v6973 = vmul.f32 %v6964, %v6971
          %s6974 = scalar_lea.vmem %s8, %s6948
          %v6975 = vld [vmem:[%s6974] sm:$0x1]
          %v6977 = vlaneseq
          %v6978 = vshrl.u32 %v6977, 7
          %v6979 = vsub.s32 0, %v6978
          %v6980 = vrot.slane %v6975, %v6979
          %v6982 = vadd.f32 %v6973, %v6980
        $region115: #{perceiver_forward.1} parent=71 // loop_footer
          %s5882 = sadd.s32 1, %s5878
        $region116: #{perceiver_forward.1} parent=71 // loop_footer_branch
          %5877 = sbr.rel target = $region112
        $region117: #{perceiver_forward.1} parent=71 // loop_exit
          _
        %6983 = vst.msk [vmem:[%s550] sm:$0xff] %vm594, %v5883
        %s6984 = sand.u32 %s326, 1
        %s6985 = scalar_lea.sflag [#allocation4], %s6984
        %s6986 = sand.u32 %s326, 1
        %s6987 = smul.addr %s6986, 8
        %s6988 = scalar_lea.vmem [#allocation13], %s6987
        // Predicated region
        $region118: #{perceiver_forward.1} parent=71 // pred_check
          %p6989 = pneg %p336
        $region119: #{perceiver_forward.1} parent=71 // pred_check_branch
          %6991 = sbr.rel (%p6989) target = $region121
        $region120: #{perceiver_forward.1} parent=71 // pred_region
          %s6993 = ssub.s32 128, 128
          %6994 = vsyncadd %s6985, %s6993
          %s6995 = smul.addr %s35, 128
          %s6996 = scalar_lea.hbm %s13, %s6995
          %s6998 = sshll.u32 %s6988, 4
          %s6999 = int_to_ptr.vmem [resolvable:$true] %s6998
          %7001 = dma.vmem_to_hbm [thread:$0]  %s6999, 128, %s6996, %s6985
        $region121: #{perceiver_forward.1} parent=71 // pred_fallthru
          _
      $region72: #{perceiver_forward.1} parent=5 // pred_fallthru
        _
      %p7002 = scmp.le.s32.totalorder 2, %s30
      // Predicated region
      $region122: #{perceiver_forward.1} parent=5 // pred_check
        %p7003 = pneg %p7002
      $region123: #{perceiver_forward.1} parent=5 // pred_check_branch
        %7005 = sbr.rel (%p7003) target = $region125
      $region124: #{perceiver_forward.1} parent=5 // pred_region
        %s7006 = ssub.s32 %s30, 2
        // Predicated region
        $region126: #{perceiver_forward.1} parent=124 // pred_check
          %p7007 = pneg %p342
        $region127: #{perceiver_forward.1} parent=124 // pred_check_branch
          %7009 = sbr.rel (%p7007) target = $region129
        $region128: #{perceiver_forward.1} parent=124 // pred_region
          %s7010 = sand.u32 %s327, 1
          %s7011 = scalar_lea.sflag [#allocation4], %s7010
          %s7012 = sand.u32 %s327, 1
          %s7013 = smul.addr %s7012, 8
          %s7014 = scalar_lea.vmem [#allocation13], %s7013
          %7015 = dma.done %s7011, 128
        $region129: #{perceiver_forward.1} parent=124 // pred_fallthru
          _
      $region125: #{perceiver_forward.1} parent=5 // pred_fallthru
        _
    $region6: #{perceiver_forward.1} parent=1 // loop_footer
      %s34 = sadd.s32 1, %s30
    $region7: #{perceiver_forward.1} parent=1 // loop_footer_branch
      %29 = sbr.rel target = $region3
    $region8: #{perceiver_forward.1} parent=1 // loop_exit
      _
    %7016 = vsyncpa [#allocation3], 1
    %s7017 = scalar_lea.sflag [#allocation3], 1
    %7018 = vsyncpa %s7017, 1
    %7019 = vsyncpa [#allocation6], 1
    %s7020 = scalar_lea.sflag [#allocation6], 1
    %7021 = vsyncpa %s7020, 1
    %7022 = vsyncpa [#allocation9], 1
    %7023 = vsyncpa [#allocation12], 1
    %7024 = vsyncpa [#allocation4], 1
    %s7025 = scalar_lea.sflag [#allocation4], 1
    %7026 = vsyncpa %s7025, 1

</llo_original>
